<compile_context>
chip_gen: v7x
topology: tpu7x:2x2x1
jax: 0.10.0
libtpu: 0.0.40
codegen_flags: <defaults>
</compile_context>

<pallas_src>
import jax
import jax.numpy as jnp
from jax import lax
from jax.experimental import pallas as pl
from jax.experimental.pallas import tpu as pltpu

# ---- module constants (faithful to the PyTorch source; vocab kept small) ----
SEQ_LEN = 128
NUM_HEADS = 6
EMB_DIM = 156
NUM_LAYERS = 6
HEAD_DIM = EMB_DIM // NUM_HEADS        # 26
HPAD = 32                              # padded head width (lane-aligned)
GW = 256                               # padded Q/K/V group width (vreg-aligned)
OHW = NUM_HEADS * HPAD                 # 192: concatenated padded head outputs
MLP_DIM = EMB_DIM * 4                  # 624
VOCAB = 64
VOCAB_PAD = 128                        # lane-dense padded LM-head width
LN_EPS = 1e-5
BATCH = 2
NEG_BIAS = -1e30                       # finite "masked" additive bias (exp -> 0)


def _layernorm(x, g, b):
    # PyTorch nn.LayerNorm semantics (biased variance, eps inside sqrt, affine),
    # computed in one pass: var = E[x^2] - mean^2.  f32 math.
    mean = jnp.mean(x, axis=-1, keepdims=True)
    msq = jnp.mean(x * x, axis=-1, keepdims=True)
    var = msq - mean * mean
    return (x - mean) * lax.rsqrt(var + LN_EPS) * g + b


# ------------------------------ fused GPT kernel ---------------------------------
def gpt_kernel(x_ref, bias_ref,
               g1_ref, be1_ref, wqkv_ref, bqkv_ref, wo_ref, bo_ref,
               g2_ref, be2_ref, w1_ref, b1_ref, w2_ref, b2_ref,
               gf_ref, bf_ref, wh_ref, bh_ref,
               o_ref, x_scr, qkv_scr, kt_scr, heads_scr):
    l = pl.program_id(1)
    last = pl.num_programs(1) - 1

    # Load this batch block's initial activations into the resident scratch once.
    @pl.when(l == 0)
    def _():
        x_scr[...] = x_ref[...]

    x = x_scr[...]                                   # (T, E) f32
    bias = bias_ref[...]                             # (T, T) additive causal bias

    # ---- x = x + MultiHeadAttention(LayerNorm1(x)) ----
    xn1 = _layernorm(x, g1_ref[0], be1_ref[0])
    # Fused QKV for all heads; softmax scale is pre-folded into the Q columns.
    qkv_scr[...] = jnp.dot(xn1.astype(jnp.bfloat16), wqkv_ref[0],
                           preferred_element_type=jnp.float32) + bqkv_ref[0]
    # One tile-aligned transpose of the whole K group (replaces 6 per-head transposes).
    kt_scr[...] = jnp.transpose(qkv_scr[:, GW:2 * GW])

    for h in range(NUM_HEADS):                       # static unroll (H = 6)
        qo = h * HPAD                                # 32-aligned lane offset
        q = qkv_scr[:, qo:qo + HPAD]                 # (T, 32)
        kt = kt_scr[qo:qo + HPAD, :]                 # (32, T)
        v = qkv_scr[:, 2 * GW + qo:2 * GW + qo + HPAD]   # (T, 32)

        s = jnp.dot(q.astype(jnp.bfloat16), kt.astype(jnp.bfloat16),
                    preferred_element_type=jnp.float32) + bias       # (T, T)
        s = s - jnp.max(s, axis=-1, keepdims=True)
        p = jnp.exp(s)
        r = pl.reciprocal(jnp.sum(p, axis=-1, keepdims=True), approx=True)
        o_h = jnp.dot(p.astype(jnp.bfloat16), v.astype(jnp.bfloat16),
                      preferred_element_type=jnp.float32)            # (T, 32)
        # Normalize AFTER the PV matmul (scales (T,32) not (T,T)); store to scratch
        # immediately to bound live ranges.
        heads_scr[:, qo:qo + HPAD] = o_h * r

    # Single fused output projection for all heads.
    att = jnp.dot(heads_scr[...].astype(jnp.bfloat16), wo_ref[0],
                  preferred_element_type=jnp.float32) + bo_ref[0]    # (T, E)
    x1 = x + att

    # ---- x = x + MLP(LayerNorm2(x)) ----
    xn2 = _layernorm(x1, g2_ref[0], be2_ref[0])
    hid = jnp.maximum(
        jnp.dot(xn2.astype(jnp.bfloat16), w1_ref[0],
                preferred_element_type=jnp.float32) + b1_ref[0], 0.0)
    mlp = jnp.dot(hid.astype(jnp.bfloat16), w2_ref[0],
                  preferred_element_type=jnp.float32) + b2_ref[0]
    x2 = x1 + mlp
    x_scr[...] = x2

    # ---- final LayerNorm + LM head, fused on the last layer ----
    @pl.when(l == last)
    def _():
        xn = _layernorm(x2, gf_ref[...], bf_ref[...])
        o_ref[...] = jnp.dot(xn.astype(jnp.bfloat16), wh_ref[...],
                             preferred_element_type=jnp.float32) + bh_ref[...]


# --------------------------------- wrapper ----------------------------------------
def gpt_pallas_call(stacked, head, x_flat, causal_bias):
    def layer_spec(a):
        return pl.BlockSpec((1,) + a.shape[1:],
                            lambda b, l, _nd=a.ndim: (l,) + (0,) * (_nd - 1))

    def const_spec(a):
        return pl.BlockSpec(a.shape, lambda b, l, _nd=a.ndim: (0,) * _nd)

    x_spec = pl.BlockSpec((SEQ_LEN, EMB_DIM), lambda b, l: (b, 0))
    out_spec = pl.BlockSpec((SEQ_LEN, VOCAB_PAD), lambda b, l: (b, 0))

    in_specs = [x_spec, const_spec(causal_bias)]
    in_specs += [layer_spec(a) for a in stacked]
    in_specs += [const_spec(a) for a in head]

    grid_spec = pltpu.PrefetchScalarGridSpec(
        num_scalar_prefetch=0,
        grid=(BATCH, NUM_LAYERS),
        in_specs=in_specs,
        out_specs=out_spec,
        scratch_shapes=[
            pltpu.VMEM((SEQ_LEN, EMB_DIM), jnp.float32),   # resident activations
            pltpu.VMEM((SEQ_LEN, 3 * GW), jnp.float32),    # fused QKV (padded groups)
            pltpu.VMEM((GW, SEQ_LEN), jnp.float32),        # transposed K group
            pltpu.VMEM((SEQ_LEN, OHW), jnp.float32),       # per-head outputs (T, H*32)
        ],
    )
    return pl.pallas_call(
        gpt_kernel,
        out_shape=jax.ShapeDtypeStruct((BATCH * SEQ_LEN, VOCAB_PAD), jnp.float32),
        grid_spec=grid_spec,
        compiler_params=pltpu.CompilerParams(
            dimension_semantics=("parallel", "arbitrary")),  # batch parallel, layer seq
    )(x_flat, causal_bias, *stacked, *head)


# ------------------------------ parameter init ------------------------------------
def init_params(key):
    def nrm(k, shape, s=0.02):
        return (s * jax.random.normal(k, shape)).astype(jnp.float32)

    k_tok, k_pos, k_layers, k_head = jax.random.split(key, 4)
    tok_emb = nrm(k_tok, (VOCAB, EMB_DIM))
    pos_emb = nrm(k_pos, (SEQ_LEN, EMB_DIM))

    lk = jax.random.split(k_layers, 12)
    scale = HEAD_DIM ** -0.5           # k.shape[-1] ** -0.5 in the PyTorch source

    def pad_group_w(w):
        # (L, E, H, D) -> (L, E, GW): pad head dim 26->32, flatten heads, pad group to 256.
        w = jnp.pad(w, ((0, 0), (0, 0), (0, 0), (0, HPAD - HEAD_DIM)))
        w = w.reshape(NUM_LAYERS, EMB_DIM, OHW)
        return jnp.pad(w, ((0, 0), (0, 0), (0, GW - OHW)))

    def pad_group_b(b):
        # (L, H, D) -> (L, 1, GW)
        b = jnp.pad(b, ((0, 0), (0, 0), (0, HPAD - HEAD_DIM)))
        b = b.reshape(NUM_LAYERS, 1, OHW)
        return jnp.pad(b, ((0, 0), (0, 0), (0, GW - OHW)))

    # Per-head QKV weights, regrouped as [all-Q | all-K | all-V]; softmax scale folded
    # into the Q weights / bias at init (review item 3).
    wq = nrm(lk[0], (NUM_LAYERS, EMB_DIM, NUM_HEADS, HEAD_DIM)) * scale
    wk = nrm(lk[1], (NUM_LAYERS, EMB_DIM, NUM_HEADS, HEAD_DIM))
    wv = nrm(lk[2], (NUM_LAYERS, EMB_DIM, NUM_HEADS, HEAD_DIM))
    bq = nrm(lk[3], (NUM_LAYERS, NUM_HEADS, HEAD_DIM)) * scale
    bk = nrm(lk[4], (NUM_LAYERS, NUM_HEADS, HEAD_DIM))
    bv = nrm(lk[5], (NUM_LAYERS, NUM_HEADS, HEAD_DIM))
    wqkv = jnp.concatenate([pad_group_w(wq), pad_group_w(wk), pad_group_w(wv)],
                           axis=-1).astype(jnp.bfloat16)          # (L, E, 3*GW)
    bqkv = jnp.concatenate([pad_group_b(bq), pad_group_b(bk), pad_group_b(bv)],
                           axis=-1)                               # (L, 1, 3*GW) f32

    # Output projection as one (H*32, E) matrix; rows for the padded head columns are 0.
    wo = nrm(lk[6], (NUM_LAYERS, NUM_HEADS, HEAD_DIM, EMB_DIM))
    wo = jnp.pad(wo, ((0, 0), (0, 0), (0, HPAD - HEAD_DIM), (0, 0)))
    wo = wo.reshape(NUM_LAYERS, OHW, EMB_DIM).astype(jnp.bfloat16)
    bo = nrm(lk[7], (NUM_LAYERS, 1, EMB_DIM))

    g1 = jnp.ones((NUM_LAYERS, 1, EMB_DIM), jnp.float32)
    be1 = jnp.zeros((NUM_LAYERS, 1, EMB_DIM), jnp.float32)
    g2 = jnp.ones((NUM_LAYERS, 1, EMB_DIM), jnp.float32)
    be2 = jnp.zeros((NUM_LAYERS, 1, EMB_DIM), jnp.float32)

    w1 = nrm(lk[8], (NUM_LAYERS, EMB_DIM, MLP_DIM)).astype(jnp.bfloat16)
    b1 = nrm(lk[9], (NUM_LAYERS, 1, MLP_DIM))
    w2 = nrm(lk[10], (NUM_LAYERS, MLP_DIM, EMB_DIM)).astype(jnp.bfloat16)
    b2 = nrm(lk[11], (NUM_LAYERS, 1, EMB_DIM))

    stacked = (g1, be1, wqkv, bqkv, wo, bo, g2, be2, w1, b1, w2, b2)

    hk = jax.random.split(k_head, 2)
    gf = jnp.ones((1, EMB_DIM), jnp.float32)
    bf_ = jnp.zeros((1, EMB_DIM), jnp.float32)
    # LM head zero-padded to a lane-dense 128-wide output; sliced back outside.
    w_head = jnp.zeros((EMB_DIM, VOCAB_PAD), jnp.float32)
    w_head = w_head.at[:, :VOCAB].set(nrm(hk[0], (EMB_DIM, VOCAB))).astype(jnp.bfloat16)
    b_head = jnp.zeros((1, VOCAB_PAD), jnp.float32)
    b_head = b_head.at[:, :VOCAB].set(nrm(hk[1], (1, VOCAB)))
    head = (gf, bf_, w_head, b_head)
    return tok_emb, pos_emb, stacked, head


# ---------------------------------- forward ---------------------------------------
def gpt_forward(token_ids, params):
    tok_emb, pos_emb, stacked, head = params
    B, T = token_ids.shape
    assert B == BATCH and T == SEQ_LEN, (B, T)
    # Token-embedding gather + positional add: plain-JAX glue (data-dependent gather).
    x = tok_emb[token_ids] + pos_emb[None, :T, :]
    x_flat = x.reshape(B * T, EMB_DIM).astype(jnp.float32)
    # Causal additive bias, built once outside the kernel (hoisted mask construction).
    row = jnp.arange(SEQ_LEN)[:, None]
    col = jnp.arange(SEQ_LEN)[None, :]
    causal_bias = jnp.where(row >= col, 0.0, NEG_BIAS).astype(jnp.float32)

    logits_pad = gpt_pallas_call(stacked, head, x_flat, causal_bias)
    return logits_pad.reshape(B, T, VOCAB_PAD)[:, :, :VOCAB]


if __name__ == "__main__":
    key = jax.random.PRNGKey(0)
    k_param, k_ids = jax.random.split(key)
    params = init_params(k_param)
    # T must equal SEQ_LEN (the PyTorch mask slice fixes it to seq_len=128).
    token_ids = jax.random.randint(k_ids, (BATCH, SEQ_LEN), 0, VOCAB, dtype=jnp.int32)

    logits = gpt_forward(token_ids, params)
    logits = jax.block_until_ready(logits)

    assert logits.shape == (BATCH, SEQ_LEN, VOCAB), logits.shape
    assert bool(jnp.all(jnp.isfinite(logits)))
    print("KERNEL_OK")
</pallas_src>

<mosaic_0001>
module attributes {stable_mosaic.version = 11 : i64} {
  func.func @gpt_kernel(%arg0: i32, %arg1: i32, %arg2: memref<128x156xf32, #tpu.memory_space<vmem>>, %arg3: memref<128x128xf32, #tpu.memory_space<vmem>>, %arg4: memref<1x1x156xf32, #tpu.memory_space<vmem>>, %arg5: memref<1x1x156xf32, #tpu.memory_space<vmem>>, %arg6: memref<1x156x768xbf16, #tpu.memory_space<vmem>>, %arg7: memref<1x1x768xf32, #tpu.memory_space<vmem>>, %arg8: memref<1x192x156xbf16, #tpu.memory_space<vmem>>, %arg9: memref<1x1x156xf32, #tpu.memory_space<vmem>>, %arg10: memref<1x1x156xf32, #tpu.memory_space<vmem>>, %arg11: memref<1x1x156xf32, #tpu.memory_space<vmem>>, %arg12: memref<1x156x624xbf16, #tpu.memory_space<vmem>>, %arg13: memref<1x1x624xf32, #tpu.memory_space<vmem>>, %arg14: memref<1x624x156xbf16, #tpu.memory_space<vmem>>, %arg15: memref<1x1x156xf32, #tpu.memory_space<vmem>>, %arg16: memref<1x156xf32, #tpu.memory_space<vmem>>, %arg17: memref<1x156xf32, #tpu.memory_space<vmem>>, %arg18: memref<156x128xbf16, #tpu.memory_space<vmem>>, %arg19: memref<1x128xf32, #tpu.memory_space<vmem>>, %arg20: memref<128x128xf32, #tpu.memory_space<vmem>>, %arg21: memref<128x156xf32, #tpu.memory_space<vmem>>, %arg22: memref<128x768xf32, #tpu.memory_space<vmem>>, %arg23: memref<256x128xf32, #tpu.memory_space<vmem>>, %arg24: memref<128x192xf32, #tpu.memory_space<vmem>>) attributes {dimension_semantics = [#tpu.dimension_semantics<parallel>, #tpu.dimension_semantics<arbitrary>], iteration_bounds = array<i64: 2, 6>, scalar_prefetch = 0 : i64, scratch_operands = 4 : i64, tpu.core_type = #tpu.core_type<tc>, window_params = [{transform_indices = @transform_0, window_bounds = array<i64: 128, 156>}, {pipeline_mode = #tpu.pipeline_mode<synchronous>, transform_indices = @transform_1, window_bounds = array<i64: 128, 128>}, {transform_indices = @transform_2, window_bounds = array<i64: 1, 1, 156>}, {transform_indices = @transform_3, window_bounds = array<i64: 1, 1, 156>}, {transform_indices = @transform_4, window_bounds = array<i64: 1, 156, 768>}, {transform_indices = @transform_5, window_bounds = array<i64: 1, 1, 768>}, {transform_indices = @transform_6, window_bounds = array<i64: 1, 192, 156>}, {transform_indices = @transform_7, window_bounds = array<i64: 1, 1, 156>}, {transform_indices = @transform_8, window_bounds = array<i64: 1, 1, 156>}, {transform_indices = @transform_9, window_bounds = array<i64: 1, 1, 156>}, {transform_indices = @transform_10, window_bounds = array<i64: 1, 156, 624>}, {transform_indices = @transform_11, window_bounds = array<i64: 1, 1, 624>}, {transform_indices = @transform_12, window_bounds = array<i64: 1, 624, 156>}, {transform_indices = @transform_13, window_bounds = array<i64: 1, 1, 156>}, {pipeline_mode = #tpu.pipeline_mode<synchronous>, transform_indices = @transform_14, window_bounds = array<i64: 1, 156>}, {pipeline_mode = #tpu.pipeline_mode<synchronous>, transform_indices = @transform_15, window_bounds = array<i64: 1, 156>}, {pipeline_mode = #tpu.pipeline_mode<synchronous>, transform_indices = @transform_16, window_bounds = array<i64: 156, 128>}, {pipeline_mode = #tpu.pipeline_mode<synchronous>, transform_indices = @transform_17, window_bounds = array<i64: 1, 128>}, {transform_indices = @transform_18, window_bounds = array<i64: 128, 128>}]} {
    %c0_i32 = arith.constant 0 : i32
    %0 = arith.cmpi eq, %arg1, %c0_i32 : i32
    %1 = arith.extui %0 : i1 to i32
    %c0_i32_0 = arith.constant 0 : i32
    %2 = arith.cmpi ne, %1, %c0_i32_0 : i32
    scf.if %2 {
      %c0_125 = arith.constant 0 : index
      %c0_126 = arith.constant 0 : index
      %228 = vector.load %arg2[%c0_125, %c0_126] : memref<128x156xf32, #tpu.memory_space<vmem>>, vector<128x156xf32>
      %c0_127 = arith.constant 0 : index
      %c0_128 = arith.constant 0 : index
      %229 = vector.load %arg21[%c0_127, %c0_128] : memref<128x156xf32, #tpu.memory_space<vmem>>, vector<128x156xf32>
      tpu.vector_store %arg21[%c0_127, %c0_128], %228 {strides = array<i32>} : memref<128x156xf32, #tpu.memory_space<vmem>>, vector<128x156xf32>,
    } else {
    }
    %c0 = arith.constant 0 : index
    %c0_1 = arith.constant 0 : index
    %3 = vector.load %arg21[%c0, %c0_1] : memref<128x156xf32, #tpu.memory_space<vmem>>, vector<128x156xf32>
    %c0_2 = arith.constant 0 : index
    %c0_3 = arith.constant 0 : index
    %4 = vector.load %arg3[%c0_2, %c0_3] : memref<128x128xf32, #tpu.memory_space<vmem>>, vector<128x128xf32>
    %c0_4 = arith.constant 0 : index
    %c0_5 = arith.constant 0 : index
    %c0_6 = arith.constant 0 : index
    %5 = vector.load %arg4[%c0_4, %c0_5, %c0_6] : memref<1x1x156xf32, #tpu.memory_space<vmem>>, vector<1x1x156xf32>
    %6 = vector.shape_cast %5 : vector<1x1x156xf32> to vector<1x156xf32>
    %c0_7 = arith.constant 0 : index
    %c0_8 = arith.constant 0 : index
    %c0_9 = arith.constant 0 : index
    %7 = vector.load %arg5[%c0_7, %c0_8, %c0_9] : memref<1x1x156xf32, #tpu.memory_space<vmem>>, vector<1x1x156xf32>
    %8 = vector.shape_cast %7 : vector<1x1x156xf32> to vector<1x156xf32>
    %cst = arith.constant dense<0.000000e+00> : vector<128xf32>
    %9 = vector.multi_reduction <add>, %3, %cst [1] : vector<128x156xf32> to vector<128xf32>
    %10 = vector.shape_cast %9 : vector<128xf32> to vector<128x1xf32>
    %cst_10 = arith.constant 1.560000e+02 : f32
    %11 = vector.broadcast %cst_10 : f32 to vector<128x1xf32>
    %12 = arith.divf %10, %11 : vector<128x1xf32>
    %13 = arith.mulf %3, %3 : vector<128x156xf32>
    %cst_11 = arith.constant dense<0.000000e+00> : vector<128xf32>
    %14 = vector.multi_reduction <add>, %13, %cst_11 [1] : vector<128x156xf32> to vector<128xf32>
    %15 = vector.shape_cast %14 : vector<128xf32> to vector<128x1xf32>
    %cst_12 = arith.constant 1.560000e+02 : f32
    %16 = vector.broadcast %cst_12 : f32 to vector<128x1xf32>
    %17 = arith.divf %15, %16 : vector<128x1xf32>
    %18 = arith.mulf %12, %12 : vector<128x1xf32>
    %19 = arith.subf %17, %18 : vector<128x1xf32>
    %20 = vector.broadcast %12 : vector<128x1xf32> to vector<128x156xf32>
    %21 = arith.subf %3, %20 : vector<128x156xf32>
    %cst_13 = arith.constant 9.99999974E-6 : f32
    %22 = vector.broadcast %cst_13 : f32 to vector<128x1xf32>
    %23 = arith.addf %19, %22 : vector<128x1xf32>
    %24 = math.rsqrt %23 : vector<128x1xf32>
    %25 = vector.broadcast %24 : vector<128x1xf32> to vector<128x156xf32>
    %26 = arith.mulf %21, %25 : vector<128x156xf32>
    %27 = vector.broadcast %6 : vector<1x156xf32> to vector<128x156xf32>
    %28 = arith.mulf %26, %27 : vector<128x156xf32>
    %29 = vector.broadcast %8 : vector<1x156xf32> to vector<128x156xf32>
    %30 = arith.addf %28, %29 : vector<128x156xf32>
    %31 = arith.truncf %30 : vector<128x156xf32> to vector<128x156xbf16>
    %c0_14 = arith.constant 0 : index
    %c0_15 = arith.constant 0 : index
    %c0_16 = arith.constant 0 : index
    %32 = vector.load %arg6[%c0_14, %c0_15, %c0_16] : memref<1x156x768xbf16, #tpu.memory_space<vmem>>, vector<1x156x768xbf16>
    %33 = vector.shape_cast %32 : vector<1x156x768xbf16> to vector<156x768xbf16>
    %cst_17 = arith.constant dense<0.000000e+00> : vector<128x768xf32>
    %34 = tpu.matmul %31, %33, %cst_17 {dimension_numbers = #tpu.dot_dimension_numbers<[1], [0], [0], [1], [0, 0, 1, 1], [], []>} : vector<128x156xbf16>, vector<156x768xbf16>, vector<128x768xf32> -> vector<128x768xf32>
    %c0_18 = arith.constant 0 : index
    %c0_19 = arith.constant 0 : index
    %c0_20 = arith.constant 0 : index
    %35 = vector.load %arg7[%c0_18, %c0_19, %c0_20] : memref<1x1x768xf32, #tpu.memory_space<vmem>>, vector<1x1x768xf32>
    %36 = vector.shape_cast %35 : vector<1x1x768xf32> to vector<1x768xf32>
    %37 = vector.broadcast %36 : vector<1x768xf32> to vector<128x768xf32>
    %38 = arith.addf %34, %37 : vector<128x768xf32>
    %c0_21 = arith.constant 0 : index
    %c0_22 = arith.constant 0 : index
    %39 = vector.load %arg22[%c0_21, %c0_22] : memref<128x768xf32, #tpu.memory_space<vmem>>, vector<128x768xf32>
    tpu.vector_store %arg22[%c0_21, %c0_22], %38 {strides = array<i32>} : memref<128x768xf32, #tpu.memory_space<vmem>>, vector<128x768xf32>,
    %c0_23 = arith.constant 0 : index
    %c256 = arith.constant 256 : index
    %40 = vector.load %arg22[%c0_23, %c256] : memref<128x768xf32, #tpu.memory_space<vmem>>, vector<128x256xf32>
    %41 = tpu.transpose %40, [1, 0] : vector<128x256xf32> -> vector<256x128xf32>
    %c0_24 = arith.constant 0 : index
    %c0_25 = arith.constant 0 : index
    %42 = vector.load %arg23[%c0_24, %c0_25] : memref<256x128xf32, #tpu.memory_space<vmem>>, vector<256x128xf32>
    tpu.vector_store %arg23[%c0_24, %c0_25], %41 {strides = array<i32>} : memref<256x128xf32, #tpu.memory_space<vmem>>, vector<256x128xf32>,
    %c0_26 = arith.constant 0 : index
    %c0_27 = arith.constant 0 : index
    %43 = vector.load %arg22[%c0_26, %c0_27] : memref<128x768xf32, #tpu.memory_space<vmem>>, vector<128x32xf32>
    %c0_28 = arith.constant 0 : index
    %c0_29 = arith.constant 0 : index
    %44 = vector.load %arg23[%c0_28, %c0_29] : memref<256x128xf32, #tpu.memory_space<vmem>>, vector<32x128xf32>
    %c0_30 = arith.constant 0 : index
    %c512 = arith.constant 512 : index
    %45 = vector.load %arg22[%c0_30, %c512] : memref<128x768xf32, #tpu.memory_space<vmem>>, vector<128x32xf32>
    %46 = arith.truncf %43 : vector<128x32xf32> to vector<128x32xbf16>
    %47 = arith.truncf %44 : vector<32x128xf32> to vector<32x128xbf16>
    %cst_31 = arith.constant dense<0.000000e+00> : vector<128x128xf32>
    %48 = tpu.matmul %46, %47, %cst_31 {dimension_numbers = #tpu.dot_dimension_numbers<[1], [0], [0], [1], [0, 0, 1, 1], [], []>} : vector<128x32xbf16>, vector<32x128xbf16>, vector<128x128xf32> -> vector<128x128xf32>
    %49 = arith.addf %48, %4 : vector<128x128xf32>
    %cst_32 = arith.constant dense<0xFF800000> : vector<128xf32>
    %50 = vector.multi_reduction <maximumf>, %49, %cst_32 [1] : vector<128x128xf32> to vector<128xf32>
    %51 = vector.shape_cast %50 : vector<128xf32> to vector<128x1xf32>
    %52 = vector.broadcast %51 : vector<128x1xf32> to vector<128x128xf32>
    %53 = arith.subf %49, %52 : vector<128x128xf32>
    %54 = math.exp %53 : vector<128x128xf32>
    %cst_33 = arith.constant dense<0.000000e+00> : vector<128xf32>
    %55 = vector.multi_reduction <add>, %54, %cst_33 [1] : vector<128x128xf32> to vector<128xf32>
    %56 = vector.shape_cast %55 : vector<128xf32> to vector<128x1xf32>
    %57 = tpu.reciprocal %56 {approx = true} : vector<128x1xf32> -> vector<128x1xf32>
    %58 = arith.truncf %54 : vector<128x128xf32> to vector<128x128xbf16>
    %59 = arith.truncf %45 : vector<128x32xf32> to vector<128x32xbf16>
    %cst_34 = arith.constant dense<0.000000e+00> : vector<128x32xf32>
    %60 = tpu.matmul %58, %59, %cst_34 {dimension_numbers = #tpu.dot_dimension_numbers<[1], [0], [0], [1], [0, 0, 1, 1], [], []>} : vector<128x128xbf16>, vector<128x32xbf16>, vector<128x32xf32> -> vector<128x32xf32>
    %61 = vector.broadcast %57 : vector<128x1xf32> to vector<128x32xf32>
    %62 = arith.mulf %60, %61 : vector<128x32xf32>
    %c0_35 = arith.constant 0 : index
    %c0_36 = arith.constant 0 : index
    %63 = vector.load %arg24[%c0_35, %c0_36] : memref<128x192xf32, #tpu.memory_space<vmem>>, vector<128x32xf32>
    tpu.vector_store %arg24[%c0_35, %c0_36], %62 {strides = array<i32>} : memref<128x192xf32, #tpu.memory_space<vmem>>, vector<128x32xf32>,
    %c0_37 = arith.constant 0 : index
    %c32 = arith.constant 32 : index
    %64 = vector.load %arg22[%c0_37, %c32] : memref<128x768xf32, #tpu.memory_space<vmem>>, vector<128x32xf32>
    %c32_38 = arith.constant 32 : index
    %c0_39 = arith.constant 0 : index
    %65 = vector.load %arg23[%c32_38, %c0_39] : memref<256x128xf32, #tpu.memory_space<vmem>>, vector<32x128xf32>
    %c0_40 = arith.constant 0 : index
    %c544 = arith.constant 544 : index
    %66 = vector.load %arg22[%c0_40, %c544] : memref<128x768xf32, #tpu.memory_space<vmem>>, vector<128x32xf32>
    %67 = arith.truncf %64 : vector<128x32xf32> to vector<128x32xbf16>
    %68 = arith.truncf %65 : vector<32x128xf32> to vector<32x128xbf16>
    %cst_41 = arith.constant dense<0.000000e+00> : vector<128x128xf32>
    %69 = tpu.matmul %67, %68, %cst_41 {dimension_numbers = #tpu.dot_dimension_numbers<[1], [0], [0], [1], [0, 0, 1, 1], [], []>} : vector<128x32xbf16>, vector<32x128xbf16>, vector<128x128xf32> -> vector<128x128xf32>
    %70 = arith.addf %69, %4 : vector<128x128xf32>
    %cst_42 = arith.constant dense<0xFF800000> : vector<128xf32>
    %71 = vector.multi_reduction <maximumf>, %70, %cst_42 [1] : vector<128x128xf32> to vector<128xf32>
    %72 = vector.shape_cast %71 : vector<128xf32> to vector<128x1xf32>
    %73 = vector.broadcast %72 : vector<128x1xf32> to vector<128x128xf32>
    %74 = arith.subf %70, %73 : vector<128x128xf32>
    %75 = math.exp %74 : vector<128x128xf32>
    %cst_43 = arith.constant dense<0.000000e+00> : vector<128xf32>
    %76 = vector.multi_reduction <add>, %75, %cst_43 [1] : vector<128x128xf32> to vector<128xf32>
    %77 = vector.shape_cast %76 : vector<128xf32> to vector<128x1xf32>
    %78 = tpu.reciprocal %77 {approx = true} : vector<128x1xf32> -> vector<128x1xf32>
    %79 = arith.truncf %75 : vector<128x128xf32> to vector<128x128xbf16>
    %80 = arith.truncf %66 : vector<128x32xf32> to vector<128x32xbf16>
    %cst_44 = arith.constant dense<0.000000e+00> : vector<128x32xf32>
    %81 = tpu.matmul %79, %80, %cst_44 {dimension_numbers = #tpu.dot_dimension_numbers<[1], [0], [0], [1], [0, 0, 1, 1], [], []>} : vector<128x128xbf16>, vector<128x32xbf16>, vector<128x32xf32> -> vector<128x32xf32>
    %82 = vector.broadcast %78 : vector<128x1xf32> to vector<128x32xf32>
    %83 = arith.mulf %81, %82 : vector<128x32xf32>
    %c0_45 = arith.constant 0 : index
    %c32_46 = arith.constant 32 : index
    %84 = vector.load %arg24[%c0_45, %c32_46] : memref<128x192xf32, #tpu.memory_space<vmem>>, vector<128x32xf32>
    tpu.vector_store %arg24[%c0_45, %c32_46], %83 {strides = array<i32>} : memref<128x192xf32, #tpu.memory_space<vmem>>, vector<128x32xf32>,
    %c0_47 = arith.constant 0 : index
    %c64 = arith.constant 64 : index
    %85 = vector.load %arg22[%c0_47, %c64] : memref<128x768xf32, #tpu.memory_space<vmem>>, vector<128x32xf32>
    %c64_48 = arith.constant 64 : index
    %c0_49 = arith.constant 0 : index
    %86 = vector.load %arg23[%c64_48, %c0_49] : memref<256x128xf32, #tpu.memory_space<vmem>>, vector<32x128xf32>
    %c0_50 = arith.constant 0 : index
    %c576 = arith.constant 576 : index
    %87 = vector.load %arg22[%c0_50, %c576] : memref<128x768xf32, #tpu.memory_space<vmem>>, vector<128x32xf32>
    %88 = arith.truncf %85 : vector<128x32xf32> to vector<128x32xbf16>
    %89 = arith.truncf %86 : vector<32x128xf32> to vector<32x128xbf16>
    %cst_51 = arith.constant dense<0.000000e+00> : vector<128x128xf32>
    %90 = tpu.matmul %88, %89, %cst_51 {dimension_numbers = #tpu.dot_dimension_numbers<[1], [0], [0], [1], [0, 0, 1, 1], [], []>} : vector<128x32xbf16>, vector<32x128xbf16>, vector<128x128xf32> -> vector<128x128xf32>
    %91 = arith.addf %90, %4 : vector<128x128xf32>
    %cst_52 = arith.constant dense<0xFF800000> : vector<128xf32>
    %92 = vector.multi_reduction <maximumf>, %91, %cst_52 [1] : vector<128x128xf32> to vector<128xf32>
    %93 = vector.shape_cast %92 : vector<128xf32> to vector<128x1xf32>
    %94 = vector.broadcast %93 : vector<128x1xf32> to vector<128x128xf32>
    %95 = arith.subf %91, %94 : vector<128x128xf32>
    %96 = math.exp %95 : vector<128x128xf32>
    %cst_53 = arith.constant dense<0.000000e+00> : vector<128xf32>
    %97 = vector.multi_reduction <add>, %96, %cst_53 [1] : vector<128x128xf32> to vector<128xf32>
    %98 = vector.shape_cast %97 : vector<128xf32> to vector<128x1xf32>
    %99 = tpu.reciprocal %98 {approx = true} : vector<128x1xf32> -> vector<128x1xf32>
    %100 = arith.truncf %96 : vector<128x128xf32> to vector<128x128xbf16>
    %101 = arith.truncf %87 : vector<128x32xf32> to vector<128x32xbf16>
    %cst_54 = arith.constant dense<0.000000e+00> : vector<128x32xf32>
    %102 = tpu.matmul %100, %101, %cst_54 {dimension_numbers = #tpu.dot_dimension_numbers<[1], [0], [0], [1], [0, 0, 1, 1], [], []>} : vector<128x128xbf16>, vector<128x32xbf16>, vector<128x32xf32> -> vector<128x32xf32>
    %103 = vector.broadcast %99 : vector<128x1xf32> to vector<128x32xf32>
    %104 = arith.mulf %102, %103 : vector<128x32xf32>
    %c0_55 = arith.constant 0 : index
    %c64_56 = arith.constant 64 : index
    %105 = vector.load %arg24[%c0_55, %c64_56] : memref<128x192xf32, #tpu.memory_space<vmem>>, vector<128x32xf32>
    tpu.vector_store %arg24[%c0_55, %c64_56], %104 {strides = array<i32>} : memref<128x192xf32, #tpu.memory_space<vmem>>, vector<128x32xf32>,
    %c0_57 = arith.constant 0 : index
    %c96 = arith.constant 96 : index
    %106 = vector.load %arg22[%c0_57, %c96] : memref<128x768xf32, #tpu.memory_space<vmem>>, vector<128x32xf32>
    %c96_58 = arith.constant 96 : index
    %c0_59 = arith.constant 0 : index
    %107 = vector.load %arg23[%c96_58, %c0_59] : memref<256x128xf32, #tpu.memory_space<vmem>>, vector<32x128xf32>
    %c0_60 = arith.constant 0 : index
    %c608 = arith.constant 608 : index
    %108 = vector.load %arg22[%c0_60, %c608] : memref<128x768xf32, #tpu.memory_space<vmem>>, vector<128x32xf32>
    %109 = arith.truncf %106 : vector<128x32xf32> to vector<128x32xbf16>
    %110 = arith.truncf %107 : vector<32x128xf32> to vector<32x128xbf16>
    %cst_61 = arith.constant dense<0.000000e+00> : vector<128x128xf32>
    %111 = tpu.matmul %109, %110, %cst_61 {dimension_numbers = #tpu.dot_dimension_numbers<[1], [0], [0], [1], [0, 0, 1, 1], [], []>} : vector<128x32xbf16>, vector<32x128xbf16>, vector<128x128xf32> -> vector<128x128xf32>
    %112 = arith.addf %111, %4 : vector<128x128xf32>
    %cst_62 = arith.constant dense<0xFF800000> : vector<128xf32>
    %113 = vector.multi_reduction <maximumf>, %112, %cst_62 [1] : vector<128x128xf32> to vector<128xf32>
    %114 = vector.shape_cast %113 : vector<128xf32> to vector<128x1xf32>
    %115 = vector.broadcast %114 : vector<128x1xf32> to vector<128x128xf32>
    %116 = arith.subf %112, %115 : vector<128x128xf32>
    %117 = math.exp %116 : vector<128x128xf32>
    %cst_63 = arith.constant dense<0.000000e+00> : vector<128xf32>
    %118 = vector.multi_reduction <add>, %117, %cst_63 [1] : vector<128x128xf32> to vector<128xf32>
    %119 = vector.shape_cast %118 : vector<128xf32> to vector<128x1xf32>
    %120 = tpu.reciprocal %119 {approx = true} : vector<128x1xf32> -> vector<128x1xf32>
    %121 = arith.truncf %117 : vector<128x128xf32> to vector<128x128xbf16>
    %122 = arith.truncf %108 : vector<128x32xf32> to vector<128x32xbf16>
    %cst_64 = arith.constant dense<0.000000e+00> : vector<128x32xf32>
    %123 = tpu.matmul %121, %122, %cst_64 {dimension_numbers = #tpu.dot_dimension_numbers<[1], [0], [0], [1], [0, 0, 1, 1], [], []>} : vector<128x128xbf16>, vector<128x32xbf16>, vector<128x32xf32> -> vector<128x32xf32>
    %124 = vector.broadcast %120 : vector<128x1xf32> to vector<128x32xf32>
    %125 = arith.mulf %123, %124 : vector<128x32xf32>
    %c0_65 = arith.constant 0 : index
    %c96_66 = arith.constant 96 : index
    %126 = vector.load %arg24[%c0_65, %c96_66] : memref<128x192xf32, #tpu.memory_space<vmem>>, vector<128x32xf32>
    tpu.vector_store %arg24[%c0_65, %c96_66], %125 {strides = array<i32>} : memref<128x192xf32, #tpu.memory_space<vmem>>, vector<128x32xf32>,
    %c0_67 = arith.constant 0 : index
    %c128 = arith.constant 128 : index
    %127 = vector.load %arg22[%c0_67, %c128] : memref<128x768xf32, #tpu.memory_space<vmem>>, vector<128x32xf32>
    %c128_68 = arith.constant 128 : index
    %c0_69 = arith.constant 0 : index
    %128 = vector.load %arg23[%c128_68, %c0_69] : memref<256x128xf32, #tpu.memory_space<vmem>>, vector<32x128xf32>
    %c0_70 = arith.constant 0 : index
    %c640 = arith.constant 640 : index
    %129 = vector.load %arg22[%c0_70, %c640] : memref<128x768xf32, #tpu.memory_space<vmem>>, vector<128x32xf32>
    %130 = arith.truncf %127 : vector<128x32xf32> to vector<128x32xbf16>
    %131 = arith.truncf %128 : vector<32x128xf32> to vector<32x128xbf16>
    %cst_71 = arith.constant dense<0.000000e+00> : vector<128x128xf32>
    %132 = tpu.matmul %130, %131, %cst_71 {dimension_numbers = #tpu.dot_dimension_numbers<[1], [0], [0], [1], [0, 0, 1, 1], [], []>} : vector<128x32xbf16>, vector<32x128xbf16>, vector<128x128xf32> -> vector<128x128xf32>
    %133 = arith.addf %132, %4 : vector<128x128xf32>
    %cst_72 = arith.constant dense<0xFF800000> : vector<128xf32>
    %134 = vector.multi_reduction <maximumf>, %133, %cst_72 [1] : vector<128x128xf32> to vector<128xf32>
    %135 = vector.shape_cast %134 : vector<128xf32> to vector<128x1xf32>
    %136 = vector.broadcast %135 : vector<128x1xf32> to vector<128x128xf32>
    %137 = arith.subf %133, %136 : vector<128x128xf32>
    %138 = math.exp %137 : vector<128x128xf32>
    %cst_73 = arith.constant dense<0.000000e+00> : vector<128xf32>
    %139 = vector.multi_reduction <add>, %138, %cst_73 [1] : vector<128x128xf32> to vector<128xf32>
    %140 = vector.shape_cast %139 : vector<128xf32> to vector<128x1xf32>
    %141 = tpu.reciprocal %140 {approx = true} : vector<128x1xf32> -> vector<128x1xf32>
    %142 = arith.truncf %138 : vector<128x128xf32> to vector<128x128xbf16>
    %143 = arith.truncf %129 : vector<128x32xf32> to vector<128x32xbf16>
    %cst_74 = arith.constant dense<0.000000e+00> : vector<128x32xf32>
    %144 = tpu.matmul %142, %143, %cst_74 {dimension_numbers = #tpu.dot_dimension_numbers<[1], [0], [0], [1], [0, 0, 1, 1], [], []>} : vector<128x128xbf16>, vector<128x32xbf16>, vector<128x32xf32> -> vector<128x32xf32>
    %145 = vector.broadcast %141 : vector<128x1xf32> to vector<128x32xf32>
    %146 = arith.mulf %144, %145 : vector<128x32xf32>
    %c0_75 = arith.constant 0 : index
    %c128_76 = arith.constant 128 : index
    %147 = vector.load %arg24[%c0_75, %c128_76] : memref<128x192xf32, #tpu.memory_space<vmem>>, vector<128x32xf32>
    tpu.vector_store %arg24[%c0_75, %c128_76], %146 {strides = array<i32>} : memref<128x192xf32, #tpu.memory_space<vmem>>, vector<128x32xf32>,
    %c0_77 = arith.constant 0 : index
    %c160 = arith.constant 160 : index
    %148 = vector.load %arg22[%c0_77, %c160] : memref<128x768xf32, #tpu.memory_space<vmem>>, vector<128x32xf32>
    %c160_78 = arith.constant 160 : index
    %c0_79 = arith.constant 0 : index
    %149 = vector.load %arg23[%c160_78, %c0_79] : memref<256x128xf32, #tpu.memory_space<vmem>>, vector<32x128xf32>
    %c0_80 = arith.constant 0 : index
    %c672 = arith.constant 672 : index
    %150 = vector.load %arg22[%c0_80, %c672] : memref<128x768xf32, #tpu.memory_space<vmem>>, vector<128x32xf32>
    %151 = arith.truncf %148 : vector<128x32xf32> to vector<128x32xbf16>
    %152 = arith.truncf %149 : vector<32x128xf32> to vector<32x128xbf16>
    %cst_81 = arith.constant dense<0.000000e+00> : vector<128x128xf32>
    %153 = tpu.matmul %151, %152, %cst_81 {dimension_numbers = #tpu.dot_dimension_numbers<[1], [0], [0], [1], [0, 0, 1, 1], [], []>} : vector<128x32xbf16>, vector<32x128xbf16>, vector<128x128xf32> -> vector<128x128xf32>
    %154 = arith.addf %153, %4 : vector<128x128xf32>
    %cst_82 = arith.constant dense<0xFF800000> : vector<128xf32>
    %155 = vector.multi_reduction <maximumf>, %154, %cst_82 [1] : vector<128x128xf32> to vector<128xf32>
    %156 = vector.shape_cast %155 : vector<128xf32> to vector<128x1xf32>
    %157 = vector.broadcast %156 : vector<128x1xf32> to vector<128x128xf32>
    %158 = arith.subf %154, %157 : vector<128x128xf32>
    %159 = math.exp %158 : vector<128x128xf32>
    %cst_83 = arith.constant dense<0.000000e+00> : vector<128xf32>
    %160 = vector.multi_reduction <add>, %159, %cst_83 [1] : vector<128x128xf32> to vector<128xf32>
    %161 = vector.shape_cast %160 : vector<128xf32> to vector<128x1xf32>
    %162 = tpu.reciprocal %161 {approx = true} : vector<128x1xf32> -> vector<128x1xf32>
    %163 = arith.truncf %159 : vector<128x128xf32> to vector<128x128xbf16>
    %164 = arith.truncf %150 : vector<128x32xf32> to vector<128x32xbf16>
    %cst_84 = arith.constant dense<0.000000e+00> : vector<128x32xf32>
    %165 = tpu.matmul %163, %164, %cst_84 {dimension_numbers = #tpu.dot_dimension_numbers<[1], [0], [0], [1], [0, 0, 1, 1], [], []>} : vector<128x128xbf16>, vector<128x32xbf16>, vector<128x32xf32> -> vector<128x32xf32>
    %166 = vector.broadcast %162 : vector<128x1xf32> to vector<128x32xf32>
    %167 = arith.mulf %165, %166 : vector<128x32xf32>
    %c0_85 = arith.constant 0 : index
    %c160_86 = arith.constant 160 : index
    %168 = vector.load %arg24[%c0_85, %c160_86] : memref<128x192xf32, #tpu.memory_space<vmem>>, vector<128x32xf32>
    tpu.vector_store %arg24[%c0_85, %c160_86], %167 {strides = array<i32>} : memref<128x192xf32, #tpu.memory_space<vmem>>, vector<128x32xf32>,
    %c0_87 = arith.constant 0 : index
    %c0_88 = arith.constant 0 : index
    %169 = vector.load %arg24[%c0_87, %c0_88] : memref<128x192xf32, #tpu.memory_space<vmem>>, vector<128x192xf32>
    %170 = arith.truncf %169 : vector<128x192xf32> to vector<128x192xbf16>
    %c0_89 = arith.constant 0 : index
    %c0_90 = arith.constant 0 : index
    %c0_91 = arith.constant 0 : index
    %171 = vector.load %arg8[%c0_89, %c0_90, %c0_91] : memref<1x192x156xbf16, #tpu.memory_space<vmem>>, vector<1x192x156xbf16>
    %172 = vector.shape_cast %171 : vector<1x192x156xbf16> to vector<192x156xbf16>
    %cst_92 = arith.constant dense<0.000000e+00> : vector<128x156xf32>
    %173 = tpu.matmul %170, %172, %cst_92 {dimension_numbers = #tpu.dot_dimension_numbers<[1], [0], [0], [1], [0, 0, 1, 1], [], []>} : vector<128x192xbf16>, vector<192x156xbf16>, vector<128x156xf32> -> vector<128x156xf32>
    %c0_93 = arith.constant 0 : index
    %c0_94 = arith.constant 0 : index
    %c0_95 = arith.constant 0 : index
    %174 = vector.load %arg9[%c0_93, %c0_94, %c0_95] : memref<1x1x156xf32, #tpu.memory_space<vmem>>, vector<1x1x156xf32>
    %175 = vector.shape_cast %174 : vector<1x1x156xf32> to vector<1x156xf32>
    %176 = vector.broadcast %175 : vector<1x156xf32> to vector<128x156xf32>
    %177 = arith.addf %173, %176 : vector<128x156xf32>
    %178 = arith.addf %3, %177 : vector<128x156xf32>
    %c0_96 = arith.constant 0 : index
    %c0_97 = arith.constant 0 : index
    %c0_98 = arith.constant 0 : index
    %179 = vector.load %arg10[%c0_96, %c0_97, %c0_98] : memref<1x1x156xf32, #tpu.memory_space<vmem>>, vector<1x1x156xf32>
    %180 = vector.shape_cast %179 : vector<1x1x156xf32> to vector<1x156xf32>
    %c0_99 = arith.constant 0 : index
    %c0_100 = arith.constant 0 : index
    %c0_101 = arith.constant 0 : index
    %181 = vector.load %arg11[%c0_99, %c0_100, %c0_101] : memref<1x1x156xf32, #tpu.memory_space<vmem>>, vector<1x1x156xf32>
    %182 = vector.shape_cast %181 : vector<1x1x156xf32> to vector<1x156xf32>
    %cst_102 = arith.constant dense<0.000000e+00> : vector<128xf32>
    %183 = vector.multi_reduction <add>, %178, %cst_102 [1] : vector<128x156xf32> to vector<128xf32>
    %184 = vector.shape_cast %183 : vector<128xf32> to vector<128x1xf32>
    %cst_103 = arith.constant 1.560000e+02 : f32
    %185 = vector.broadcast %cst_103 : f32 to vector<128x1xf32>
    %186 = arith.divf %184, %185 : vector<128x1xf32>
    %187 = arith.mulf %178, %178 : vector<128x156xf32>
    %cst_104 = arith.constant dense<0.000000e+00> : vector<128xf32>
    %188 = vector.multi_reduction <add>, %187, %cst_104 [1] : vector<128x156xf32> to vector<128xf32>
    %189 = vector.shape_cast %188 : vector<128xf32> to vector<128x1xf32>
    %cst_105 = arith.constant 1.560000e+02 : f32
    %190 = vector.broadcast %cst_105 : f32 to vector<128x1xf32>
    %191 = arith.divf %189, %190 : vector<128x1xf32>
    %192 = arith.mulf %186, %186 : vector<128x1xf32>
    %193 = arith.subf %191, %192 : vector<128x1xf32>
    %194 = vector.broadcast %186 : vector<128x1xf32> to vector<128x156xf32>
    %195 = arith.subf %178, %194 : vector<128x156xf32>
    %cst_106 = arith.constant 9.99999974E-6 : f32
    %196 = vector.broadcast %cst_106 : f32 to vector<128x1xf32>
    %197 = arith.addf %193, %196 : vector<128x1xf32>
    %198 = math.rsqrt %197 : vector<128x1xf32>
    %199 = vector.broadcast %198 : vector<128x1xf32> to vector<128x156xf32>
    %200 = arith.mulf %195, %199 : vector<128x156xf32>
    %201 = vector.broadcast %180 : vector<1x156xf32> to vector<128x156xf32>
    %202 = arith.mulf %200, %201 : vector<128x156xf32>
    %203 = vector.broadcast %182 : vector<1x156xf32> to vector<128x156xf32>
    %204 = arith.addf %202, %203 : vector<128x156xf32>
    %205 = arith.truncf %204 : vector<128x156xf32> to vector<128x156xbf16>
    %c0_107 = arith.constant 0 : index
    %c0_108 = arith.constant 0 : index
    %c0_109 = arith.constant 0 : index
    %206 = vector.load %arg12[%c0_107, %c0_108, %c0_109] : memref<1x156x624xbf16, #tpu.memory_space<vmem>>, vector<1x156x624xbf16>
    %207 = vector.shape_cast %206 : vector<1x156x624xbf16> to vector<156x624xbf16>
    %cst_110 = arith.constant dense<0.000000e+00> : vector<128x624xf32>
    %208 = tpu.matmul %205, %207, %cst_110 {dimension_numbers = #tpu.dot_dimension_numbers<[1], [0], [0], [1], [0, 0, 1, 1], [], []>} : vector<128x156xbf16>, vector<156x624xbf16>, vector<128x624xf32> -> vector<128x624xf32>
    %c0_111 = arith.constant 0 : index
    %c0_112 = arith.constant 0 : index
    %c0_113 = arith.constant 0 : index
    %209 = vector.load %arg13[%c0_111, %c0_112, %c0_113] : memref<1x1x624xf32, #tpu.memory_space<vmem>>, vector<1x1x624xf32>
    %210 = vector.shape_cast %209 : vector<1x1x624xf32> to vector<1x624xf32>
    %211 = vector.broadcast %210 : vector<1x624xf32> to vector<128x624xf32>
    %212 = arith.addf %208, %211 : vector<128x624xf32>
    %cst_114 = arith.constant 0.000000e+00 : f32
    %213 = vector.broadcast %cst_114 : f32 to vector<128x624xf32>
    %214 = arith.maximumf %212, %213 : vector<128x624xf32>
    %215 = arith.truncf %214 : vector<128x624xf32> to vector<128x624xbf16>
    %c0_115 = arith.constant 0 : index
    %c0_116 = arith.constant 0 : index
    %c0_117 = arith.constant 0 : index
    %216 = vector.load %arg14[%c0_115, %c0_116, %c0_117] : memref<1x624x156xbf16, #tpu.memory_space<vmem>>, vector<1x624x156xbf16>
    %217 = vector.shape_cast %216 : vector<1x624x156xbf16> to vector<624x156xbf16>
    %cst_118 = arith.constant dense<0.000000e+00> : vector<128x156xf32>
    %218 = tpu.matmul %215, %217, %cst_118 {dimension_numbers = #tpu.dot_dimension_numbers<[1], [0], [0], [1], [0, 0, 1, 1], [], []>} : vector<128x624xbf16>, vector<624x156xbf16>, vector<128x156xf32> -> vector<128x156xf32>
    %c0_119 = arith.constant 0 : index
    %c0_120 = arith.constant 0 : index
    %c0_121 = arith.constant 0 : index
    %219 = vector.load %arg15[%c0_119, %c0_120, %c0_121] : memref<1x1x156xf32, #tpu.memory_space<vmem>>, vector<1x1x156xf32>
    %220 = vector.shape_cast %219 : vector<1x1x156xf32> to vector<1x156xf32>
    %221 = vector.broadcast %220 : vector<1x156xf32> to vector<128x156xf32>
    %222 = arith.addf %218, %221 : vector<128x156xf32>
    %223 = arith.addf %178, %222 : vector<128x156xf32>
    %c0_122 = arith.constant 0 : index
    %c0_123 = arith.constant 0 : index
    %224 = vector.load %arg21[%c0_122, %c0_123] : memref<128x156xf32, #tpu.memory_space<vmem>>, vector<128x156xf32>
    tpu.vector_store %arg21[%c0_122, %c0_123], %223 {strides = array<i32>} : memref<128x156xf32, #tpu.memory_space<vmem>>, vector<128x156xf32>,
    %c5_i32 = arith.constant 5 : i32
    %225 = arith.cmpi eq, %arg1, %c5_i32 : i32
    %226 = arith.extui %225 : i1 to i32
    %c0_i32_124 = arith.constant 0 : i32
    %227 = arith.cmpi ne, %226, %c0_i32_124 : i32
    scf.if %227 {
      %c0_125 = arith.constant 0 : index
      %c0_126 = arith.constant 0 : index
      %228 = vector.load %arg16[%c0_125, %c0_126] : memref<1x156xf32, #tpu.memory_space<vmem>>, vector<1x156xf32>
      %c0_127 = arith.constant 0 : index
      %c0_128 = arith.constant 0 : index
      %229 = vector.load %arg17[%c0_127, %c0_128] : memref<1x156xf32, #tpu.memory_space<vmem>>, vector<1x156xf32>
      %cst_129 = arith.constant dense<0.000000e+00> : vector<128xf32>
      %230 = vector.multi_reduction <add>, %223, %cst_129 [1] : vector<128x156xf32> to vector<128xf32>
      %231 = vector.shape_cast %230 : vector<128xf32> to vector<128x1xf32>
      %cst_130 = arith.constant 1.560000e+02 : f32
      %232 = vector.broadcast %cst_130 : f32 to vector<128x1xf32>
      %233 = arith.divf %231, %232 : vector<128x1xf32>
      %234 = arith.mulf %223, %223 : vector<128x156xf32>
      %cst_131 = arith.constant dense<0.000000e+00> : vector<128xf32>
      %235 = vector.multi_reduction <add>, %234, %cst_131 [1] : vector<128x156xf32> to vector<128xf32>
      %236 = vector.shape_cast %235 : vector<128xf32> to vector<128x1xf32>
      %cst_132 = arith.constant 1.560000e+02 : f32
      %237 = vector.broadcast %cst_132 : f32 to vector<128x1xf32>
      %238 = arith.divf %236, %237 : vector<128x1xf32>
      %239 = arith.mulf %233, %233 : vector<128x1xf32>
      %240 = arith.subf %238, %239 : vector<128x1xf32>
      %241 = vector.broadcast %233 : vector<128x1xf32> to vector<128x156xf32>
      %242 = arith.subf %223, %241 : vector<128x156xf32>
      %cst_133 = arith.constant 9.99999974E-6 : f32
      %243 = vector.broadcast %cst_133 : f32 to vector<128x1xf32>
      %244 = arith.addf %240, %243 : vector<128x1xf32>
      %245 = math.rsqrt %244 : vector<128x1xf32>
      %246 = vector.broadcast %245 : vector<128x1xf32> to vector<128x156xf32>
      %247 = arith.mulf %242, %246 : vector<128x156xf32>
      %248 = vector.broadcast %228 : vector<1x156xf32> to vector<128x156xf32>
      %249 = arith.mulf %247, %248 : vector<128x156xf32>
      %250 = vector.broadcast %229 : vector<1x156xf32> to vector<128x156xf32>
      %251 = arith.addf %249, %250 : vector<128x156xf32>
      %252 = arith.truncf %251 : vector<128x156xf32> to vector<128x156xbf16>
      %c0_134 = arith.constant 0 : index
      %c0_135 = arith.constant 0 : index
      %253 = vector.load %arg18[%c0_134, %c0_135] : memref<156x128xbf16, #tpu.memory_space<vmem>>, vector<156x128xbf16>
      %cst_136 = arith.constant dense<0.000000e+00> : vector<128x128xf32>
      %254 = tpu.matmul %252, %253, %cst_136 {dimension_numbers = #tpu.dot_dimension_numbers<[1], [0], [0], [1], [0, 0, 1, 1], [], []>} : vector<128x156xbf16>, vector<156x128xbf16>, vector<128x128xf32> -> vector<128x128xf32>
      %c0_137 = arith.constant 0 : index
      %c0_138 = arith.constant 0 : index
      %255 = vector.load %arg19[%c0_137, %c0_138] : memref<1x128xf32, #tpu.memory_space<vmem>>, vector<1x128xf32>
      %256 = vector.broadcast %255 : vector<1x128xf32> to vector<128x128xf32>
      %257 = arith.addf %254, %256 : vector<128x128xf32>
      %c0_139 = arith.constant 0 : index
      %c0_140 = arith.constant 0 : index
      %258 = vector.load %arg20[%c0_139, %c0_140] : memref<128x128xf32, #tpu.memory_space<vmem>>, vector<128x128xf32>
      tpu.vector_store %arg20[%c0_139, %c0_140], %257 {strides = array<i32>} : memref<128x128xf32, #tpu.memory_space<vmem>>, vector<128x128xf32>,
    } else {
    }
    return
  }
  func.func @transform_0(%arg0: i32, %arg1: i32) -> (i32, i32) {
    %c0_i32 = arith.constant 0 : i32
    %c0_i32_0 = arith.constant 0 : i32
    return %arg0, %c0_i32 : i32, i32
  }
  func.func @transform_1(%arg0: i32, %arg1: i32) -> (i32, i32) {
    %c0_i32 = arith.constant 0 : i32
    %c0_i32_0 = arith.constant 0 : i32
    %c0_i32_1 = arith.constant 0 : i32
    return %c0_i32, %c0_i32_0 : i32, i32
  }
  func.func @transform_2(%arg0: i32, %arg1: i32) -> (i32, i32, i32) {
    %c0_i32 = arith.constant 0 : i32
    %c0_i32_0 = arith.constant 0 : i32
    %c0_i32_1 = arith.constant 0 : i32
    return %arg1, %c0_i32, %c0_i32_0 : i32, i32, i32
  }
  func.func @transform_3(%arg0: i32, %arg1: i32) -> (i32, i32, i32) {
    %c0_i32 = arith.constant 0 : i32
    %c0_i32_0 = arith.constant 0 : i32
    %c0_i32_1 = arith.constant 0 : i32
    return %arg1, %c0_i32, %c0_i32_0 : i32, i32, i32
  }
  func.func @transform_4(%arg0: i32, %arg1: i32) -> (i32, i32, i32) {
    %c0_i32 = arith.constant 0 : i32
    %c0_i32_0 = arith.constant 0 : i32
    %c0_i32_1 = arith.constant 0 : i32
    return %arg1, %c0_i32, %c0_i32_0 : i32, i32, i32
  }
  func.func @transform_5(%arg0: i32, %arg1: i32) -> (i32, i32, i32) {
    %c0_i32 = arith.constant 0 : i32
    %c0_i32_0 = arith.constant 0 : i32
    %c0_i32_1 = arith.constant 0 : i32
    return %arg1, %c0_i32, %c0_i32_0 : i32, i32, i32
  }
  func.func @transform_6(%arg0: i32, %arg1: i32) -> (i32, i32, i32) {
    %c0_i32 = arith.constant 0 : i32
    %c0_i32_0 = arith.constant 0 : i32
    %c0_i32_1 = arith.constant 0 : i32
    return %arg1, %c0_i32, %c0_i32_0 : i32, i32, i32
  }
  func.func @transform_7(%arg0: i32, %arg1: i32) -> (i32, i32, i32) {
    %c0_i32 = arith.constant 0 : i32
    %c0_i32_0 = arith.constant 0 : i32
    %c0_i32_1 = arith.constant 0 : i32
    return %arg1, %c0_i32, %c0_i32_0 : i32, i32, i32
  }
  func.func @transform_8(%arg0: i32, %arg1: i32) -> (i32, i32, i32) {
    %c0_i32 = arith.constant 0 : i32
    %c0_i32_0 = arith.constant 0 : i32
    %c0_i32_1 = arith.constant 0 : i32
    return %arg1, %c0_i32, %c0_i32_0 : i32, i32, i32
  }
  func.func @transform_9(%arg0: i32, %arg1: i32) -> (i32, i32, i32) {
    %c0_i32 = arith.constant 0 : i32
    %c0_i32_0 = arith.constant 0 : i32
    %c0_i32_1 = arith.constant 0 : i32
    return %arg1, %c0_i32, %c0_i32_0 : i32, i32, i32
  }
  func.func @transform_10(%arg0: i32, %arg1: i32) -> (i32, i32, i32) {
    %c0_i32 = arith.constant 0 : i32
    %c0_i32_0 = arith.constant 0 : i32
    %c0_i32_1 = arith.constant 0 : i32
    return %arg1, %c0_i32, %c0_i32_0 : i32, i32, i32
  }
  func.func @transform_11(%arg0: i32, %arg1: i32) -> (i32, i32, i32) {
    %c0_i32 = arith.constant 0 : i32
    %c0_i32_0 = arith.constant 0 : i32
    %c0_i32_1 = arith.constant 0 : i32
    return %arg1, %c0_i32, %c0_i32_0 : i32, i32, i32
  }
  func.func @transform_12(%arg0: i32, %arg1: i32) -> (i32, i32, i32) {
    %c0_i32 = arith.constant 0 : i32
    %c0_i32_0 = arith.constant 0 : i32
    %c0_i32_1 = arith.constant 0 : i32
    return %arg1, %c0_i32, %c0_i32_0 : i32, i32, i32
  }
  func.func @transform_13(%arg0: i32, %arg1: i32) -> (i32, i32, i32) {
    %c0_i32 = arith.constant 0 : i32
    %c0_i32_0 = arith.constant 0 : i32
    %c0_i32_1 = arith.constant 0 : i32
    return %arg1, %c0_i32, %c0_i32_0 : i32, i32, i32
  }
  func.func @transform_14(%arg0: i32, %arg1: i32) -> (i32, i32) {
    %c0_i32 = arith.constant 0 : i32
    %c0_i32_0 = arith.constant 0 : i32
    %c0_i32_1 = arith.constant 0 : i32
    return %c0_i32, %c0_i32_0 : i32, i32
  }
  func.func @transform_15(%arg0: i32, %arg1: i32) -> (i32, i32) {
    %c0_i32 = arith.constant 0 : i32
    %c0_i32_0 = arith.constant 0 : i32
    %c0_i32_1 = arith.constant 0 : i32
    return %c0_i32, %c0_i32_0 : i32, i32
  }
  func.func @transform_16(%arg0: i32, %arg1: i32) -> (i32, i32) {
    %c0_i32 = arith.constant 0 : i32
    %c0_i32_0 = arith.constant 0 : i32
    %c0_i32_1 = arith.constant 0 : i32
    return %c0_i32, %c0_i32_0 : i32, i32
  }
  func.func @transform_17(%arg0: i32, %arg1: i32) -> (i32, i32) {
    %c0_i32 = arith.constant 0 : i32
    %c0_i32_0 = arith.constant 0 : i32
    %c0_i32_1 = arith.constant 0 : i32
    return %c0_i32, %c0_i32_0 : i32, i32
  }
  func.func @transform_18(%arg0: i32, %arg1: i32) -> (i32, i32) {
    %c0_i32 = arith.constant 0 : i32
    %c0_i32_0 = arith.constant 0 : i32
    return %arg0, %c0_i32 : i32, i32
  }
}

</mosaic_0001>

<llo_original>
// kernel: tpu_custom_call.1
$region0: #{tpu_custom_call.1}
  #allocation0 [shape = 'u32[]', space=smem, size = 0x4, offset = 0x4, fixed_abs, tag = 'smem constant byte address 0x4 - core index']
  #allocation1 [shape = 'u32[144,128]{1,0:T(1,128)}', space=vmem, size = 0x12000, scoped, tag = 'internal scratch']
  #allocation2 [shape = 'f32[128,156]{1,0:T(8,128)}', space=vmem, size = 0x20000, scoped, tag = 'scratch operand']
  #allocation3 [shape = 'f32[128,768]{1,0:T(8,128)}', space=vmem, size = 0x60000, scoped, tag = 'scratch operand']
  #allocation4 [shape = 'f32[256,128]{1,0:T(8,128)}', space=vmem, size = 0x20000, scoped, tag = 'scratch operand']
  #allocation5 [shape = 'f32[128,192]{1,0:T(8,128)}', space=vmem, size = 0x20000, scoped, tag = 'scratch operand']
  %s0 = inlined_call_operand.vmem [shape: f32[256,156], index: 0, kind: input, shape index: {}]
  %s1 = inlined_call_operand.vmem [shape: f32[128,128], index: 1, kind: input, shape index: {}]
  %s2 = inlined_call_operand.vmem [shape: f32[6,1,156], index: 2, kind: input, shape index: {}]
  %s3 = inlined_call_operand.vmem [shape: f32[6,1,156], index: 3, kind: input, shape index: {}]
  %s4 = inlined_call_operand.vmem [shape: bf16[6,156,768], index: 4, kind: input, shape index: {}]
  %s5 = inlined_call_operand.vmem [shape: f32[6,1,768], index: 5, kind: input, shape index: {}]
  %s6 = inlined_call_operand.vmem [shape: bf16[6,192,156], index: 6, kind: input, shape index: {}]
  %s7 = inlined_call_operand.vmem [shape: f32[6,1,156], index: 7, kind: input, shape index: {}]
  %s8 = inlined_call_operand.vmem [shape: f32[6,1,156], index: 8, kind: input, shape index: {}]
  %s9 = inlined_call_operand.vmem [shape: f32[6,1,156], index: 9, kind: input, shape index: {}]
  %s10 = inlined_call_operand.vmem [shape: bf16[6,156,624], index: 10, kind: input, shape index: {}]
  %s11 = inlined_call_operand.vmem [shape: f32[6,1,624], index: 11, kind: input, shape index: {}]
  %s12 = inlined_call_operand.vmem [shape: bf16[6,624,156], index: 12, kind: input, shape index: {}]
  %s13 = inlined_call_operand.vmem [shape: f32[6,1,156], index: 13, kind: input, shape index: {}]
  %s14 = inlined_call_operand.vmem [shape: f32[1,156], index: 14, kind: input, shape index: {}]
  %s15 = inlined_call_operand.vmem [shape: f32[1,156], index: 15, kind: input, shape index: {}]
  %s16 = inlined_call_operand.vmem [shape: bf16[156,128], index: 16, kind: input, shape index: {}]
  %s17 = inlined_call_operand.vmem [shape: f32[1,128], index: 17, kind: input, shape index: {}]
  %s18 = inlined_call_operand.hbm [shape: f32[256,128], index: 18, kind: output, shape index: {}]
  %s19 = sld [smem:[#allocation0]]
  $region113: #{tpu_custom_call.1} parent=0
    _
  %s21 = ssub.s32 1, %s19
  %s22 = scalar_select 0, %s21, %s19
  $region1: #{tpu_custom_call.1} parent=0
    #allocation6 [shape = 'u8[131072]{0}', space=vmem, size = 0x20000, scoped, tag = 'output window, operand 0']
    #allocation7 [shape = 's32[2]{0}', space=sflag, size = 0x8, scoped, tag = 'scoped memory for tpu_custom_call.1']
    %23 = vsyncpa [#allocation7], 0
    %s24 = scalar_lea.sflag [#allocation7], 1
    %25 = vsyncpa %s24, 0
    loop: start=0, step=1, limit=14
    $region2: #{tpu_custom_call.1} parent=1 // loop_pre_header
      _
    $region3: #{tpu_custom_call.1} parent=1 // loop_header
      %s27 = sphi 0, %s31
      %p28 = scmp.ge.s32.totalorder %s27, 14
      %s34 = sphi 0, %s46
      %s35 = sphi 0, %s42
      %s36 = sphi 0, %s34
      %s37 = sphi 0, %s35
      %s38 = sphi 0, %s36
      %s39 = sphi 0, %s37
      %s49 = sphi 0, %s51
      %s52 = sphi 0, %s49
      %s53 = sphi 0, %s52
      %s69 = sphi 0, %s53
      %s73 = sphi 0, %s73
      %s75 = sphi 0, %s73
      %s76 = sphi 0, %s75
      %s90 = sphi 0, %s76
      %s96 = sphi 0, %s98
      %s99 = sphi 0, %s96
      %s100 = sphi 0, %s99
      %s116 = sphi 0, %s100
      %s122 = sphi 0, %s124
      %s125 = sphi 0, %s122
      %s126 = sphi 0, %s125
      %s142 = sphi 0, %s126
      %s148 = sphi 0, %s150
      %s151 = sphi 0, %s148
      %s152 = sphi 0, %s151
      %s168 = sphi 0, %s152
      %s174 = sphi 0, %s176
      %s177 = sphi 0, %s174
      %s178 = sphi 0, %s177
      %s194 = sphi 0, %s178
      %s200 = sphi 0, %s202
      %s203 = sphi 0, %s200
      %s204 = sphi 0, %s203
      %s220 = sphi 0, %s204
      %s226 = sphi 0, %s228
      %s229 = sphi 0, %s226
      %s230 = sphi 0, %s229
      %s246 = sphi 0, %s230
      %s252 = sphi 0, %s254
      %s255 = sphi 0, %s252
      %s256 = sphi 0, %s255
      %s272 = sphi 0, %s256
      %s278 = sphi 0, %s280
      %s281 = sphi 0, %s278
      %s282 = sphi 0, %s281
      %s298 = sphi 0, %s282
      %s304 = sphi 0, %s306
      %s307 = sphi 0, %s304
      %s308 = sphi 0, %s307
      %s324 = sphi 0, %s308
      %s330 = sphi 0, %s332
      %s333 = sphi 0, %s330
      %s334 = sphi 0, %s333
      %s350 = sphi 0, %s334
      %s356 = sphi 0, %s358
      %s359 = sphi 0, %s356
      %s360 = sphi 0, %s359
      %s376 = sphi 0, %s360
      %s382 = sphi 0, %s384
      %s385 = sphi 0, %s382
      %s386 = sphi 0, %s385
      %s402 = sphi 0, %s386
      %s406 = sphi 0, %s406
      %s408 = sphi 0, %s406
      %s409 = sphi 0, %s408
      %s423 = sphi 0, %s409
      %s427 = sphi 0, %s427
      %s429 = sphi 0, %s427
      %s430 = sphi 0, %s429
      %s444 = sphi 0, %s430
      %s448 = sphi 0, %s448
      %s450 = sphi 0, %s448
      %s451 = sphi 0, %s450
      %s465 = sphi 0, %s451
      %s469 = sphi 0, %s469
      %s471 = sphi 0, %s469
      %s472 = sphi 0, %s471
      %s486 = sphi 0, %s472
      %s492 = sphi 0, %s494
      %s495 = sphi 0, %s492
      %s496 = sphi 0, %s495
      %s512 = sphi 0, %s496
    $region4: #{tpu_custom_call.1} parent=1 // loop_header_branch
      %30 = sbr.rel (%p28) target = $region8
    $region5: #{tpu_custom_call.1} parent=1 // loop_body
      %s32 = ssub.s32 %s27, 1
      %s33 = ssub.s32 %s27, 2
      %s40 = sadd.s32 1, %s35
      %p41 = scmp.ge.s32.totalorder %s40, 6
      %s42 = scalar_select %p41, 0, %s40
      %s43 = sadd.s32 1, %s34
      %s44 = scalar_select %p41, %s43, %s34
      %p45 = scmp.ge.s32.totalorder %s44, 2
      %s46 = scalar_select %p45, 0, %s44
      %s47 = ssub.s32 %s34, %s46
      %p48 = scmp.eq.s32.totalorder %s47, 0
      %s50 = sadd.s32 %s49, 1
      %s51 = scalar_select %p48, %s49, %s50
      %p54 = pneg %p48
      %p55 = scmp.eq.s32.totalorder %s27, 11
      %p56 = por %p54, %p55
      %p57 = scmp.ne.s32.totalorder %s49, %s52
      %p58 = scmp.eq.s32.totalorder %s27, 0
      %p59 = por %p57, %p58
      %p60 = scmp.ne.s32.totalorder %s49, %s52
      %p61 = scmp.eq.s32.totalorder %s32, 11
      %p62 = por %p60, %p61
      %p63 = scmp.ne.s32.totalorder %s52, %s53
      %p64 = scmp.eq.s32.totalorder %s32, 0
      %p65 = por %p63, %p64
      %p66 = scmp.ne.s32.totalorder %s52, %s53
      %p67 = scmp.eq.s32.totalorder %s33, 11
      %p68 = por %p66, %p67
      %p70 = scmp.ne.s32.totalorder %s53, %s69
      %p71 = scmp.eq.s32.totalorder %s33, 0
      %p72 = por %p70, %p71
      %s74 = sadd.s32 %s73, 1
      %p77 = scmp.eq.s32.totalorder %s27, 11
      %p78 = scmp.ne.s32.totalorder %s73, %s75
      %p79 = scmp.eq.s32.totalorder %s27, 0
      %p80 = por %p78, %p79
      %p81 = scmp.ne.s32.totalorder %s73, %s75
      %p82 = scmp.eq.s32.totalorder %s32, 11
      %p83 = por %p81, %p82
      %p84 = scmp.ne.s32.totalorder %s75, %s76
      %p85 = scmp.eq.s32.totalorder %s32, 0
      %p86 = por %p84, %p85
      %p87 = scmp.ne.s32.totalorder %s75, %s76
      %p88 = scmp.eq.s32.totalorder %s33, 11
      %p89 = por %p87, %p88
      %p91 = scmp.ne.s32.totalorder %s76, %s90
      %p92 = scmp.eq.s32.totalorder %s33, 0
      %p93 = por %p91, %p92
      %s94 = ssub.s32 %s35, %s42
      %p95 = scmp.eq.s32.totalorder %s94, 0
      %s97 = sadd.s32 %s96, 1
      %s98 = scalar_select %p95, %s96, %s97
      %p101 = pneg %p95
      %p102 = scmp.eq.s32.totalorder %s27, 11
      %p103 = por %p101, %p102
      %p104 = scmp.ne.s32.totalorder %s96, %s99
      %p105 = scmp.eq.s32.totalorder %s27, 0
      %p106 = por %p104, %p105
      %p107 = scmp.ne.s32.totalorder %s96, %s99
      %p108 = scmp.eq.s32.totalorder %s32, 11
      %p109 = por %p107, %p108
      %p110 = scmp.ne.s32.totalorder %s99, %s100
      %p111 = scmp.eq.s32.totalorder %s32, 0
      %p112 = por %p110, %p111
      %p113 = scmp.ne.s32.totalorder %s99, %s100
      %p114 = scmp.eq.s32.totalorder %s33, 11
      %p115 = por %p113, %p114
      %p117 = scmp.ne.s32.totalorder %s100, %s116
      %p118 = scmp.eq.s32.totalorder %s33, 0
      %p119 = por %p117, %p118
      %s120 = ssub.s32 %s35, %s42
      %p121 = scmp.eq.s32.totalorder %s120, 0
      %s123 = sadd.s32 %s122, 1
      %s124 = scalar_select %p121, %s122, %s123
      %p127 = pneg %p121
      %p128 = scmp.eq.s32.totalorder %s27, 11
      %p129 = por %p127, %p128
      %p130 = scmp.ne.s32.totalorder %s122, %s125
      %p131 = scmp.eq.s32.totalorder %s27, 0
      %p132 = por %p130, %p131
      %p133 = scmp.ne.s32.totalorder %s122, %s125
      %p134 = scmp.eq.s32.totalorder %s32, 11
      %p135 = por %p133, %p134
      %p136 = scmp.ne.s32.totalorder %s125, %s126
      %p137 = scmp.eq.s32.totalorder %s32, 0
      %p138 = por %p136, %p137
      %p139 = scmp.ne.s32.totalorder %s125, %s126
      %p140 = scmp.eq.s32.totalorder %s33, 11
      %p141 = por %p139, %p140
      %p143 = scmp.ne.s32.totalorder %s126, %s142
      %p144 = scmp.eq.s32.totalorder %s33, 0
      %p145 = por %p143, %p144
      %s146 = ssub.s32 %s35, %s42
      %p147 = scmp.eq.s32.totalorder %s146, 0
      %s149 = sadd.s32 %s148, 1
      %s150 = scalar_select %p147, %s148, %s149
      %p153 = pneg %p147
      %p154 = scmp.eq.s32.totalorder %s27, 11
      %p155 = por %p153, %p154
      %p156 = scmp.ne.s32.totalorder %s148, %s151
      %p157 = scmp.eq.s32.totalorder %s27, 0
      %p158 = por %p156, %p157
      %p159 = scmp.ne.s32.totalorder %s148, %s151
      %p160 = scmp.eq.s32.totalorder %s32, 11
      %p161 = por %p159, %p160
      %p162 = scmp.ne.s32.totalorder %s151, %s152
      %p163 = scmp.eq.s32.totalorder %s32, 0
      %p164 = por %p162, %p163
      %p165 = scmp.ne.s32.totalorder %s151, %s152
      %p166 = scmp.eq.s32.totalorder %s33, 11
      %p167 = por %p165, %p166
      %p169 = scmp.ne.s32.totalorder %s152, %s168
      %p170 = scmp.eq.s32.totalorder %s33, 0
      %p171 = por %p169, %p170
      %s172 = ssub.s32 %s35, %s42
      %p173 = scmp.eq.s32.totalorder %s172, 0
      %s175 = sadd.s32 %s174, 1
      %s176 = scalar_select %p173, %s174, %s175
      %p179 = pneg %p173
      %p180 = scmp.eq.s32.totalorder %s27, 11
      %p181 = por %p179, %p180
      %p182 = scmp.ne.s32.totalorder %s174, %s177
      %p183 = scmp.eq.s32.totalorder %s27, 0
      %p184 = por %p182, %p183
      %p185 = scmp.ne.s32.totalorder %s174, %s177
      %p186 = scmp.eq.s32.totalorder %s32, 11
      %p187 = por %p185, %p186
      %p188 = scmp.ne.s32.totalorder %s177, %s178
      %p189 = scmp.eq.s32.totalorder %s32, 0
      %p190 = por %p188, %p189
      %p191 = scmp.ne.s32.totalorder %s177, %s178
      %p192 = scmp.eq.s32.totalorder %s33, 11
      %p193 = por %p191, %p192
      %p195 = scmp.ne.s32.totalorder %s178, %s194
      %p196 = scmp.eq.s32.totalorder %s33, 0
      %p197 = por %p195, %p196
      %s198 = ssub.s32 %s35, %s42
      %p199 = scmp.eq.s32.totalorder %s198, 0
      %s201 = sadd.s32 %s200, 1
      %s202 = scalar_select %p199, %s200, %s201
      %p205 = pneg %p199
      %p206 = scmp.eq.s32.totalorder %s27, 11
      %p207 = por %p205, %p206
      %p208 = scmp.ne.s32.totalorder %s200, %s203
      %p209 = scmp.eq.s32.totalorder %s27, 0
      %p210 = por %p208, %p209
      %p211 = scmp.ne.s32.totalorder %s200, %s203
      %p212 = scmp.eq.s32.totalorder %s32, 11
      %p213 = por %p211, %p212
      %p214 = scmp.ne.s32.totalorder %s203, %s204
      %p215 = scmp.eq.s32.totalorder %s32, 0
      %p216 = por %p214, %p215
      %p217 = scmp.ne.s32.totalorder %s203, %s204
      %p218 = scmp.eq.s32.totalorder %s33, 11
      %p219 = por %p217, %p218
      %p221 = scmp.ne.s32.totalorder %s204, %s220
      %p222 = scmp.eq.s32.totalorder %s33, 0
      %p223 = por %p221, %p222
      %s224 = ssub.s32 %s35, %s42
      %p225 = scmp.eq.s32.totalorder %s224, 0
      %s227 = sadd.s32 %s226, 1
      %s228 = scalar_select %p225, %s226, %s227
      %p231 = pneg %p225
      %p232 = scmp.eq.s32.totalorder %s27, 11
      %p233 = por %p231, %p232
      %p234 = scmp.ne.s32.totalorder %s226, %s229
      %p235 = scmp.eq.s32.totalorder %s27, 0
      %p236 = por %p234, %p235
      %p237 = scmp.ne.s32.totalorder %s226, %s229
      %p238 = scmp.eq.s32.totalorder %s32, 11
      %p239 = por %p237, %p238
      %p240 = scmp.ne.s32.totalorder %s229, %s230
      %p241 = scmp.eq.s32.totalorder %s32, 0
      %p242 = por %p240, %p241
      %p243 = scmp.ne.s32.totalorder %s229, %s230
      %p244 = scmp.eq.s32.totalorder %s33, 11
      %p245 = por %p243, %p244
      %p247 = scmp.ne.s32.totalorder %s230, %s246
      %p248 = scmp.eq.s32.totalorder %s33, 0
      %p249 = por %p247, %p248
      %s250 = ssub.s32 %s35, %s42
      %p251 = scmp.eq.s32.totalorder %s250, 0
      %s253 = sadd.s32 %s252, 1
      %s254 = scalar_select %p251, %s252, %s253
      %p257 = pneg %p251
      %p258 = scmp.eq.s32.totalorder %s27, 11
      %p259 = por %p257, %p258
      %p260 = scmp.ne.s32.totalorder %s252, %s255
      %p261 = scmp.eq.s32.totalorder %s27, 0
      %p262 = por %p260, %p261
      %p263 = scmp.ne.s32.totalorder %s252, %s255
      %p264 = scmp.eq.s32.totalorder %s32, 11
      %p265 = por %p263, %p264
      %p266 = scmp.ne.s32.totalorder %s255, %s256
      %p267 = scmp.eq.s32.totalorder %s32, 0
      %p268 = por %p266, %p267
      %p269 = scmp.ne.s32.totalorder %s255, %s256
      %p270 = scmp.eq.s32.totalorder %s33, 11
      %p271 = por %p269, %p270
      %p273 = scmp.ne.s32.totalorder %s256, %s272
      %p274 = scmp.eq.s32.totalorder %s33, 0
      %p275 = por %p273, %p274
      %s276 = ssub.s32 %s35, %s42
      %p277 = scmp.eq.s32.totalorder %s276, 0
      %s279 = sadd.s32 %s278, 1
      %s280 = scalar_select %p277, %s278, %s279
      %p283 = pneg %p277
      %p284 = scmp.eq.s32.totalorder %s27, 11
      %p285 = por %p283, %p284
      %p286 = scmp.ne.s32.totalorder %s278, %s281
      %p287 = scmp.eq.s32.totalorder %s27, 0
      %p288 = por %p286, %p287
      %p289 = scmp.ne.s32.totalorder %s278, %s281
      %p290 = scmp.eq.s32.totalorder %s32, 11
      %p291 = por %p289, %p290
      %p292 = scmp.ne.s32.totalorder %s281, %s282
      %p293 = scmp.eq.s32.totalorder %s32, 0
      %p294 = por %p292, %p293
      %p295 = scmp.ne.s32.totalorder %s281, %s282
      %p296 = scmp.eq.s32.totalorder %s33, 11
      %p297 = por %p295, %p296
      %p299 = scmp.ne.s32.totalorder %s282, %s298
      %p300 = scmp.eq.s32.totalorder %s33, 0
      %p301 = por %p299, %p300
      %s302 = ssub.s32 %s35, %s42
      %p303 = scmp.eq.s32.totalorder %s302, 0
      %s305 = sadd.s32 %s304, 1
      %s306 = scalar_select %p303, %s304, %s305
      %p309 = pneg %p303
      %p310 = scmp.eq.s32.totalorder %s27, 11
      %p311 = por %p309, %p310
      %p312 = scmp.ne.s32.totalorder %s304, %s307
      %p313 = scmp.eq.s32.totalorder %s27, 0
      %p314 = por %p312, %p313
      %p315 = scmp.ne.s32.totalorder %s304, %s307
      %p316 = scmp.eq.s32.totalorder %s32, 11
      %p317 = por %p315, %p316
      %p318 = scmp.ne.s32.totalorder %s307, %s308
      %p319 = scmp.eq.s32.totalorder %s32, 0
      %p320 = por %p318, %p319
      %p321 = scmp.ne.s32.totalorder %s307, %s308
      %p322 = scmp.eq.s32.totalorder %s33, 11
      %p323 = por %p321, %p322
      %p325 = scmp.ne.s32.totalorder %s308, %s324
      %p326 = scmp.eq.s32.totalorder %s33, 0
      %p327 = por %p325, %p326
      %s328 = ssub.s32 %s35, %s42
      %p329 = scmp.eq.s32.totalorder %s328, 0
      %s331 = sadd.s32 %s330, 1
      %s332 = scalar_select %p329, %s330, %s331
      %p335 = pneg %p329
      %p336 = scmp.eq.s32.totalorder %s27, 11
      %p337 = por %p335, %p336
      %p338 = scmp.ne.s32.totalorder %s330, %s333
      %p339 = scmp.eq.s32.totalorder %s27, 0
      %p340 = por %p338, %p339
      %p341 = scmp.ne.s32.totalorder %s330, %s333
      %p342 = scmp.eq.s32.totalorder %s32, 11
      %p343 = por %p341, %p342
      %p344 = scmp.ne.s32.totalorder %s333, %s334
      %p345 = scmp.eq.s32.totalorder %s32, 0
      %p346 = por %p344, %p345
      %p347 = scmp.ne.s32.totalorder %s333, %s334
      %p348 = scmp.eq.s32.totalorder %s33, 11
      %p349 = por %p347, %p348
      %p351 = scmp.ne.s32.totalorder %s334, %s350
      %p352 = scmp.eq.s32.totalorder %s33, 0
      %p353 = por %p351, %p352
      %s354 = ssub.s32 %s35, %s42
      %p355 = scmp.eq.s32.totalorder %s354, 0
      %s357 = sadd.s32 %s356, 1
      %s358 = scalar_select %p355, %s356, %s357
      %p361 = pneg %p355
      %p362 = scmp.eq.s32.totalorder %s27, 11
      %p363 = por %p361, %p362
      %p364 = scmp.ne.s32.totalorder %s356, %s359
      %p365 = scmp.eq.s32.totalorder %s27, 0
      %p366 = por %p364, %p365
      %p367 = scmp.ne.s32.totalorder %s356, %s359
      %p368 = scmp.eq.s32.totalorder %s32, 11
      %p369 = por %p367, %p368
      %p370 = scmp.ne.s32.totalorder %s359, %s360
      %p371 = scmp.eq.s32.totalorder %s32, 0
      %p372 = por %p370, %p371
      %p373 = scmp.ne.s32.totalorder %s359, %s360
      %p374 = scmp.eq.s32.totalorder %s33, 11
      %p375 = por %p373, %p374
      %p377 = scmp.ne.s32.totalorder %s360, %s376
      %p378 = scmp.eq.s32.totalorder %s33, 0
      %p379 = por %p377, %p378
      %s380 = ssub.s32 %s35, %s42
      %p381 = scmp.eq.s32.totalorder %s380, 0
      %s383 = sadd.s32 %s382, 1
      %s384 = scalar_select %p381, %s382, %s383
      %p387 = pneg %p381
      %p388 = scmp.eq.s32.totalorder %s27, 11
      %p389 = por %p387, %p388
      %p390 = scmp.ne.s32.totalorder %s382, %s385
      %p391 = scmp.eq.s32.totalorder %s27, 0
      %p392 = por %p390, %p391
      %p393 = scmp.ne.s32.totalorder %s382, %s385
      %p394 = scmp.eq.s32.totalorder %s32, 11
      %p395 = por %p393, %p394
      %p396 = scmp.ne.s32.totalorder %s385, %s386
      %p397 = scmp.eq.s32.totalorder %s32, 0
      %p398 = por %p396, %p397
      %p399 = scmp.ne.s32.totalorder %s385, %s386
      %p400 = scmp.eq.s32.totalorder %s33, 11
      %p401 = por %p399, %p400
      %p403 = scmp.ne.s32.totalorder %s386, %s402
      %p404 = scmp.eq.s32.totalorder %s33, 0
      %p405 = por %p403, %p404
      %s407 = sadd.s32 %s406, 1
      %p410 = scmp.eq.s32.totalorder %s27, 11
      %p411 = scmp.ne.s32.totalorder %s406, %s408
      %p412 = scmp.eq.s32.totalorder %s27, 0
      %p413 = por %p411, %p412
      %p414 = scmp.ne.s32.totalorder %s406, %s408
      %p415 = scmp.eq.s32.totalorder %s32, 11
      %p416 = por %p414, %p415
      %p417 = scmp.ne.s32.totalorder %s408, %s409
      %p418 = scmp.eq.s32.totalorder %s32, 0
      %p419 = por %p417, %p418
      %p420 = scmp.ne.s32.totalorder %s408, %s409
      %p421 = scmp.eq.s32.totalorder %s33, 11
      %p422 = por %p420, %p421
      %p424 = scmp.ne.s32.totalorder %s409, %s423
      %p425 = scmp.eq.s32.totalorder %s33, 0
      %p426 = por %p424, %p425
      %s428 = sadd.s32 %s427, 1
      %p431 = scmp.eq.s32.totalorder %s27, 11
      %p432 = scmp.ne.s32.totalorder %s427, %s429
      %p433 = scmp.eq.s32.totalorder %s27, 0
      %p434 = por %p432, %p433
      %p435 = scmp.ne.s32.totalorder %s427, %s429
      %p436 = scmp.eq.s32.totalorder %s32, 11
      %p437 = por %p435, %p436
      %p438 = scmp.ne.s32.totalorder %s429, %s430
      %p439 = scmp.eq.s32.totalorder %s32, 0
      %p440 = por %p438, %p439
      %p441 = scmp.ne.s32.totalorder %s429, %s430
      %p442 = scmp.eq.s32.totalorder %s33, 11
      %p443 = por %p441, %p442
      %p445 = scmp.ne.s32.totalorder %s430, %s444
      %p446 = scmp.eq.s32.totalorder %s33, 0
      %p447 = por %p445, %p446
      %s449 = sadd.s32 %s448, 1
      %p452 = scmp.eq.s32.totalorder %s27, 11
      %p453 = scmp.ne.s32.totalorder %s448, %s450
      %p454 = scmp.eq.s32.totalorder %s27, 0
      %p455 = por %p453, %p454
      %p456 = scmp.ne.s32.totalorder %s448, %s450
      %p457 = scmp.eq.s32.totalorder %s32, 11
      %p458 = por %p456, %p457
      %p459 = scmp.ne.s32.totalorder %s450, %s451
      %p460 = scmp.eq.s32.totalorder %s32, 0
      %p461 = por %p459, %p460
      %p462 = scmp.ne.s32.totalorder %s450, %s451
      %p463 = scmp.eq.s32.totalorder %s33, 11
      %p464 = por %p462, %p463
      %p466 = scmp.ne.s32.totalorder %s451, %s465
      %p467 = scmp.eq.s32.totalorder %s33, 0
      %p468 = por %p466, %p467
      %s470 = sadd.s32 %s469, 1
      %p473 = scmp.eq.s32.totalorder %s27, 11
      %p474 = scmp.ne.s32.totalorder %s469, %s471
      %p475 = scmp.eq.s32.totalorder %s27, 0
      %p476 = por %p474, %p475
      %p477 = scmp.ne.s32.totalorder %s469, %s471
      %p478 = scmp.eq.s32.totalorder %s32, 11
      %p479 = por %p477, %p478
      %p480 = scmp.ne.s32.totalorder %s471, %s472
      %p481 = scmp.eq.s32.totalorder %s32, 0
      %p482 = por %p480, %p481
      %p483 = scmp.ne.s32.totalorder %s471, %s472
      %p484 = scmp.eq.s32.totalorder %s33, 11
      %p485 = por %p483, %p484
      %p487 = scmp.ne.s32.totalorder %s472, %s486
      %p488 = scmp.eq.s32.totalorder %s33, 0
      %p489 = por %p487, %p488
      %s490 = ssub.s32 %s34, %s46
      %p491 = scmp.eq.s32.totalorder %s490, 0
      %s493 = sadd.s32 %s492, 1
      %s494 = scalar_select %p491, %s492, %s493
      %p497 = pneg %p491
      %p498 = scmp.eq.s32.totalorder %s27, 11
      %p499 = por %p497, %p498
      %p500 = scmp.ne.s32.totalorder %s492, %s495
      %p501 = scmp.eq.s32.totalorder %s27, 0
      %p502 = por %p500, %p501
      %p503 = scmp.ne.s32.totalorder %s492, %s495
      %p504 = scmp.eq.s32.totalorder %s32, 11
      %p505 = por %p503, %p504
      %p506 = scmp.ne.s32.totalorder %s495, %s496
      %p507 = scmp.eq.s32.totalorder %s32, 0
      %p508 = por %p506, %p507
      %p509 = scmp.ne.s32.totalorder %s495, %s496
      %p510 = scmp.eq.s32.totalorder %s33, 11
      %p511 = por %p509, %p510
      %p513 = scmp.ne.s32.totalorder %s496, %s512
      %p514 = scmp.eq.s32.totalorder %s33, 0
      %p515 = por %p513, %p514
      %p516 = scmp.le.s32.totalorder 1, %s27
      %p517 = scmp.lt.s32.totalorder %s27, 13
      %p518 = pnand %p516, %p517
      %p519 = pneg %p518
      // Predicated region
      $region9: #{tpu_custom_call.1} parent=5 // pred_check
        _
      $region10: #{tpu_custom_call.1} parent=5 // pred_check_branch
        %521 = sbr.rel (%p518) target = $region12
      $region11: #{tpu_custom_call.1} parent=5 // pred_region
        %s522 = ssub.s32 %s27, 1
        // Predicated region
        $region13: #{tpu_custom_call.1} parent=11 // pred_check
          %p523 = pneg %p86
        $region14: #{tpu_custom_call.1} parent=11 // pred_check_branch
          %525 = sbr.rel (%p523) target = $region16
        $region15: #{tpu_custom_call.1} parent=11 // pred_region
          _
        $region16: #{tpu_custom_call.1} parent=11 // pred_fallthru
          _
        // Predicated region
        $region17: #{tpu_custom_call.1} parent=11 // pred_check
          %p526 = pneg %p419
        $region18: #{tpu_custom_call.1} parent=11 // pred_check_branch
          %528 = sbr.rel (%p526) target = $region20
        $region19: #{tpu_custom_call.1} parent=11 // pred_region
          _
        $region20: #{tpu_custom_call.1} parent=11 // pred_fallthru
          _
        // Predicated region
        $region21: #{tpu_custom_call.1} parent=11 // pred_check
          %p529 = pneg %p440
        $region22: #{tpu_custom_call.1} parent=11 // pred_check_branch
          %531 = sbr.rel (%p529) target = $region24
        $region23: #{tpu_custom_call.1} parent=11 // pred_region
          _
        $region24: #{tpu_custom_call.1} parent=11 // pred_fallthru
          _
        // Predicated region
        $region25: #{tpu_custom_call.1} parent=11 // pred_check
          %p532 = pneg %p461
        $region26: #{tpu_custom_call.1} parent=11 // pred_check_branch
          %534 = sbr.rel (%p532) target = $region28
        $region27: #{tpu_custom_call.1} parent=11 // pred_region
          _
        $region28: #{tpu_custom_call.1} parent=11 // pred_fallthru
          _
        // Predicated region
        $region29: #{tpu_custom_call.1} parent=11 // pred_check
          %p535 = pneg %p482
        $region30: #{tpu_custom_call.1} parent=11 // pred_check_branch
          %537 = sbr.rel (%p535) target = $region32
        $region31: #{tpu_custom_call.1} parent=11 // pred_region
          _
        $region32: #{tpu_custom_call.1} parent=11 // pred_fallthru
          _
      $region12: #{tpu_custom_call.1} parent=5 // pred_fallthru
        _
      %p538 = scmp.lt.s32.totalorder %s27, 12
      // Predicated region
      $region33: #{tpu_custom_call.1} parent=5 // pred_check
        %p539 = pneg %p538
      $region34: #{tpu_custom_call.1} parent=5 // pred_check_branch
        %541 = sbr.rel (%p539) target = $region36
      $region35: #{tpu_custom_call.1} parent=5 // pred_region
        // Predicated region
        $region37: #{tpu_custom_call.1} parent=35 // pred_check
          %p542 = pneg %p59
        $region38: #{tpu_custom_call.1} parent=35 // pred_check_branch
          %544 = sbr.rel (%p542) target = $region40
        $region39: #{tpu_custom_call.1} parent=35 // pred_region
          %s545 = smul.u32 16, %s34
          %p546 = scmp.lt.s32.totalorder %s545, 31
          %s547 = scalar_select %p546, %s545, 31
          %s548 = smul.addr %s547, 2
          %s549 = smul.addr %s548, 8
          %s550 = scalar_lea.vmem %s0, %s549
          %s551 = smul.u32 16, %s34
        $region40: #{tpu_custom_call.1} parent=35 // pred_fallthru
          _
        // Predicated region
        $region41: #{tpu_custom_call.1} parent=35 // pred_check
          %p552 = pneg %p106
        $region42: #{tpu_custom_call.1} parent=35 // pred_check_branch
          %554 = sbr.rel (%p552) target = $region44
        $region43: #{tpu_custom_call.1} parent=35 // pred_region
          %p555 = scmp.lt.s32.totalorder %s35, 5
          %s556 = scalar_select %p555, %s35, 5
          %s557 = smul.addr %s556, 2
          %s558 = scalar_lea.vmem %s2, %s557
        $region44: #{tpu_custom_call.1} parent=35 // pred_fallthru
          _
        // Predicated region
        $region45: #{tpu_custom_call.1} parent=35 // pred_check
          %p559 = pneg %p132
        $region46: #{tpu_custom_call.1} parent=35 // pred_check_branch
          %561 = sbr.rel (%p559) target = $region48
        $region47: #{tpu_custom_call.1} parent=35 // pred_region
          %p562 = scmp.lt.s32.totalorder %s35, 5
          %s563 = scalar_select %p562, %s35, 5
          %s564 = smul.addr %s563, 2
          %s565 = scalar_lea.vmem %s3, %s564
        $region48: #{tpu_custom_call.1} parent=35 // pred_fallthru
          _
        // Predicated region
        $region49: #{tpu_custom_call.1} parent=35 // pred_check
          %p566 = pneg %p158
        $region50: #{tpu_custom_call.1} parent=35 // pred_check_branch
          %568 = sbr.rel (%p566) target = $region52
        $region51: #{tpu_custom_call.1} parent=35 // pred_region
          %p569 = scmp.lt.s32.totalorder %s35, 5
          %s570 = scalar_select %p569, %s35, 5
          %s571 = smul.addr %s570, 120
          %s572 = smul.addr %s571, 4
          %s573 = scalar_lea.vmem %s4, %s572
        $region52: #{tpu_custom_call.1} parent=35 // pred_fallthru
          _
        // Predicated region
        $region53: #{tpu_custom_call.1} parent=35 // pred_check
          %p574 = pneg %p184
        $region54: #{tpu_custom_call.1} parent=35 // pred_check_branch
          %576 = sbr.rel (%p574) target = $region56
        $region55: #{tpu_custom_call.1} parent=35 // pred_region
          %p577 = scmp.lt.s32.totalorder %s35, 5
          %s578 = scalar_select %p577, %s35, 5
          %s579 = smul.addr %s578, 6
          %s580 = scalar_lea.vmem %s5, %s579
        $region56: #{tpu_custom_call.1} parent=35 // pred_fallthru
          _
        // Predicated region
        $region57: #{tpu_custom_call.1} parent=35 // pred_check
          %p581 = pneg %p210
        $region58: #{tpu_custom_call.1} parent=35 // pred_check_branch
          %583 = sbr.rel (%p581) target = $region60
        $region59: #{tpu_custom_call.1} parent=35 // pred_region
          %p584 = scmp.lt.s32.totalorder %s35, 5
          %s585 = scalar_select %p584, %s35, 5
          %s586 = smul.addr %s585, 48
          %s587 = smul.addr %s586, 4
          %s588 = scalar_lea.vmem %s6, %s587
        $region60: #{tpu_custom_call.1} parent=35 // pred_fallthru
          _
        // Predicated region
        $region61: #{tpu_custom_call.1} parent=35 // pred_check
          %p589 = pneg %p236
        $region62: #{tpu_custom_call.1} parent=35 // pred_check_branch
          %591 = sbr.rel (%p589) target = $region64
        $region63: #{tpu_custom_call.1} parent=35 // pred_region
          %p592 = scmp.lt.s32.totalorder %s35, 5
          %s593 = scalar_select %p592, %s35, 5
          %s594 = smul.addr %s593, 2
          %s595 = scalar_lea.vmem %s7, %s594
        $region64: #{tpu_custom_call.1} parent=35 // pred_fallthru
          _
        // Predicated region
        $region65: #{tpu_custom_call.1} parent=35 // pred_check
          %p596 = pneg %p262
        $region66: #{tpu_custom_call.1} parent=35 // pred_check_branch
          %598 = sbr.rel (%p596) target = $region68
        $region67: #{tpu_custom_call.1} parent=35 // pred_region
          %p599 = scmp.lt.s32.totalorder %s35, 5
          %s600 = scalar_select %p599, %s35, 5
          %s601 = smul.addr %s600, 2
          %s602 = scalar_lea.vmem %s8, %s601
        $region68: #{tpu_custom_call.1} parent=35 // pred_fallthru
          _
        // Predicated region
        $region69: #{tpu_custom_call.1} parent=35 // pred_check
          %p603 = pneg %p288
        $region70: #{tpu_custom_call.1} parent=35 // pred_check_branch
          %605 = sbr.rel (%p603) target = $region72
        $region71: #{tpu_custom_call.1} parent=35 // pred_region
          %p606 = scmp.lt.s32.totalorder %s35, 5
          %s607 = scalar_select %p606, %s35, 5
          %s608 = smul.addr %s607, 2
          %s609 = scalar_lea.vmem %s9, %s608
        $region72: #{tpu_custom_call.1} parent=35 // pred_fallthru
          _
        // Predicated region
        $region73: #{tpu_custom_call.1} parent=35 // pred_check
          %p610 = pneg %p314
        $region74: #{tpu_custom_call.1} parent=35 // pred_check_branch
          %612 = sbr.rel (%p610) target = $region76
        $region75: #{tpu_custom_call.1} parent=35 // pred_region
          %p613 = scmp.lt.s32.totalorder %s35, 5
          %s614 = scalar_select %p613, %s35, 5
          %s615 = smul.addr %s614, 100
          %s616 = smul.addr %s615, 4
          %s617 = scalar_lea.vmem %s10, %s616
        $region76: #{tpu_custom_call.1} parent=35 // pred_fallthru
          _
        // Predicated region
        $region77: #{tpu_custom_call.1} parent=35 // pred_check
          %p618 = pneg %p340
        $region78: #{tpu_custom_call.1} parent=35 // pred_check_branch
          %620 = sbr.rel (%p618) target = $region80
        $region79: #{tpu_custom_call.1} parent=35 // pred_region
          %p621 = scmp.lt.s32.totalorder %s35, 5
          %s622 = scalar_select %p621, %s35, 5
          %s623 = smul.addr %s622, 5
          %s624 = scalar_lea.vmem %s11, %s623
        $region80: #{tpu_custom_call.1} parent=35 // pred_fallthru
          _
        // Predicated region
        $region81: #{tpu_custom_call.1} parent=35 // pred_check
          %p625 = pneg %p366
        $region82: #{tpu_custom_call.1} parent=35 // pred_check_branch
          %627 = sbr.rel (%p625) target = $region84
        $region83: #{tpu_custom_call.1} parent=35 // pred_region
          %p628 = scmp.lt.s32.totalorder %s35, 5
          %s629 = scalar_select %p628, %s35, 5
          %s630 = smul.addr %s629, 156
          %s631 = smul.addr %s630, 4
          %s632 = scalar_lea.vmem %s12, %s631
        $region84: #{tpu_custom_call.1} parent=35 // pred_fallthru
          _
        // Predicated region
        $region85: #{tpu_custom_call.1} parent=35 // pred_check
          %p633 = pneg %p392
        $region86: #{tpu_custom_call.1} parent=35 // pred_check_branch
          %635 = sbr.rel (%p633) target = $region88
        $region87: #{tpu_custom_call.1} parent=35 // pred_region
          %p636 = scmp.lt.s32.totalorder %s35, 5
          %s637 = scalar_select %p636, %s35, 5
          %s638 = smul.addr %s637, 2
          %s639 = scalar_lea.vmem %s13, %s638
        $region88: #{tpu_custom_call.1} parent=35 // pred_fallthru
          _
      $region36: #{tpu_custom_call.1} parent=5 // pred_fallthru
        _
      %p640 = scmp.le.s32.totalorder 1, %s27
      %p641 = scmp.lt.s32.totalorder %s27, 13
      %p642 = pnand %p640, %p641
      %p643 = pneg %p642
      // Predicated region
      $region89: #{tpu_custom_call.1} parent=5 // pred_check
        _
      $region90: #{tpu_custom_call.1} parent=5 // pred_check_branch
        %645 = sbr.rel (%p642) target = $region92
      $region91: #{tpu_custom_call.1} parent=5 // pred_region
        %s646 = ssub.s32 %s27, 1
        %s647 = smul.u32 16, %s36
        %p648 = scmp.lt.s32.totalorder %s647, 31
        %s649 = scalar_select %p648, %s647, 31
        %s650 = smul.addr %s649, 2
        %s651 = smul.addr %s650, 8
        %s652 = scalar_lea.vmem %s0, %s651
        %p653 = pneg %p65
        %p654 = pneg %p62
        %p655 = pneg %p86
        %p656 = pneg %p83
        %p657 = scmp.lt.s32.totalorder %s37, 5
        %s658 = scalar_select %p657, %s37, 5
        %s659 = smul.addr %s658, 2
        %s660 = scalar_lea.vmem %s2, %s659
        %p661 = pneg %p112
        %p662 = pneg %p109
        %p663 = scmp.lt.s32.totalorder %s37, 5
        %s664 = scalar_select %p663, %s37, 5
        %s665 = smul.addr %s664, 2
        %s666 = scalar_lea.vmem %s3, %s665
        %p667 = pneg %p138
        %p668 = pneg %p135
        %p669 = scmp.lt.s32.totalorder %s37, 5
        %s670 = scalar_select %p669, %s37, 5
        %s671 = smul.addr %s670, 120
        %s672 = smul.addr %s671, 4
        %s673 = scalar_lea.vmem %s4, %s672
        %p674 = pneg %p164
        %p675 = pneg %p161
        %p676 = scmp.lt.s32.totalorder %s37, 5
        %s677 = scalar_select %p676, %s37, 5
        %s678 = smul.addr %s677, 6
        %s679 = scalar_lea.vmem %s5, %s678
        %p680 = pneg %p190
        %p681 = pneg %p187
        %p682 = scmp.lt.s32.totalorder %s37, 5
        %s683 = scalar_select %p682, %s37, 5
        %s684 = smul.addr %s683, 48
        %s685 = smul.addr %s684, 4
        %s686 = scalar_lea.vmem %s6, %s685
        %p687 = pneg %p216
        %p688 = pneg %p213
        %p689 = scmp.lt.s32.totalorder %s37, 5
        %s690 = scalar_select %p689, %s37, 5
        %s691 = smul.addr %s690, 2
        %s692 = scalar_lea.vmem %s7, %s691
        %p693 = pneg %p242
        %p694 = pneg %p239
        %p695 = scmp.lt.s32.totalorder %s37, 5
        %s696 = scalar_select %p695, %s37, 5
        %s697 = smul.addr %s696, 2
        %s698 = scalar_lea.vmem %s8, %s697
        %p699 = pneg %p268
        %p700 = pneg %p265
        %p701 = scmp.lt.s32.totalorder %s37, 5
        %s702 = scalar_select %p701, %s37, 5
        %s703 = smul.addr %s702, 2
        %s704 = scalar_lea.vmem %s9, %s703
        %p705 = pneg %p294
        %p706 = pneg %p291
        %p707 = scmp.lt.s32.totalorder %s37, 5
        %s708 = scalar_select %p707, %s37, 5
        %s709 = smul.addr %s708, 100
        %s710 = smul.addr %s709, 4
        %s711 = scalar_lea.vmem %s10, %s710
        %p712 = pneg %p320
        %p713 = pneg %p317
        %p714 = scmp.lt.s32.totalorder %s37, 5
        %s715 = scalar_select %p714, %s37, 5
        %s716 = smul.addr %s715, 5
        %s717 = scalar_lea.vmem %s11, %s716
        %p718 = pneg %p346
        %p719 = pneg %p343
        %p720 = scmp.lt.s32.totalorder %s37, 5
        %s721 = scalar_select %p720, %s37, 5
        %s722 = smul.addr %s721, 156
        %s723 = smul.addr %s722, 4
        %s724 = scalar_lea.vmem %s12, %s723
        %p725 = pneg %p372
        %p726 = pneg %p369
        %p727 = scmp.lt.s32.totalorder %s37, 5
        %s728 = scalar_select %p727, %s37, 5
        %s729 = smul.addr %s728, 2
        %s730 = scalar_lea.vmem %s13, %s729
        %p731 = pneg %p398
        %p732 = pneg %p395
        %p733 = pneg %p419
        %p734 = pneg %p416
        %p735 = pneg %p440
        %p736 = pneg %p437
        %p737 = pneg %p461
        %p738 = pneg %p458
        %p739 = pneg %p482
        %p740 = pneg %p479
        %p741 = pneg %p508
        %p742 = pneg %p505
        %s743 = sand.u32 %s495, 1
        %s744 = scalar_lea.sflag [#allocation7], %s743
        %s745 = sand.u32 %s495, 1
        %s746 = smul.addr %s745, 128
        %s747 = scalar_lea.vmem [#allocation6], %s746
        %s748 = smul.u32 16, %s36
        %p749 = scmp.lt.s32.totalorder %s748, 31
        %s750 = scalar_select %p749, %s748, 31
        %s751 = smul.addr %s750, 2
        %s752 = smul.addr %s751, 8
        %s753 = scalar_lea.vmem %s0, %s752
        %s754 = smul.u32 16, %s36
        %p755 = scmp.lt.s32.totalorder %s37, 5
        %s756 = scalar_select %p755, %s37, 5
        %s757 = smul.addr %s756, 2
        %s758 = scalar_lea.vmem %s2, %s757
        %p759 = scmp.lt.s32.totalorder %s37, 5
        %s760 = scalar_select %p759, %s37, 5
        %s761 = smul.addr %s760, 2
        %s762 = scalar_lea.vmem %s3, %s761
        %p763 = scmp.lt.s32.totalorder %s37, 5
        %s764 = scalar_select %p763, %s37, 5
        %s765 = smul.addr %s764, 120
        %s766 = smul.addr %s765, 4
        %s767 = scalar_lea.vmem %s4, %s766
        %p768 = scmp.lt.s32.totalorder %s37, 5
        %s769 = scalar_select %p768, %s37, 5
        %s770 = smul.addr %s769, 6
        %s771 = scalar_lea.vmem %s5, %s770
        %p772 = scmp.lt.s32.totalorder %s37, 5
        %s773 = scalar_select %p772, %s37, 5
        %s774 = smul.addr %s773, 48
        %s775 = smul.addr %s774, 4
        %s776 = scalar_lea.vmem %s6, %s775
        %p777 = scmp.lt.s32.totalorder %s37, 5
        %s778 = scalar_select %p777, %s37, 5
        %s779 = smul.addr %s778, 2
        %s780 = scalar_lea.vmem %s7, %s779
        %p781 = scmp.lt.s32.totalorder %s37, 5
        %s782 = scalar_select %p781, %s37, 5
        %s783 = smul.addr %s782, 2
        %s784 = scalar_lea.vmem %s8, %s783
        %p785 = scmp.lt.s32.totalorder %s37, 5
        %s786 = scalar_select %p785, %s37, 5
        %s787 = smul.addr %s786, 2
        %s788 = scalar_lea.vmem %s9, %s787
        %p789 = scmp.lt.s32.totalorder %s37, 5
        %s790 = scalar_select %p789, %s37, 5
        %s791 = smul.addr %s790, 100
        %s792 = smul.addr %s791, 4
        %s793 = scalar_lea.vmem %s10, %s792
        %p794 = scmp.lt.s32.totalorder %s37, 5
        %s795 = scalar_select %p794, %s37, 5
        %s796 = smul.addr %s795, 5
        %s797 = scalar_lea.vmem %s11, %s796
        %p798 = scmp.lt.s32.totalorder %s37, 5
        %s799 = scalar_select %p798, %s37, 5
        %s800 = smul.addr %s799, 156
        %s801 = smul.addr %s800, 4
        %s802 = scalar_lea.vmem %s12, %s801
        %p803 = scmp.lt.s32.totalorder %s37, 5
        %s804 = scalar_select %p803, %s37, 5
        %s805 = smul.addr %s804, 2
        %s806 = scalar_lea.vmem %s13, %s805
        %s807 = smul.u32 16, %s36
        %p809 = scmp.eq.s32.totalorder %s37, 0
        // Predicated region
        $region93: #{tpu_custom_call.1} parent=91 // pred_check
          %p810 = pneg %p809
        $region94: #{tpu_custom_call.1} parent=91 // pred_check_branch
          %812 = sbr.rel (%p810) target = $region96
        $region95: #{tpu_custom_call.1} parent=91 // pred_region
          %v813 = vld [vmem:[%s753] sm:$0xff]
          %v814 = vld [vmem:[%s753 + $0x8] sm:$0xff]
          %v815 = vld [vmem:[%s753 + $0x10] sm:$0xff]
          %v816 = vld [vmem:[%s753 + $0x18] sm:$0xff]
          %v817 = vld [vmem:[%s753 + $0x20] sm:$0xff]
          %v818 = vld [vmem:[%s753 + $0x28] sm:$0xff]
          %v819 = vld [vmem:[%s753 + $0x30] sm:$0xff]
          %v820 = vld [vmem:[%s753 + $0x38] sm:$0xff]
          %v821 = vld [vmem:[%s753 + $0x40] sm:$0xff]
          %v822 = vld [vmem:[%s753 + $0x48] sm:$0xff]
          %v823 = vld [vmem:[%s753 + $0x50] sm:$0xff]
          %v824 = vld [vmem:[%s753 + $0x58] sm:$0xff]
          %v825 = vld [vmem:[%s753 + $0x60] sm:$0xff]
          %v826 = vld [vmem:[%s753 + $0x68] sm:$0xff]
          %v827 = vld [vmem:[%s753 + $0x70] sm:$0xff]
          %v828 = vld [vmem:[%s753 + $0x78] sm:$0xff]
          %v829 = vld [vmem:[%s753 + $0x80] sm:$0xff]
          %v830 = vld [vmem:[%s753 + $0x88] sm:$0xff]
          %v831 = vld [vmem:[%s753 + $0x90] sm:$0xff]
          %v832 = vld [vmem:[%s753 + $0x98] sm:$0xff]
          %v833 = vld [vmem:[%s753 + $0xa0] sm:$0xff]
          %v834 = vld [vmem:[%s753 + $0xa8] sm:$0xff]
          %v835 = vld [vmem:[%s753 + $0xb0] sm:$0xff]
          %v836 = vld [vmem:[%s753 + $0xb8] sm:$0xff]
          %v837 = vld [vmem:[%s753 + $0xc0] sm:$0xff]
          %v838 = vld [vmem:[%s753 + $0xc8] sm:$0xff]
          %v839 = vld [vmem:[%s753 + $0xd0] sm:$0xff]
          %v840 = vld [vmem:[%s753 + $0xd8] sm:$0xff]
          %v841 = vld [vmem:[%s753 + $0xe0] sm:$0xff]
          %v842 = vld [vmem:[%s753 + $0xe8] sm:$0xff]
          %v843 = vld [vmem:[%s753 + $0xf0] sm:$0xff]
          %v844 = vld [vmem:[%s753 + $0xf8] sm:$0xff]
          %845 = vst [vmem:[#allocation2] sm:$0xff] %v813
          %vm846 = vcmask 228352
          %847 = vst.msk [vmem:[#allocation2 + $0x8] sm:$0xff] %vm846, %v814
          %848 = vst [vmem:[#allocation2 + $0x10] sm:$0xff] %v815
          %849 = vst.msk [vmem:[#allocation2 + $0x18] sm:$0xff] %vm846, %v816
          %850 = vst [vmem:[#allocation2 + $0x20] sm:$0xff] %v817
          %851 = vst.msk [vmem:[#allocation2 + $0x28] sm:$0xff] %vm846, %v818
          %852 = vst [vmem:[#allocation2 + $0x30] sm:$0xff] %v819
          %853 = vst.msk [vmem:[#allocation2 + $0x38] sm:$0xff] %vm846, %v820
          %854 = vst [vmem:[#allocation2 + $0x40] sm:$0xff] %v821
          %855 = vst.msk [vmem:[#allocation2 + $0x48] sm:$0xff] %vm846, %v822
          %856 = vst [vmem:[#allocation2 + $0x50] sm:$0xff] %v823
          %857 = vst.msk [vmem:[#allocation2 + $0x58] sm:$0xff] %vm846, %v824
          %858 = vst [vmem:[#allocation2 + $0x60] sm:$0xff] %v825
          %859 = vst.msk [vmem:[#allocation2 + $0x68] sm:$0xff] %vm846, %v826
          %860 = vst [vmem:[#allocation2 + $0x70] sm:$0xff] %v827
          %861 = vst.msk [vmem:[#allocation2 + $0x78] sm:$0xff] %vm846, %v828
          %862 = vst [vmem:[#allocation2 + $0x80] sm:$0xff] %v829
          %863 = vst.msk [vmem:[#allocation2 + $0x88] sm:$0xff] %vm846, %v830
          %864 = vst [vmem:[#allocation2 + $0x90] sm:$0xff] %v831
          %865 = vst.msk [vmem:[#allocation2 + $0x98] sm:$0xff] %vm846, %v832
          %866 = vst [vmem:[#allocation2 + $0xa0] sm:$0xff] %v833
          %867 = vst.msk [vmem:[#allocation2 + $0xa8] sm:$0xff] %vm846, %v834
          %868 = vst [vmem:[#allocation2 + $0xb0] sm:$0xff] %v835
          %869 = vst.msk [vmem:[#allocation2 + $0xb8] sm:$0xff] %vm846, %v836
          %870 = vst [vmem:[#allocation2 + $0xc0] sm:$0xff] %v837
          %871 = vst.msk [vmem:[#allocation2 + $0xc8] sm:$0xff] %vm846, %v838
          %872 = vst [vmem:[#allocation2 + $0xd0] sm:$0xff] %v839
          %873 = vst.msk [vmem:[#allocation2 + $0xd8] sm:$0xff] %vm846, %v840
          %874 = vst [vmem:[#allocation2 + $0xe0] sm:$0xff] %v841
          %875 = vst.msk [vmem:[#allocation2 + $0xe8] sm:$0xff] %vm846, %v842
          %876 = vst [vmem:[#allocation2 + $0xf0] sm:$0xff] %v843
          %877 = vst.msk [vmem:[#allocation2 + $0xf8] sm:$0xff] %vm846, %v844
        $region96: #{tpu_custom_call.1} parent=91 // pred_fallthru
          _
        %v878 = vld [vmem:[#allocation2] sm:$0xff]
        %v879 = vld [vmem:[#allocation2 + $0x8] sm:$0xff]
        %v880 = vld [vmem:[#allocation2 + $0x10] sm:$0xff]
        %v881 = vld [vmem:[#allocation2 + $0x18] sm:$0xff]
        %v882 = vld [vmem:[#allocation2 + $0x20] sm:$0xff]
        %v883 = vld [vmem:[#allocation2 + $0x28] sm:$0xff]
        %v884 = vld [vmem:[#allocation2 + $0x30] sm:$0xff]
        %v885 = vld [vmem:[#allocation2 + $0x38] sm:$0xff]
        %v886 = vld [vmem:[#allocation2 + $0x40] sm:$0xff]
        %v887 = vld [vmem:[#allocation2 + $0x48] sm:$0xff]
        %v888 = vld [vmem:[#allocation2 + $0x50] sm:$0xff]
        %v889 = vld [vmem:[#allocation2 + $0x58] sm:$0xff]
        %v890 = vld [vmem:[#allocation2 + $0x60] sm:$0xff]
        %v891 = vld [vmem:[#allocation2 + $0x68] sm:$0xff]
        %v892 = vld [vmem:[#allocation2 + $0x70] sm:$0xff]
        %v893 = vld [vmem:[#allocation2 + $0x78] sm:$0xff]
        %v894 = vld [vmem:[#allocation2 + $0x80] sm:$0xff]
        %v895 = vld [vmem:[#allocation2 + $0x88] sm:$0xff]
        %v896 = vld [vmem:[#allocation2 + $0x90] sm:$0xff]
        %v897 = vld [vmem:[#allocation2 + $0x98] sm:$0xff]
        %v898 = vld [vmem:[#allocation2 + $0xa0] sm:$0xff]
        %v899 = vld [vmem:[#allocation2 + $0xa8] sm:$0xff]
        %v900 = vld [vmem:[#allocation2 + $0xb0] sm:$0xff]
        %v901 = vld [vmem:[#allocation2 + $0xb8] sm:$0xff]
        %v902 = vld [vmem:[#allocation2 + $0xc0] sm:$0xff]
        %v903 = vld [vmem:[#allocation2 + $0xc8] sm:$0xff]
        %v904 = vld [vmem:[#allocation2 + $0xd0] sm:$0xff]
        %v905 = vld [vmem:[#allocation2 + $0xd8] sm:$0xff]
        %v906 = vld [vmem:[#allocation2 + $0xe0] sm:$0xff]
        %v907 = vld [vmem:[#allocation2 + $0xe8] sm:$0xff]
        %v908 = vld [vmem:[#allocation2 + $0xf0] sm:$0xff]
        %v909 = vld [vmem:[#allocation2 + $0xf8] sm:$0xff]
        %v910 = vld [vmem:[%s1] sm:$0xff]
        %v911 = vld [vmem:[%s1 + $0x8] sm:$0xff]
        %v912 = vld [vmem:[%s1 + $0x10] sm:$0xff]
        %v913 = vld [vmem:[%s1 + $0x18] sm:$0xff]
        %v914 = vld [vmem:[%s1 + $0x20] sm:$0xff]
        %v915 = vld [vmem:[%s1 + $0x28] sm:$0xff]
        %v916 = vld [vmem:[%s1 + $0x30] sm:$0xff]
        %v917 = vld [vmem:[%s1 + $0x38] sm:$0xff]
        %v918 = vld [vmem:[%s1 + $0x40] sm:$0xff]
        %v919 = vld [vmem:[%s1 + $0x48] sm:$0xff]
        %v920 = vld [vmem:[%s1 + $0x50] sm:$0xff]
        %v921 = vld [vmem:[%s1 + $0x58] sm:$0xff]
        %v922 = vld [vmem:[%s1 + $0x60] sm:$0xff]
        %v923 = vld [vmem:[%s1 + $0x68] sm:$0xff]
        %v924 = vld [vmem:[%s1 + $0x70] sm:$0xff]
        %v925 = vld [vmem:[%s1 + $0x78] sm:$0xff]
        %v926 = vld [vmem:[%s758] sm:$0x3]
        %v927 = vld [vmem:[%s762] sm:$0x3]
        %vm928 = vcmask 228352
        %v929 = vsel %vm928, %v879, 0.0
        %v930 = vadd.f32 %v878, %v929
        %931 = vadd.xlane.f32.xlu0 %v930
        %v932 = vpop.xlane.xlu0 %931
        %v933 = vsel %vm928, %v881, 0.0
        %v934 = vadd.f32 %v880, %v933
        %935 = vadd.xlane.f32.xlu0 %v934
        %v936 = vpop.xlane.xlu0 %935
        %v937 = vsel %vm928, %v883, 0.0
        %v938 = vadd.f32 %v882, %v937
        %939 = vadd.xlane.f32.xlu0 %v938
        %v940 = vpop.xlane.xlu0 %939
        %v941 = vsel %vm928, %v885, 0.0
        %v942 = vadd.f32 %v884, %v941
        %943 = vadd.xlane.f32.xlu0 %v942
        %v944 = vpop.xlane.xlu0 %943
        %v945 = vsel %vm928, %v887, 0.0
        %v946 = vadd.f32 %v886, %v945
        %947 = vadd.xlane.f32.xlu0 %v946
        %v948 = vpop.xlane.xlu0 %947
        %v949 = vsel %vm928, %v889, 0.0
        %v950 = vadd.f32 %v888, %v949
        %951 = vadd.xlane.f32.xlu0 %v950
        %v952 = vpop.xlane.xlu0 %951
        %v953 = vsel %vm928, %v891, 0.0
        %v954 = vadd.f32 %v890, %v953
        %955 = vadd.xlane.f32.xlu0 %v954
        %v956 = vpop.xlane.xlu0 %955
        %v957 = vsel %vm928, %v893, 0.0
        %v958 = vadd.f32 %v892, %v957
        %959 = vadd.xlane.f32.xlu0 %v958
        %v960 = vpop.xlane.xlu0 %959
        %v961 = vsel %vm928, %v895, 0.0
        %v962 = vadd.f32 %v894, %v961
        %963 = vadd.xlane.f32.xlu0 %v962
        %v964 = vpop.xlane.xlu0 %963
        %v965 = vsel %vm928, %v897, 0.0
        %v966 = vadd.f32 %v896, %v965
        %967 = vadd.xlane.f32.xlu0 %v966
        %v968 = vpop.xlane.xlu0 %967
        %v969 = vsel %vm928, %v899, 0.0
        %v970 = vadd.f32 %v898, %v969
        %971 = vadd.xlane.f32.xlu0 %v970
        %v972 = vpop.xlane.xlu0 %971
        %v973 = vsel %vm928, %v901, 0.0
        %v974 = vadd.f32 %v900, %v973
        %975 = vadd.xlane.f32.xlu0 %v974
        %v976 = vpop.xlane.xlu0 %975
        %v977 = vsel %vm928, %v903, 0.0
        %v978 = vadd.f32 %v902, %v977
        %979 = vadd.xlane.f32.xlu0 %v978
        %v980 = vpop.xlane.xlu0 %979
        %v981 = vsel %vm928, %v905, 0.0
        %v982 = vadd.f32 %v904, %v981
        %983 = vadd.xlane.f32.xlu0 %v982
        %v984 = vpop.xlane.xlu0 %983
        %v985 = vsel %vm928, %v907, 0.0
        %v986 = vadd.f32 %v906, %v985
        %987 = vadd.xlane.f32.xlu0 %v986
        %v988 = vpop.xlane.xlu0 %987
        %v989 = vsel %vm928, %v909, 0.0
        %v990 = vadd.f32 %v908, %v989
        %991 = vadd.xlane.f32.xlu0 %v990
        %v992 = vpop.xlane.xlu0 %991
        %v993 = vrcp.pop 156.0
        %v994 = vmul.f32 %v932, %v993
        %v995 = vmul.f32 %v936, %v993
        %v996 = vmul.f32 %v940, %v993
        %v997 = vmul.f32 %v944, %v993
        %v998 = vmul.f32 %v948, %v993
        %v999 = vmul.f32 %v952, %v993
        %v1000 = vmul.f32 %v956, %v993
        %v1001 = vmul.f32 %v960, %v993
        %v1002 = vmul.f32 %v964, %v993
        %v1003 = vmul.f32 %v968, %v993
        %v1004 = vmul.f32 %v972, %v993
        %v1005 = vmul.f32 %v976, %v993
        %v1006 = vmul.f32 %v980, %v993
        %v1007 = vmul.f32 %v984, %v993
        %v1008 = vmul.f32 %v988, %v993
        %v1009 = vmul.f32 %v992, %v993
        %v1010 = vmul.f32 %v878, %v878
        %v1011 = vmul.f32 %v879, %v879
        %v1012 = vmul.f32 %v880, %v880
        %v1013 = vmul.f32 %v881, %v881
        %v1014 = vmul.f32 %v882, %v882
        %v1015 = vmul.f32 %v883, %v883
        %v1016 = vmul.f32 %v884, %v884
        %v1017 = vmul.f32 %v885, %v885
        %v1018 = vmul.f32 %v886, %v886
        %v1019 = vmul.f32 %v887, %v887
        %v1020 = vmul.f32 %v888, %v888
        %v1021 = vmul.f32 %v889, %v889
        %v1022 = vmul.f32 %v890, %v890
        %v1023 = vmul.f32 %v891, %v891
        %v1024 = vmul.f32 %v892, %v892
        %v1025 = vmul.f32 %v893, %v893
        %v1026 = vmul.f32 %v894, %v894
        %v1027 = vmul.f32 %v895, %v895
        %v1028 = vmul.f32 %v896, %v896
        %v1029 = vmul.f32 %v897, %v897
        %v1030 = vmul.f32 %v898, %v898
        %v1031 = vmul.f32 %v899, %v899
        %v1032 = vmul.f32 %v900, %v900
        %v1033 = vmul.f32 %v901, %v901
        %v1034 = vmul.f32 %v902, %v902
        %v1035 = vmul.f32 %v903, %v903
        %v1036 = vmul.f32 %v904, %v904
        %v1037 = vmul.f32 %v905, %v905
        %v1038 = vmul.f32 %v906, %v906
        %v1039 = vmul.f32 %v907, %v907
        %v1040 = vmul.f32 %v908, %v908
        %v1041 = vmul.f32 %v909, %v909
        %v1042 = vsel %vm928, %v1011, 0.0
        %v1043 = vadd.f32 %v1010, %v1042
        %1044 = vadd.xlane.f32.xlu0 %v1043
        %v1045 = vpop.xlane.xlu0 %1044
        %v1046 = vsel %vm928, %v1013, 0.0
        %v1047 = vadd.f32 %v1012, %v1046
        %1048 = vadd.xlane.f32.xlu0 %v1047
        %v1049 = vpop.xlane.xlu0 %1048
        %v1050 = vsel %vm928, %v1015, 0.0
        %v1051 = vadd.f32 %v1014, %v1050
        %1052 = vadd.xlane.f32.xlu0 %v1051
        %v1053 = vpop.xlane.xlu0 %1052
        %v1054 = vsel %vm928, %v1017, 0.0
        %v1055 = vadd.f32 %v1016, %v1054
        %1056 = vadd.xlane.f32.xlu0 %v1055
        %v1057 = vpop.xlane.xlu0 %1056
        %v1058 = vsel %vm928, %v1019, 0.0
        %v1059 = vadd.f32 %v1018, %v1058
        %1060 = vadd.xlane.f32.xlu0 %v1059
        %v1061 = vpop.xlane.xlu0 %1060
        %v1062 = vsel %vm928, %v1021, 0.0
        %v1063 = vadd.f32 %v1020, %v1062
        %1064 = vadd.xlane.f32.xlu0 %v1063
        %v1065 = vpop.xlane.xlu0 %1064
        %v1066 = vsel %vm928, %v1023, 0.0
        %v1067 = vadd.f32 %v1022, %v1066
        %1068 = vadd.xlane.f32.xlu0 %v1067
        %v1069 = vpop.xlane.xlu0 %1068
        %v1070 = vsel %vm928, %v1025, 0.0
        %v1071 = vadd.f32 %v1024, %v1070
        %1072 = vadd.xlane.f32.xlu0 %v1071
        %v1073 = vpop.xlane.xlu0 %1072
        %v1074 = vsel %vm928, %v1027, 0.0
        %v1075 = vadd.f32 %v1026, %v1074
        %1076 = vadd.xlane.f32.xlu0 %v1075
        %v1077 = vpop.xlane.xlu0 %1076
        %v1078 = vsel %vm928, %v1029, 0.0
        %v1079 = vadd.f32 %v1028, %v1078
        %1080 = vadd.xlane.f32.xlu0 %v1079
        %v1081 = vpop.xlane.xlu0 %1080
        %v1082 = vsel %vm928, %v1031, 0.0
        %v1083 = vadd.f32 %v1030, %v1082
        %1084 = vadd.xlane.f32.xlu0 %v1083
        %v1085 = vpop.xlane.xlu0 %1084
        %v1086 = vsel %vm928, %v1033, 0.0
        %v1087 = vadd.f32 %v1032, %v1086
        %1088 = vadd.xlane.f32.xlu0 %v1087
        %v1089 = vpop.xlane.xlu0 %1088
        %v1090 = vsel %vm928, %v1035, 0.0
        %v1091 = vadd.f32 %v1034, %v1090
        %1092 = vadd.xlane.f32.xlu0 %v1091
        %v1093 = vpop.xlane.xlu0 %1092
        %v1094 = vsel %vm928, %v1037, 0.0
        %v1095 = vadd.f32 %v1036, %v1094
        %1096 = vadd.xlane.f32.xlu0 %v1095
        %v1097 = vpop.xlane.xlu0 %1096
        %v1098 = vsel %vm928, %v1039, 0.0
        %v1099 = vadd.f32 %v1038, %v1098
        %1100 = vadd.xlane.f32.xlu0 %v1099
        %v1101 = vpop.xlane.xlu0 %1100
        %v1102 = vsel %vm928, %v1041, 0.0
        %v1103 = vadd.f32 %v1040, %v1102
        %1104 = vadd.xlane.f32.xlu0 %v1103
        %v1105 = vpop.xlane.xlu0 %1104
        %v1106 = vmul.f32 %v1045, %v993
        %v1107 = vmul.f32 %v1049, %v993
        %v1108 = vmul.f32 %v1053, %v993
        %v1109 = vmul.f32 %v1057, %v993
        %v1110 = vmul.f32 %v1061, %v993
        %v1111 = vmul.f32 %v1065, %v993
        %v1112 = vmul.f32 %v1069, %v993
        %v1113 = vmul.f32 %v1073, %v993
        %v1114 = vmul.f32 %v1077, %v993
        %v1115 = vmul.f32 %v1081, %v993
        %v1116 = vmul.f32 %v1085, %v993
        %v1117 = vmul.f32 %v1089, %v993
        %v1118 = vmul.f32 %v1093, %v993
        %v1119 = vmul.f32 %v1097, %v993
        %v1120 = vmul.f32 %v1101, %v993
        %v1121 = vmul.f32 %v1105, %v993
        %v1122 = vmul.f32 %v994, %v994
        %v1123 = vmul.f32 %v995, %v995
        %v1124 = vmul.f32 %v996, %v996
        %v1125 = vmul.f32 %v997, %v997
        %v1126 = vmul.f32 %v998, %v998
        %v1127 = vmul.f32 %v999, %v999
        %v1128 = vmul.f32 %v1000, %v1000
        %v1129 = vmul.f32 %v1001, %v1001
        %v1130 = vmul.f32 %v1002, %v1002
        %v1131 = vmul.f32 %v1003, %v1003
        %v1132 = vmul.f32 %v1004, %v1004
        %v1133 = vmul.f32 %v1005, %v1005
        %v1134 = vmul.f32 %v1006, %v1006
        %v1135 = vmul.f32 %v1007, %v1007
        %v1136 = vmul.f32 %v1008, %v1008
        %v1137 = vmul.f32 %v1009, %v1009
        %v1138 = vsub.f32 %v1106, %v1122
        %v1139 = vsub.f32 %v1107, %v1123
        %v1140 = vsub.f32 %v1108, %v1124
        %v1141 = vsub.f32 %v1109, %v1125
        %v1142 = vsub.f32 %v1110, %v1126
        %v1143 = vsub.f32 %v1111, %v1127
        %v1144 = vsub.f32 %v1112, %v1128
        %v1145 = vsub.f32 %v1113, %v1129
        %v1146 = vsub.f32 %v1114, %v1130
        %v1147 = vsub.f32 %v1115, %v1131
        %v1148 = vsub.f32 %v1116, %v1132
        %v1149 = vsub.f32 %v1117, %v1133
        %v1150 = vsub.f32 %v1118, %v1134
        %v1151 = vsub.f32 %v1119, %v1135
        %v1152 = vsub.f32 %v1120, %v1136
        %v1153 = vsub.f32 %v1121, %v1137
        %v1154 = vsub.f32 %v878, %v994
        %v1155 = vsub.f32 %v879, %v994
        %v1156 = vsub.f32 %v880, %v995
        %v1157 = vsub.f32 %v881, %v995
        %v1158 = vsub.f32 %v882, %v996
        %v1159 = vsub.f32 %v883, %v996
        %v1160 = vsub.f32 %v884, %v997
        %v1161 = vsub.f32 %v885, %v997
        %v1162 = vsub.f32 %v886, %v998
        %v1163 = vsub.f32 %v887, %v998
        %v1164 = vsub.f32 %v888, %v999
        %v1165 = vsub.f32 %v889, %v999
        %v1166 = vsub.f32 %v890, %v1000
        %v1167 = vsub.f32 %v891, %v1000
        %v1168 = vsub.f32 %v892, %v1001
        %v1169 = vsub.f32 %v893, %v1001
        %v1170 = vsub.f32 %v894, %v1002
        %v1171 = vsub.f32 %v895, %v1002
        %v1172 = vsub.f32 %v896, %v1003
        %v1173 = vsub.f32 %v897, %v1003
        %v1174 = vsub.f32 %v898, %v1004
        %v1175 = vsub.f32 %v899, %v1004
        %v1176 = vsub.f32 %v900, %v1005
        %v1177 = vsub.f32 %v901, %v1005
        %v1178 = vsub.f32 %v902, %v1006
        %v1179 = vsub.f32 %v903, %v1006
        %v1180 = vsub.f32 %v904, %v1007
        %v1181 = vsub.f32 %v905, %v1007
        %v1182 = vsub.f32 %v906, %v1008
        %v1183 = vsub.f32 %v907, %v1008
        %v1184 = vsub.f32 %v908, %v1009
        %v1185 = vsub.f32 %v909, %v1009
        %v1186 = vadd.f32 %v1138, 1e-05
        %v1187 = vadd.f32 %v1139, 1e-05
        %v1188 = vadd.f32 %v1140, 1e-05
        %v1189 = vadd.f32 %v1141, 1e-05
        %v1190 = vadd.f32 %v1142, 1e-05
        %v1191 = vadd.f32 %v1143, 1e-05
        %v1192 = vadd.f32 %v1144, 1e-05
        %v1193 = vadd.f32 %v1145, 1e-05
        %v1194 = vadd.f32 %v1146, 1e-05
        %v1195 = vadd.f32 %v1147, 1e-05
        %v1196 = vadd.f32 %v1148, 1e-05
        %v1197 = vadd.f32 %v1149, 1e-05
        %v1198 = vadd.f32 %v1150, 1e-05
        %v1199 = vadd.f32 %v1151, 1e-05
        %v1200 = vadd.f32 %v1152, 1e-05
        %v1201 = vadd.f32 %v1153, 1e-05
        %v1202 = vrsqrt.pop %v1186
        %v1203 = vrsqrt.pop %v1187
        %v1204 = vrsqrt.pop %v1188
        %v1205 = vrsqrt.pop %v1189
        %v1206 = vrsqrt.pop %v1190
        %v1207 = vrsqrt.pop %v1191
        %v1208 = vrsqrt.pop %v1192
        %v1209 = vrsqrt.pop %v1193
        %v1210 = vrsqrt.pop %v1194
        %v1211 = vrsqrt.pop %v1195
        %v1212 = vrsqrt.pop %v1196
        %v1213 = vrsqrt.pop %v1197
        %v1214 = vrsqrt.pop %v1198
        %v1215 = vrsqrt.pop %v1199
        %v1216 = vrsqrt.pop %v1200
        %v1217 = vrsqrt.pop %v1201
        %v1218 = vmul.f32 %v1154, %v1202
        %v1219 = vmul.f32 %v1155, %v1202
        %v1220 = vmul.f32 %v1156, %v1203
        %v1221 = vmul.f32 %v1157, %v1203
        %v1222 = vmul.f32 %v1158, %v1204
        %v1223 = vmul.f32 %v1159, %v1204
        %v1224 = vmul.f32 %v1160, %v1205
        %v1225 = vmul.f32 %v1161, %v1205
        %v1226 = vmul.f32 %v1162, %v1206
        %v1227 = vmul.f32 %v1163, %v1206
        %v1228 = vmul.f32 %v1164, %v1207
        %v1229 = vmul.f32 %v1165, %v1207
        %v1230 = vmul.f32 %v1166, %v1208
        %v1231 = vmul.f32 %v1167, %v1208
        %v1232 = vmul.f32 %v1168, %v1209
        %v1233 = vmul.f32 %v1169, %v1209
        %v1234 = vmul.f32 %v1170, %v1210
        %v1235 = vmul.f32 %v1171, %v1210
        %v1236 = vmul.f32 %v1172, %v1211
        %v1237 = vmul.f32 %v1173, %v1211
        %v1238 = vmul.f32 %v1174, %v1212
        %v1239 = vmul.f32 %v1175, %v1212
        %v1240 = vmul.f32 %v1176, %v1213
        %v1241 = vmul.f32 %v1177, %v1213
        %v1242 = vmul.f32 %v1178, %v1214
        %v1243 = vmul.f32 %v1179, %v1214
        %v1244 = vmul.f32 %v1180, %v1215
        %v1245 = vmul.f32 %v1181, %v1215
        %v1246 = vmul.f32 %v1182, %v1216
        %v1247 = vmul.f32 %v1183, %v1216
        %v1248 = vmul.f32 %v1184, %v1217
        %v1249 = vmul.f32 %v1185, %v1217
        %v1251 = vlaneseq
        %v1252 = vshrl.u32 %v1251, 7
        %v1253 = vsub.s32 0, %v1252
        %v1254 = vrot.slane %v926, %v1253
        %v1255 = vlaneseq
        %v1256 = vshrl.u32 %v1255, 7
        %v1257 = vsub.s32 1, %v1256
        %v1258 = vrot.slane %v926, %v1257
        %v1261 = vmul.f32 %v1218, %v1254
        %v1262 = vmul.f32 %v1219, %v1258
        %v1263 = vmul.f32 %v1220, %v1254
        %v1264 = vmul.f32 %v1221, %v1258
        %v1265 = vmul.f32 %v1222, %v1254
        %v1266 = vmul.f32 %v1223, %v1258
        %v1267 = vmul.f32 %v1224, %v1254
        %v1268 = vmul.f32 %v1225, %v1258
        %v1269 = vmul.f32 %v1226, %v1254
        %v1270 = vmul.f32 %v1227, %v1258
        %v1271 = vmul.f32 %v1228, %v1254
        %v1272 = vmul.f32 %v1229, %v1258
        %v1273 = vmul.f32 %v1230, %v1254
        %v1274 = vmul.f32 %v1231, %v1258
        %v1275 = vmul.f32 %v1232, %v1254
        %v1276 = vmul.f32 %v1233, %v1258
        %v1277 = vmul.f32 %v1234, %v1254
        %v1278 = vmul.f32 %v1235, %v1258
        %v1279 = vmul.f32 %v1236, %v1254
        %v1280 = vmul.f32 %v1237, %v1258
        %v1281 = vmul.f32 %v1238, %v1254
        %v1282 = vmul.f32 %v1239, %v1258
        %v1283 = vmul.f32 %v1240, %v1254
        %v1284 = vmul.f32 %v1241, %v1258
        %v1285 = vmul.f32 %v1242, %v1254
        %v1286 = vmul.f32 %v1243, %v1258
        %v1287 = vmul.f32 %v1244, %v1254
        %v1288 = vmul.f32 %v1245, %v1258
        %v1289 = vmul.f32 %v1246, %v1254
        %v1290 = vmul.f32 %v1247, %v1258
        %v1291 = vmul.f32 %v1248, %v1254
        %v1292 = vmul.f32 %v1249, %v1258
        %v1294 = vlaneseq
        %v1295 = vshrl.u32 %v1294, 7
        %v1296 = vsub.s32 0, %v1295
        %v1297 = vrot.slane %v927, %v1296
        %v1298 = vlaneseq
        %v1299 = vshrl.u32 %v1298, 7
        %v1300 = vsub.s32 1, %v1299
        %v1301 = vrot.slane %v927, %v1300
        %v1304 = vadd.f32 %v1261, %v1297
        %v1305 = vadd.f32 %v1262, %v1301
        %v1306 = vadd.f32 %v1263, %v1297
        %v1307 = vadd.f32 %v1264, %v1301
        %v1308 = vadd.f32 %v1265, %v1297
        %v1309 = vadd.f32 %v1266, %v1301
        %v1310 = vadd.f32 %v1267, %v1297
        %v1311 = vadd.f32 %v1268, %v1301
        %v1312 = vadd.f32 %v1269, %v1297
        %v1313 = vadd.f32 %v1270, %v1301
        %v1314 = vadd.f32 %v1271, %v1297
        %v1315 = vadd.f32 %v1272, %v1301
        %v1316 = vadd.f32 %v1273, %v1297
        %v1317 = vadd.f32 %v1274, %v1301
        %v1318 = vadd.f32 %v1275, %v1297
        %v1319 = vadd.f32 %v1276, %v1301
        %v1320 = vadd.f32 %v1277, %v1297
        %v1321 = vadd.f32 %v1278, %v1301
        %v1322 = vadd.f32 %v1279, %v1297
        %v1323 = vadd.f32 %v1280, %v1301
        %v1324 = vadd.f32 %v1281, %v1297
        %v1325 = vadd.f32 %v1282, %v1301
        %v1326 = vadd.f32 %v1283, %v1297
        %v1327 = vadd.f32 %v1284, %v1301
        %v1328 = vadd.f32 %v1285, %v1297
        %v1329 = vadd.f32 %v1286, %v1301
        %v1330 = vadd.f32 %v1287, %v1297
        %v1331 = vadd.f32 %v1288, %v1301
        %v1332 = vadd.f32 %v1289, %v1297
        %v1333 = vadd.f32 %v1290, %v1301
        %v1334 = vadd.f32 %v1291, %v1297
        %v1335 = vadd.f32 %v1292, %v1301
        %v1336 = vpack.c.bf16 %v1306, %v1304
        %v1337 = vpack.c.bf16 %v1307, %v1305
        %v1338 = vpack.c.bf16 %v1310, %v1308
        %v1339 = vpack.c.bf16 %v1311, %v1309
        %v1340 = vpack.c.bf16 %v1314, %v1312
        %v1341 = vpack.c.bf16 %v1315, %v1313
        %v1342 = vpack.c.bf16 %v1318, %v1316
        %v1343 = vpack.c.bf16 %v1319, %v1317
        %v1344 = vpack.c.bf16 %v1322, %v1320
        %v1345 = vpack.c.bf16 %v1323, %v1321
        %v1346 = vpack.c.bf16 %v1326, %v1324
        %v1347 = vpack.c.bf16 %v1327, %v1325
        %v1348 = vpack.c.bf16 %v1330, %v1328
        %v1349 = vpack.c.bf16 %v1331, %v1329
        %v1350 = vpack.c.bf16 %v1334, %v1332
        %v1351 = vpack.c.bf16 %v1335, %v1333
        %v1352 = vld [vmem:[%s767] sm:$0xff]
        %v1353 = vld [vmem:[%s767 + $0x8] sm:$0xff]
        %v1354 = vld [vmem:[%s767 + $0x10] sm:$0xff]
        %v1355 = vld [vmem:[%s767 + $0x18] sm:$0xff]
        %v1356 = vld [vmem:[%s767 + $0x20] sm:$0xff]
        %v1357 = vld [vmem:[%s767 + $0x28] sm:$0xff]
        %v1358 = vld [vmem:[%s767 + $0x30] sm:$0xff]
        %v1359 = vld [vmem:[%s767 + $0x38] sm:$0xff]
        %v1360 = vld [vmem:[%s767 + $0x40] sm:$0xff]
        %v1361 = vld [vmem:[%s767 + $0x48] sm:$0xff]
        %v1362 = vld [vmem:[%s767 + $0x50] sm:$0xff]
        %v1363 = vld [vmem:[%s767 + $0x58] sm:$0xff]
        %v1364 = vld [vmem:[%s767 + $0x60] sm:$0xff]
        %v1365 = vld [vmem:[%s767 + $0x68] sm:$0xff]
        %v1366 = vld [vmem:[%s767 + $0x70] sm:$0xff]
        %v1367 = vld [vmem:[%s767 + $0x78] sm:$0xff]
        %v1368 = vld [vmem:[%s767 + $0x80] sm:$0xff]
        %v1369 = vld [vmem:[%s767 + $0x88] sm:$0xff]
        %v1370 = vld [vmem:[%s767 + $0x90] sm:$0xff]
        %v1371 = vld [vmem:[%s767 + $0x98] sm:$0xff]
        %v1372 = vld [vmem:[%s767 + $0xa0] sm:$0xff]
        %v1373 = vld [vmem:[%s767 + $0xa8] sm:$0xff]
        %v1374 = vld [vmem:[%s767 + $0xb0] sm:$0xff]
        %v1375 = vld [vmem:[%s767 + $0xb8] sm:$0xff]
        %v1376 = vld [vmem:[%s767 + $0xc0] sm:$0xff]
        %v1377 = vld [vmem:[%s767 + $0xc8] sm:$0xff]
        %v1378 = vld [vmem:[%s767 + $0xd0] sm:$0xff]
        %v1379 = vld [vmem:[%s767 + $0xd8] sm:$0xff]
        %v1380 = vld [vmem:[%s767 + $0xe0] sm:$0xff]
        %v1381 = vld [vmem:[%s767 + $0xe8] sm:$0xff]
        %v1382 = vld [vmem:[%s767 + $0xf0] sm:$0xff]
        %v1383 = vld [vmem:[%s767 + $0xf8] sm:$0xff]
        %v1384 = vld [vmem:[%s767 + $0x100] sm:$0xff]
        %v1385 = vld [vmem:[%s767 + $0x108] sm:$0xff]
        %v1386 = vld [vmem:[%s767 + $0x110] sm:$0xff]
        %v1387 = vld [vmem:[%s767 + $0x118] sm:$0xff]
        %v1388 = vld [vmem:[%s767 + $0x120] sm:$0xff]
        %v1389 = vld [vmem:[%s767 + $0x128] sm:$0xff]
        %v1390 = vld [vmem:[%s767 + $0x130] sm:$0xff]
        %v1391 = vld [vmem:[%s767 + $0x138] sm:$0xff]
        %v1392 = vld [vmem:[%s767 + $0x140] sm:$0xff]
        %v1393 = vld [vmem:[%s767 + $0x148] sm:$0xff]
        %v1394 = vld [vmem:[%s767 + $0x150] sm:$0xff]
        %v1395 = vld [vmem:[%s767 + $0x158] sm:$0xff]
        %v1396 = vld [vmem:[%s767 + $0x160] sm:$0xff]
        %v1397 = vld [vmem:[%s767 + $0x168] sm:$0xff]
        %v1398 = vld [vmem:[%s767 + $0x170] sm:$0xff]
        %v1399 = vld [vmem:[%s767 + $0x178] sm:$0xff]
        %v1400 = vld [vmem:[%s767 + $0x180] sm:$0xff]
        %v1401 = vld [vmem:[%s767 + $0x188] sm:$0xff]
        %v1402 = vld [vmem:[%s767 + $0x190] sm:$0xff]
        %v1403 = vld [vmem:[%s767 + $0x198] sm:$0xff]
        %v1404 = vld [vmem:[%s767 + $0x1a0] sm:$0xff]
        %v1405 = vld [vmem:[%s767 + $0x1a8] sm:$0xff]
        %v1406 = vld [vmem:[%s767 + $0x1b0] sm:$0xff]
        %v1407 = vld [vmem:[%s767 + $0x1b8] sm:$0xff]
        %v1408 = vld [vmem:[%s767 + $0x1c0] sm:$0xff]
        %v1409 = vld [vmem:[%s767 + $0x1c8] sm:$0x33]
        %v1410 = vld [vmem:[%s767 + $0x1d0] sm:$0x33]
        %v1411 = vld [vmem:[%s767 + $0x1d8] sm:$0x33]
        %v1412 = vld [vmem:[%s771] sm:$0x3f]
        %v1414 = vlaneseq
        %v1415 = vshrl.u32 %v1414, 7
        %v1416 = vsub.s32 0, %v1415
        %v1417 = vrot.slane %v1412, %v1416
        %v1418 = vlaneseq
        %v1419 = vshrl.u32 %v1418, 7
        %v1420 = vsub.s32 1, %v1419
        %v1421 = vrot.slane %v1412, %v1420
        %v1422 = vlaneseq
        %v1423 = vshrl.u32 %v1422, 7
        %v1424 = vsub.s32 2, %v1423
        %v1425 = vrot.slane %v1412, %v1424
        %v1426 = vlaneseq
        %v1427 = vshrl.u32 %v1426, 7
        %v1428 = vsub.s32 3, %v1427
        %v1429 = vrot.slane %v1412, %v1428
        %v1430 = vlaneseq
        %v1431 = vshrl.u32 %v1430, 7
        %v1432 = vsub.s32 4, %v1431
        %v1433 = vrot.slane %v1412, %v1432
        %v1434 = vlaneseq
        %v1435 = vshrl.u32 %v1434, 7
        %v1436 = vsub.s32 5, %v1435
        %v1437 = vrot.slane %v1412, %v1436
        %v1504 = vunpack.c.l.b16 %v1352
        %v1505 = vunpack.c.h.b16 %v1352
        %v1506 = vunpack.c.l.b16 %v1353
        %v1507 = vunpack.c.h.b16 %v1353
        %v1508 = vunpack.c.l.b16 %v1354
        %v1509 = vunpack.c.h.b16 %v1354
        %v1510 = vunpack.c.l.b16 %v1355
        %v1511 = vunpack.c.h.b16 %v1355
        %v1512 = vunpack.c.l.b16 %v1356
        %v1513 = vunpack.c.h.b16 %v1356
        %v1514 = vunpack.c.l.b16 %v1357
        %v1515 = vunpack.c.h.b16 %v1357
        %v1516 = vunpack.c.l.b16 %v1358
        %v1517 = vunpack.c.h.b16 %v1358
        %v1518 = vunpack.c.l.b16 %v1359
        %v1519 = vunpack.c.h.b16 %v1359
        %v1520 = vunpack.c.l.b16 %v1360
        %v1521 = vunpack.c.h.b16 %v1360
        %v1522 = vunpack.c.l.b16 %v1361
        %v1523 = vunpack.c.h.b16 %v1361
        %v1524 = vunpack.c.l.b16 %v1362
        %v1525 = vunpack.c.h.b16 %v1362
        %v1526 = vunpack.c.l.b16 %v1363
        %v1527 = vunpack.c.h.b16 %v1363
        %v1528 = vunpack.c.l.b16 %v1364
        %v1529 = vunpack.c.h.b16 %v1364
        %v1530 = vunpack.c.l.b16 %v1365
        %v1531 = vunpack.c.h.b16 %v1365
        %v1532 = vunpack.c.l.b16 %v1366
        %v1533 = vunpack.c.h.b16 %v1366
        %v1534 = vunpack.c.l.b16 %v1367
        %v1535 = vunpack.c.h.b16 %v1367
        %v1536 = vunpack.c.l.b16 %v1368
        %v1537 = vunpack.c.h.b16 %v1368
        %v1538 = vunpack.c.l.b16 %v1369
        %v1539 = vunpack.c.h.b16 %v1369
        %v1540 = vunpack.c.l.b16 %v1370
        %v1541 = vunpack.c.h.b16 %v1370
        %v1542 = vunpack.c.l.b16 %v1371
        %v1543 = vunpack.c.h.b16 %v1371
        %v1544 = vunpack.c.l.b16 %v1372
        %v1545 = vunpack.c.h.b16 %v1372
        %v1546 = vunpack.c.l.b16 %v1373
        %v1547 = vunpack.c.h.b16 %v1373
        %v1548 = vunpack.c.l.b16 %v1374
        %v1549 = vunpack.c.h.b16 %v1374
        %v1550 = vunpack.c.l.b16 %v1375
        %v1551 = vunpack.c.h.b16 %v1375
        %v1552 = vunpack.c.l.b16 %v1376
        %v1553 = vunpack.c.h.b16 %v1376
        %v1554 = vunpack.c.l.b16 %v1377
        %v1555 = vunpack.c.h.b16 %v1377
        %v1556 = vunpack.c.l.b16 %v1378
        %v1557 = vunpack.c.h.b16 %v1378
        %v1558 = vunpack.c.l.b16 %v1379
        %v1559 = vunpack.c.h.b16 %v1379
        %v1560 = vunpack.c.l.b16 %v1380
        %v1561 = vunpack.c.h.b16 %v1380
        %v1562 = vunpack.c.l.b16 %v1381
        %v1563 = vunpack.c.h.b16 %v1381
        %v1564 = vunpack.c.l.b16 %v1382
        %v1565 = vunpack.c.h.b16 %v1382
        %v1566 = vunpack.c.l.b16 %v1383
        %v1567 = vunpack.c.h.b16 %v1383
        %v1568 = vunpack.c.l.b16 %v1384
        %v1569 = vunpack.c.h.b16 %v1384
        %v1570 = vunpack.c.l.b16 %v1385
        %v1571 = vunpack.c.h.b16 %v1385
        %v1572 = vunpack.c.l.b16 %v1386
        %v1573 = vunpack.c.h.b16 %v1386
        %v1574 = vunpack.c.l.b16 %v1387
        %v1575 = vunpack.c.h.b16 %v1387
        %v1576 = vunpack.c.l.b16 %v1388
        %v1577 = vunpack.c.h.b16 %v1388
        %v1578 = vunpack.c.l.b16 %v1389
        %v1579 = vunpack.c.h.b16 %v1389
        %v1580 = vunpack.c.l.b16 %v1390
        %v1581 = vunpack.c.h.b16 %v1390
        %v1582 = vunpack.c.l.b16 %v1391
        %v1583 = vunpack.c.h.b16 %v1391
        %v1584 = vunpack.c.l.b16 %v1392
        %v1585 = vunpack.c.h.b16 %v1392
        %v1586 = vunpack.c.l.b16 %v1393
        %v1587 = vunpack.c.h.b16 %v1393
        %v1588 = vunpack.c.l.b16 %v1394
        %v1589 = vunpack.c.h.b16 %v1394
        %v1590 = vunpack.c.l.b16 %v1395
        %v1591 = vunpack.c.h.b16 %v1395
        %v1592 = vunpack.c.l.b16 %v1396
        %v1593 = vunpack.c.h.b16 %v1396
        %v1594 = vunpack.c.l.b16 %v1397
        %v1595 = vunpack.c.h.b16 %v1397
        %v1596 = vunpack.c.l.b16 %v1398
        %v1597 = vunpack.c.h.b16 %v1398
        %v1598 = vunpack.c.l.b16 %v1399
        %v1599 = vunpack.c.h.b16 %v1399
        %v1600 = vunpack.c.l.b16 %v1400
        %v1601 = vunpack.c.h.b16 %v1400
        %v1602 = vunpack.c.l.b16 %v1401
        %v1603 = vunpack.c.h.b16 %v1401
        %v1604 = vunpack.c.l.b16 %v1402
        %v1605 = vunpack.c.h.b16 %v1402
        %v1606 = vunpack.c.l.b16 %v1403
        %v1607 = vunpack.c.h.b16 %v1403
        %v1608 = vunpack.c.l.b16 %v1404
        %v1609 = vunpack.c.h.b16 %v1404
        %v1610 = vunpack.c.l.b16 %v1405
        %v1611 = vunpack.c.h.b16 %v1405
        %v1612 = vunpack.c.l.b16 %v1406
        %v1613 = vunpack.c.h.b16 %v1406
        %v1614 = vunpack.c.l.b16 %v1407
        %v1615 = vunpack.c.h.b16 %v1407
        %v1616 = vunpack.c.l.b16 %v1408
        %v1617 = vunpack.c.h.b16 %v1408
        %v1618 = vunpack.c.l.b16 %v1409
        %v1619 = vunpack.c.h.b16 %v1409
        %v1620 = vunpack.c.l.b16 %v1410
        %v1621 = vunpack.c.h.b16 %v1410
        %v1622 = vunpack.c.l.b16 %v1411
        %v1623 = vunpack.c.h.b16 %v1411
        %v1624 = vpack.c.b16 %v1510, %v1504
        %v1625 = vpack.c.b16 %v1511, %v1505
        %v1626 = vpack.c.b16 %v1512, %v1506
        %v1627 = vpack.c.b16 %v1513, %v1507
        %v1628 = vpack.c.b16 %v1514, %v1508
        %v1629 = vpack.c.b16 %v1515, %v1509
        %v1630 = vpack.c.b16 %v1522, %v1516
        %v1631 = vpack.c.b16 %v1523, %v1517
        %v1632 = vpack.c.b16 %v1524, %v1518
        %v1633 = vpack.c.b16 %v1525, %v1519
        %v1634 = vpack.c.b16 %v1526, %v1520
        %v1635 = vpack.c.b16 %v1527, %v1521
        %v1636 = vpack.c.b16 %v1534, %v1528
        %v1637 = vpack.c.b16 %v1535, %v1529
        %v1638 = vpack.c.b16 %v1536, %v1530
        %v1639 = vpack.c.b16 %v1537, %v1531
        %v1640 = vpack.c.b16 %v1538, %v1532
        %v1641 = vpack.c.b16 %v1539, %v1533
        %v1642 = vpack.c.b16 %v1546, %v1540
        %v1643 = vpack.c.b16 %v1547, %v1541
        %v1644 = vpack.c.b16 %v1548, %v1542
        %v1645 = vpack.c.b16 %v1549, %v1543
        %v1646 = vpack.c.b16 %v1550, %v1544
        %v1647 = vpack.c.b16 %v1551, %v1545
        %v1648 = vpack.c.b16 %v1558, %v1552
        %v1649 = vpack.c.b16 %v1559, %v1553
        %v1650 = vpack.c.b16 %v1560, %v1554
        %v1651 = vpack.c.b16 %v1561, %v1555
        %v1652 = vpack.c.b16 %v1562, %v1556
        %v1653 = vpack.c.b16 %v1563, %v1557
        %v1654 = vpack.c.b16 %v1570, %v1564
        %v1655 = vpack.c.b16 %v1571, %v1565
        %v1656 = vpack.c.b16 %v1572, %v1566
        %v1657 = vpack.c.b16 %v1573, %v1567
        %v1658 = vpack.c.b16 %v1574, %v1568
        %v1659 = vpack.c.b16 %v1575, %v1569
        %v1660 = vpack.c.b16 %v1582, %v1576
        %v1661 = vpack.c.b16 %v1583, %v1577
        %v1662 = vpack.c.b16 %v1584, %v1578
        %v1663 = vpack.c.b16 %v1585, %v1579
        %v1664 = vpack.c.b16 %v1586, %v1580
        %v1665 = vpack.c.b16 %v1587, %v1581
        %v1666 = vpack.c.b16 %v1594, %v1588
        %v1667 = vpack.c.b16 %v1595, %v1589
        %v1668 = vpack.c.b16 %v1596, %v1590
        %v1669 = vpack.c.b16 %v1597, %v1591
        %v1670 = vpack.c.b16 %v1598, %v1592
        %v1671 = vpack.c.b16 %v1599, %v1593
        %v1672 = vpack.c.b16 %v1606, %v1600
        %v1673 = vpack.c.b16 %v1607, %v1601
        %v1674 = vpack.c.b16 %v1608, %v1602
        %v1675 = vpack.c.b16 %v1609, %v1603
        %v1676 = vpack.c.b16 %v1610, %v1604
        %v1677 = vpack.c.b16 %v1611, %v1605
        %v1678 = vpack.c.b16 %v1618, %v1612
        %v1679 = vpack.c.b16 %v1619, %v1613
        %v1680 = vpack.c.b16 %v1620, %v1614
        %v1681 = vpack.c.b16 %v1621, %v1615
        %v1682 = vpack.c.b16 %v1622, %v1616
        %v1683 = vpack.c.b16 %v1623, %v1617
        %v1739 = vsel %vm928, %v1337, 0
        %v1742 = vsel %vm928, %v1339, 0
        %v1745 = vsel %vm928, %v1341, 0
        %v1748 = vsel %vm928, %v1343, 0
        %v1751 = vsel %vm928, %v1345, 0
        %v1754 = vsel %vm928, %v1347, 0
        %v1757 = vsel %vm928, %v1349, 0
        %v1760 = vsel %vm928, %v1351, 0
        %vm1762 = vcmask 1045504
        %v1764 = vsel %vm1762, %v1678, 0
        %v1767 = vsel %vm1762, %v1679, 0
        %v1770 = vsel %vm1762, %v1680, 0
        %v1773 = vsel %vm1762, %v1681, 0
        %v1776 = vsel %vm1762, %v1682, 0
        %v1779 = vsel %vm1762, %v1683, 0
        %1781 = vmatprep.subr.bf16.mxu0 %v1625
        %1782 = vmatpush1.bf16.msra.mxu0 %v1624
        %1783 = vmatprep.subr.bf16.mxu0 %v1631
        %1784 = vmatpush1.bf16.msra.mxu0 %v1630
        %1785 = vmatprep.subr.bf16.mxu0 %v1637
        %1786 = vmatpush1.bf16.msra.mxu0 %v1636
        %1787 = vmatprep.subr.bf16.mxu0 %v1643
        %1788 = vmatpush1.bf16.msra.mxu0 %v1642
        %1789 = vmatprep.subr.bf16.mxu0 %v1649
        %1790 = vmatpush1.bf16.msra.mxu0 %v1648
        %1791 = vmatprep.subr.bf16.mxu0 %v1655
        %1792 = vmatpush1.bf16.msra.mxu0 %v1654
        %1793 = vmatprep.subr.bf16.mxu0 %v1661
        %1794 = vmatpush1.bf16.msra.mxu0 %v1660
        %1795 = vmatprep.subr.bf16.mxu0 %v1667
        %1796 = vmatpush1.bf16.msra.mxu0 %v1666
        %1797 = vmatprep.subr.bf16.mxu0 %v1673
        %1798 = vmatpush1.bf16.msra.mxu0 %v1672
        %1799 = vmatprep.subr.bf16.mxu0 %v1767
        %1800 = vmatpush1.bf16.msra.mxu0 %v1764
        %1801 = vmatprep.subr.bf16.mxu0 0
        %1802 = vmatpush1.bf16.msra.mxu0 0
        %1803 = vmatprep.subr.bf16.mxu0 0
        %1804 = vmatpush1.bf16.msra.mxu0 0
        %1805 = vmatprep.subr.bf16.mxu0 0
        %1806 = vmatpush1.bf16.msra.mxu0 0
        %1807 = vmatprep.subr.bf16.mxu0 0
        %1808 = vmatpush1.bf16.msra.mxu0 0
        %1809 = vmatprep.subr.bf16.mxu0 0
        %1810 = vmatpush1.bf16.msra.mxu0 0
        %1811 = vmatprep.subr.bf16.mxu0 0
        %1812 = vmatpush1.bf16.msra.mxu0 0
        %1813 = vmatprep.mubr.bf16.mxu0 %v1739
        %1814 = vmatmul.mubr.bf16.gmra.mrb[0].mxu0 %v1336
        %v1815 = vpop.f32.mrb[0].mxu0
        %v1816 = vadd.f32 %v1417, %v1815
        %v1817 = vpop.f32.mrb[0].mxu0
        %v1818 = vadd.f32 %v1421, %v1817
        %v1819 = vpop.f32.mrb[0].mxu0
        %v1820 = vadd.f32 %v1417, %v1819
        %v1821 = vpop.f32.mrb[0].mxu0
        %v1822 = vadd.f32 %v1421, %v1821
        %1823 = vmatprep.mubr.bf16.mxu0 %v1742
        %1824 = vmatmul.mubr.bf16.gmra.mrb[0].mxu0 %v1338
        %v1825 = vpop.f32.mrb[0].mxu0
        %v1826 = vadd.f32 %v1417, %v1825
        %v1827 = vpop.f32.mrb[0].mxu0
        %v1828 = vadd.f32 %v1421, %v1827
        %v1829 = vpop.f32.mrb[0].mxu0
        %v1830 = vadd.f32 %v1417, %v1829
        %v1831 = vpop.f32.mrb[0].mxu0
        %v1832 = vadd.f32 %v1421, %v1831
        %1833 = vmatprep.mubr.bf16.mxu0 %v1745
        %1834 = vmatmul.mubr.bf16.gmra.mrb[0].mxu0 %v1340
        %v1835 = vpop.f32.mrb[0].mxu0
        %v1836 = vadd.f32 %v1417, %v1835
        %v1837 = vpop.f32.mrb[0].mxu0
        %v1838 = vadd.f32 %v1421, %v1837
        %v1839 = vpop.f32.mrb[0].mxu0
        %v1840 = vadd.f32 %v1417, %v1839
        %v1841 = vpop.f32.mrb[0].mxu0
        %v1842 = vadd.f32 %v1421, %v1841
        %1843 = vmatprep.mubr.bf16.mxu0 %v1748
        %1844 = vmatmul.mubr.bf16.gmra.mrb[0].mxu0 %v1342
        %v1845 = vpop.f32.mrb[0].mxu0
        %v1846 = vadd.f32 %v1417, %v1845
        %v1847 = vpop.f32.mrb[0].mxu0
        %v1848 = vadd.f32 %v1421, %v1847
        %v1849 = vpop.f32.mrb[0].mxu0
        %v1850 = vadd.f32 %v1417, %v1849
        %v1851 = vpop.f32.mrb[0].mxu0
        %v1852 = vadd.f32 %v1421, %v1851
        %1853 = vmatprep.mubr.bf16.mxu0 %v1751
        %1854 = vmatmul.mubr.bf16.gmra.mrb[0].mxu0 %v1344
        %v1855 = vpop.f32.mrb[0].mxu0
        %v1856 = vadd.f32 %v1417, %v1855
        %v1857 = vpop.f32.mrb[0].mxu0
        %v1858 = vadd.f32 %v1421, %v1857
        %v1859 = vpop.f32.mrb[0].mxu0
        %v1860 = vadd.f32 %v1417, %v1859
        %v1861 = vpop.f32.mrb[0].mxu0
        %v1862 = vadd.f32 %v1421, %v1861
        %1863 = vmatprep.mubr.bf16.mxu0 %v1754
        %1864 = vmatmul.mubr.bf16.gmra.mrb[0].mxu0 %v1346
        %v1865 = vpop.f32.mrb[0].mxu0
        %v1866 = vadd.f32 %v1417, %v1865
        %v1867 = vpop.f32.mrb[0].mxu0
        %v1868 = vadd.f32 %v1421, %v1867
        %v1869 = vpop.f32.mrb[0].mxu0
        %v1870 = vadd.f32 %v1417, %v1869
        %v1871 = vpop.f32.mrb[0].mxu0
        %v1872 = vadd.f32 %v1421, %v1871
        %1873 = vmatprep.mubr.bf16.mxu0 %v1757
        %1874 = vmatmul.mubr.bf16.gmra.mrb[0].mxu0 %v1348
        %v1875 = vpop.f32.mrb[0].mxu0
        %v1876 = vadd.f32 %v1417, %v1875
        %v1877 = vpop.f32.mrb[0].mxu0
        %v1878 = vadd.f32 %v1421, %v1877
        %v1879 = vpop.f32.mrb[0].mxu0
        %v1880 = vadd.f32 %v1417, %v1879
        %v1881 = vpop.f32.mrb[0].mxu0
        %v1882 = vadd.f32 %v1421, %v1881
        %1883 = vmatprep.mubr.bf16.mxu0 %v1760
        %1884 = vmatmul.mubr.bf16.gmra.mrb[0].mxu0 %v1350
        %v1885 = vpop.f32.mrb[0].mxu0
        %v1886 = vadd.f32 %v1417, %v1885
        %v1887 = vpop.f32.mrb[0].mxu0
        %v1888 = vadd.f32 %v1421, %v1887
        %v1889 = vpop.f32.mrb[0].mxu0
        %v1890 = vadd.f32 %v1417, %v1889
        %v1891 = vpop.f32.mrb[0].mxu0
        %v1892 = vadd.f32 %v1421, %v1891
        %1893 = vdwg.mxu0
        %1894 = vmatprep.subr.bf16.mxu0 %v1627
        %1895 = vmatpush1.bf16.msra.mxu0 %v1626
        %1896 = vmatprep.subr.bf16.mxu0 %v1633
        %1897 = vmatpush1.bf16.msra.mxu0 %v1632
        %1898 = vmatprep.subr.bf16.mxu0 %v1639
        %1899 = vmatpush1.bf16.msra.mxu0 %v1638
        %1900 = vmatprep.subr.bf16.mxu0 %v1645
        %1901 = vmatpush1.bf16.msra.mxu0 %v1644
        %1902 = vmatprep.subr.bf16.mxu0 %v1651
        %1903 = vmatpush1.bf16.msra.mxu0 %v1650
        %1904 = vmatprep.subr.bf16.mxu0 %v1657
        %1905 = vmatpush1.bf16.msra.mxu0 %v1656
        %1906 = vmatprep.subr.bf16.mxu0 %v1663
        %1907 = vmatpush1.bf16.msra.mxu0 %v1662
        %1908 = vmatprep.subr.bf16.mxu0 %v1669
        %1909 = vmatpush1.bf16.msra.mxu0 %v1668
        %1910 = vmatprep.subr.bf16.mxu0 %v1675
        %1911 = vmatpush1.bf16.msra.mxu0 %v1674
        %1912 = vmatprep.subr.bf16.mxu0 %v1773
        %1913 = vmatpush1.bf16.msra.mxu0 %v1770
        %1914 = vmatprep.subr.bf16.mxu0 0
        %1915 = vmatpush1.bf16.msra.mxu0 0
        %1916 = vmatprep.subr.bf16.mxu0 0
        %1917 = vmatpush1.bf16.msra.mxu0 0
        %1918 = vmatprep.subr.bf16.mxu0 0
        %1919 = vmatpush1.bf16.msra.mxu0 0
        %1920 = vmatprep.subr.bf16.mxu0 0
        %1921 = vmatpush1.bf16.msra.mxu0 0
        %1922 = vmatprep.subr.bf16.mxu0 0
        %1923 = vmatpush1.bf16.msra.mxu0 0
        %1924 = vmatprep.subr.bf16.mxu0 0
        %1925 = vmatpush1.bf16.msra.mxu0 0
        %1926 = vmatprep.mubr.bf16.mxu0 %v1739
        %1927 = vmatmul.mubr.bf16.gmra.mrb[0].mxu0 %v1336
        %v1928 = vpop.f32.mrb[0].mxu0
        %v1929 = vadd.f32 %v1425, %v1928
        %v1930 = vpop.f32.mrb[0].mxu0
        %v1931 = vadd.f32 %v1429, %v1930
        %v1932 = vpop.f32.mrb[0].mxu0
        %v1933 = vadd.f32 %v1425, %v1932
        %v1934 = vpop.f32.mrb[0].mxu0
        %v1935 = vadd.f32 %v1429, %v1934
        %1936 = vmatprep.mubr.bf16.mxu0 %v1742
        %1937 = vmatmul.mubr.bf16.gmra.mrb[0].mxu0 %v1338
        %v1938 = vpop.f32.mrb[0].mxu0
        %v1939 = vadd.f32 %v1425, %v1938
        %v1940 = vpop.f32.mrb[0].mxu0
        %v1941 = vadd.f32 %v1429, %v1940
        %v1942 = vpop.f32.mrb[0].mxu0
        %v1943 = vadd.f32 %v1425, %v1942
        %v1944 = vpop.f32.mrb[0].mxu0
        %v1945 = vadd.f32 %v1429, %v1944
        %1946 = vmatprep.mubr.bf16.mxu0 %v1745
        %1947 = vmatmul.mubr.bf16.gmra.mrb[0].mxu0 %v1340
        %v1948 = vpop.f32.mrb[0].mxu0
        %v1949 = vadd.f32 %v1425, %v1948
        %v1950 = vpop.f32.mrb[0].mxu0
        %v1951 = vadd.f32 %v1429, %v1950
        %v1952 = vpop.f32.mrb[0].mxu0
        %v1953 = vadd.f32 %v1425, %v1952
        %v1954 = vpop.f32.mrb[0].mxu0
        %v1955 = vadd.f32 %v1429, %v1954
        %1956 = vmatprep.mubr.bf16.mxu0 %v1748
        %1957 = vmatmul.mubr.bf16.gmra.mrb[0].mxu0 %v1342
        %v1958 = vpop.f32.mrb[0].mxu0
        %v1959 = vadd.f32 %v1425, %v1958
        %v1960 = vpop.f32.mrb[0].mxu0
        %v1961 = vadd.f32 %v1429, %v1960
        %v1962 = vpop.f32.mrb[0].mxu0
        %v1963 = vadd.f32 %v1425, %v1962
        %v1964 = vpop.f32.mrb[0].mxu0
        %v1965 = vadd.f32 %v1429, %v1964
        %1966 = vmatprep.mubr.bf16.mxu0 %v1751
        %1967 = vmatmul.mubr.bf16.gmra.mrb[0].mxu0 %v1344
        %v1968 = vpop.f32.mrb[0].mxu0
        %v1969 = vadd.f32 %v1425, %v1968
        %v1970 = vpop.f32.mrb[0].mxu0
        %v1971 = vadd.f32 %v1429, %v1970
        %v1972 = vpop.f32.mrb[0].mxu0
        %v1973 = vadd.f32 %v1425, %v1972
        %v1974 = vpop.f32.mrb[0].mxu0
        %v1975 = vadd.f32 %v1429, %v1974
        %1976 = vmatprep.mubr.bf16.mxu0 %v1754
        %1977 = vmatmul.mubr.bf16.gmra.mrb[0].mxu0 %v1346
        %v1978 = vpop.f32.mrb[0].mxu0
        %v1979 = vadd.f32 %v1425, %v1978
        %v1980 = vpop.f32.mrb[0].mxu0
        %v1981 = vadd.f32 %v1429, %v1980
        %v1982 = vpop.f32.mrb[0].mxu0
        %v1983 = vadd.f32 %v1425, %v1982
        %v1984 = vpop.f32.mrb[0].mxu0
        %v1985 = vadd.f32 %v1429, %v1984
        %1986 = vmatprep.mubr.bf16.mxu0 %v1757
        %1987 = vmatmul.mubr.bf16.gmra.mrb[0].mxu0 %v1348
        %v1988 = vpop.f32.mrb[0].mxu0
        %v1989 = vadd.f32 %v1425, %v1988
        %v1990 = vpop.f32.mrb[0].mxu0
        %v1991 = vadd.f32 %v1429, %v1990
        %v1992 = vpop.f32.mrb[0].mxu0
        %v1993 = vadd.f32 %v1425, %v1992
        %v1994 = vpop.f32.mrb[0].mxu0
        %v1995 = vadd.f32 %v1429, %v1994
        %1996 = vmatprep.mubr.bf16.mxu0 %v1760
        %1997 = vmatmul.mubr.bf16.gmra.mrb[0].mxu0 %v1350
        %v1998 = vpop.f32.mrb[0].mxu0
        %v1999 = vadd.f32 %v1425, %v1998
        %v2000 = vpop.f32.mrb[0].mxu0
        %v2001 = vadd.f32 %v1429, %v2000
        %v2002 = vpop.f32.mrb[0].mxu0
        %v2003 = vadd.f32 %v1425, %v2002
        %v2004 = vpop.f32.mrb[0].mxu0
        %v2005 = vadd.f32 %v1429, %v2004
        %2006 = vdwg.mxu0
        %2007 = vmatprep.subr.bf16.mxu0 %v1629
        %2008 = vmatpush1.bf16.msra.mxu0 %v1628
        %2009 = vmatprep.subr.bf16.mxu0 %v1635
        %2010 = vmatpush1.bf16.msra.mxu0 %v1634
        %2011 = vmatprep.subr.bf16.mxu0 %v1641
        %2012 = vmatpush1.bf16.msra.mxu0 %v1640
        %2013 = vmatprep.subr.bf16.mxu0 %v1647
        %2014 = vmatpush1.bf16.msra.mxu0 %v1646
        %2015 = vmatprep.subr.bf16.mxu0 %v1653
        %2016 = vmatpush1.bf16.msra.mxu0 %v1652
        %2017 = vmatprep.subr.bf16.mxu0 %v1659
        %2018 = vmatpush1.bf16.msra.mxu0 %v1658
        %2019 = vmatprep.subr.bf16.mxu0 %v1665
        %2020 = vmatpush1.bf16.msra.mxu0 %v1664
        %2021 = vmatprep.subr.bf16.mxu0 %v1671
        %2022 = vmatpush1.bf16.msra.mxu0 %v1670
        %2023 = vmatprep.subr.bf16.mxu0 %v1677
        %2024 = vmatpush1.bf16.msra.mxu0 %v1676
        %2025 = vmatprep.subr.bf16.mxu0 %v1779
        %2026 = vmatpush1.bf16.msra.mxu0 %v1776
        %2027 = vmatprep.subr.bf16.mxu0 0
        %2028 = vmatpush1.bf16.msra.mxu0 0
        %2029 = vmatprep.subr.bf16.mxu0 0
        %2030 = vmatpush1.bf16.msra.mxu0 0
        %2031 = vmatprep.subr.bf16.mxu0 0
        %2032 = vmatpush1.bf16.msra.mxu0 0
        %2033 = vmatprep.subr.bf16.mxu0 0
        %2034 = vmatpush1.bf16.msra.mxu0 0
        %2035 = vmatprep.subr.bf16.mxu0 0
        %2036 = vmatpush1.bf16.msra.mxu0 0
        %2037 = vmatprep.subr.bf16.mxu0 0
        %2038 = vmatpush1.bf16.msra.mxu0 0
        %2039 = vmatprep.mubr.bf16.mxu0 %v1739
        %2040 = vmatmul.mubr.bf16.gmra.mrb[0].mxu0 %v1336
        %v2041 = vpop.f32.mrb[0].mxu0
        %v2042 = vadd.f32 %v1433, %v2041
        %v2043 = vpop.f32.mrb[0].mxu0
        %v2044 = vadd.f32 %v1437, %v2043
        %v2045 = vpop.f32.mrb[0].mxu0
        %v2046 = vadd.f32 %v1433, %v2045
        %v2047 = vpop.f32.mrb[0].mxu0
        %v2048 = vadd.f32 %v1437, %v2047
        %2049 = vmatprep.mubr.bf16.mxu0 %v1742
        %2050 = vmatmul.mubr.bf16.gmra.mrb[0].mxu0 %v1338
        %v2051 = vpop.f32.mrb[0].mxu0
        %v2052 = vadd.f32 %v1433, %v2051
        %v2053 = vpop.f32.mrb[0].mxu0
        %v2054 = vadd.f32 %v1437, %v2053
        %v2055 = vpop.f32.mrb[0].mxu0
        %v2056 = vadd.f32 %v1433, %v2055
        %v2057 = vpop.f32.mrb[0].mxu0
        %v2058 = vadd.f32 %v1437, %v2057
        %2059 = vmatprep.mubr.bf16.mxu0 %v1745
        %2060 = vmatmul.mubr.bf16.gmra.mrb[0].mxu0 %v1340
        %v2061 = vpop.f32.mrb[0].mxu0
        %v2062 = vadd.f32 %v1433, %v2061
        %v2063 = vpop.f32.mrb[0].mxu0
        %v2064 = vadd.f32 %v1437, %v2063
        %v2065 = vpop.f32.mrb[0].mxu0
        %v2066 = vadd.f32 %v1433, %v2065
        %v2067 = vpop.f32.mrb[0].mxu0
        %v2068 = vadd.f32 %v1437, %v2067
        %2069 = vmatprep.mubr.bf16.mxu0 %v1748
        %2070 = vmatmul.mubr.bf16.gmra.mrb[0].mxu0 %v1342
        %v2071 = vpop.f32.mrb[0].mxu0
        %v2072 = vadd.f32 %v1433, %v2071
        %v2073 = vpop.f32.mrb[0].mxu0
        %v2074 = vadd.f32 %v1437, %v2073
        %v2075 = vpop.f32.mrb[0].mxu0
        %v2076 = vadd.f32 %v1433, %v2075
        %v2077 = vpop.f32.mrb[0].mxu0
        %v2078 = vadd.f32 %v1437, %v2077
        %2079 = vmatprep.mubr.bf16.mxu0 %v1751
        %2080 = vmatmul.mubr.bf16.gmra.mrb[0].mxu0 %v1344
        %v2081 = vpop.f32.mrb[0].mxu0
        %v2082 = vadd.f32 %v1433, %v2081
        %v2083 = vpop.f32.mrb[0].mxu0
        %v2084 = vadd.f32 %v1437, %v2083
        %v2085 = vpop.f32.mrb[0].mxu0
        %v2086 = vadd.f32 %v1433, %v2085
        %v2087 = vpop.f32.mrb[0].mxu0
        %v2088 = vadd.f32 %v1437, %v2087
        %2089 = vmatprep.mubr.bf16.mxu0 %v1754
        %2090 = vmatmul.mubr.bf16.gmra.mrb[0].mxu0 %v1346
        %v2091 = vpop.f32.mrb[0].mxu0
        %v2092 = vadd.f32 %v1433, %v2091
        %v2093 = vpop.f32.mrb[0].mxu0
        %v2094 = vadd.f32 %v1437, %v2093
        %v2095 = vpop.f32.mrb[0].mxu0
        %v2096 = vadd.f32 %v1433, %v2095
        %v2097 = vpop.f32.mrb[0].mxu0
        %v2098 = vadd.f32 %v1437, %v2097
        %2099 = vmatprep.mubr.bf16.mxu0 %v1757
        %2100 = vmatmul.mubr.bf16.gmra.mrb[0].mxu0 %v1348
        %v2101 = vpop.f32.mrb[0].mxu0
        %v2102 = vadd.f32 %v1433, %v2101
        %v2103 = vpop.f32.mrb[0].mxu0
        %v2104 = vadd.f32 %v1437, %v2103
        %v2105 = vpop.f32.mrb[0].mxu0
        %v2106 = vadd.f32 %v1433, %v2105
        %v2107 = vpop.f32.mrb[0].mxu0
        %v2108 = vadd.f32 %v1437, %v2107
        %2109 = vmatprep.mubr.bf16.mxu0 %v1760
        %2110 = vmatmul.mubr.bf16.gmra.mrb[0].mxu0 %v1350
        %v2111 = vpop.f32.mrb[0].mxu0
        %v2112 = vadd.f32 %v1433, %v2111
        %v2113 = vpop.f32.mrb[0].mxu0
        %v2114 = vadd.f32 %v1437, %v2113
        %v2115 = vpop.f32.mrb[0].mxu0
        %v2116 = vadd.f32 %v1433, %v2115
        %v2117 = vpop.f32.mrb[0].mxu0
        %v2118 = vadd.f32 %v1437, %v2117
        %2119 = vdwg.mxu0
        %2120 = vst [vmem:[#allocation3] sm:$0xff] %v1816
        %2121 = vst [vmem:[#allocation3 + $0x8] sm:$0xff] %v1818
        %2122 = vst [vmem:[#allocation3 + $0x10] sm:$0xff] %v1929
        %2123 = vst [vmem:[#allocation3 + $0x18] sm:$0xff] %v1931
        %2124 = vst [vmem:[#allocation3 + $0x20] sm:$0xff] %v2042
        %2125 = vst [vmem:[#allocation3 + $0x28] sm:$0xff] %v2044
        %2126 = vst [vmem:[#allocation3 + $0x30] sm:$0xff] %v1820
        %2127 = vst [vmem:[#allocation3 + $0x38] sm:$0xff] %v1822
        %2128 = vst [vmem:[#allocation3 + $0x40] sm:$0xff] %v1933
        %2129 = vst [vmem:[#allocation3 + $0x48] sm:$0xff] %v1935
        %2130 = vst [vmem:[#allocation3 + $0x50] sm:$0xff] %v2046
        %2131 = vst [vmem:[#allocation3 + $0x58] sm:$0xff] %v2048
        %2132 = vst [vmem:[#allocation3 + $0x60] sm:$0xff] %v1826
        %2133 = vst [vmem:[#allocation3 + $0x68] sm:$0xff] %v1828
        %2134 = vst [vmem:[#allocation3 + $0x70] sm:$0xff] %v1939
        %2135 = vst [vmem:[#allocation3 + $0x78] sm:$0xff] %v1941
        %2136 = vst [vmem:[#allocation3 + $0x80] sm:$0xff] %v2052
        %2137 = vst [vmem:[#allocation3 + $0x88] sm:$0xff] %v2054
        %2138 = vst [vmem:[#allocation3 + $0x90] sm:$0xff] %v1830
        %2139 = vst [vmem:[#allocation3 + $0x98] sm:$0xff] %v1832
        %2140 = vst [vmem:[#allocation3 + $0xa0] sm:$0xff] %v1943
        %2141 = vst [vmem:[#allocation3 + $0xa8] sm:$0xff] %v1945
        %2142 = vst [vmem:[#allocation3 + $0xb0] sm:$0xff] %v2056
        %2143 = vst [vmem:[#allocation3 + $0xb8] sm:$0xff] %v2058
        %2144 = vst [vmem:[#allocation3 + $0xc0] sm:$0xff] %v1836
        %2145 = vst [vmem:[#allocation3 + $0xc8] sm:$0xff] %v1838
        %2146 = vst [vmem:[#allocation3 + $0xd0] sm:$0xff] %v1949
        %2147 = vst [vmem:[#allocation3 + $0xd8] sm:$0xff] %v1951
        %2148 = vst [vmem:[#allocation3 + $0xe0] sm:$0xff] %v2062
        %2149 = vst [vmem:[#allocation3 + $0xe8] sm:$0xff] %v2064
        %2150 = vst [vmem:[#allocation3 + $0xf0] sm:$0xff] %v1840
        %2151 = vst [vmem:[#allocation3 + $0xf8] sm:$0xff] %v1842
        %2152 = vst [vmem:[#allocation3 + $0x100] sm:$0xff] %v1953
        %2153 = vst [vmem:[#allocation3 + $0x108] sm:$0xff] %v1955
        %2154 = vst [vmem:[#allocation3 + $0x110] sm:$0xff] %v2066
        %2155 = vst [vmem:[#allocation3 + $0x118] sm:$0xff] %v2068
        %2156 = vst [vmem:[#allocation3 + $0x120] sm:$0xff] %v1846
        %2157 = vst [vmem:[#allocation3 + $0x128] sm:$0xff] %v1848
        %2158 = vst [vmem:[#allocation3 + $0x130] sm:$0xff] %v1959
        %2159 = vst [vmem:[#allocation3 + $0x138] sm:$0xff] %v1961
        %2160 = vst [vmem:[#allocation3 + $0x140] sm:$0xff] %v2072
        %2161 = vst [vmem:[#allocation3 + $0x148] sm:$0xff] %v2074
        %2162 = vst [vmem:[#allocation3 + $0x150] sm:$0xff] %v1850
        %2163 = vst [vmem:[#allocation3 + $0x158] sm:$0xff] %v1852
        %2164 = vst [vmem:[#allocation3 + $0x160] sm:$0xff] %v1963
        %2165 = vst [vmem:[#allocation3 + $0x168] sm:$0xff] %v1965
        %2166 = vst [vmem:[#allocation3 + $0x170] sm:$0xff] %v2076
        %2167 = vst [vmem:[#allocation3 + $0x178] sm:$0xff] %v2078
        %2168 = vst [vmem:[#allocation3 + $0x180] sm:$0xff] %v1856
        %2169 = vst [vmem:[#allocation3 + $0x188] sm:$0xff] %v1858
        %2170 = vst [vmem:[#allocation3 + $0x190] sm:$0xff] %v1969
        %2171 = vst [vmem:[#allocation3 + $0x198] sm:$0xff] %v1971
        %2172 = vst [vmem:[#allocation3 + $0x1a0] sm:$0xff] %v2082
        %2173 = vst [vmem:[#allocation3 + $0x1a8] sm:$0xff] %v2084
        %2174 = vst [vmem:[#allocation3 + $0x1b0] sm:$0xff] %v1860
        %2175 = vst [vmem:[#allocation3 + $0x1b8] sm:$0xff] %v1862
        %2176 = vst [vmem:[#allocation3 + $0x1c0] sm:$0xff] %v1973
        %2177 = vst [vmem:[#allocation3 + $0x1c8] sm:$0xff] %v1975
        %2178 = vst [vmem:[#allocation3 + $0x1d0] sm:$0xff] %v2086
        %2179 = vst [vmem:[#allocation3 + $0x1d8] sm:$0xff] %v2088
        %2180 = vst [vmem:[#allocation3 + $0x1e0] sm:$0xff] %v1866
        %2181 = vst [vmem:[#allocation3 + $0x1e8] sm:$0xff] %v1868
        %2182 = vst [vmem:[#allocation3 + $0x1f0] sm:$0xff] %v1979
        %2183 = vst [vmem:[#allocation3 + $0x1f8] sm:$0xff] %v1981
        %2184 = vst [vmem:[#allocation3 + $0x200] sm:$0xff] %v2092
        %2185 = vst [vmem:[#allocation3 + $0x208] sm:$0xff] %v2094
        %2186 = vst [vmem:[#allocation3 + $0x210] sm:$0xff] %v1870
        %2187 = vst [vmem:[#allocation3 + $0x218] sm:$0xff] %v1872
        %2188 = vst [vmem:[#allocation3 + $0x220] sm:$0xff] %v1983
        %2189 = vst [vmem:[#allocation3 + $0x228] sm:$0xff] %v1985
        %2190 = vst [vmem:[#allocation3 + $0x230] sm:$0xff] %v2096
        %2191 = vst [vmem:[#allocation3 + $0x238] sm:$0xff] %v2098
        %2192 = vst [vmem:[#allocation3 + $0x240] sm:$0xff] %v1876
        %2193 = vst [vmem:[#allocation3 + $0x248] sm:$0xff] %v1878
        %2194 = vst [vmem:[#allocation3 + $0x250] sm:$0xff] %v1989
        %2195 = vst [vmem:[#allocation3 + $0x258] sm:$0xff] %v1991
        %2196 = vst [vmem:[#allocation3 + $0x260] sm:$0xff] %v2102
        %2197 = vst [vmem:[#allocation3 + $0x268] sm:$0xff] %v2104
        %2198 = vst [vmem:[#allocation3 + $0x270] sm:$0xff] %v1880
        %2199 = vst [vmem:[#allocation3 + $0x278] sm:$0xff] %v1882
        %2200 = vst [vmem:[#allocation3 + $0x280] sm:$0xff] %v1993
        %2201 = vst [vmem:[#allocation3 + $0x288] sm:$0xff] %v1995
        %2202 = vst [vmem:[#allocation3 + $0x290] sm:$0xff] %v2106
        %2203 = vst [vmem:[#allocation3 + $0x298] sm:$0xff] %v2108
        %2204 = vst [vmem:[#allocation3 + $0x2a0] sm:$0xff] %v1886
        %2205 = vst [vmem:[#allocation3 + $0x2a8] sm:$0xff] %v1888
        %2206 = vst [vmem:[#allocation3 + $0x2b0] sm:$0xff] %v1999
        %2207 = vst [vmem:[#allocation3 + $0x2b8] sm:$0xff] %v2001
        %2208 = vst [vmem:[#allocation3 + $0x2c0] sm:$0xff] %v2112
        %2209 = vst [vmem:[#allocation3 + $0x2c8] sm:$0xff] %v2114
        %2210 = vst [vmem:[#allocation3 + $0x2d0] sm:$0xff] %v1890
        %2211 = vst [vmem:[#allocation3 + $0x2d8] sm:$0xff] %v1892
        %2212 = vst [vmem:[#allocation3 + $0x2e0] sm:$0xff] %v2003
        %2213 = vst [vmem:[#allocation3 + $0x2e8] sm:$0xff] %v2005
        %2214 = vst [vmem:[#allocation3 + $0x2f0] sm:$0xff] %v2116
        %2215 = vst [vmem:[#allocation3 + $0x2f8] sm:$0xff] %v2118
        %v2216 = vld [vmem:[#allocation3 + $0x10] sm:$0xff]
        %v2217 = vld [vmem:[#allocation3 + $0x18] sm:$0xff]
        %v2218 = vld [vmem:[#allocation3 + $0x40] sm:$0xff]
        %v2219 = vld [vmem:[#allocation3 + $0x48] sm:$0xff]
        %v2220 = vld [vmem:[#allocation3 + $0x70] sm:$0xff]
        %v2221 = vld [vmem:[#allocation3 + $0x78] sm:$0xff]
        %v2222 = vld [vmem:[#allocation3 + $0xa0] sm:$0xff]
        %v2223 = vld [vmem:[#allocation3 + $0xa8] sm:$0xff]
        %v2224 = vld [vmem:[#allocation3 + $0xd0] sm:$0xff]
        %v2225 = vld [vmem:[#allocation3 + $0xd8] sm:$0xff]
        %v2226 = vld [vmem:[#allocation3 + $0x100] sm:$0xff]
        %v2227 = vld [vmem:[#allocation3 + $0x108] sm:$0xff]
        %v2228 = vld [vmem:[#allocation3 + $0x130] sm:$0xff]
        %v2229 = vld [vmem:[#allocation3 + $0x138] sm:$0xff]
        %v2230 = vld [vmem:[#allocation3 + $0x160] sm:$0xff]
        %v2231 = vld [vmem:[#allocation3 + $0x168] sm:$0xff]
        %v2232 = vld [vmem:[#allocation3 + $0x190] sm:$0xff]
        %v2233 = vld [vmem:[#allocation3 + $0x198] sm:$0xff]
        %v2234 = vld [vmem:[#allocation3 + $0x1c0] sm:$0xff]
        %v2235 = vld [vmem:[#allocation3 + $0x1c8] sm:$0xff]
        %v2236 = vld [vmem:[#allocation3 + $0x1f0] sm:$0xff]
        %v2237 = vld [vmem:[#allocation3 + $0x1f8] sm:$0xff]
        %v2238 = vld [vmem:[#allocation3 + $0x220] sm:$0xff]
        %v2239 = vld [vmem:[#allocation3 + $0x228] sm:$0xff]
        %v2240 = vld [vmem:[#allocation3 + $0x250] sm:$0xff]
        %v2241 = vld [vmem:[#allocation3 + $0x258] sm:$0xff]
        %v2242 = vld [vmem:[#allocation3 + $0x280] sm:$0xff]
        %v2243 = vld [vmem:[#allocation3 + $0x288] sm:$0xff]
        %v2244 = vld [vmem:[#allocation3 + $0x2b0] sm:$0xff]
        %v2245 = vld [vmem:[#allocation3 + $0x2b8] sm:$0xff]
        %v2246 = vld [vmem:[#allocation3 + $0x2e0] sm:$0xff]
        %v2247 = vld [vmem:[#allocation3 + $0x2e8] sm:$0xff]
        %2248 = vxpose.xlu0.b32.start [1/16] %v2216, 128
        %2249 = vxpose.xlu0.b32.cont [2/16] %v2218, 128
        %2250 = vxpose.xlu0.b32.cont [3/16] %v2220, 128
        %2251 = vxpose.xlu0.b32.cont [4/16] %v2222, 128
        %2252 = vxpose.xlu0.b32.cont [5/16] %v2224, 128
        %2253 = vxpose.xlu0.b32.cont [6/16] %v2226, 128
        %2254 = vxpose.xlu0.b32.cont [7/16] %v2228, 128
        %2255 = vxpose.xlu0.b32.cont [8/16] %v2230, 128
        %2256 = vxpose.xlu0.b32.cont [9/16] %v2232, 128
        %2257 = vxpose.xlu0.b32.cont [10/16] %v2234, 128
        %2258 = vxpose.xlu0.b32.cont [11/16] %v2236, 128
        %2259 = vxpose.xlu0.b32.cont [12/16] %v2238, 128
        %2260 = vxpose.xlu0.b32.cont [13/16] %v2240, 128
        %2261 = vxpose.xlu0.b32.cont [14/16] %v2242, 128
        %2262 = vxpose.xlu0.b32.cont [15/16] %v2244, 128
        %2263 = vxpose.xlu0.b32.end [16/16] %v2246, 128
        %v2264 = vpop.trf.xlu0
        %v2265 = vpop.trf.xlu0
        %v2266 = vpop.trf.xlu0
        %v2267 = vpop.trf.xlu0
        %v2268 = vpop.trf.xlu0
        %v2269 = vpop.trf.xlu0
        %v2270 = vpop.trf.xlu0
        %v2271 = vpop.trf.xlu0
        %v2272 = vpop.trf.xlu0
        %v2273 = vpop.trf.xlu0
        %v2274 = vpop.trf.xlu0
        %v2275 = vpop.trf.xlu0
        %v2276 = vpop.trf.xlu0
        %v2277 = vpop.trf.xlu0
        %v2278 = vpop.trf.xlu0
        %v2279 = vpop.trf.xlu0
        %2280 = vxpose.xlu0.b32.start [1/16] %v2217, 128
        %2281 = vxpose.xlu0.b32.cont [2/16] %v2219, 128
        %2282 = vxpose.xlu0.b32.cont [3/16] %v2221, 128
        %2283 = vxpose.xlu0.b32.cont [4/16] %v2223, 128
        %2284 = vxpose.xlu0.b32.cont [5/16] %v2225, 128
        %2285 = vxpose.xlu0.b32.cont [6/16] %v2227, 128
        %2286 = vxpose.xlu0.b32.cont [7/16] %v2229, 128
        %2287 = vxpose.xlu0.b32.cont [8/16] %v2231, 128
        %2288 = vxpose.xlu0.b32.cont [9/16] %v2233, 128
        %2289 = vxpose.xlu0.b32.cont [10/16] %v2235, 128
        %2290 = vxpose.xlu0.b32.cont [11/16] %v2237, 128
        %2291 = vxpose.xlu0.b32.cont [12/16] %v2239, 128
        %2292 = vxpose.xlu0.b32.cont [13/16] %v2241, 128
        %2293 = vxpose.xlu0.b32.cont [14/16] %v2243, 128
        %2294 = vxpose.xlu0.b32.cont [15/16] %v2245, 128
        %2295 = vxpose.xlu0.b32.end [16/16] %v2247, 128
        %v2296 = vpop.trf.xlu0
        %v2297 = vpop.trf.xlu0
        %v2298 = vpop.trf.xlu0
        %v2299 = vpop.trf.xlu0
        %v2300 = vpop.trf.xlu0
        %v2301 = vpop.trf.xlu0
        %v2302 = vpop.trf.xlu0
        %v2303 = vpop.trf.xlu0
        %v2304 = vpop.trf.xlu0
        %v2305 = vpop.trf.xlu0
        %v2306 = vpop.trf.xlu0
        %v2307 = vpop.trf.xlu0
        %v2308 = vpop.trf.xlu0
        %v2309 = vpop.trf.xlu0
        %v2310 = vpop.trf.xlu0
        %v2311 = vpop.trf.xlu0
        %2312 = vst [vmem:[#allocation4] sm:$0xff] %v2264
        %2313 = vst [vmem:[#allocation4 + $0x8] sm:$0xff] %v2265
        %2314 = vst [vmem:[#allocation4 + $0x10] sm:$0xff] %v2266
        %2315 = vst [vmem:[#allocation4 + $0x18] sm:$0xff] %v2267
        %2316 = vst [vmem:[#allocation4 + $0x20] sm:$0xff] %v2268
        %2317 = vst [vmem:[#allocation4 + $0x28] sm:$0xff] %v2269
        %2318 = vst [vmem:[#allocation4 + $0x30] sm:$0xff] %v2270
        %2319 = vst [vmem:[#allocation4 + $0x38] sm:$0xff] %v2271
        %2320 = vst [vmem:[#allocation4 + $0x40] sm:$0xff] %v2272
        %2321 = vst [vmem:[#allocation4 + $0x48] sm:$0xff] %v2273
        %2322 = vst [vmem:[#allocation4 + $0x50] sm:$0xff] %v2274
        %2323 = vst [vmem:[#allocation4 + $0x58] sm:$0xff] %v2275
        %2324 = vst [vmem:[#allocation4 + $0x60] sm:$0xff] %v2276
        %2325 = vst [vmem:[#allocation4 + $0x68] sm:$0xff] %v2277
        %2326 = vst [vmem:[#allocation4 + $0x70] sm:$0xff] %v2278
        %2327 = vst [vmem:[#allocation4 + $0x78] sm:$0xff] %v2279
        %2328 = vst [vmem:[#allocation4 + $0x80] sm:$0xff] %v2296
        %2329 = vst [vmem:[#allocation4 + $0x88] sm:$0xff] %v2297
        %2330 = vst [vmem:[#allocation4 + $0x90] sm:$0xff] %v2298
        %2331 = vst [vmem:[#allocation4 + $0x98] sm:$0xff] %v2299
        %2332 = vst [vmem:[#allocation4 + $0xa0] sm:$0xff] %v2300
        %2333 = vst [vmem:[#allocation4 + $0xa8] sm:$0xff] %v2301
        %2334 = vst [vmem:[#allocation4 + $0xb0] sm:$0xff] %v2302
        %2335 = vst [vmem:[#allocation4 + $0xb8] sm:$0xff] %v2303
        %2336 = vst [vmem:[#allocation4 + $0xc0] sm:$0xff] %v2304
        %2337 = vst [vmem:[#allocation4 + $0xc8] sm:$0xff] %v2305
        %2338 = vst [vmem:[#allocation4 + $0xd0] sm:$0xff] %v2306
        %2339 = vst [vmem:[#allocation4 + $0xd8] sm:$0xff] %v2307
        %2340 = vst [vmem:[#allocation4 + $0xe0] sm:$0xff] %v2308
        %2341 = vst [vmem:[#allocation4 + $0xe8] sm:$0xff] %v2309
        %2342 = vst [vmem:[#allocation4 + $0xf0] sm:$0xff] %v2310
        %2343 = vst [vmem:[#allocation4 + $0xf8] sm:$0xff] %v2311
        %v2344 = vld [vmem:[#allocation3] sm:$0xff]
        %v2345 = vld [vmem:[#allocation3 + $0x30] sm:$0xff]
        %v2346 = vld [vmem:[#allocation3 + $0x60] sm:$0xff]
        %v2347 = vld [vmem:[#allocation3 + $0x90] sm:$0xff]
        %v2348 = vld [vmem:[#allocation3 + $0xc0] sm:$0xff]
        %v2349 = vld [vmem:[#allocation3 + $0xf0] sm:$0xff]
        %v2350 = vld [vmem:[#allocation3 + $0x120] sm:$0xff]
        %v2351 = vld [vmem:[#allocation3 + $0x150] sm:$0xff]
        %v2352 = vld [vmem:[#allocation3 + $0x180] sm:$0xff]
        %v2353 = vld [vmem:[#allocation3 + $0x1b0] sm:$0xff]
        %v2354 = vld [vmem:[#allocation3 + $0x1e0] sm:$0xff]
        %v2355 = vld [vmem:[#allocation3 + $0x210] sm:$0xff]
        %v2356 = vld [vmem:[#allocation3 + $0x240] sm:$0xff]
        %v2357 = vld [vmem:[#allocation3 + $0x270] sm:$0xff]
        %v2358 = vld [vmem:[#allocation3 + $0x2a0] sm:$0xff]
        %v2359 = vld [vmem:[#allocation3 + $0x2d0] sm:$0xff]
        %v2360 = vld [vmem:[#allocation4] sm:$0xff]
        %v2361 = vld [vmem:[#allocation4 + $0x8] sm:$0xff]
        %v2362 = vld [vmem:[#allocation4 + $0x10] sm:$0xff]
        %v2363 = vld [vmem:[#allocation4 + $0x18] sm:$0xff]
        %v2364 = vld [vmem:[#allocation3 + $0x20] sm:$0xff]
        %v2365 = vld [vmem:[#allocation3 + $0x50] sm:$0xff]
        %v2366 = vld [vmem:[#allocation3 + $0x80] sm:$0xff]
        %v2367 = vld [vmem:[#allocation3 + $0xb0] sm:$0xff]
        %v2368 = vld [vmem:[#allocation3 + $0xe0] sm:$0xff]
        %v2369 = vld [vmem:[#allocation3 + $0x110] sm:$0xff]
        %v2370 = vld [vmem:[#allocation3 + $0x140] sm:$0xff]
        %v2371 = vld [vmem:[#allocation3 + $0x170] sm:$0xff]
        %v2372 = vld [vmem:[#allocation3 + $0x1a0] sm:$0xff]
        %v2373 = vld [vmem:[#allocation3 + $0x1d0] sm:$0xff]
        %v2374 = vld [vmem:[#allocation3 + $0x200] sm:$0xff]
        %v2375 = vld [vmem:[#allocation3 + $0x230] sm:$0xff]
        %v2376 = vld [vmem:[#allocation3 + $0x260] sm:$0xff]
        %v2377 = vld [vmem:[#allocation3 + $0x290] sm:$0xff]
        %v2378 = vld [vmem:[#allocation3 + $0x2c0] sm:$0xff]
        %v2379 = vld [vmem:[#allocation3 + $0x2f0] sm:$0xff]
        %v2380 = vpack.c.bf16 %v2345, %v2344
        %v2381 = vpack.c.bf16 %v2347, %v2346
        %v2382 = vpack.c.bf16 %v2349, %v2348
        %v2383 = vpack.c.bf16 %v2351, %v2350
        %v2384 = vpack.c.bf16 %v2353, %v2352
        %v2385 = vpack.c.bf16 %v2355, %v2354
        %v2386 = vpack.c.bf16 %v2357, %v2356
        %v2387 = vpack.c.bf16 %v2359, %v2358
        %v2388 = vpack.c.bf16 %v2361, %v2360
        %v2389 = vpack.c.bf16 %v2363, %v2362
        %vm2390 = vcmask 261120
        %v2392 = vsel %vm2390, %v2380, 0
        %v2395 = vsel %vm2390, %v2381, 0
        %v2398 = vsel %vm2390, %v2382, 0
        %v2401 = vsel %vm2390, %v2383, 0
        %v2404 = vsel %vm2390, %v2384, 0
        %v2407 = vsel %vm2390, %v2385, 0
        %v2410 = vsel %vm2390, %v2386, 0
        %v2413 = vsel %vm2390, %v2387, 0
        %2415 = vmatprep.subr.bf16.mxu0 0
        %2416 = vmatpush1.bf16.msra.mxu0 %v2388
        %2417 = vmatprep.subr.bf16.mxu0 0
        %2418 = vmatpush1.bf16.msra.mxu0 %v2389
        %2419 = vmatprep.subr.bf16.mxu0 0
        %2420 = vmatpush1.bf16.msra.mxu0 0
        %2421 = vmatprep.subr.bf16.mxu0 0
        %2422 = vmatpush1.bf16.msra.mxu0 0
        %2423 = vmatprep.subr.bf16.mxu0 0
        %2424 = vmatpush1.bf16.msra.mxu0 0
        %2425 = vmatprep.subr.bf16.mxu0 0
        %2426 = vmatpush1.bf16.msra.mxu0 0
        %2427 = vmatprep.subr.bf16.mxu0 0
        %2428 = vmatpush1.bf16.msra.mxu0 0
        %2429 = vmatprep.subr.bf16.mxu0 0
        %2430 = vmatpush1.bf16.msra.mxu0 0
        %2431 = vmatprep.subr.bf16.mxu0 0
        %2432 = vmatpush1.bf16.msra.mxu0 0
        %2433 = vmatprep.subr.bf16.mxu0 0
        %2434 = vmatpush1.bf16.msra.mxu0 0
        %2435 = vmatprep.subr.bf16.mxu0 0
        %2436 = vmatpush1.bf16.msra.mxu0 0
        %2437 = vmatprep.subr.bf16.mxu0 0
        %2438 = vmatpush1.bf16.msra.mxu0 0
        %2439 = vmatprep.subr.bf16.mxu0 0
        %2440 = vmatpush1.bf16.msra.mxu0 0
        %2441 = vmatprep.subr.bf16.mxu0 0
        %2442 = vmatpush1.bf16.msra.mxu0 0
        %2443 = vmatprep.subr.bf16.mxu0 0
        %2444 = vmatpush1.bf16.msra.mxu0 0
        %2445 = vmatprep.subr.bf16.mxu0 0
        %2446 = vmatpush1.bf16.msra.mxu0 0
        %2447 = vmatprep.mubr.bf16.mxu0 0
        %2448 = vmatmul.mubr.bf16.gmra.mrb[0].mxu0 %v2392
        %v2449 = vpop.f32.mrb[0].mxu0
        %v2450 = vadd.f32 %v910, %v2449
        %v2451 = vpop.f32.mrb[0].mxu0
        %v2452 = vpop.f32.mrb[0].mxu0
        %v2453 = vadd.f32 %v911, %v2452
        %v2454 = vpop.f32.mrb[0].mxu0
        %2455 = vmatprep.mubr.bf16.mxu0 0
        %2456 = vmatmul.mubr.bf16.gmra.mrb[0].mxu0 %v2395
        %v2457 = vpop.f32.mrb[0].mxu0
        %v2458 = vadd.f32 %v912, %v2457
        %v2459 = vpop.f32.mrb[0].mxu0
        %v2460 = vpop.f32.mrb[0].mxu0
        %v2461 = vadd.f32 %v913, %v2460
        %v2462 = vpop.f32.mrb[0].mxu0
        %2463 = vmatprep.mubr.bf16.mxu0 0
        %2464 = vmatmul.mubr.bf16.gmra.mrb[0].mxu0 %v2398
        %v2465 = vpop.f32.mrb[0].mxu0
        %v2466 = vadd.f32 %v914, %v2465
        %v2467 = vpop.f32.mrb[0].mxu0
        %v2468 = vpop.f32.mrb[0].mxu0
        %v2469 = vadd.f32 %v915, %v2468
        %v2470 = vpop.f32.mrb[0].mxu0
        %2471 = vmatprep.mubr.bf16.mxu0 0
        %2472 = vmatmul.mubr.bf16.gmra.mrb[0].mxu0 %v2401
        %v2473 = vpop.f32.mrb[0].mxu0
        %v2474 = vadd.f32 %v916, %v2473
        %v2475 = vpop.f32.mrb[0].mxu0
        %v2476 = vpop.f32.mrb[0].mxu0
        %v2477 = vadd.f32 %v917, %v2476
        %v2478 = vpop.f32.mrb[0].mxu0
        %2479 = vmatprep.mubr.bf16.mxu0 0
        %2480 = vmatmul.mubr.bf16.gmra.mrb[0].mxu0 %v2404
        %v2481 = vpop.f32.mrb[0].mxu0
        %v2482 = vadd.f32 %v918, %v2481
        %v2483 = vpop.f32.mrb[0].mxu0
        %v2484 = vpop.f32.mrb[0].mxu0
        %v2485 = vadd.f32 %v919, %v2484
        %v2486 = vpop.f32.mrb[0].mxu0
        %2487 = vmatprep.mubr.bf16.mxu0 0
        %2488 = vmatmul.mubr.bf16.gmra.mrb[0].mxu0 %v2407
        %v2489 = vpop.f32.mrb[0].mxu0
        %v2490 = vadd.f32 %v920, %v2489
        %v2491 = vpop.f32.mrb[0].mxu0
        %v2492 = vpop.f32.mrb[0].mxu0
        %v2493 = vadd.f32 %v921, %v2492
        %v2494 = vpop.f32.mrb[0].mxu0
        %2495 = vmatprep.mubr.bf16.mxu0 0
        %2496 = vmatmul.mubr.bf16.gmra.mrb[0].mxu0 %v2410
        %v2497 = vpop.f32.mrb[0].mxu0
        %v2498 = vadd.f32 %v922, %v2497
        %v2499 = vpop.f32.mrb[0].mxu0
        %v2500 = vpop.f32.mrb[0].mxu0
        %v2501 = vadd.f32 %v923, %v2500
        %v2502 = vpop.f32.mrb[0].mxu0
        %2503 = vmatprep.mubr.bf16.mxu0 0
        %2504 = vmatmul.mubr.bf16.gmra.mrb[0].mxu0 %v2413
        %v2505 = vpop.f32.mrb[0].mxu0
        %v2506 = vadd.f32 %v924, %v2505
        %v2507 = vpop.f32.mrb[0].mxu0
        %v2508 = vpop.f32.mrb[0].mxu0
        %v2509 = vadd.f32 %v925, %v2508
        %v2510 = vpop.f32.mrb[0].mxu0
        %2511 = vdwg.mxu0
        %2512 = vmax.xlane.f32.xlu0 %v2450
        %v2513 = vpop.xlane.xlu0 %2512
        %2514 = vmax.xlane.f32.xlu0 %v2453
        %v2515 = vpop.xlane.xlu0 %2514
        %2516 = vmax.xlane.f32.xlu0 %v2458
        %v2517 = vpop.xlane.xlu0 %2516
        %2518 = vmax.xlane.f32.xlu0 %v2461
        %v2519 = vpop.xlane.xlu0 %2518
        %2520 = vmax.xlane.f32.xlu0 %v2466
        %v2521 = vpop.xlane.xlu0 %2520
        %2522 = vmax.xlane.f32.xlu0 %v2469
        %v2523 = vpop.xlane.xlu0 %2522
        %2524 = vmax.xlane.f32.xlu0 %v2474
        %v2525 = vpop.xlane.xlu0 %2524
        %2526 = vmax.xlane.f32.xlu0 %v2477
        %v2527 = vpop.xlane.xlu0 %2526
        %2528 = vmax.xlane.f32.xlu0 %v2482
        %v2529 = vpop.xlane.xlu0 %2528
        %2530 = vmax.xlane.f32.xlu0 %v2485
        %v2531 = vpop.xlane.xlu0 %2530
        %2532 = vmax.xlane.f32.xlu0 %v2490
        %v2533 = vpop.xlane.xlu0 %2532
        %2534 = vmax.xlane.f32.xlu0 %v2493
        %v2535 = vpop.xlane.xlu0 %2534
        %2536 = vmax.xlane.f32.xlu0 %v2498
        %v2537 = vpop.xlane.xlu0 %2536
        %2538 = vmax.xlane.f32.xlu0 %v2501
        %v2539 = vpop.xlane.xlu0 %2538
        %2540 = vmax.xlane.f32.xlu0 %v2506
        %v2541 = vpop.xlane.xlu0 %2540
        %2542 = vmax.xlane.f32.xlu0 %v2509
        %v2543 = vpop.xlane.xlu0 %2542
        %v2544 = vsub.f32 %v2450, %v2513
        %v2545 = vsub.f32 %v2453, %v2515
        %v2546 = vsub.f32 %v2458, %v2517
        %v2547 = vsub.f32 %v2461, %v2519
        %v2548 = vsub.f32 %v2466, %v2521
        %v2549 = vsub.f32 %v2469, %v2523
        %v2550 = vsub.f32 %v2474, %v2525
        %v2551 = vsub.f32 %v2477, %v2527
        %v2552 = vsub.f32 %v2482, %v2529
        %v2553 = vsub.f32 %v2485, %v2531
        %v2554 = vsub.f32 %v2490, %v2533
        %v2555 = vsub.f32 %v2493, %v2535
        %v2556 = vsub.f32 %v2498, %v2537
        %v2557 = vsub.f32 %v2501, %v2539
        %v2558 = vsub.f32 %v2506, %v2541
        %v2559 = vsub.f32 %v2509, %v2543
        %v2560 = vmul.f32 %v2544, 1.442695
        %v2561 = vpow.pop %v2560
        %v2562 = vmul.f32 %v2545, 1.442695
        %v2563 = vpow.pop %v2562
        %v2564 = vmul.f32 %v2546, 1.442695
        %v2565 = vpow.pop %v2564
        %v2566 = vmul.f32 %v2547, 1.442695
        %v2567 = vpow.pop %v2566
        %v2568 = vmul.f32 %v2548, 1.442695
        %v2569 = vpow.pop %v2568
        %v2570 = vmul.f32 %v2549, 1.442695
        %v2571 = vpow.pop %v2570
        %v2572 = vmul.f32 %v2550, 1.442695
        %v2573 = vpow.pop %v2572
        %v2574 = vmul.f32 %v2551, 1.442695
        %v2575 = vpow.pop %v2574
        %v2576 = vmul.f32 %v2552, 1.442695
        %v2577 = vpow.pop %v2576
        %v2578 = vmul.f32 %v2553, 1.442695
        %v2579 = vpow.pop %v2578
        %v2580 = vmul.f32 %v2554, 1.442695
        %v2581 = vpow.pop %v2580
        %v2582 = vmul.f32 %v2555, 1.442695
        %v2583 = vpow.pop %v2582
        %v2584 = vmul.f32 %v2556, 1.442695
        %v2585 = vpow.pop %v2584
        %v2586 = vmul.f32 %v2557, 1.442695
        %v2587 = vpow.pop %v2586
        %v2588 = vmul.f32 %v2558, 1.442695
        %v2589 = vpow.pop %v2588
        %v2590 = vmul.f32 %v2559, 1.442695
        %v2591 = vpow.pop %v2590
        %2592 = vadd.xlane.f32.xlu0 %v2561
        %v2593 = vpop.xlane.xlu0 %2592
        %2594 = vadd.xlane.f32.xlu0 %v2563
        %v2595 = vpop.xlane.xlu0 %2594
        %2596 = vadd.xlane.f32.xlu0 %v2565
        %v2597 = vpop.xlane.xlu0 %2596
        %2598 = vadd.xlane.f32.xlu0 %v2567
        %v2599 = vpop.xlane.xlu0 %2598
        %2600 = vadd.xlane.f32.xlu0 %v2569
        %v2601 = vpop.xlane.xlu0 %2600
        %2602 = vadd.xlane.f32.xlu0 %v2571
        %v2603 = vpop.xlane.xlu0 %2602
        %2604 = vadd.xlane.f32.xlu0 %v2573
        %v2605 = vpop.xlane.xlu0 %2604
        %2606 = vadd.xlane.f32.xlu0 %v2575
        %v2607 = vpop.xlane.xlu0 %2606
        %2608 = vadd.xlane.f32.xlu0 %v2577
        %v2609 = vpop.xlane.xlu0 %2608
        %2610 = vadd.xlane.f32.xlu0 %v2579
        %v2611 = vpop.xlane.xlu0 %2610
        %2612 = vadd.xlane.f32.xlu0 %v2581
        %v2613 = vpop.xlane.xlu0 %2612
        %2614 = vadd.xlane.f32.xlu0 %v2583
        %v2615 = vpop.xlane.xlu0 %2614
        %2616 = vadd.xlane.f32.xlu0 %v2585
        %v2617 = vpop.xlane.xlu0 %2616
        %2618 = vadd.xlane.f32.xlu0 %v2587
        %v2619 = vpop.xlane.xlu0 %2618
        %2620 = vadd.xlane.f32.xlu0 %v2589
        %v2621 = vpop.xlane.xlu0 %2620
        %2622 = vadd.xlane.f32.xlu0 %v2591
        %v2623 = vpop.xlane.xlu0 %2622
        %v2624 = vrcp.pop %v2593
        %v2625 = vrcp.pop %v2595
        %v2626 = vrcp.pop %v2597
        %v2627 = vrcp.pop %v2599
        %v2628 = vrcp.pop %v2601
        %v2629 = vrcp.pop %v2603
        %v2630 = vrcp.pop %v2605
        %v2631 = vrcp.pop %v2607
        %v2632 = vrcp.pop %v2609
        %v2633 = vrcp.pop %v2611
        %v2634 = vrcp.pop %v2613
        %v2635 = vrcp.pop %v2615
        %v2636 = vrcp.pop %v2617
        %v2637 = vrcp.pop %v2619
        %v2638 = vrcp.pop %v2621
        %v2639 = vrcp.pop %v2623
        %v2640 = vpack.c.bf16 %v2563, %v2561
        %v2641 = vpack.c.bf16 %v2567, %v2565
        %v2642 = vpack.c.bf16 %v2571, %v2569
        %v2643 = vpack.c.bf16 %v2575, %v2573
        %v2644 = vpack.c.bf16 %v2579, %v2577
        %v2645 = vpack.c.bf16 %v2583, %v2581
        %v2646 = vpack.c.bf16 %v2587, %v2585
        %v2647 = vpack.c.bf16 %v2591, %v2589
        %v2648 = vpack.c.bf16 %v2365, %v2364
        %v2649 = vpack.c.bf16 %v2367, %v2366
        %v2650 = vpack.c.bf16 %v2369, %v2368
        %v2651 = vpack.c.bf16 %v2371, %v2370
        %v2652 = vpack.c.bf16 %v2373, %v2372
        %v2653 = vpack.c.bf16 %v2375, %v2374
        %v2654 = vpack.c.bf16 %v2377, %v2376
        %v2655 = vpack.c.bf16 %v2379, %v2378
        %2656 = vmatprep.subr.bf16.mxu0 0
        %2657 = vmatpush1.bf16.msra.mxu0 %v2648
        %2658 = vmatprep.subr.bf16.mxu0 0
        %2659 = vmatpush1.bf16.msra.mxu0 %v2649
        %2660 = vmatprep.subr.bf16.mxu0 0
        %2661 = vmatpush1.bf16.msra.mxu0 %v2650
        %2662 = vmatprep.subr.bf16.mxu0 0
        %2663 = vmatpush1.bf16.msra.mxu0 %v2651
        %2664 = vmatprep.subr.bf16.mxu0 0
        %2665 = vmatpush1.bf16.msra.mxu0 %v2652
        %2666 = vmatprep.subr.bf16.mxu0 0
        %2667 = vmatpush1.bf16.msra.mxu0 %v2653
        %2668 = vmatprep.subr.bf16.mxu0 0
        %2669 = vmatpush1.bf16.msra.mxu0 %v2654
        %2670 = vmatprep.subr.bf16.mxu0 0
        %2671 = vmatpush1.bf16.msra.mxu0 %v2655
        %2672 = vmatprep.subr.bf16.mxu0 0
        %2673 = vmatpush1.bf16.msra.mxu0 0
        %2674 = vmatprep.subr.bf16.mxu0 0
        %2675 = vmatpush1.bf16.msra.mxu0 0
        %2676 = vmatprep.subr.bf16.mxu0 0
        %2677 = vmatpush1.bf16.msra.mxu0 0
        %2678 = vmatprep.subr.bf16.mxu0 0
        %2679 = vmatpush1.bf16.msra.mxu0 0
        %2680 = vmatprep.subr.bf16.mxu0 0
        %2681 = vmatpush1.bf16.msra.mxu0 0
        %2682 = vmatprep.subr.bf16.mxu0 0
        %2683 = vmatpush1.bf16.msra.mxu0 0
        %2684 = vmatprep.subr.bf16.mxu0 0
        %2685 = vmatpush1.bf16.msra.mxu0 0
        %2686 = vmatprep.subr.bf16.mxu0 0
        %2687 = vmatpush1.bf16.msra.mxu0 0
        %2688 = vmatprep.mubr.bf16.mxu0 0
        %2689 = vmatmul.mubr.bf16.gmra.mrb[0].mxu0 %v2640
        %v2690 = vpop.f32.mrb[0].mxu0
        %v2691 = vadd.f32 0.0, %v2690
        %v2692 = vpop.f32.mrb[0].mxu0
        %v2693 = vpop.f32.mrb[0].mxu0
        %v2694 = vadd.f32 0.0, %v2693
        %v2695 = vpop.f32.mrb[0].mxu0
        %2696 = vmatprep.mubr.bf16.mxu0 0
        %2697 = vmatmul.mubr.bf16.gmra.mrb[0].mxu0 %v2641
        %v2698 = vpop.f32.mrb[0].mxu0
        %v2699 = vadd.f32 0.0, %v2698
        %v2700 = vpop.f32.mrb[0].mxu0
        %v2701 = vpop.f32.mrb[0].mxu0
        %v2702 = vadd.f32 0.0, %v2701
        %v2703 = vpop.f32.mrb[0].mxu0
        %2704 = vmatprep.mubr.bf16.mxu0 0
        %2705 = vmatmul.mubr.bf16.gmra.mrb[0].mxu0 %v2642
        %v2706 = vpop.f32.mrb[0].mxu0
        %v2707 = vadd.f32 0.0, %v2706
        %v2708 = vpop.f32.mrb[0].mxu0
        %v2709 = vpop.f32.mrb[0].mxu0
        %v2710 = vadd.f32 0.0, %v2709
        %v2711 = vpop.f32.mrb[0].mxu0
        %2712 = vmatprep.mubr.bf16.mxu0 0
        %2713 = vmatmul.mubr.bf16.gmra.mrb[0].mxu0 %v2643
        %v2714 = vpop.f32.mrb[0].mxu0
        %v2715 = vadd.f32 0.0, %v2714
        %v2716 = vpop.f32.mrb[0].mxu0
        %v2717 = vpop.f32.mrb[0].mxu0
        %v2718 = vadd.f32 0.0, %v2717
        %v2719 = vpop.f32.mrb[0].mxu0
        %2720 = vmatprep.mubr.bf16.mxu0 0
        %2721 = vmatmul.mubr.bf16.gmra.mrb[0].mxu0 %v2644
        %v2722 = vpop.f32.mrb[0].mxu0
        %v2723 = vadd.f32 0.0, %v2722
        %v2724 = vpop.f32.mrb[0].mxu0
        %v2725 = vpop.f32.mrb[0].mxu0
        %v2726 = vadd.f32 0.0, %v2725
        %v2727 = vpop.f32.mrb[0].mxu0
        %2728 = vmatprep.mubr.bf16.mxu0 0
        %2729 = vmatmul.mubr.bf16.gmra.mrb[0].mxu0 %v2645
        %v2730 = vpop.f32.mrb[0].mxu0
        %v2731 = vadd.f32 0.0, %v2730
        %v2732 = vpop.f32.mrb[0].mxu0
        %v2733 = vpop.f32.mrb[0].mxu0
        %v2734 = vadd.f32 0.0, %v2733
        %v2735 = vpop.f32.mrb[0].mxu0
        %2736 = vmatprep.mubr.bf16.mxu0 0
        %2737 = vmatmul.mubr.bf16.gmra.mrb[0].mxu0 %v2646
        %v2738 = vpop.f32.mrb[0].mxu0
        %v2739 = vadd.f32 0.0, %v2738
        %v2740 = vpop.f32.mrb[0].mxu0
        %v2741 = vpop.f32.mrb[0].mxu0
        %v2742 = vadd.f32 0.0, %v2741
        %v2743 = vpop.f32.mrb[0].mxu0
        %2744 = vmatprep.mubr.bf16.mxu0 0
        %2745 = vmatmul.mubr.bf16.gmra.mrb[0].mxu0 %v2647
        %v2746 = vpop.f32.mrb[0].mxu0
        %v2747 = vadd.f32 0.0, %v2746
        %v2748 = vpop.f32.mrb[0].mxu0
        %v2749 = vpop.f32.mrb[0].mxu0
        %v2750 = vadd.f32 0.0, %v2749
        %v2751 = vpop.f32.mrb[0].mxu0
        %2752 = vdwg.mxu0
        %v2753 = vmul.f32 %v2691, %v2624
        %v2754 = vmul.f32 %v2694, %v2625
        %v2755 = vmul.f32 %v2699, %v2626
        %v2756 = vmul.f32 %v2702, %v2627
        %v2757 = vmul.f32 %v2707, %v2628
        %v2758 = vmul.f32 %v2710, %v2629
        %v2759 = vmul.f32 %v2715, %v2630
        %v2760 = vmul.f32 %v2718, %v2631
        %v2761 = vmul.f32 %v2723, %v2632
        %v2762 = vmul.f32 %v2726, %v2633
        %v2763 = vmul.f32 %v2731, %v2634
        %v2764 = vmul.f32 %v2734, %v2635
        %v2765 = vmul.f32 %v2739, %v2636
        %v2766 = vmul.f32 %v2742, %v2637
        %v2767 = vmul.f32 %v2747, %v2638
        %v2768 = vmul.f32 %v2750, %v2639
        %2769 = vst.msk [vmem:[#allocation5] sm:$0xff] %vm2390, %v2753
        %2770 = vst.msk [vmem:[#allocation5 + $0x10] sm:$0xff] %vm2390, %v2754
        %2771 = vst.msk [vmem:[#allocation5 + $0x20] sm:$0xff] %vm2390, %v2755
        %2772 = vst.msk [vmem:[#allocation5 + $0x30] sm:$0xff] %vm2390, %v2756
        %2773 = vst.msk [vmem:[#allocation5 + $0x40] sm:$0xff] %vm2390, %v2757
        %2774 = vst.msk [vmem:[#allocation5 + $0x50] sm:$0xff] %vm2390, %v2758
        %2775 = vst.msk [vmem:[#allocation5 + $0x60] sm:$0xff] %vm2390, %v2759
        %2776 = vst.msk [vmem:[#allocation5 + $0x70] sm:$0xff] %vm2390, %v2760
        %2777 = vst.msk [vmem:[#allocation5 + $0x80] sm:$0xff] %vm2390, %v2761
        %2778 = vst.msk [vmem:[#allocation5 + $0x90] sm:$0xff] %vm2390, %v2762
        %2779 = vst.msk [vmem:[#allocation5 + $0xa0] sm:$0xff] %vm2390, %v2763
        %2780 = vst.msk [vmem:[#allocation5 + $0xb0] sm:$0xff] %vm2390, %v2764
        %2781 = vst.msk [vmem:[#allocation5 + $0xc0] sm:$0xff] %vm2390, %v2765
        %2782 = vst.msk [vmem:[#allocation5 + $0xd0] sm:$0xff] %vm2390, %v2766
        %2783 = vst.msk [vmem:[#allocation5 + $0xe0] sm:$0xff] %vm2390, %v2767
        %2784 = vst.msk [vmem:[#allocation5 + $0xf0] sm:$0xff] %vm2390, %v2768
        %v2785 = vld [vmem:[#allocation3] sm:$0xff]
        %v2786 = vld [vmem:[#allocation3 + $0x30] sm:$0xff]
        %v2787 = vld [vmem:[#allocation3 + $0x60] sm:$0xff]
        %v2788 = vld [vmem:[#allocation3 + $0x90] sm:$0xff]
        %v2789 = vld [vmem:[#allocation3 + $0xc0] sm:$0xff]
        %v2790 = vld [vmem:[#allocation3 + $0xf0] sm:$0xff]
        %v2791 = vld [vmem:[#allocation3 + $0x120] sm:$0xff]
        %v2792 = vld [vmem:[#allocation3 + $0x150] sm:$0xff]
        %v2793 = vld [vmem:[#allocation3 + $0x180] sm:$0xff]
        %v2794 = vld [vmem:[#allocation3 + $0x1b0] sm:$0xff]
        %v2795 = vld [vmem:[#allocation3 + $0x1e0] sm:$0xff]
        %v2796 = vld [vmem:[#allocation3 + $0x210] sm:$0xff]
        %v2797 = vld [vmem:[#allocation3 + $0x240] sm:$0xff]
        %v2798 = vld [vmem:[#allocation3 + $0x270] sm:$0xff]
        %v2799 = vld [vmem:[#allocation3 + $0x2a0] sm:$0xff]
        %v2800 = vld [vmem:[#allocation3 + $0x2d0] sm:$0xff]
        %v2801 = vld [vmem:[#allocation4 + $0x20] sm:$0xff]
        %v2802 = vld [vmem:[#allocation4 + $0x28] sm:$0xff]
        %v2803 = vld [vmem:[#allocation4 + $0x30] sm:$0xff]
        %v2804 = vld [vmem:[#allocation4 + $0x38] sm:$0xff]
        %v2805 = vld [vmem:[#allocation3 + $0x20] sm:$0xff]
        %v2806 = vld [vmem:[#allocation3 + $0x50] sm:$0xff]
        %v2807 = vld [vmem:[#allocation3 + $0x80] sm:$0xff]
        %v2808 = vld [vmem:[#allocation3 + $0xb0] sm:$0xff]
        %v2809 = vld [vmem:[#allocation3 + $0xe0] sm:$0xff]
        %v2810 = vld [vmem:[#allocation3 + $0x110] sm:$0xff]
        %v2811 = vld [vmem:[#allocation3 + $0x140] sm:$0xff]
        %v2812 = vld [vmem:[#allocation3 + $0x170] sm:$0xff]
        %v2813 = vld [vmem:[#allocation3 + $0x1a0] sm:$0xff]
        %v2814 = vld [vmem:[#allocation3 + $0x1d0] sm:$0xff]
        %v2815 = vld [vmem:[#allocation3 + $0x200] sm:$0xff]
        %v2816 = vld [vmem:[#allocation3 + $0x230] sm:$0xff]
        %v2817 = vld [vmem:[#allocation3 + $0x260] sm:$0xff]
        %v2818 = vld [vmem:[#allocation3 + $0x290] sm:$0xff]
        %v2819 = vld [vmem:[#allocation3 + $0x2c0] sm:$0xff]
        %v2820 = vld [vmem:[#allocation3 + $0x2f0] sm:$0xff]
        %v2821 = vpack.c.bf16 %v2786, %v2785
        %v2822 = vpack.c.bf16 %v2788, %v2787
        %v2823 = vpack.c.bf16 %v2790, %v2789
        %v2824 = vpack.c.bf16 %v2792, %v2791
        %v2825 = vpack.c.bf16 %v2794, %v2793
        %v2826 = vpack.c.bf16 %v2796, %v2795
        %v2827 = vpack.c.bf16 %v2798, %v2797
        %v2828 = vpack.c.bf16 %v2800, %v2799
        %v2829 = vpack.c.bf16 %v2802, %v2801
        %v2830 = vpack.c.bf16 %v2804, %v2803
        %2839 = vrot.lane.b32.xlu0 %v2821, 96
        %v2840 = vpop.permute.xlu0 %2839
        %2841 = vrot.lane.b32.xlu0 %v2822, 96
        %v2842 = vpop.permute.xlu0 %2841
        %2843 = vrot.lane.b32.xlu0 %v2823, 96
        %v2844 = vpop.permute.xlu0 %2843
        %2845 = vrot.lane.b32.xlu0 %v2824, 96
        %v2846 = vpop.permute.xlu0 %2845
        %2847 = vrot.lane.b32.xlu0 %v2825, 96
        %v2848 = vpop.permute.xlu0 %2847
        %2849 = vrot.lane.b32.xlu0 %v2826, 96
        %v2850 = vpop.permute.xlu0 %2849
        %2851 = vrot.lane.b32.xlu0 %v2827, 96
        %v2852 = vpop.permute.xlu0 %2851
        %2853 = vrot.lane.b32.xlu0 %v2828, 96
        %v2854 = vpop.permute.xlu0 %2853
        %v2856 = vsel %vm2390, %v2840, 0
        %v2859 = vsel %vm2390, %v2842, 0
        %v2862 = vsel %vm2390, %v2844, 0
        %v2865 = vsel %vm2390, %v2846, 0
        %v2868 = vsel %vm2390, %v2848, 0
        %v2871 = vsel %vm2390, %v2850, 0
        %v2874 = vsel %vm2390, %v2852, 0
        %v2877 = vsel %vm2390, %v2854, 0
        %2879 = vmatprep.subr.bf16.mxu0 0
        %2880 = vmatpush1.bf16.msra.mxu0 %v2829
        %2881 = vmatprep.subr.bf16.mxu0 0
        %2882 = vmatpush1.bf16.msra.mxu0 %v2830
        %2883 = vmatprep.subr.bf16.mxu0 0
        %2884 = vmatpush1.bf16.msra.mxu0 0
        %2885 = vmatprep.subr.bf16.mxu0 0
        %2886 = vmatpush1.bf16.msra.mxu0 0
        %2887 = vmatprep.subr.bf16.mxu0 0
        %2888 = vmatpush1.bf16.msra.mxu0 0
        %2889 = vmatprep.subr.bf16.mxu0 0
        %2890 = vmatpush1.bf16.msra.mxu0 0
        %2891 = vmatprep.subr.bf16.mxu0 0
        %2892 = vmatpush1.bf16.msra.mxu0 0
        %2893 = vmatprep.subr.bf16.mxu0 0
        %2894 = vmatpush1.bf16.msra.mxu0 0
        %2895 = vmatprep.subr.bf16.mxu0 0
        %2896 = vmatpush1.bf16.msra.mxu0 0
        %2897 = vmatprep.subr.bf16.mxu0 0
        %2898 = vmatpush1.bf16.msra.mxu0 0
        %2899 = vmatprep.subr.bf16.mxu0 0
        %2900 = vmatpush1.bf16.msra.mxu0 0
        %2901 = vmatprep.subr.bf16.mxu0 0
        %2902 = vmatpush1.bf16.msra.mxu0 0
        %2903 = vmatprep.subr.bf16.mxu0 0
        %2904 = vmatpush1.bf16.msra.mxu0 0
        %2905 = vmatprep.subr.bf16.mxu0 0
        %2906 = vmatpush1.bf16.msra.mxu0 0
        %2907 = vmatprep.subr.bf16.mxu0 0
        %2908 = vmatpush1.bf16.msra.mxu0 0
        %2909 = vmatprep.subr.bf16.mxu0 0
        %2910 = vmatpush1.bf16.msra.mxu0 0
        %2911 = vmatprep.mubr.bf16.mxu0 0
        %2912 = vmatmul.mubr.bf16.gmra.mrb[0].mxu0 %v2856
        %v2913 = vpop.f32.mrb[0].mxu0
        %v2914 = vadd.f32 %v910, %v2913
        %v2915 = vpop.f32.mrb[0].mxu0
        %v2916 = vpop.f32.mrb[0].mxu0
        %v2917 = vadd.f32 %v911, %v2916
        %v2918 = vpop.f32.mrb[0].mxu0
        %2919 = vmatprep.mubr.bf16.mxu0 0
        %2920 = vmatmul.mubr.bf16.gmra.mrb[0].mxu0 %v2859
        %v2921 = vpop.f32.mrb[0].mxu0
        %v2922 = vadd.f32 %v912, %v2921
        %v2923 = vpop.f32.mrb[0].mxu0
        %v2924 = vpop.f32.mrb[0].mxu0
        %v2925 = vadd.f32 %v913, %v2924
        %v2926 = vpop.f32.mrb[0].mxu0
        %2927 = vmatprep.mubr.bf16.mxu0 0
        %2928 = vmatmul.mubr.bf16.gmra.mrb[0].mxu0 %v2862
        %v2929 = vpop.f32.mrb[0].mxu0
        %v2930 = vadd.f32 %v914, %v2929
        %v2931 = vpop.f32.mrb[0].mxu0
        %v2932 = vpop.f32.mrb[0].mxu0
        %v2933 = vadd.f32 %v915, %v2932
        %v2934 = vpop.f32.mrb[0].mxu0
        %2935 = vmatprep.mubr.bf16.mxu0 0
        %2936 = vmatmul.mubr.bf16.gmra.mrb[0].mxu0 %v2865
        %v2937 = vpop.f32.mrb[0].mxu0
        %v2938 = vadd.f32 %v916, %v2937
        %v2939 = vpop.f32.mrb[0].mxu0
        %v2940 = vpop.f32.mrb[0].mxu0
        %v2941 = vadd.f32 %v917, %v2940
        %v2942 = vpop.f32.mrb[0].mxu0
        %2943 = vmatprep.mubr.bf16.mxu0 0
        %2944 = vmatmul.mubr.bf16.gmra.mrb[0].mxu0 %v2868
        %v2945 = vpop.f32.mrb[0].mxu0
        %v2946 = vadd.f32 %v918, %v2945
        %v2947 = vpop.f32.mrb[0].mxu0
        %v2948 = vpop.f32.mrb[0].mxu0
        %v2949 = vadd.f32 %v919, %v2948
        %v2950 = vpop.f32.mrb[0].mxu0
        %2951 = vmatprep.mubr.bf16.mxu0 0
        %2952 = vmatmul.mubr.bf16.gmra.mrb[0].mxu0 %v2871
        %v2953 = vpop.f32.mrb[0].mxu0
        %v2954 = vadd.f32 %v920, %v2953
        %v2955 = vpop.f32.mrb[0].mxu0
        %v2956 = vpop.f32.mrb[0].mxu0
        %v2957 = vadd.f32 %v921, %v2956
        %v2958 = vpop.f32.mrb[0].mxu0
        %2959 = vmatprep.mubr.bf16.mxu0 0
        %2960 = vmatmul.mubr.bf16.gmra.mrb[0].mxu0 %v2874
        %v2961 = vpop.f32.mrb[0].mxu0
        %v2962 = vadd.f32 %v922, %v2961
        %v2963 = vpop.f32.mrb[0].mxu0
        %v2964 = vpop.f32.mrb[0].mxu0
        %v2965 = vadd.f32 %v923, %v2964
        %v2966 = vpop.f32.mrb[0].mxu0
        %2967 = vmatprep.mubr.bf16.mxu0 0
        %2968 = vmatmul.mubr.bf16.gmra.mrb[0].mxu0 %v2877
        %v2969 = vpop.f32.mrb[0].mxu0
        %v2970 = vadd.f32 %v924, %v2969
        %v2971 = vpop.f32.mrb[0].mxu0
        %v2972 = vpop.f32.mrb[0].mxu0
        %v2973 = vadd.f32 %v925, %v2972
        %v2974 = vpop.f32.mrb[0].mxu0
        %2975 = vdwg.mxu0
        %2976 = vmax.xlane.f32.xlu0 %v2914
        %v2977 = vpop.xlane.xlu0 %2976
        %2978 = vmax.xlane.f32.xlu0 %v2917
        %v2979 = vpop.xlane.xlu0 %2978
        %2980 = vmax.xlane.f32.xlu0 %v2922
        %v2981 = vpop.xlane.xlu0 %2980
        %2982 = vmax.xlane.f32.xlu0 %v2925
        %v2983 = vpop.xlane.xlu0 %2982
        %2984 = vmax.xlane.f32.xlu0 %v2930
        %v2985 = vpop.xlane.xlu0 %2984
        %2986 = vmax.xlane.f32.xlu0 %v2933
        %v2987 = vpop.xlane.xlu0 %2986
        %2988 = vmax.xlane.f32.xlu0 %v2938
        %v2989 = vpop.xlane.xlu0 %2988
        %2990 = vmax.xlane.f32.xlu0 %v2941
        %v2991 = vpop.xlane.xlu0 %2990
        %2992 = vmax.xlane.f32.xlu0 %v2946
        %v2993 = vpop.xlane.xlu0 %2992
        %2994 = vmax.xlane.f32.xlu0 %v2949
        %v2995 = vpop.xlane.xlu0 %2994
        %2996 = vmax.xlane.f32.xlu0 %v2954
        %v2997 = vpop.xlane.xlu0 %2996
        %2998 = vmax.xlane.f32.xlu0 %v2957
        %v2999 = vpop.xlane.xlu0 %2998
        %3000 = vmax.xlane.f32.xlu0 %v2962
        %v3001 = vpop.xlane.xlu0 %3000
        %3002 = vmax.xlane.f32.xlu0 %v2965
        %v3003 = vpop.xlane.xlu0 %3002
        %3004 = vmax.xlane.f32.xlu0 %v2970
        %v3005 = vpop.xlane.xlu0 %3004
        %3006 = vmax.xlane.f32.xlu0 %v2973
        %v3007 = vpop.xlane.xlu0 %3006
        %v3008 = vsub.f32 %v2914, %v2977
        %v3009 = vsub.f32 %v2917, %v2979
        %v3010 = vsub.f32 %v2922, %v2981
        %v3011 = vsub.f32 %v2925, %v2983
        %v3012 = vsub.f32 %v2930, %v2985
        %v3013 = vsub.f32 %v2933, %v2987
        %v3014 = vsub.f32 %v2938, %v2989
        %v3015 = vsub.f32 %v2941, %v2991
        %v3016 = vsub.f32 %v2946, %v2993
        %v3017 = vsub.f32 %v2949, %v2995
        %v3018 = vsub.f32 %v2954, %v2997
        %v3019 = vsub.f32 %v2957, %v2999
        %v3020 = vsub.f32 %v2962, %v3001
        %v3021 = vsub.f32 %v2965, %v3003
        %v3022 = vsub.f32 %v2970, %v3005
        %v3023 = vsub.f32 %v2973, %v3007
        %v3024 = vmul.f32 %v3008, 1.442695
        %v3025 = vpow.pop %v3024
        %v3026 = vmul.f32 %v3009, 1.442695
        %v3027 = vpow.pop %v3026
        %v3028 = vmul.f32 %v3010, 1.442695
        %v3029 = vpow.pop %v3028
        %v3030 = vmul.f32 %v3011, 1.442695
        %v3031 = vpow.pop %v3030
        %v3032 = vmul.f32 %v3012, 1.442695
        %v3033 = vpow.pop %v3032
        %v3034 = vmul.f32 %v3013, 1.442695
        %v3035 = vpow.pop %v3034
        %v3036 = vmul.f32 %v3014, 1.442695
        %v3037 = vpow.pop %v3036
        %v3038 = vmul.f32 %v3015, 1.442695
        %v3039 = vpow.pop %v3038
        %v3040 = vmul.f32 %v3016, 1.442695
        %v3041 = vpow.pop %v3040
        %v3042 = vmul.f32 %v3017, 1.442695
        %v3043 = vpow.pop %v3042
        %v3044 = vmul.f32 %v3018, 1.442695
        %v3045 = vpow.pop %v3044
        %v3046 = vmul.f32 %v3019, 1.442695
        %v3047 = vpow.pop %v3046
        %v3048 = vmul.f32 %v3020, 1.442695
        %v3049 = vpow.pop %v3048
        %v3050 = vmul.f32 %v3021, 1.442695
        %v3051 = vpow.pop %v3050
        %v3052 = vmul.f32 %v3022, 1.442695
        %v3053 = vpow.pop %v3052
        %v3054 = vmul.f32 %v3023, 1.442695
        %v3055 = vpow.pop %v3054
        %3056 = vadd.xlane.f32.xlu0 %v3025
        %v3057 = vpop.xlane.xlu0 %3056
        %3058 = vadd.xlane.f32.xlu0 %v3027
        %v3059 = vpop.xlane.xlu0 %3058
        %3060 = vadd.xlane.f32.xlu0 %v3029
        %v3061 = vpop.xlane.xlu0 %3060
        %3062 = vadd.xlane.f32.xlu0 %v3031
        %v3063 = vpop.xlane.xlu0 %3062
        %3064 = vadd.xlane.f32.xlu0 %v3033
        %v3065 = vpop.xlane.xlu0 %3064
        %3066 = vadd.xlane.f32.xlu0 %v3035
        %v3067 = vpop.xlane.xlu0 %3066
        %3068 = vadd.xlane.f32.xlu0 %v3037
        %v3069 = vpop.xlane.xlu0 %3068
        %3070 = vadd.xlane.f32.xlu0 %v3039
        %v3071 = vpop.xlane.xlu0 %3070
        %3072 = vadd.xlane.f32.xlu0 %v3041
        %v3073 = vpop.xlane.xlu0 %3072
        %3074 = vadd.xlane.f32.xlu0 %v3043
        %v3075 = vpop.xlane.xlu0 %3074
        %3076 = vadd.xlane.f32.xlu0 %v3045
        %v3077 = vpop.xlane.xlu0 %3076
        %3078 = vadd.xlane.f32.xlu0 %v3047
        %v3079 = vpop.xlane.xlu0 %3078
        %3080 = vadd.xlane.f32.xlu0 %v3049
        %v3081 = vpop.xlane.xlu0 %3080
        %3082 = vadd.xlane.f32.xlu0 %v3051
        %v3083 = vpop.xlane.xlu0 %3082
        %3084 = vadd.xlane.f32.xlu0 %v3053
        %v3085 = vpop.xlane.xlu0 %3084
        %3086 = vadd.xlane.f32.xlu0 %v3055
        %v3087 = vpop.xlane.xlu0 %3086
        %v3088 = vrcp.pop %v3057
        %v3089 = vrcp.pop %v3059
        %v3090 = vrcp.pop %v3061
        %v3091 = vrcp.pop %v3063
        %v3092 = vrcp.pop %v3065
        %v3093 = vrcp.pop %v3067
        %v3094 = vrcp.pop %v3069
        %v3095 = vrcp.pop %v3071
        %v3096 = vrcp.pop %v3073
        %v3097 = vrcp.pop %v3075
        %v3098 = vrcp.pop %v3077
        %v3099 = vrcp.pop %v3079
        %v3100 = vrcp.pop %v3081
        %v3101 = vrcp.pop %v3083
        %v3102 = vrcp.pop %v3085
        %v3103 = vrcp.pop %v3087
        %v3104 = vpack.c.bf16 %v3027, %v3025
        %v3105 = vpack.c.bf16 %v3031, %v3029
        %v3106 = vpack.c.bf16 %v3035, %v3033
        %v3107 = vpack.c.bf16 %v3039, %v3037
        %v3108 = vpack.c.bf16 %v3043, %v3041
        %v3109 = vpack.c.bf16 %v3047, %v3045
        %v3110 = vpack.c.bf16 %v3051, %v3049
        %v3111 = vpack.c.bf16 %v3055, %v3053
        %v3112 = vpack.c.bf16 %v2806, %v2805
        %v3113 = vpack.c.bf16 %v2808, %v2807
        %v3114 = vpack.c.bf16 %v2810, %v2809
        %v3115 = vpack.c.bf16 %v2812, %v2811
        %v3116 = vpack.c.bf16 %v2814, %v2813
        %v3117 = vpack.c.bf16 %v2816, %v2815
        %v3118 = vpack.c.bf16 %v2818, %v2817
        %v3119 = vpack.c.bf16 %v2820, %v2819
        %3128 = vrot.lane.b32.xlu0 %v3112, 96
        %v3129 = vpop.permute.xlu0 %3128
        %3130 = vrot.lane.b32.xlu0 %v3113, 96
        %v3131 = vpop.permute.xlu0 %3130
        %3132 = vrot.lane.b32.xlu0 %v3114, 96
        %v3133 = vpop.permute.xlu0 %3132
        %3134 = vrot.lane.b32.xlu0 %v3115, 96
        %v3135 = vpop.permute.xlu0 %3134
        %3136 = vrot.lane.b32.xlu0 %v3116, 96
        %v3137 = vpop.permute.xlu0 %3136
        %3138 = vrot.lane.b32.xlu0 %v3117, 96
        %v3139 = vpop.permute.xlu0 %3138
        %3140 = vrot.lane.b32.xlu0 %v3118, 96
        %v3141 = vpop.permute.xlu0 %3140
        %3142 = vrot.lane.b32.xlu0 %v3119, 96
        %v3143 = vpop.permute.xlu0 %3142
        %3152 = vmatprep.subr.bf16.mxu0 0
        %3153 = vmatpush1.bf16.msra.mxu0 %v3129
        %3154 = vmatprep.subr.bf16.mxu0 0
        %3155 = vmatpush1.bf16.msra.mxu0 %v3131
        %3156 = vmatprep.subr.bf16.mxu0 0
        %3157 = vmatpush1.bf16.msra.mxu0 %v3133
        %3158 = vmatprep.subr.bf16.mxu0 0
        %3159 = vmatpush1.bf16.msra.mxu0 %v3135
        %3160 = vmatprep.subr.bf16.mxu0 0
        %3161 = vmatpush1.bf16.msra.mxu0 %v3137
        %3162 = vmatprep.subr.bf16.mxu0 0
        %3163 = vmatpush1.bf16.msra.mxu0 %v3139
        %3164 = vmatprep.subr.bf16.mxu0 0
        %3165 = vmatpush1.bf16.msra.mxu0 %v3141
        %3166 = vmatprep.subr.bf16.mxu0 0
        %3167 = vmatpush1.bf16.msra.mxu0 %v3143
        %3168 = vmatprep.subr.bf16.mxu0 0
        %3169 = vmatpush1.bf16.msra.mxu0 0
        %3170 = vmatprep.subr.bf16.mxu0 0
        %3171 = vmatpush1.bf16.msra.mxu0 0
        %3172 = vmatprep.subr.bf16.mxu0 0
        %3173 = vmatpush1.bf16.msra.mxu0 0
        %3174 = vmatprep.subr.bf16.mxu0 0
        %3175 = vmatpush1.bf16.msra.mxu0 0
        %3176 = vmatprep.subr.bf16.mxu0 0
        %3177 = vmatpush1.bf16.msra.mxu0 0
        %3178 = vmatprep.subr.bf16.mxu0 0
        %3179 = vmatpush1.bf16.msra.mxu0 0
        %3180 = vmatprep.subr.bf16.mxu0 0
        %3181 = vmatpush1.bf16.msra.mxu0 0
        %3182 = vmatprep.subr.bf16.mxu0 0
        %3183 = vmatpush1.bf16.msra.mxu0 0
        %3184 = vmatprep.mubr.bf16.mxu0 0
        %3185 = vmatmul.mubr.bf16.gmra.mrb[0].mxu0 %v3104
        %v3186 = vpop.f32.mrb[0].mxu0
        %v3187 = vadd.f32 0.0, %v3186
        %v3188 = vpop.f32.mrb[0].mxu0
        %v3189 = vpop.f32.mrb[0].mxu0
        %v3190 = vadd.f32 0.0, %v3189
        %v3191 = vpop.f32.mrb[0].mxu0
        %3192 = vmatprep.mubr.bf16.mxu0 0
        %3193 = vmatmul.mubr.bf16.gmra.mrb[0].mxu0 %v3105
        %v3194 = vpop.f32.mrb[0].mxu0
        %v3195 = vadd.f32 0.0, %v3194
        %v3196 = vpop.f32.mrb[0].mxu0
        %v3197 = vpop.f32.mrb[0].mxu0
        %v3198 = vadd.f32 0.0, %v3197
        %v3199 = vpop.f32.mrb[0].mxu0
        %3200 = vmatprep.mubr.bf16.mxu0 0
        %3201 = vmatmul.mubr.bf16.gmra.mrb[0].mxu0 %v3106
        %v3202 = vpop.f32.mrb[0].mxu0
        %v3203 = vadd.f32 0.0, %v3202
        %v3204 = vpop.f32.mrb[0].mxu0
        %v3205 = vpop.f32.mrb[0].mxu0
        %v3206 = vadd.f32 0.0, %v3205
        %v3207 = vpop.f32.mrb[0].mxu0
        %3208 = vmatprep.mubr.bf16.mxu0 0
        %3209 = vmatmul.mubr.bf16.gmra.mrb[0].mxu0 %v3107
        %v3210 = vpop.f32.mrb[0].mxu0
        %v3211 = vadd.f32 0.0, %v3210
        %v3212 = vpop.f32.mrb[0].mxu0
        %v3213 = vpop.f32.mrb[0].mxu0
        %v3214 = vadd.f32 0.0, %v3213
        %v3215 = vpop.f32.mrb[0].mxu0
        %3216 = vmatprep.mubr.bf16.mxu0 0
        %3217 = vmatmul.mubr.bf16.gmra.mrb[0].mxu0 %v3108
        %v3218 = vpop.f32.mrb[0].mxu0
        %v3219 = vadd.f32 0.0, %v3218
        %v3220 = vpop.f32.mrb[0].mxu0
        %v3221 = vpop.f32.mrb[0].mxu0
        %v3222 = vadd.f32 0.0, %v3221
        %v3223 = vpop.f32.mrb[0].mxu0
        %3224 = vmatprep.mubr.bf16.mxu0 0
        %3225 = vmatmul.mubr.bf16.gmra.mrb[0].mxu0 %v3109
        %v3226 = vpop.f32.mrb[0].mxu0
        %v3227 = vadd.f32 0.0, %v3226
        %v3228 = vpop.f32.mrb[0].mxu0
        %v3229 = vpop.f32.mrb[0].mxu0
        %v3230 = vadd.f32 0.0, %v3229
        %v3231 = vpop.f32.mrb[0].mxu0
        %3232 = vmatprep.mubr.bf16.mxu0 0
        %3233 = vmatmul.mubr.bf16.gmra.mrb[0].mxu0 %v3110
        %v3234 = vpop.f32.mrb[0].mxu0
        %v3235 = vadd.f32 0.0, %v3234
        %v3236 = vpop.f32.mrb[0].mxu0
        %v3237 = vpop.f32.mrb[0].mxu0
        %v3238 = vadd.f32 0.0, %v3237
        %v3239 = vpop.f32.mrb[0].mxu0
        %3240 = vmatprep.mubr.bf16.mxu0 0
        %3241 = vmatmul.mubr.bf16.gmra.mrb[0].mxu0 %v3111
        %v3242 = vpop.f32.mrb[0].mxu0
        %v3243 = vadd.f32 0.0, %v3242
        %v3244 = vpop.f32.mrb[0].mxu0
        %v3245 = vpop.f32.mrb[0].mxu0
        %v3246 = vadd.f32 0.0, %v3245
        %v3247 = vpop.f32.mrb[0].mxu0
        %3248 = vdwg.mxu0
        %v3249 = vmul.f32 %v3187, %v3088
        %v3250 = vmul.f32 %v3190, %v3089
        %v3251 = vmul.f32 %v3195, %v3090
        %v3252 = vmul.f32 %v3198, %v3091
        %v3253 = vmul.f32 %v3203, %v3092
        %v3254 = vmul.f32 %v3206, %v3093
        %v3255 = vmul.f32 %v3211, %v3094
        %v3256 = vmul.f32 %v3214, %v3095
        %v3257 = vmul.f32 %v3219, %v3096
        %v3258 = vmul.f32 %v3222, %v3097
        %v3259 = vmul.f32 %v3227, %v3098
        %v3260 = vmul.f32 %v3230, %v3099
        %v3261 = vmul.f32 %v3235, %v3100
        %v3262 = vmul.f32 %v3238, %v3101
        %v3263 = vmul.f32 %v3243, %v3102
        %v3264 = vmul.f32 %v3246, %v3103
        %3281 = vrot.lane.b32.xlu0 %v3249, 32
        %v3282 = vpop.permute.xlu0 %3281
        %3283 = vrot.lane.b32.xlu0 %v3250, 32
        %v3284 = vpop.permute.xlu0 %3283
        %3285 = vrot.lane.b32.xlu0 %v3251, 32
        %v3286 = vpop.permute.xlu0 %3285
        %3287 = vrot.lane.b32.xlu0 %v3252, 32
        %v3288 = vpop.permute.xlu0 %3287
        %3289 = vrot.lane.b32.xlu0 %v3253, 32
        %v3290 = vpop.permute.xlu0 %3289
        %3291 = vrot.lane.b32.xlu0 %v3254, 32
        %v3292 = vpop.permute.xlu0 %3291
        %3293 = vrot.lane.b32.xlu0 %v3255, 32
        %v3294 = vpop.permute.xlu0 %3293
        %3295 = vrot.lane.b32.xlu0 %v3256, 32
        %v3296 = vpop.permute.xlu0 %3295
        %3297 = vrot.lane.b32.xlu0 %v3257, 32
        %v3298 = vpop.permute.xlu0 %3297
        %3299 = vrot.lane.b32.xlu0 %v3258, 32
        %v3300 = vpop.permute.xlu0 %3299
        %3301 = vrot.lane.b32.xlu0 %v3259, 32
        %v3302 = vpop.permute.xlu0 %3301
        %3303 = vrot.lane.b32.xlu0 %v3260, 32
        %v3304 = vpop.permute.xlu0 %3303
        %3305 = vrot.lane.b32.xlu0 %v3261, 32
        %v3306 = vpop.permute.xlu0 %3305
        %3307 = vrot.lane.b32.xlu0 %v3262, 32
        %v3308 = vpop.permute.xlu0 %3307
        %3309 = vrot.lane.b32.xlu0 %v3263, 32
        %v3310 = vpop.permute.xlu0 %3309
        %3311 = vrot.lane.b32.xlu0 %v3264, 32
        %v3312 = vpop.permute.xlu0 %3311
        %vm3329 = vcmask 523520
        %3330 = vst.msk [vmem:[#allocation5] sm:$0xff] %vm3329, %v3282
        %3331 = vst.msk [vmem:[#allocation5 + $0x10] sm:$0xff] %vm3329, %v3284
        %3332 = vst.msk [vmem:[#allocation5 + $0x20] sm:$0xff] %vm3329, %v3286
        %3333 = vst.msk [vmem:[#allocation5 + $0x30] sm:$0xff] %vm3329, %v3288
        %3334 = vst.msk [vmem:[#allocation5 + $0x40] sm:$0xff] %vm3329, %v3290
        %3335 = vst.msk [vmem:[#allocation5 + $0x50] sm:$0xff] %vm3329, %v3292
        %3336 = vst.msk [vmem:[#allocation5 + $0x60] sm:$0xff] %vm3329, %v3294
        %3337 = vst.msk [vmem:[#allocation5 + $0x70] sm:$0xff] %vm3329, %v3296
        %3338 = vst.msk [vmem:[#allocation5 + $0x80] sm:$0xff] %vm3329, %v3298
        %3339 = vst.msk [vmem:[#allocation5 + $0x90] sm:$0xff] %vm3329, %v3300
        %3340 = vst.msk [vmem:[#allocation5 + $0xa0] sm:$0xff] %vm3329, %v3302
        %3341 = vst.msk [vmem:[#allocation5 + $0xb0] sm:$0xff] %vm3329, %v3304
        %3342 = vst.msk [vmem:[#allocation5 + $0xc0] sm:$0xff] %vm3329, %v3306
        %3343 = vst.msk [vmem:[#allocation5 + $0xd0] sm:$0xff] %vm3329, %v3308
        %3344 = vst.msk [vmem:[#allocation5 + $0xe0] sm:$0xff] %vm3329, %v3310
        %3345 = vst.msk [vmem:[#allocation5 + $0xf0] sm:$0xff] %vm3329, %v3312
        %v3346 = vld [vmem:[#allocation3] sm:$0xff]
        %v3347 = vld [vmem:[#allocation3 + $0x30] sm:$0xff]
        %v3348 = vld [vmem:[#allocation3 + $0x60] sm:$0xff]
        %v3349 = vld [vmem:[#allocation3 + $0x90] sm:$0xff]
        %v3350 = vld [vmem:[#allocation3 + $0xc0] sm:$0xff]
        %v3351 = vld [vmem:[#allocation3 + $0xf0] sm:$0xff]
        %v3352 = vld [vmem:[#allocation3 + $0x120] sm:$0xff]
        %v3353 = vld [vmem:[#allocation3 + $0x150] sm:$0xff]
        %v3354 = vld [vmem:[#allocation3 + $0x180] sm:$0xff]
        %v3355 = vld [vmem:[#allocation3 + $0x1b0] sm:$0xff]
        %v3356 = vld [vmem:[#allocation3 + $0x1e0] sm:$0xff]
        %v3357 = vld [vmem:[#allocation3 + $0x210] sm:$0xff]
        %v3358 = vld [vmem:[#allocation3 + $0x240] sm:$0xff]
        %v3359 = vld [vmem:[#allocation3 + $0x270] sm:$0xff]
        %v3360 = vld [vmem:[#allocation3 + $0x2a0] sm:$0xff]
        %v3361 = vld [vmem:[#allocation3 + $0x2d0] sm:$0xff]
        %v3362 = vld [vmem:[#allocation4 + $0x40] sm:$0xff]
        %v3363 = vld [vmem:[#allocation4 + $0x48] sm:$0xff]
        %v3364 = vld [vmem:[#allocation4 + $0x50] sm:$0xff]
        %v3365 = vld [vmem:[#allocation4 + $0x58] sm:$0xff]
        %v3366 = vld [vmem:[#allocation3 + $0x20] sm:$0xff]
        %v3367 = vld [vmem:[#allocation3 + $0x50] sm:$0xff]
        %v3368 = vld [vmem:[#allocation3 + $0x80] sm:$0xff]
        %v3369 = vld [vmem:[#allocation3 + $0xb0] sm:$0xff]
        %v3370 = vld [vmem:[#allocation3 + $0xe0] sm:$0xff]
        %v3371 = vld [vmem:[#allocation3 + $0x110] sm:$0xff]
        %v3372 = vld [vmem:[#allocation3 + $0x140] sm:$0xff]
        %v3373 = vld [vmem:[#allocation3 + $0x170] sm:$0xff]
        %v3374 = vld [vmem:[#allocation3 + $0x1a0] sm:$0xff]
        %v3375 = vld [vmem:[#allocation3 + $0x1d0] sm:$0xff]
        %v3376 = vld [vmem:[#allocation3 + $0x200] sm:$0xff]
        %v3377 = vld [vmem:[#allocation3 + $0x230] sm:$0xff]
        %v3378 = vld [vmem:[#allocation3 + $0x260] sm:$0xff]
        %v3379 = vld [vmem:[#allocation3 + $0x290] sm:$0xff]
        %v3380 = vld [vmem:[#allocation3 + $0x2c0] sm:$0xff]
        %v3381 = vld [vmem:[#allocation3 + $0x2f0] sm:$0xff]
        %v3382 = vpack.c.bf16 %v3347, %v3346
        %v3383 = vpack.c.bf16 %v3349, %v3348
        %v3384 = vpack.c.bf16 %v3351, %v3350
        %v3385 = vpack.c.bf16 %v3353, %v3352
        %v3386 = vpack.c.bf16 %v3355, %v3354
        %v3387 = vpack.c.bf16 %v3357, %v3356
        %v3388 = vpack.c.bf16 %v3359, %v3358
        %v3389 = vpack.c.bf16 %v3361, %v3360
        %v3390 = vpack.c.bf16 %v3363, %v3362
        %v3391 = vpack.c.bf16 %v3365, %v3364
        %3400 = vrot.lane.b32.xlu0 %v3382, 64
        %v3401 = vpop.permute.xlu0 %3400
        %3402 = vrot.lane.b32.xlu0 %v3383, 64
        %v3403 = vpop.permute.xlu0 %3402
        %3404 = vrot.lane.b32.xlu0 %v3384, 64
        %v3405 = vpop.permute.xlu0 %3404
        %3406 = vrot.lane.b32.xlu0 %v3385, 64
        %v3407 = vpop.permute.xlu0 %3406
        %3408 = vrot.lane.b32.xlu0 %v3386, 64
        %v3409 = vpop.permute.xlu0 %3408
        %3410 = vrot.lane.b32.xlu0 %v3387, 64
        %v3411 = vpop.permute.xlu0 %3410
        %3412 = vrot.lane.b32.xlu0 %v3388, 64
        %v3413 = vpop.permute.xlu0 %3412
        %3414 = vrot.lane.b32.xlu0 %v3389, 64
        %v3415 = vpop.permute.xlu0 %3414
        %v3417 = vsel %vm2390, %v3401, 0
        %v3420 = vsel %vm2390, %v3403, 0
        %v3423 = vsel %vm2390, %v3405, 0
        %v3426 = vsel %vm2390, %v3407, 0
        %v3429 = vsel %vm2390, %v3409, 0
        %v3432 = vsel %vm2390, %v3411, 0
        %v3435 = vsel %vm2390, %v3413, 0
        %v3438 = vsel %vm2390, %v3415, 0
        %3440 = vmatprep.subr.bf16.mxu0 0
        %3441 = vmatpush1.bf16.msra.mxu0 %v3390
        %3442 = vmatprep.subr.bf16.mxu0 0
        %3443 = vmatpush1.bf16.msra.mxu0 %v3391
        %3444 = vmatprep.subr.bf16.mxu0 0
        %3445 = vmatpush1.bf16.msra.mxu0 0
        %3446 = vmatprep.subr.bf16.mxu0 0
        %3447 = vmatpush1.bf16.msra.mxu0 0
        %3448 = vmatprep.subr.bf16.mxu0 0
        %3449 = vmatpush1.bf16.msra.mxu0 0
        %3450 = vmatprep.subr.bf16.mxu0 0
        %3451 = vmatpush1.bf16.msra.mxu0 0
        %3452 = vmatprep.subr.bf16.mxu0 0
        %3453 = vmatpush1.bf16.msra.mxu0 0
        %3454 = vmatprep.subr.bf16.mxu0 0
        %3455 = vmatpush1.bf16.msra.mxu0 0
        %3456 = vmatprep.subr.bf16.mxu0 0
        %3457 = vmatpush1.bf16.msra.mxu0 0
        %3458 = vmatprep.subr.bf16.mxu0 0
        %3459 = vmatpush1.bf16.msra.mxu0 0
        %3460 = vmatprep.subr.bf16.mxu0 0
        %3461 = vmatpush1.bf16.msra.mxu0 0
        %3462 = vmatprep.subr.bf16.mxu0 0
        %3463 = vmatpush1.bf16.msra.mxu0 0
        %3464 = vmatprep.subr.bf16.mxu0 0
        %3465 = vmatpush1.bf16.msra.mxu0 0
        %3466 = vmatprep.subr.bf16.mxu0 0
        %3467 = vmatpush1.bf16.msra.mxu0 0
        %3468 = vmatprep.subr.bf16.mxu0 0
        %3469 = vmatpush1.bf16.msra.mxu0 0
        %3470 = vmatprep.subr.bf16.mxu0 0
        %3471 = vmatpush1.bf16.msra.mxu0 0
        %3472 = vmatprep.mubr.bf16.mxu0 0
        %3473 = vmatmul.mubr.bf16.gmra.mrb[0].mxu0 %v3417
        %v3474 = vpop.f32.mrb[0].mxu0
        %v3475 = vadd.f32 %v910, %v3474
        %v3476 = vpop.f32.mrb[0].mxu0
        %v3477 = vpop.f32.mrb[0].mxu0
        %v3478 = vadd.f32 %v911, %v3477
        %v3479 = vpop.f32.mrb[0].mxu0
        %3480 = vmatprep.mubr.bf16.mxu0 0
        %3481 = vmatmul.mubr.bf16.gmra.mrb[0].mxu0 %v3420
        %v3482 = vpop.f32.mrb[0].mxu0
        %v3483 = vadd.f32 %v912, %v3482
        %v3484 = vpop.f32.mrb[0].mxu0
        %v3485 = vpop.f32.mrb[0].mxu0
        %v3486 = vadd.f32 %v913, %v3485
        %v3487 = vpop.f32.mrb[0].mxu0
        %3488 = vmatprep.mubr.bf16.mxu0 0
        %3489 = vmatmul.mubr.bf16.gmra.mrb[0].mxu0 %v3423
        %v3490 = vpop.f32.mrb[0].mxu0
        %v3491 = vadd.f32 %v914, %v3490
        %v3492 = vpop.f32.mrb[0].mxu0
        %v3493 = vpop.f32.mrb[0].mxu0
        %v3494 = vadd.f32 %v915, %v3493
        %v3495 = vpop.f32.mrb[0].mxu0
        %3496 = vmatprep.mubr.bf16.mxu0 0
        %3497 = vmatmul.mubr.bf16.gmra.mrb[0].mxu0 %v3426
        %v3498 = vpop.f32.mrb[0].mxu0
        %v3499 = vadd.f32 %v916, %v3498
        %v3500 = vpop.f32.mrb[0].mxu0
        %v3501 = vpop.f32.mrb[0].mxu0
        %v3502 = vadd.f32 %v917, %v3501
        %v3503 = vpop.f32.mrb[0].mxu0
        %3504 = vmatprep.mubr.bf16.mxu0 0
        %3505 = vmatmul.mubr.bf16.gmra.mrb[0].mxu0 %v3429
        %v3506 = vpop.f32.mrb[0].mxu0
        %v3507 = vadd.f32 %v918, %v3506
        %v3508 = vpop.f32.mrb[0].mxu0
        %v3509 = vpop.f32.mrb[0].mxu0
        %v3510 = vadd.f32 %v919, %v3509
        %v3511 = vpop.f32.mrb[0].mxu0
        %3512 = vmatprep.mubr.bf16.mxu0 0
        %3513 = vmatmul.mubr.bf16.gmra.mrb[0].mxu0 %v3432
        %v3514 = vpop.f32.mrb[0].mxu0
        %v3515 = vadd.f32 %v920, %v3514
        %v3516 = vpop.f32.mrb[0].mxu0
        %v3517 = vpop.f32.mrb[0].mxu0
        %v3518 = vadd.f32 %v921, %v3517
        %v3519 = vpop.f32.mrb[0].mxu0
        %3520 = vmatprep.mubr.bf16.mxu0 0
        %3521 = vmatmul.mubr.bf16.gmra.mrb[0].mxu0 %v3435
        %v3522 = vpop.f32.mrb[0].mxu0
        %v3523 = vadd.f32 %v922, %v3522
        %v3524 = vpop.f32.mrb[0].mxu0
        %v3525 = vpop.f32.mrb[0].mxu0
        %v3526 = vadd.f32 %v923, %v3525
        %v3527 = vpop.f32.mrb[0].mxu0
        %3528 = vmatprep.mubr.bf16.mxu0 0
        %3529 = vmatmul.mubr.bf16.gmra.mrb[0].mxu0 %v3438
        %v3530 = vpop.f32.mrb[0].mxu0
        %v3531 = vadd.f32 %v924, %v3530
        %v3532 = vpop.f32.mrb[0].mxu0
        %v3533 = vpop.f32.mrb[0].mxu0
        %v3534 = vadd.f32 %v925, %v3533
        %v3535 = vpop.f32.mrb[0].mxu0
        %3536 = vdwg.mxu0
        %3537 = vmax.xlane.f32.xlu0 %v3475
        %v3538 = vpop.xlane.xlu0 %3537
        %3539 = vmax.xlane.f32.xlu0 %v3478
        %v3540 = vpop.xlane.xlu0 %3539
        %3541 = vmax.xlane.f32.xlu0 %v3483
        %v3542 = vpop.xlane.xlu0 %3541
        %3543 = vmax.xlane.f32.xlu0 %v3486
        %v3544 = vpop.xlane.xlu0 %3543
        %3545 = vmax.xlane.f32.xlu0 %v3491
        %v3546 = vpop.xlane.xlu0 %3545
        %3547 = vmax.xlane.f32.xlu0 %v3494
        %v3548 = vpop.xlane.xlu0 %3547
        %3549 = vmax.xlane.f32.xlu0 %v3499
        %v3550 = vpop.xlane.xlu0 %3549
        %3551 = vmax.xlane.f32.xlu0 %v3502
        %v3552 = vpop.xlane.xlu0 %3551
        %3553 = vmax.xlane.f32.xlu0 %v3507
        %v3554 = vpop.xlane.xlu0 %3553
        %3555 = vmax.xlane.f32.xlu0 %v3510
        %v3556 = vpop.xlane.xlu0 %3555
        %3557 = vmax.xlane.f32.xlu0 %v3515
        %v3558 = vpop.xlane.xlu0 %3557
        %3559 = vmax.xlane.f32.xlu0 %v3518
        %v3560 = vpop.xlane.xlu0 %3559
        %3561 = vmax.xlane.f32.xlu0 %v3523
        %v3562 = vpop.xlane.xlu0 %3561
        %3563 = vmax.xlane.f32.xlu0 %v3526
        %v3564 = vpop.xlane.xlu0 %3563
        %3565 = vmax.xlane.f32.xlu0 %v3531
        %v3566 = vpop.xlane.xlu0 %3565
        %3567 = vmax.xlane.f32.xlu0 %v3534
        %v3568 = vpop.xlane.xlu0 %3567
        %v3569 = vsub.f32 %v3475, %v3538
        %v3570 = vsub.f32 %v3478, %v3540
        %v3571 = vsub.f32 %v3483, %v3542
        %v3572 = vsub.f32 %v3486, %v3544
        %v3573 = vsub.f32 %v3491, %v3546
        %v3574 = vsub.f32 %v3494, %v3548
        %v3575 = vsub.f32 %v3499, %v3550
        %v3576 = vsub.f32 %v3502, %v3552
        %v3577 = vsub.f32 %v3507, %v3554
        %v3578 = vsub.f32 %v3510, %v3556
        %v3579 = vsub.f32 %v3515, %v3558
        %v3580 = vsub.f32 %v3518, %v3560
        %v3581 = vsub.f32 %v3523, %v3562
        %v3582 = vsub.f32 %v3526, %v3564
        %v3583 = vsub.f32 %v3531, %v3566
        %v3584 = vsub.f32 %v3534, %v3568
        %v3585 = vmul.f32 %v3569, 1.442695
        %v3586 = vpow.pop %v3585
        %v3587 = vmul.f32 %v3570, 1.442695
        %v3588 = vpow.pop %v3587
        %v3589 = vmul.f32 %v3571, 1.442695
        %v3590 = vpow.pop %v3589
        %v3591 = vmul.f32 %v3572, 1.442695
        %v3592 = vpow.pop %v3591
        %v3593 = vmul.f32 %v3573, 1.442695
        %v3594 = vpow.pop %v3593
        %v3595 = vmul.f32 %v3574, 1.442695
        %v3596 = vpow.pop %v3595
        %v3597 = vmul.f32 %v3575, 1.442695
        %v3598 = vpow.pop %v3597
        %v3599 = vmul.f32 %v3576, 1.442695
        %v3600 = vpow.pop %v3599
        %v3601 = vmul.f32 %v3577, 1.442695
        %v3602 = vpow.pop %v3601
        %v3603 = vmul.f32 %v3578, 1.442695
        %v3604 = vpow.pop %v3603
        %v3605 = vmul.f32 %v3579, 1.442695
        %v3606 = vpow.pop %v3605
        %v3607 = vmul.f32 %v3580, 1.442695
        %v3608 = vpow.pop %v3607
        %v3609 = vmul.f32 %v3581, 1.442695
        %v3610 = vpow.pop %v3609
        %v3611 = vmul.f32 %v3582, 1.442695
        %v3612 = vpow.pop %v3611
        %v3613 = vmul.f32 %v3583, 1.442695
        %v3614 = vpow.pop %v3613
        %v3615 = vmul.f32 %v3584, 1.442695
        %v3616 = vpow.pop %v3615
        %3617 = vadd.xlane.f32.xlu0 %v3586
        %v3618 = vpop.xlane.xlu0 %3617
        %3619 = vadd.xlane.f32.xlu0 %v3588
        %v3620 = vpop.xlane.xlu0 %3619
        %3621 = vadd.xlane.f32.xlu0 %v3590
        %v3622 = vpop.xlane.xlu0 %3621
        %3623 = vadd.xlane.f32.xlu0 %v3592
        %v3624 = vpop.xlane.xlu0 %3623
        %3625 = vadd.xlane.f32.xlu0 %v3594
        %v3626 = vpop.xlane.xlu0 %3625
        %3627 = vadd.xlane.f32.xlu0 %v3596
        %v3628 = vpop.xlane.xlu0 %3627
        %3629 = vadd.xlane.f32.xlu0 %v3598
        %v3630 = vpop.xlane.xlu0 %3629
        %3631 = vadd.xlane.f32.xlu0 %v3600
        %v3632 = vpop.xlane.xlu0 %3631
        %3633 = vadd.xlane.f32.xlu0 %v3602
        %v3634 = vpop.xlane.xlu0 %3633
        %3635 = vadd.xlane.f32.xlu0 %v3604
        %v3636 = vpop.xlane.xlu0 %3635
        %3637 = vadd.xlane.f32.xlu0 %v3606
        %v3638 = vpop.xlane.xlu0 %3637
        %3639 = vadd.xlane.f32.xlu0 %v3608
        %v3640 = vpop.xlane.xlu0 %3639
        %3641 = vadd.xlane.f32.xlu0 %v3610
        %v3642 = vpop.xlane.xlu0 %3641
        %3643 = vadd.xlane.f32.xlu0 %v3612
        %v3644 = vpop.xlane.xlu0 %3643
        %3645 = vadd.xlane.f32.xlu0 %v3614
        %v3646 = vpop.xlane.xlu0 %3645
        %3647 = vadd.xlane.f32.xlu0 %v3616
        %v3648 = vpop.xlane.xlu0 %3647
        %v3649 = vrcp.pop %v3618
        %v3650 = vrcp.pop %v3620
        %v3651 = vrcp.pop %v3622
        %v3652 = vrcp.pop %v3624
        %v3653 = vrcp.pop %v3626
        %v3654 = vrcp.pop %v3628
        %v3655 = vrcp.pop %v3630
        %v3656 = vrcp.pop %v3632
        %v3657 = vrcp.pop %v3634
        %v3658 = vrcp.pop %v3636
        %v3659 = vrcp.pop %v3638
        %v3660 = vrcp.pop %v3640
        %v3661 = vrcp.pop %v3642
        %v3662 = vrcp.pop %v3644
        %v3663 = vrcp.pop %v3646
        %v3664 = vrcp.pop %v3648
        %v3665 = vpack.c.bf16 %v3588, %v3586
        %v3666 = vpack.c.bf16 %v3592, %v3590
        %v3667 = vpack.c.bf16 %v3596, %v3594
        %v3668 = vpack.c.bf16 %v3600, %v3598
        %v3669 = vpack.c.bf16 %v3604, %v3602
        %v3670 = vpack.c.bf16 %v3608, %v3606
        %v3671 = vpack.c.bf16 %v3612, %v3610
        %v3672 = vpack.c.bf16 %v3616, %v3614
        %v3673 = vpack.c.bf16 %v3367, %v3366
        %v3674 = vpack.c.bf16 %v3369, %v3368
        %v3675 = vpack.c.bf16 %v3371, %v3370
        %v3676 = vpack.c.bf16 %v3373, %v3372
        %v3677 = vpack.c.bf16 %v3375, %v3374
        %v3678 = vpack.c.bf16 %v3377, %v3376
        %v3679 = vpack.c.bf16 %v3379, %v3378
        %v3680 = vpack.c.bf16 %v3381, %v3380
        %3689 = vrot.lane.b32.xlu0 %v3673, 64
        %v3690 = vpop.permute.xlu0 %3689
        %3691 = vrot.lane.b32.xlu0 %v3674, 64
        %v3692 = vpop.permute.xlu0 %3691
        %3693 = vrot.lane.b32.xlu0 %v3675, 64
        %v3694 = vpop.permute.xlu0 %3693
        %3695 = vrot.lane.b32.xlu0 %v3676, 64
        %v3696 = vpop.permute.xlu0 %3695
        %3697 = vrot.lane.b32.xlu0 %v3677, 64
        %v3698 = vpop.permute.xlu0 %3697
        %3699 = vrot.lane.b32.xlu0 %v3678, 64
        %v3700 = vpop.permute.xlu0 %3699
        %3701 = vrot.lane.b32.xlu0 %v3679, 64
        %v3702 = vpop.permute.xlu0 %3701
        %3703 = vrot.lane.b32.xlu0 %v3680, 64
        %v3704 = vpop.permute.xlu0 %3703
        %3713 = vmatprep.subr.bf16.mxu0 0
        %3714 = vmatpush1.bf16.msra.mxu0 %v3690
        %3715 = vmatprep.subr.bf16.mxu0 0
        %3716 = vmatpush1.bf16.msra.mxu0 %v3692
        %3717 = vmatprep.subr.bf16.mxu0 0
        %3718 = vmatpush1.bf16.msra.mxu0 %v3694
        %3719 = vmatprep.subr.bf16.mxu0 0
        %3720 = vmatpush1.bf16.msra.mxu0 %v3696
        %3721 = vmatprep.subr.bf16.mxu0 0
        %3722 = vmatpush1.bf16.msra.mxu0 %v3698
        %3723 = vmatprep.subr.bf16.mxu0 0
        %3724 = vmatpush1.bf16.msra.mxu0 %v3700
        %3725 = vmatprep.subr.bf16.mxu0 0
        %3726 = vmatpush1.bf16.msra.mxu0 %v3702
        %3727 = vmatprep.subr.bf16.mxu0 0
        %3728 = vmatpush1.bf16.msra.mxu0 %v3704
        %3729 = vmatprep.subr.bf16.mxu0 0
        %3730 = vmatpush1.bf16.msra.mxu0 0
        %3731 = vmatprep.subr.bf16.mxu0 0
        %3732 = vmatpush1.bf16.msra.mxu0 0
        %3733 = vmatprep.subr.bf16.mxu0 0
        %3734 = vmatpush1.bf16.msra.mxu0 0
        %3735 = vmatprep.subr.bf16.mxu0 0
        %3736 = vmatpush1.bf16.msra.mxu0 0
        %3737 = vmatprep.subr.bf16.mxu0 0
        %3738 = vmatpush1.bf16.msra.mxu0 0
        %3739 = vmatprep.subr.bf16.mxu0 0
        %3740 = vmatpush1.bf16.msra.mxu0 0
        %3741 = vmatprep.subr.bf16.mxu0 0
        %3742 = vmatpush1.bf16.msra.mxu0 0
        %3743 = vmatprep.subr.bf16.mxu0 0
        %3744 = vmatpush1.bf16.msra.mxu0 0
        %3745 = vmatprep.mubr.bf16.mxu0 0
        %3746 = vmatmul.mubr.bf16.gmra.mrb[0].mxu0 %v3665
        %v3747 = vpop.f32.mrb[0].mxu0
        %v3748 = vadd.f32 0.0, %v3747
        %v3749 = vpop.f32.mrb[0].mxu0
        %v3750 = vpop.f32.mrb[0].mxu0
        %v3751 = vadd.f32 0.0, %v3750
        %v3752 = vpop.f32.mrb[0].mxu0
        %3753 = vmatprep.mubr.bf16.mxu0 0
        %3754 = vmatmul.mubr.bf16.gmra.mrb[0].mxu0 %v3666
        %v3755 = vpop.f32.mrb[0].mxu0
        %v3756 = vadd.f32 0.0, %v3755
        %v3757 = vpop.f32.mrb[0].mxu0
        %v3758 = vpop.f32.mrb[0].mxu0
        %v3759 = vadd.f32 0.0, %v3758
        %v3760 = vpop.f32.mrb[0].mxu0
        %3761 = vmatprep.mubr.bf16.mxu0 0
        %3762 = vmatmul.mubr.bf16.gmra.mrb[0].mxu0 %v3667
        %v3763 = vpop.f32.mrb[0].mxu0
        %v3764 = vadd.f32 0.0, %v3763
        %v3765 = vpop.f32.mrb[0].mxu0
        %v3766 = vpop.f32.mrb[0].mxu0
        %v3767 = vadd.f32 0.0, %v3766
        %v3768 = vpop.f32.mrb[0].mxu0
        %3769 = vmatprep.mubr.bf16.mxu0 0
        %3770 = vmatmul.mubr.bf16.gmra.mrb[0].mxu0 %v3668
        %v3771 = vpop.f32.mrb[0].mxu0
        %v3772 = vadd.f32 0.0, %v3771
        %v3773 = vpop.f32.mrb[0].mxu0
        %v3774 = vpop.f32.mrb[0].mxu0
        %v3775 = vadd.f32 0.0, %v3774
        %v3776 = vpop.f32.mrb[0].mxu0
        %3777 = vmatprep.mubr.bf16.mxu0 0
        %3778 = vmatmul.mubr.bf16.gmra.mrb[0].mxu0 %v3669
        %v3779 = vpop.f32.mrb[0].mxu0
        %v3780 = vadd.f32 0.0, %v3779
        %v3781 = vpop.f32.mrb[0].mxu0
        %v3782 = vpop.f32.mrb[0].mxu0
        %v3783 = vadd.f32 0.0, %v3782
        %v3784 = vpop.f32.mrb[0].mxu0
        %3785 = vmatprep.mubr.bf16.mxu0 0
        %3786 = vmatmul.mubr.bf16.gmra.mrb[0].mxu0 %v3670
        %v3787 = vpop.f32.mrb[0].mxu0
        %v3788 = vadd.f32 0.0, %v3787
        %v3789 = vpop.f32.mrb[0].mxu0
        %v3790 = vpop.f32.mrb[0].mxu0
        %v3791 = vadd.f32 0.0, %v3790
        %v3792 = vpop.f32.mrb[0].mxu0
        %3793 = vmatprep.mubr.bf16.mxu0 0
        %3794 = vmatmul.mubr.bf16.gmra.mrb[0].mxu0 %v3671
        %v3795 = vpop.f32.mrb[0].mxu0
        %v3796 = vadd.f32 0.0, %v3795
        %v3797 = vpop.f32.mrb[0].mxu0
        %v3798 = vpop.f32.mrb[0].mxu0
        %v3799 = vadd.f32 0.0, %v3798
        %v3800 = vpop.f32.mrb[0].mxu0
        %3801 = vmatprep.mubr.bf16.mxu0 0
        %3802 = vmatmul.mubr.bf16.gmra.mrb[0].mxu0 %v3672
        %v3803 = vpop.f32.mrb[0].mxu0
        %v3804 = vadd.f32 0.0, %v3803
        %v3805 = vpop.f32.mrb[0].mxu0
        %v3806 = vpop.f32.mrb[0].mxu0
        %v3807 = vadd.f32 0.0, %v3806
        %v3808 = vpop.f32.mrb[0].mxu0
        %3809 = vdwg.mxu0
        %v3810 = vmul.f32 %v3748, %v3649
        %v3811 = vmul.f32 %v3751, %v3650
        %v3812 = vmul.f32 %v3756, %v3651
        %v3813 = vmul.f32 %v3759, %v3652
        %v3814 = vmul.f32 %v3764, %v3653
        %v3815 = vmul.f32 %v3767, %v3654
        %v3816 = vmul.f32 %v3772, %v3655
        %v3817 = vmul.f32 %v3775, %v3656
        %v3818 = vmul.f32 %v3780, %v3657
        %v3819 = vmul.f32 %v3783, %v3658
        %v3820 = vmul.f32 %v3788, %v3659
        %v3821 = vmul.f32 %v3791, %v3660
        %v3822 = vmul.f32 %v3796, %v3661
        %v3823 = vmul.f32 %v3799, %v3662
        %v3824 = vmul.f32 %v3804, %v3663
        %v3825 = vmul.f32 %v3807, %v3664
        %3842 = vrot.lane.b32.xlu0 %v3810, 64
        %v3843 = vpop.permute.xlu0 %3842
        %3844 = vrot.lane.b32.xlu0 %v3811, 64
        %v3845 = vpop.permute.xlu0 %3844
        %3846 = vrot.lane.b32.xlu0 %v3812, 64
        %v3847 = vpop.permute.xlu0 %3846
        %3848 = vrot.lane.b32.xlu0 %v3813, 64
        %v3849 = vpop.permute.xlu0 %3848
        %3850 = vrot.lane.b32.xlu0 %v3814, 64
        %v3851 = vpop.permute.xlu0 %3850
        %3852 = vrot.lane.b32.xlu0 %v3815, 64
        %v3853 = vpop.permute.xlu0 %3852
        %3854 = vrot.lane.b32.xlu0 %v3816, 64
        %v3855 = vpop.permute.xlu0 %3854
        %3856 = vrot.lane.b32.xlu0 %v3817, 64
        %v3857 = vpop.permute.xlu0 %3856
        %3858 = vrot.lane.b32.xlu0 %v3818, 64
        %v3859 = vpop.permute.xlu0 %3858
        %3860 = vrot.lane.b32.xlu0 %v3819, 64
        %v3861 = vpop.permute.xlu0 %3860
        %3862 = vrot.lane.b32.xlu0 %v3820, 64
        %v3863 = vpop.permute.xlu0 %3862
        %3864 = vrot.lane.b32.xlu0 %v3821, 64
        %v3865 = vpop.permute.xlu0 %3864
        %3866 = vrot.lane.b32.xlu0 %v3822, 64
        %v3867 = vpop.permute.xlu0 %3866
        %3868 = vrot.lane.b32.xlu0 %v3823, 64
        %v3869 = vpop.permute.xlu0 %3868
        %3870 = vrot.lane.b32.xlu0 %v3824, 64
        %v3871 = vpop.permute.xlu0 %3870
        %3872 = vrot.lane.b32.xlu0 %v3825, 64
        %v3873 = vpop.permute.xlu0 %3872
        %vm3890 = vcmask 785920
        %3891 = vst.msk [vmem:[#allocation5] sm:$0xff] %vm3890, %v3843
        %3892 = vst.msk [vmem:[#allocation5 + $0x10] sm:$0xff] %vm3890, %v3845
        %3893 = vst.msk [vmem:[#allocation5 + $0x20] sm:$0xff] %vm3890, %v3847
        %3894 = vst.msk [vmem:[#allocation5 + $0x30] sm:$0xff] %vm3890, %v3849
        %3895 = vst.msk [vmem:[#allocation5 + $0x40] sm:$0xff] %vm3890, %v3851
        %3896 = vst.msk [vmem:[#allocation5 + $0x50] sm:$0xff] %vm3890, %v3853
        %3897 = vst.msk [vmem:[#allocation5 + $0x60] sm:$0xff] %vm3890, %v3855
        %3898 = vst.msk [vmem:[#allocation5 + $0x70] sm:$0xff] %vm3890, %v3857
        %3899 = vst.msk [vmem:[#allocation5 + $0x80] sm:$0xff] %vm3890, %v3859
        %3900 = vst.msk [vmem:[#allocation5 + $0x90] sm:$0xff] %vm3890, %v3861
        %3901 = vst.msk [vmem:[#allocation5 + $0xa0] sm:$0xff] %vm3890, %v3863
        %3902 = vst.msk [vmem:[#allocation5 + $0xb0] sm:$0xff] %vm3890, %v3865
        %3903 = vst.msk [vmem:[#allocation5 + $0xc0] sm:$0xff] %vm3890, %v3867
        %3904 = vst.msk [vmem:[#allocation5 + $0xd0] sm:$0xff] %vm3890, %v3869
        %3905 = vst.msk [vmem:[#allocation5 + $0xe0] sm:$0xff] %vm3890, %v3871
        %3906 = vst.msk [vmem:[#allocation5 + $0xf0] sm:$0xff] %vm3890, %v3873
        %v3907 = vld [vmem:[#allocation3] sm:$0xff]
        %v3908 = vld [vmem:[#allocation3 + $0x30] sm:$0xff]
        %v3909 = vld [vmem:[#allocation3 + $0x60] sm:$0xff]
        %v3910 = vld [vmem:[#allocation3 + $0x90] sm:$0xff]
        %v3911 = vld [vmem:[#allocation3 + $0xc0] sm:$0xff]
        %v3912 = vld [vmem:[#allocation3 + $0xf0] sm:$0xff]
        %v3913 = vld [vmem:[#allocation3 + $0x120] sm:$0xff]
        %v3914 = vld [vmem:[#allocation3 + $0x150] sm:$0xff]
        %v3915 = vld [vmem:[#allocation3 + $0x180] sm:$0xff]
        %v3916 = vld [vmem:[#allocation3 + $0x1b0] sm:$0xff]
        %v3917 = vld [vmem:[#allocation3 + $0x1e0] sm:$0xff]
        %v3918 = vld [vmem:[#allocation3 + $0x210] sm:$0xff]
        %v3919 = vld [vmem:[#allocation3 + $0x240] sm:$0xff]
        %v3920 = vld [vmem:[#allocation3 + $0x270] sm:$0xff]
        %v3921 = vld [vmem:[#allocation3 + $0x2a0] sm:$0xff]
        %v3922 = vld [vmem:[#allocation3 + $0x2d0] sm:$0xff]
        %v3923 = vld [vmem:[#allocation4 + $0x60] sm:$0xff]
        %v3924 = vld [vmem:[#allocation4 + $0x68] sm:$0xff]
        %v3925 = vld [vmem:[#allocation4 + $0x70] sm:$0xff]
        %v3926 = vld [vmem:[#allocation4 + $0x78] sm:$0xff]
        %v3927 = vld [vmem:[#allocation3 + $0x20] sm:$0xff]
        %v3928 = vld [vmem:[#allocation3 + $0x50] sm:$0xff]
        %v3929 = vld [vmem:[#allocation3 + $0x80] sm:$0xff]
        %v3930 = vld [vmem:[#allocation3 + $0xb0] sm:$0xff]
        %v3931 = vld [vmem:[#allocation3 + $0xe0] sm:$0xff]
        %v3932 = vld [vmem:[#allocation3 + $0x110] sm:$0xff]
        %v3933 = vld [vmem:[#allocation3 + $0x140] sm:$0xff]
        %v3934 = vld [vmem:[#allocation3 + $0x170] sm:$0xff]
        %v3935 = vld [vmem:[#allocation3 + $0x1a0] sm:$0xff]
        %v3936 = vld [vmem:[#allocation3 + $0x1d0] sm:$0xff]
        %v3937 = vld [vmem:[#allocation3 + $0x200] sm:$0xff]
        %v3938 = vld [vmem:[#allocation3 + $0x230] sm:$0xff]
        %v3939 = vld [vmem:[#allocation3 + $0x260] sm:$0xff]
        %v3940 = vld [vmem:[#allocation3 + $0x290] sm:$0xff]
        %v3941 = vld [vmem:[#allocation3 + $0x2c0] sm:$0xff]
        %v3942 = vld [vmem:[#allocation3 + $0x2f0] sm:$0xff]
        %v3943 = vpack.c.bf16 %v3908, %v3907
        %v3944 = vpack.c.bf16 %v3910, %v3909
        %v3945 = vpack.c.bf16 %v3912, %v3911
        %v3946 = vpack.c.bf16 %v3914, %v3913
        %v3947 = vpack.c.bf16 %v3916, %v3915
        %v3948 = vpack.c.bf16 %v3918, %v3917
        %v3949 = vpack.c.bf16 %v3920, %v3919
        %v3950 = vpack.c.bf16 %v3922, %v3921
        %v3951 = vpack.c.bf16 %v3924, %v3923
        %v3952 = vpack.c.bf16 %v3926, %v3925
        %3961 = vrot.lane.b32.xlu0 %v3943, 32
        %v3962 = vpop.permute.xlu0 %3961
        %3963 = vrot.lane.b32.xlu0 %v3944, 32
        %v3964 = vpop.permute.xlu0 %3963
        %3965 = vrot.lane.b32.xlu0 %v3945, 32
        %v3966 = vpop.permute.xlu0 %3965
        %3967 = vrot.lane.b32.xlu0 %v3946, 32
        %v3968 = vpop.permute.xlu0 %3967
        %3969 = vrot.lane.b32.xlu0 %v3947, 32
        %v3970 = vpop.permute.xlu0 %3969
        %3971 = vrot.lane.b32.xlu0 %v3948, 32
        %v3972 = vpop.permute.xlu0 %3971
        %3973 = vrot.lane.b32.xlu0 %v3949, 32
        %v3974 = vpop.permute.xlu0 %3973
        %3975 = vrot.lane.b32.xlu0 %v3950, 32
        %v3976 = vpop.permute.xlu0 %3975
        %v3978 = vsel %vm2390, %v3962, 0
        %v3981 = vsel %vm2390, %v3964, 0
        %v3984 = vsel %vm2390, %v3966, 0
        %v3987 = vsel %vm2390, %v3968, 0
        %v3990 = vsel %vm2390, %v3970, 0
        %v3993 = vsel %vm2390, %v3972, 0
        %v3996 = vsel %vm2390, %v3974, 0
        %v3999 = vsel %vm2390, %v3976, 0
        %4001 = vmatprep.subr.bf16.mxu0 0
        %4002 = vmatpush1.bf16.msra.mxu0 %v3951
        %4003 = vmatprep.subr.bf16.mxu0 0
        %4004 = vmatpush1.bf16.msra.mxu0 %v3952
        %4005 = vmatprep.subr.bf16.mxu0 0
        %4006 = vmatpush1.bf16.msra.mxu0 0
        %4007 = vmatprep.subr.bf16.mxu0 0
        %4008 = vmatpush1.bf16.msra.mxu0 0
        %4009 = vmatprep.subr.bf16.mxu0 0
        %4010 = vmatpush1.bf16.msra.mxu0 0
        %4011 = vmatprep.subr.bf16.mxu0 0
        %4012 = vmatpush1.bf16.msra.mxu0 0
        %4013 = vmatprep.subr.bf16.mxu0 0
        %4014 = vmatpush1.bf16.msra.mxu0 0
        %4015 = vmatprep.subr.bf16.mxu0 0
        %4016 = vmatpush1.bf16.msra.mxu0 0
        %4017 = vmatprep.subr.bf16.mxu0 0
        %4018 = vmatpush1.bf16.msra.mxu0 0
        %4019 = vmatprep.subr.bf16.mxu0 0
        %4020 = vmatpush1.bf16.msra.mxu0 0
        %4021 = vmatprep.subr.bf16.mxu0 0
        %4022 = vmatpush1.bf16.msra.mxu0 0
        %4023 = vmatprep.subr.bf16.mxu0 0
        %4024 = vmatpush1.bf16.msra.mxu0 0
        %4025 = vmatprep.subr.bf16.mxu0 0
        %4026 = vmatpush1.bf16.msra.mxu0 0
        %4027 = vmatprep.subr.bf16.mxu0 0
        %4028 = vmatpush1.bf16.msra.mxu0 0
        %4029 = vmatprep.subr.bf16.mxu0 0
        %4030 = vmatpush1.bf16.msra.mxu0 0
        %4031 = vmatprep.subr.bf16.mxu0 0
        %4032 = vmatpush1.bf16.msra.mxu0 0
        %4033 = vmatprep.mubr.bf16.mxu0 0
        %4034 = vmatmul.mubr.bf16.gmra.mrb[0].mxu0 %v3978
        %v4035 = vpop.f32.mrb[0].mxu0
        %v4036 = vadd.f32 %v910, %v4035
        %v4037 = vpop.f32.mrb[0].mxu0
        %v4038 = vpop.f32.mrb[0].mxu0
        %v4039 = vadd.f32 %v911, %v4038
        %v4040 = vpop.f32.mrb[0].mxu0
        %4041 = vmatprep.mubr.bf16.mxu0 0
        %4042 = vmatmul.mubr.bf16.gmra.mrb[0].mxu0 %v3981
        %v4043 = vpop.f32.mrb[0].mxu0
        %v4044 = vadd.f32 %v912, %v4043
        %v4045 = vpop.f32.mrb[0].mxu0
        %v4046 = vpop.f32.mrb[0].mxu0
        %v4047 = vadd.f32 %v913, %v4046
        %v4048 = vpop.f32.mrb[0].mxu0
        %4049 = vmatprep.mubr.bf16.mxu0 0
        %4050 = vmatmul.mubr.bf16.gmra.mrb[0].mxu0 %v3984
        %v4051 = vpop.f32.mrb[0].mxu0
        %v4052 = vadd.f32 %v914, %v4051
        %v4053 = vpop.f32.mrb[0].mxu0
        %v4054 = vpop.f32.mrb[0].mxu0
        %v4055 = vadd.f32 %v915, %v4054
        %v4056 = vpop.f32.mrb[0].mxu0
        %4057 = vmatprep.mubr.bf16.mxu0 0
        %4058 = vmatmul.mubr.bf16.gmra.mrb[0].mxu0 %v3987
        %v4059 = vpop.f32.mrb[0].mxu0
        %v4060 = vadd.f32 %v916, %v4059
        %v4061 = vpop.f32.mrb[0].mxu0
        %v4062 = vpop.f32.mrb[0].mxu0
        %v4063 = vadd.f32 %v917, %v4062
        %v4064 = vpop.f32.mrb[0].mxu0
        %4065 = vmatprep.mubr.bf16.mxu0 0
        %4066 = vmatmul.mubr.bf16.gmra.mrb[0].mxu0 %v3990
        %v4067 = vpop.f32.mrb[0].mxu0
        %v4068 = vadd.f32 %v918, %v4067
        %v4069 = vpop.f32.mrb[0].mxu0
        %v4070 = vpop.f32.mrb[0].mxu0
        %v4071 = vadd.f32 %v919, %v4070
        %v4072 = vpop.f32.mrb[0].mxu0
        %4073 = vmatprep.mubr.bf16.mxu0 0
        %4074 = vmatmul.mubr.bf16.gmra.mrb[0].mxu0 %v3993
        %v4075 = vpop.f32.mrb[0].mxu0
        %v4076 = vadd.f32 %v920, %v4075
        %v4077 = vpop.f32.mrb[0].mxu0
        %v4078 = vpop.f32.mrb[0].mxu0
        %v4079 = vadd.f32 %v921, %v4078
        %v4080 = vpop.f32.mrb[0].mxu0
        %4081 = vmatprep.mubr.bf16.mxu0 0
        %4082 = vmatmul.mubr.bf16.gmra.mrb[0].mxu0 %v3996
        %v4083 = vpop.f32.mrb[0].mxu0
        %v4084 = vadd.f32 %v922, %v4083
        %v4085 = vpop.f32.mrb[0].mxu0
        %v4086 = vpop.f32.mrb[0].mxu0
        %v4087 = vadd.f32 %v923, %v4086
        %v4088 = vpop.f32.mrb[0].mxu0
        %4089 = vmatprep.mubr.bf16.mxu0 0
        %4090 = vmatmul.mubr.bf16.gmra.mrb[0].mxu0 %v3999
        %v4091 = vpop.f32.mrb[0].mxu0
        %v4092 = vadd.f32 %v924, %v4091
        %v4093 = vpop.f32.mrb[0].mxu0
        %v4094 = vpop.f32.mrb[0].mxu0
        %v4095 = vadd.f32 %v925, %v4094
        %v4096 = vpop.f32.mrb[0].mxu0
        %4097 = vdwg.mxu0
        %4098 = vmax.xlane.f32.xlu0 %v4036
        %v4099 = vpop.xlane.xlu0 %4098
        %4100 = vmax.xlane.f32.xlu0 %v4039
        %v4101 = vpop.xlane.xlu0 %4100
        %4102 = vmax.xlane.f32.xlu0 %v4044
        %v4103 = vpop.xlane.xlu0 %4102
        %4104 = vmax.xlane.f32.xlu0 %v4047
        %v4105 = vpop.xlane.xlu0 %4104
        %4106 = vmax.xlane.f32.xlu0 %v4052
        %v4107 = vpop.xlane.xlu0 %4106
        %4108 = vmax.xlane.f32.xlu0 %v4055
        %v4109 = vpop.xlane.xlu0 %4108
        %4110 = vmax.xlane.f32.xlu0 %v4060
        %v4111 = vpop.xlane.xlu0 %4110
        %4112 = vmax.xlane.f32.xlu0 %v4063
        %v4113 = vpop.xlane.xlu0 %4112
        %4114 = vmax.xlane.f32.xlu0 %v4068
        %v4115 = vpop.xlane.xlu0 %4114
        %4116 = vmax.xlane.f32.xlu0 %v4071
        %v4117 = vpop.xlane.xlu0 %4116
        %4118 = vmax.xlane.f32.xlu0 %v4076
        %v4119 = vpop.xlane.xlu0 %4118
        %4120 = vmax.xlane.f32.xlu0 %v4079
        %v4121 = vpop.xlane.xlu0 %4120
        %4122 = vmax.xlane.f32.xlu0 %v4084
        %v4123 = vpop.xlane.xlu0 %4122
        %4124 = vmax.xlane.f32.xlu0 %v4087
        %v4125 = vpop.xlane.xlu0 %4124
        %4126 = vmax.xlane.f32.xlu0 %v4092
        %v4127 = vpop.xlane.xlu0 %4126
        %4128 = vmax.xlane.f32.xlu0 %v4095
        %v4129 = vpop.xlane.xlu0 %4128
        %v4130 = vsub.f32 %v4036, %v4099
        %v4131 = vsub.f32 %v4039, %v4101
        %v4132 = vsub.f32 %v4044, %v4103
        %v4133 = vsub.f32 %v4047, %v4105
        %v4134 = vsub.f32 %v4052, %v4107
        %v4135 = vsub.f32 %v4055, %v4109
        %v4136 = vsub.f32 %v4060, %v4111
        %v4137 = vsub.f32 %v4063, %v4113
        %v4138 = vsub.f32 %v4068, %v4115
        %v4139 = vsub.f32 %v4071, %v4117
        %v4140 = vsub.f32 %v4076, %v4119
        %v4141 = vsub.f32 %v4079, %v4121
        %v4142 = vsub.f32 %v4084, %v4123
        %v4143 = vsub.f32 %v4087, %v4125
        %v4144 = vsub.f32 %v4092, %v4127
        %v4145 = vsub.f32 %v4095, %v4129
        %v4146 = vmul.f32 %v4130, 1.442695
        %v4147 = vpow.pop %v4146
        %v4148 = vmul.f32 %v4131, 1.442695
        %v4149 = vpow.pop %v4148
        %v4150 = vmul.f32 %v4132, 1.442695
        %v4151 = vpow.pop %v4150
        %v4152 = vmul.f32 %v4133, 1.442695
        %v4153 = vpow.pop %v4152
        %v4154 = vmul.f32 %v4134, 1.442695
        %v4155 = vpow.pop %v4154
        %v4156 = vmul.f32 %v4135, 1.442695
        %v4157 = vpow.pop %v4156
        %v4158 = vmul.f32 %v4136, 1.442695
        %v4159 = vpow.pop %v4158
        %v4160 = vmul.f32 %v4137, 1.442695
        %v4161 = vpow.pop %v4160
        %v4162 = vmul.f32 %v4138, 1.442695
        %v4163 = vpow.pop %v4162
        %v4164 = vmul.f32 %v4139, 1.442695
        %v4165 = vpow.pop %v4164
        %v4166 = vmul.f32 %v4140, 1.442695
        %v4167 = vpow.pop %v4166
        %v4168 = vmul.f32 %v4141, 1.442695
        %v4169 = vpow.pop %v4168
        %v4170 = vmul.f32 %v4142, 1.442695
        %v4171 = vpow.pop %v4170
        %v4172 = vmul.f32 %v4143, 1.442695
        %v4173 = vpow.pop %v4172
        %v4174 = vmul.f32 %v4144, 1.442695
        %v4175 = vpow.pop %v4174
        %v4176 = vmul.f32 %v4145, 1.442695
        %v4177 = vpow.pop %v4176
        %4178 = vadd.xlane.f32.xlu0 %v4147
        %v4179 = vpop.xlane.xlu0 %4178
        %4180 = vadd.xlane.f32.xlu0 %v4149
        %v4181 = vpop.xlane.xlu0 %4180
        %4182 = vadd.xlane.f32.xlu0 %v4151
        %v4183 = vpop.xlane.xlu0 %4182
        %4184 = vadd.xlane.f32.xlu0 %v4153
        %v4185 = vpop.xlane.xlu0 %4184
        %4186 = vadd.xlane.f32.xlu0 %v4155
        %v4187 = vpop.xlane.xlu0 %4186
        %4188 = vadd.xlane.f32.xlu0 %v4157
        %v4189 = vpop.xlane.xlu0 %4188
        %4190 = vadd.xlane.f32.xlu0 %v4159
        %v4191 = vpop.xlane.xlu0 %4190
        %4192 = vadd.xlane.f32.xlu0 %v4161
        %v4193 = vpop.xlane.xlu0 %4192
        %4194 = vadd.xlane.f32.xlu0 %v4163
        %v4195 = vpop.xlane.xlu0 %4194
        %4196 = vadd.xlane.f32.xlu0 %v4165
        %v4197 = vpop.xlane.xlu0 %4196
        %4198 = vadd.xlane.f32.xlu0 %v4167
        %v4199 = vpop.xlane.xlu0 %4198
        %4200 = vadd.xlane.f32.xlu0 %v4169
        %v4201 = vpop.xlane.xlu0 %4200
        %4202 = vadd.xlane.f32.xlu0 %v4171
        %v4203 = vpop.xlane.xlu0 %4202
        %4204 = vadd.xlane.f32.xlu0 %v4173
        %v4205 = vpop.xlane.xlu0 %4204
        %4206 = vadd.xlane.f32.xlu0 %v4175
        %v4207 = vpop.xlane.xlu0 %4206
        %4208 = vadd.xlane.f32.xlu0 %v4177
        %v4209 = vpop.xlane.xlu0 %4208
        %v4210 = vrcp.pop %v4179
        %v4211 = vrcp.pop %v4181
        %v4212 = vrcp.pop %v4183
        %v4213 = vrcp.pop %v4185
        %v4214 = vrcp.pop %v4187
        %v4215 = vrcp.pop %v4189
        %v4216 = vrcp.pop %v4191
        %v4217 = vrcp.pop %v4193
        %v4218 = vrcp.pop %v4195
        %v4219 = vrcp.pop %v4197
        %v4220 = vrcp.pop %v4199
        %v4221 = vrcp.pop %v4201
        %v4222 = vrcp.pop %v4203
        %v4223 = vrcp.pop %v4205
        %v4224 = vrcp.pop %v4207
        %v4225 = vrcp.pop %v4209
        %v4226 = vpack.c.bf16 %v4149, %v4147
        %v4227 = vpack.c.bf16 %v4153, %v4151
        %v4228 = vpack.c.bf16 %v4157, %v4155
        %v4229 = vpack.c.bf16 %v4161, %v4159
        %v4230 = vpack.c.bf16 %v4165, %v4163
        %v4231 = vpack.c.bf16 %v4169, %v4167
        %v4232 = vpack.c.bf16 %v4173, %v4171
        %v4233 = vpack.c.bf16 %v4177, %v4175
        %v4234 = vpack.c.bf16 %v3928, %v3927
        %v4235 = vpack.c.bf16 %v3930, %v3929
        %v4236 = vpack.c.bf16 %v3932, %v3931
        %v4237 = vpack.c.bf16 %v3934, %v3933
        %v4238 = vpack.c.bf16 %v3936, %v3935
        %v4239 = vpack.c.bf16 %v3938, %v3937
        %v4240 = vpack.c.bf16 %v3940, %v3939
        %v4241 = vpack.c.bf16 %v3942, %v3941
        %4250 = vrot.lane.b32.xlu0 %v4234, 32
        %v4251 = vpop.permute.xlu0 %4250
        %4252 = vrot.lane.b32.xlu0 %v4235, 32
        %v4253 = vpop.permute.xlu0 %4252
        %4254 = vrot.lane.b32.xlu0 %v4236, 32
        %v4255 = vpop.permute.xlu0 %4254
        %4256 = vrot.lane.b32.xlu0 %v4237, 32
        %v4257 = vpop.permute.xlu0 %4256
        %4258 = vrot.lane.b32.xlu0 %v4238, 32
        %v4259 = vpop.permute.xlu0 %4258
        %4260 = vrot.lane.b32.xlu0 %v4239, 32
        %v4261 = vpop.permute.xlu0 %4260
        %4262 = vrot.lane.b32.xlu0 %v4240, 32
        %v4263 = vpop.permute.xlu0 %4262
        %4264 = vrot.lane.b32.xlu0 %v4241, 32
        %v4265 = vpop.permute.xlu0 %4264
        %4274 = vmatprep.subr.bf16.mxu0 0
        %4275 = vmatpush1.bf16.msra.mxu0 %v4251
        %4276 = vmatprep.subr.bf16.mxu0 0
        %4277 = vmatpush1.bf16.msra.mxu0 %v4253
        %4278 = vmatprep.subr.bf16.mxu0 0
        %4279 = vmatpush1.bf16.msra.mxu0 %v4255
        %4280 = vmatprep.subr.bf16.mxu0 0
        %4281 = vmatpush1.bf16.msra.mxu0 %v4257
        %4282 = vmatprep.subr.bf16.mxu0 0
        %4283 = vmatpush1.bf16.msra.mxu0 %v4259
        %4284 = vmatprep.subr.bf16.mxu0 0
        %4285 = vmatpush1.bf16.msra.mxu0 %v4261
        %4286 = vmatprep.subr.bf16.mxu0 0
        %4287 = vmatpush1.bf16.msra.mxu0 %v4263
        %4288 = vmatprep.subr.bf16.mxu0 0
        %4289 = vmatpush1.bf16.msra.mxu0 %v4265
        %4290 = vmatprep.subr.bf16.mxu0 0
        %4291 = vmatpush1.bf16.msra.mxu0 0
        %4292 = vmatprep.subr.bf16.mxu0 0
        %4293 = vmatpush1.bf16.msra.mxu0 0
        %4294 = vmatprep.subr.bf16.mxu0 0
        %4295 = vmatpush1.bf16.msra.mxu0 0
        %4296 = vmatprep.subr.bf16.mxu0 0
        %4297 = vmatpush1.bf16.msra.mxu0 0
        %4298 = vmatprep.subr.bf16.mxu0 0
        %4299 = vmatpush1.bf16.msra.mxu0 0
        %4300 = vmatprep.subr.bf16.mxu0 0
        %4301 = vmatpush1.bf16.msra.mxu0 0
        %4302 = vmatprep.subr.bf16.mxu0 0
        %4303 = vmatpush1.bf16.msra.mxu0 0
        %4304 = vmatprep.subr.bf16.mxu0 0
        %4305 = vmatpush1.bf16.msra.mxu0 0
        %4306 = vmatprep.mubr.bf16.mxu0 0
        %4307 = vmatmul.mubr.bf16.gmra.mrb[0].mxu0 %v4226
        %v4308 = vpop.f32.mrb[0].mxu0
        %v4309 = vadd.f32 0.0, %v4308
        %v4310 = vpop.f32.mrb[0].mxu0
        %v4311 = vpop.f32.mrb[0].mxu0
        %v4312 = vadd.f32 0.0, %v4311
        %v4313 = vpop.f32.mrb[0].mxu0
        %4314 = vmatprep.mubr.bf16.mxu0 0
        %4315 = vmatmul.mubr.bf16.gmra.mrb[0].mxu0 %v4227
        %v4316 = vpop.f32.mrb[0].mxu0
        %v4317 = vadd.f32 0.0, %v4316
        %v4318 = vpop.f32.mrb[0].mxu0
        %v4319 = vpop.f32.mrb[0].mxu0
        %v4320 = vadd.f32 0.0, %v4319
        %v4321 = vpop.f32.mrb[0].mxu0
        %4322 = vmatprep.mubr.bf16.mxu0 0
        %4323 = vmatmul.mubr.bf16.gmra.mrb[0].mxu0 %v4228
        %v4324 = vpop.f32.mrb[0].mxu0
        %v4325 = vadd.f32 0.0, %v4324
        %v4326 = vpop.f32.mrb[0].mxu0
        %v4327 = vpop.f32.mrb[0].mxu0
        %v4328 = vadd.f32 0.0, %v4327
        %v4329 = vpop.f32.mrb[0].mxu0
        %4330 = vmatprep.mubr.bf16.mxu0 0
        %4331 = vmatmul.mubr.bf16.gmra.mrb[0].mxu0 %v4229
        %v4332 = vpop.f32.mrb[0].mxu0
        %v4333 = vadd.f32 0.0, %v4332
        %v4334 = vpop.f32.mrb[0].mxu0
        %v4335 = vpop.f32.mrb[0].mxu0
        %v4336 = vadd.f32 0.0, %v4335
        %v4337 = vpop.f32.mrb[0].mxu0
        %4338 = vmatprep.mubr.bf16.mxu0 0
        %4339 = vmatmul.mubr.bf16.gmra.mrb[0].mxu0 %v4230
        %v4340 = vpop.f32.mrb[0].mxu0
        %v4341 = vadd.f32 0.0, %v4340
        %v4342 = vpop.f32.mrb[0].mxu0
        %v4343 = vpop.f32.mrb[0].mxu0
        %v4344 = vadd.f32 0.0, %v4343
        %v4345 = vpop.f32.mrb[0].mxu0
        %4346 = vmatprep.mubr.bf16.mxu0 0
        %4347 = vmatmul.mubr.bf16.gmra.mrb[0].mxu0 %v4231
        %v4348 = vpop.f32.mrb[0].mxu0
        %v4349 = vadd.f32 0.0, %v4348
        %v4350 = vpop.f32.mrb[0].mxu0
        %v4351 = vpop.f32.mrb[0].mxu0
        %v4352 = vadd.f32 0.0, %v4351
        %v4353 = vpop.f32.mrb[0].mxu0
        %4354 = vmatprep.mubr.bf16.mxu0 0
        %4355 = vmatmul.mubr.bf16.gmra.mrb[0].mxu0 %v4232
        %v4356 = vpop.f32.mrb[0].mxu0
        %v4357 = vadd.f32 0.0, %v4356
        %v4358 = vpop.f32.mrb[0].mxu0
        %v4359 = vpop.f32.mrb[0].mxu0
        %v4360 = vadd.f32 0.0, %v4359
        %v4361 = vpop.f32.mrb[0].mxu0
        %4362 = vmatprep.mubr.bf16.mxu0 0
        %4363 = vmatmul.mubr.bf16.gmra.mrb[0].mxu0 %v4233
        %v4364 = vpop.f32.mrb[0].mxu0
        %v4365 = vadd.f32 0.0, %v4364
        %v4366 = vpop.f32.mrb[0].mxu0
        %v4367 = vpop.f32.mrb[0].mxu0
        %v4368 = vadd.f32 0.0, %v4367
        %v4369 = vpop.f32.mrb[0].mxu0
        %4370 = vdwg.mxu0
        %v4371 = vmul.f32 %v4309, %v4210
        %v4372 = vmul.f32 %v4312, %v4211
        %v4373 = vmul.f32 %v4317, %v4212
        %v4374 = vmul.f32 %v4320, %v4213
        %v4375 = vmul.f32 %v4325, %v4214
        %v4376 = vmul.f32 %v4328, %v4215
        %v4377 = vmul.f32 %v4333, %v4216
        %v4378 = vmul.f32 %v4336, %v4217
        %v4379 = vmul.f32 %v4341, %v4218
        %v4380 = vmul.f32 %v4344, %v4219
        %v4381 = vmul.f32 %v4349, %v4220
        %v4382 = vmul.f32 %v4352, %v4221
        %v4383 = vmul.f32 %v4357, %v4222
        %v4384 = vmul.f32 %v4360, %v4223
        %v4385 = vmul.f32 %v4365, %v4224
        %v4386 = vmul.f32 %v4368, %v4225
        %4403 = vrot.lane.b32.xlu0 %v4371, 96
        %v4404 = vpop.permute.xlu0 %4403
        %4405 = vrot.lane.b32.xlu0 %v4372, 96
        %v4406 = vpop.permute.xlu0 %4405
        %4407 = vrot.lane.b32.xlu0 %v4373, 96
        %v4408 = vpop.permute.xlu0 %4407
        %4409 = vrot.lane.b32.xlu0 %v4374, 96
        %v4410 = vpop.permute.xlu0 %4409
        %4411 = vrot.lane.b32.xlu0 %v4375, 96
        %v4412 = vpop.permute.xlu0 %4411
        %4413 = vrot.lane.b32.xlu0 %v4376, 96
        %v4414 = vpop.permute.xlu0 %4413
        %4415 = vrot.lane.b32.xlu0 %v4377, 96
        %v4416 = vpop.permute.xlu0 %4415
        %4417 = vrot.lane.b32.xlu0 %v4378, 96
        %v4418 = vpop.permute.xlu0 %4417
        %4419 = vrot.lane.b32.xlu0 %v4379, 96
        %v4420 = vpop.permute.xlu0 %4419
        %4421 = vrot.lane.b32.xlu0 %v4380, 96
        %v4422 = vpop.permute.xlu0 %4421
        %4423 = vrot.lane.b32.xlu0 %v4381, 96
        %v4424 = vpop.permute.xlu0 %4423
        %4425 = vrot.lane.b32.xlu0 %v4382, 96
        %v4426 = vpop.permute.xlu0 %4425
        %4427 = vrot.lane.b32.xlu0 %v4383, 96
        %v4428 = vpop.permute.xlu0 %4427
        %4429 = vrot.lane.b32.xlu0 %v4384, 96
        %v4430 = vpop.permute.xlu0 %4429
        %4431 = vrot.lane.b32.xlu0 %v4385, 96
        %v4432 = vpop.permute.xlu0 %4431
        %4433 = vrot.lane.b32.xlu0 %v4386, 96
        %v4434 = vpop.permute.xlu0 %4433
        %vm4451 = vcmask 1048320
        %4452 = vst.msk [vmem:[#allocation5] sm:$0xff] %vm4451, %v4404
        %4453 = vst.msk [vmem:[#allocation5 + $0x10] sm:$0xff] %vm4451, %v4406
        %4454 = vst.msk [vmem:[#allocation5 + $0x20] sm:$0xff] %vm4451, %v4408
        %4455 = vst.msk [vmem:[#allocation5 + $0x30] sm:$0xff] %vm4451, %v4410
        %4456 = vst.msk [vmem:[#allocation5 + $0x40] sm:$0xff] %vm4451, %v4412
        %4457 = vst.msk [vmem:[#allocation5 + $0x50] sm:$0xff] %vm4451, %v4414
        %4458 = vst.msk [vmem:[#allocation5 + $0x60] sm:$0xff] %vm4451, %v4416
        %4459 = vst.msk [vmem:[#allocation5 + $0x70] sm:$0xff] %vm4451, %v4418
        %4460 = vst.msk [vmem:[#allocation5 + $0x80] sm:$0xff] %vm4451, %v4420
        %4461 = vst.msk [vmem:[#allocation5 + $0x90] sm:$0xff] %vm4451, %v4422
        %4462 = vst.msk [vmem:[#allocation5 + $0xa0] sm:$0xff] %vm4451, %v4424
        %4463 = vst.msk [vmem:[#allocation5 + $0xb0] sm:$0xff] %vm4451, %v4426
        %4464 = vst.msk [vmem:[#allocation5 + $0xc0] sm:$0xff] %vm4451, %v4428
        %4465 = vst.msk [vmem:[#allocation5 + $0xd0] sm:$0xff] %vm4451, %v4430
        %4466 = vst.msk [vmem:[#allocation5 + $0xe0] sm:$0xff] %vm4451, %v4432
        %4467 = vst.msk [vmem:[#allocation5 + $0xf0] sm:$0xff] %vm4451, %v4434
        %v4468 = vld [vmem:[#allocation3 + $0x8] sm:$0xff]
        %v4469 = vld [vmem:[#allocation3 + $0x38] sm:$0xff]
        %v4470 = vld [vmem:[#allocation3 + $0x68] sm:$0xff]
        %v4471 = vld [vmem:[#allocation3 + $0x98] sm:$0xff]
        %v4472 = vld [vmem:[#allocation3 + $0xc8] sm:$0xff]
        %v4473 = vld [vmem:[#allocation3 + $0xf8] sm:$0xff]
        %v4474 = vld [vmem:[#allocation3 + $0x128] sm:$0xff]
        %v4475 = vld [vmem:[#allocation3 + $0x158] sm:$0xff]
        %v4476 = vld [vmem:[#allocation3 + $0x188] sm:$0xff]
        %v4477 = vld [vmem:[#allocation3 + $0x1b8] sm:$0xff]
        %v4478 = vld [vmem:[#allocation3 + $0x1e8] sm:$0xff]
        %v4479 = vld [vmem:[#allocation3 + $0x218] sm:$0xff]
        %v4480 = vld [vmem:[#allocation3 + $0x248] sm:$0xff]
        %v4481 = vld [vmem:[#allocation3 + $0x278] sm:$0xff]
        %v4482 = vld [vmem:[#allocation3 + $0x2a8] sm:$0xff]
        %v4483 = vld [vmem:[#allocation3 + $0x2d8] sm:$0xff]
        %v4484 = vld [vmem:[#allocation4 + $0x80] sm:$0xff]
        %v4485 = vld [vmem:[#allocation4 + $0x88] sm:$0xff]
        %v4486 = vld [vmem:[#allocation4 + $0x90] sm:$0xff]
        %v4487 = vld [vmem:[#allocation4 + $0x98] sm:$0xff]
        %v4488 = vld [vmem:[#allocation3 + $0x28] sm:$0xff]
        %v4489 = vld [vmem:[#allocation3 + $0x58] sm:$0xff]
        %v4490 = vld [vmem:[#allocation3 + $0x88] sm:$0xff]
        %v4491 = vld [vmem:[#allocation3 + $0xb8] sm:$0xff]
        %v4492 = vld [vmem:[#allocation3 + $0xe8] sm:$0xff]
        %v4493 = vld [vmem:[#allocation3 + $0x118] sm:$0xff]
        %v4494 = vld [vmem:[#allocation3 + $0x148] sm:$0xff]
        %v4495 = vld [vmem:[#allocation3 + $0x178] sm:$0xff]
        %v4496 = vld [vmem:[#allocation3 + $0x1a8] sm:$0xff]
        %v4497 = vld [vmem:[#allocation3 + $0x1d8] sm:$0xff]
        %v4498 = vld [vmem:[#allocation3 + $0x208] sm:$0xff]
        %v4499 = vld [vmem:[#allocation3 + $0x238] sm:$0xff]
        %v4500 = vld [vmem:[#allocation3 + $0x268] sm:$0xff]
        %v4501 = vld [vmem:[#allocation3 + $0x298] sm:$0xff]
        %v4502 = vld [vmem:[#allocation3 + $0x2c8] sm:$0xff]
        %v4503 = vld [vmem:[#allocation3 + $0x2f8] sm:$0xff]
        %v4504 = vpack.c.bf16 %v4469, %v4468
        %v4505 = vpack.c.bf16 %v4471, %v4470
        %v4506 = vpack.c.bf16 %v4473, %v4472
        %v4507 = vpack.c.bf16 %v4475, %v4474
        %v4508 = vpack.c.bf16 %v4477, %v4476
        %v4509 = vpack.c.bf16 %v4479, %v4478
        %v4510 = vpack.c.bf16 %v4481, %v4480
        %v4511 = vpack.c.bf16 %v4483, %v4482
        %v4512 = vpack.c.bf16 %v4485, %v4484
        %v4513 = vpack.c.bf16 %v4487, %v4486
        %v4515 = vsel %vm2390, %v4504, 0
        %v4518 = vsel %vm2390, %v4505, 0
        %v4521 = vsel %vm2390, %v4506, 0
        %v4524 = vsel %vm2390, %v4507, 0
        %v4527 = vsel %vm2390, %v4508, 0
        %v4530 = vsel %vm2390, %v4509, 0
        %v4533 = vsel %vm2390, %v4510, 0
        %v4536 = vsel %vm2390, %v4511, 0
        %4538 = vmatprep.subr.bf16.mxu0 0
        %4539 = vmatpush1.bf16.msra.mxu0 %v4512
        %4540 = vmatprep.subr.bf16.mxu0 0
        %4541 = vmatpush1.bf16.msra.mxu0 %v4513
        %4542 = vmatprep.subr.bf16.mxu0 0
        %4543 = vmatpush1.bf16.msra.mxu0 0
        %4544 = vmatprep.subr.bf16.mxu0 0
        %4545 = vmatpush1.bf16.msra.mxu0 0
        %4546 = vmatprep.subr.bf16.mxu0 0
        %4547 = vmatpush1.bf16.msra.mxu0 0
        %4548 = vmatprep.subr.bf16.mxu0 0
        %4549 = vmatpush1.bf16.msra.mxu0 0
        %4550 = vmatprep.subr.bf16.mxu0 0
        %4551 = vmatpush1.bf16.msra.mxu0 0
        %4552 = vmatprep.subr.bf16.mxu0 0
        %4553 = vmatpush1.bf16.msra.mxu0 0
        %4554 = vmatprep.subr.bf16.mxu0 0
        %4555 = vmatpush1.bf16.msra.mxu0 0
        %4556 = vmatprep.subr.bf16.mxu0 0
        %4557 = vmatpush1.bf16.msra.mxu0 0
        %4558 = vmatprep.subr.bf16.mxu0 0
        %4559 = vmatpush1.bf16.msra.mxu0 0
        %4560 = vmatprep.subr.bf16.mxu0 0
        %4561 = vmatpush1.bf16.msra.mxu0 0
        %4562 = vmatprep.subr.bf16.mxu0 0
        %4563 = vmatpush1.bf16.msra.mxu0 0
        %4564 = vmatprep.subr.bf16.mxu0 0
        %4565 = vmatpush1.bf16.msra.mxu0 0
        %4566 = vmatprep.subr.bf16.mxu0 0
        %4567 = vmatpush1.bf16.msra.mxu0 0
        %4568 = vmatprep.subr.bf16.mxu0 0
        %4569 = vmatpush1.bf16.msra.mxu0 0
        %4570 = vmatprep.mubr.bf16.mxu0 0
        %4571 = vmatmul.mubr.bf16.gmra.mrb[0].mxu0 %v4515
        %v4572 = vpop.f32.mrb[0].mxu0
        %v4573 = vadd.f32 %v910, %v4572
        %v4574 = vpop.f32.mrb[0].mxu0
        %v4575 = vpop.f32.mrb[0].mxu0
        %v4576 = vadd.f32 %v911, %v4575
        %v4577 = vpop.f32.mrb[0].mxu0
        %4578 = vmatprep.mubr.bf16.mxu0 0
        %4579 = vmatmul.mubr.bf16.gmra.mrb[0].mxu0 %v4518
        %v4580 = vpop.f32.mrb[0].mxu0
        %v4581 = vadd.f32 %v912, %v4580
        %v4582 = vpop.f32.mrb[0].mxu0
        %v4583 = vpop.f32.mrb[0].mxu0
        %v4584 = vadd.f32 %v913, %v4583
        %v4585 = vpop.f32.mrb[0].mxu0
        %4586 = vmatprep.mubr.bf16.mxu0 0
        %4587 = vmatmul.mubr.bf16.gmra.mrb[0].mxu0 %v4521
        %v4588 = vpop.f32.mrb[0].mxu0
        %v4589 = vadd.f32 %v914, %v4588
        %v4590 = vpop.f32.mrb[0].mxu0
        %v4591 = vpop.f32.mrb[0].mxu0
        %v4592 = vadd.f32 %v915, %v4591
        %v4593 = vpop.f32.mrb[0].mxu0
        %4594 = vmatprep.mubr.bf16.mxu0 0
        %4595 = vmatmul.mubr.bf16.gmra.mrb[0].mxu0 %v4524
        %v4596 = vpop.f32.mrb[0].mxu0
        %v4597 = vadd.f32 %v916, %v4596
        %v4598 = vpop.f32.mrb[0].mxu0
        %v4599 = vpop.f32.mrb[0].mxu0
        %v4600 = vadd.f32 %v917, %v4599
        %v4601 = vpop.f32.mrb[0].mxu0
        %4602 = vmatprep.mubr.bf16.mxu0 0
        %4603 = vmatmul.mubr.bf16.gmra.mrb[0].mxu0 %v4527
        %v4604 = vpop.f32.mrb[0].mxu0
        %v4605 = vadd.f32 %v918, %v4604
        %v4606 = vpop.f32.mrb[0].mxu0
        %v4607 = vpop.f32.mrb[0].mxu0
        %v4608 = vadd.f32 %v919, %v4607
        %v4609 = vpop.f32.mrb[0].mxu0
        %4610 = vmatprep.mubr.bf16.mxu0 0
        %4611 = vmatmul.mubr.bf16.gmra.mrb[0].mxu0 %v4530
        %v4612 = vpop.f32.mrb[0].mxu0
        %v4613 = vadd.f32 %v920, %v4612
        %v4614 = vpop.f32.mrb[0].mxu0
        %v4615 = vpop.f32.mrb[0].mxu0
        %v4616 = vadd.f32 %v921, %v4615
        %v4617 = vpop.f32.mrb[0].mxu0
        %4618 = vmatprep.mubr.bf16.mxu0 0
        %4619 = vmatmul.mubr.bf16.gmra.mrb[0].mxu0 %v4533
        %v4620 = vpop.f32.mrb[0].mxu0
        %v4621 = vadd.f32 %v922, %v4620
        %v4622 = vpop.f32.mrb[0].mxu0
        %v4623 = vpop.f32.mrb[0].mxu0
        %v4624 = vadd.f32 %v923, %v4623
        %v4625 = vpop.f32.mrb[0].mxu0
        %4626 = vmatprep.mubr.bf16.mxu0 0
        %4627 = vmatmul.mubr.bf16.gmra.mrb[0].mxu0 %v4536
        %v4628 = vpop.f32.mrb[0].mxu0
        %v4629 = vadd.f32 %v924, %v4628
        %v4630 = vpop.f32.mrb[0].mxu0
        %v4631 = vpop.f32.mrb[0].mxu0
        %v4632 = vadd.f32 %v925, %v4631
        %v4633 = vpop.f32.mrb[0].mxu0
        %4634 = vdwg.mxu0
        %4635 = vmax.xlane.f32.xlu0 %v4573
        %v4636 = vpop.xlane.xlu0 %4635
        %4637 = vmax.xlane.f32.xlu0 %v4576
        %v4638 = vpop.xlane.xlu0 %4637
        %4639 = vmax.xlane.f32.xlu0 %v4581
        %v4640 = vpop.xlane.xlu0 %4639
        %4641 = vmax.xlane.f32.xlu0 %v4584
        %v4642 = vpop.xlane.xlu0 %4641
        %4643 = vmax.xlane.f32.xlu0 %v4589
        %v4644 = vpop.xlane.xlu0 %4643
        %4645 = vmax.xlane.f32.xlu0 %v4592
        %v4646 = vpop.xlane.xlu0 %4645
        %4647 = vmax.xlane.f32.xlu0 %v4597
        %v4648 = vpop.xlane.xlu0 %4647
        %4649 = vmax.xlane.f32.xlu0 %v4600
        %v4650 = vpop.xlane.xlu0 %4649
        %4651 = vmax.xlane.f32.xlu0 %v4605
        %v4652 = vpop.xlane.xlu0 %4651
        %4653 = vmax.xlane.f32.xlu0 %v4608
        %v4654 = vpop.xlane.xlu0 %4653
        %4655 = vmax.xlane.f32.xlu0 %v4613
        %v4656 = vpop.xlane.xlu0 %4655
        %4657 = vmax.xlane.f32.xlu0 %v4616
        %v4658 = vpop.xlane.xlu0 %4657
        %4659 = vmax.xlane.f32.xlu0 %v4621
        %v4660 = vpop.xlane.xlu0 %4659
        %4661 = vmax.xlane.f32.xlu0 %v4624
        %v4662 = vpop.xlane.xlu0 %4661
        %4663 = vmax.xlane.f32.xlu0 %v4629
        %v4664 = vpop.xlane.xlu0 %4663
        %4665 = vmax.xlane.f32.xlu0 %v4632
        %v4666 = vpop.xlane.xlu0 %4665
        %v4667 = vsub.f32 %v4573, %v4636
        %v4668 = vsub.f32 %v4576, %v4638
        %v4669 = vsub.f32 %v4581, %v4640
        %v4670 = vsub.f32 %v4584, %v4642
        %v4671 = vsub.f32 %v4589, %v4644
        %v4672 = vsub.f32 %v4592, %v4646
        %v4673 = vsub.f32 %v4597, %v4648
        %v4674 = vsub.f32 %v4600, %v4650
        %v4675 = vsub.f32 %v4605, %v4652
        %v4676 = vsub.f32 %v4608, %v4654
        %v4677 = vsub.f32 %v4613, %v4656
        %v4678 = vsub.f32 %v4616, %v4658
        %v4679 = vsub.f32 %v4621, %v4660
        %v4680 = vsub.f32 %v4624, %v4662
        %v4681 = vsub.f32 %v4629, %v4664
        %v4682 = vsub.f32 %v4632, %v4666
        %v4683 = vmul.f32 %v4667, 1.442695
        %v4684 = vpow.pop %v4683
        %v4685 = vmul.f32 %v4668, 1.442695
        %v4686 = vpow.pop %v4685
        %v4687 = vmul.f32 %v4669, 1.442695
        %v4688 = vpow.pop %v4687
        %v4689 = vmul.f32 %v4670, 1.442695
        %v4690 = vpow.pop %v4689
        %v4691 = vmul.f32 %v4671, 1.442695
        %v4692 = vpow.pop %v4691
        %v4693 = vmul.f32 %v4672, 1.442695
        %v4694 = vpow.pop %v4693
        %v4695 = vmul.f32 %v4673, 1.442695
        %v4696 = vpow.pop %v4695
        %v4697 = vmul.f32 %v4674, 1.442695
        %v4698 = vpow.pop %v4697
        %v4699 = vmul.f32 %v4675, 1.442695
        %v4700 = vpow.pop %v4699
        %v4701 = vmul.f32 %v4676, 1.442695
        %v4702 = vpow.pop %v4701
        %v4703 = vmul.f32 %v4677, 1.442695
        %v4704 = vpow.pop %v4703
        %v4705 = vmul.f32 %v4678, 1.442695
        %v4706 = vpow.pop %v4705
        %v4707 = vmul.f32 %v4679, 1.442695
        %v4708 = vpow.pop %v4707
        %v4709 = vmul.f32 %v4680, 1.442695
        %v4710 = vpow.pop %v4709
        %v4711 = vmul.f32 %v4681, 1.442695
        %v4712 = vpow.pop %v4711
        %v4713 = vmul.f32 %v4682, 1.442695
        %v4714 = vpow.pop %v4713
        %4715 = vadd.xlane.f32.xlu0 %v4684
        %v4716 = vpop.xlane.xlu0 %4715
        %4717 = vadd.xlane.f32.xlu0 %v4686
        %v4718 = vpop.xlane.xlu0 %4717
        %4719 = vadd.xlane.f32.xlu0 %v4688
        %v4720 = vpop.xlane.xlu0 %4719
        %4721 = vadd.xlane.f32.xlu0 %v4690
        %v4722 = vpop.xlane.xlu0 %4721
        %4723 = vadd.xlane.f32.xlu0 %v4692
        %v4724 = vpop.xlane.xlu0 %4723
        %4725 = vadd.xlane.f32.xlu0 %v4694
        %v4726 = vpop.xlane.xlu0 %4725
        %4727 = vadd.xlane.f32.xlu0 %v4696
        %v4728 = vpop.xlane.xlu0 %4727
        %4729 = vadd.xlane.f32.xlu0 %v4698
        %v4730 = vpop.xlane.xlu0 %4729
        %4731 = vadd.xlane.f32.xlu0 %v4700
        %v4732 = vpop.xlane.xlu0 %4731
        %4733 = vadd.xlane.f32.xlu0 %v4702
        %v4734 = vpop.xlane.xlu0 %4733
        %4735 = vadd.xlane.f32.xlu0 %v4704
        %v4736 = vpop.xlane.xlu0 %4735
        %4737 = vadd.xlane.f32.xlu0 %v4706
        %v4738 = vpop.xlane.xlu0 %4737
        %4739 = vadd.xlane.f32.xlu0 %v4708
        %v4740 = vpop.xlane.xlu0 %4739
        %4741 = vadd.xlane.f32.xlu0 %v4710
        %v4742 = vpop.xlane.xlu0 %4741
        %4743 = vadd.xlane.f32.xlu0 %v4712
        %v4744 = vpop.xlane.xlu0 %4743
        %4745 = vadd.xlane.f32.xlu0 %v4714
        %v4746 = vpop.xlane.xlu0 %4745
        %v4747 = vrcp.pop %v4716
        %v4748 = vrcp.pop %v4718
        %v4749 = vrcp.pop %v4720
        %v4750 = vrcp.pop %v4722
        %v4751 = vrcp.pop %v4724
        %v4752 = vrcp.pop %v4726
        %v4753 = vrcp.pop %v4728
        %v4754 = vrcp.pop %v4730
        %v4755 = vrcp.pop %v4732
        %v4756 = vrcp.pop %v4734
        %v4757 = vrcp.pop %v4736
        %v4758 = vrcp.pop %v4738
        %v4759 = vrcp.pop %v4740
        %v4760 = vrcp.pop %v4742
        %v4761 = vrcp.pop %v4744
        %v4762 = vrcp.pop %v4746
        %v4763 = vpack.c.bf16 %v4686, %v4684
        %v4764 = vpack.c.bf16 %v4690, %v4688
        %v4765 = vpack.c.bf16 %v4694, %v4692
        %v4766 = vpack.c.bf16 %v4698, %v4696
        %v4767 = vpack.c.bf16 %v4702, %v4700
        %v4768 = vpack.c.bf16 %v4706, %v4704
        %v4769 = vpack.c.bf16 %v4710, %v4708
        %v4770 = vpack.c.bf16 %v4714, %v4712
        %v4771 = vpack.c.bf16 %v4489, %v4488
        %v4772 = vpack.c.bf16 %v4491, %v4490
        %v4773 = vpack.c.bf16 %v4493, %v4492
        %v4774 = vpack.c.bf16 %v4495, %v4494
        %v4775 = vpack.c.bf16 %v4497, %v4496
        %v4776 = vpack.c.bf16 %v4499, %v4498
        %v4777 = vpack.c.bf16 %v4501, %v4500
        %v4778 = vpack.c.bf16 %v4503, %v4502
        %4779 = vmatprep.subr.bf16.mxu0 0
        %4780 = vmatpush1.bf16.msra.mxu0 %v4771
        %4781 = vmatprep.subr.bf16.mxu0 0
        %4782 = vmatpush1.bf16.msra.mxu0 %v4772
        %4783 = vmatprep.subr.bf16.mxu0 0
        %4784 = vmatpush1.bf16.msra.mxu0 %v4773
        %4785 = vmatprep.subr.bf16.mxu0 0
        %4786 = vmatpush1.bf16.msra.mxu0 %v4774
        %4787 = vmatprep.subr.bf16.mxu0 0
        %4788 = vmatpush1.bf16.msra.mxu0 %v4775
        %4789 = vmatprep.subr.bf16.mxu0 0
        %4790 = vmatpush1.bf16.msra.mxu0 %v4776
        %4791 = vmatprep.subr.bf16.mxu0 0
        %4792 = vmatpush1.bf16.msra.mxu0 %v4777
        %4793 = vmatprep.subr.bf16.mxu0 0
        %4794 = vmatpush1.bf16.msra.mxu0 %v4778
        %4795 = vmatprep.subr.bf16.mxu0 0
        %4796 = vmatpush1.bf16.msra.mxu0 0
        %4797 = vmatprep.subr.bf16.mxu0 0
        %4798 = vmatpush1.bf16.msra.mxu0 0
        %4799 = vmatprep.subr.bf16.mxu0 0
        %4800 = vmatpush1.bf16.msra.mxu0 0
        %4801 = vmatprep.subr.bf16.mxu0 0
        %4802 = vmatpush1.bf16.msra.mxu0 0
        %4803 = vmatprep.subr.bf16.mxu0 0
        %4804 = vmatpush1.bf16.msra.mxu0 0
        %4805 = vmatprep.subr.bf16.mxu0 0
        %4806 = vmatpush1.bf16.msra.mxu0 0
        %4807 = vmatprep.subr.bf16.mxu0 0
        %4808 = vmatpush1.bf16.msra.mxu0 0
        %4809 = vmatprep.subr.bf16.mxu0 0
        %4810 = vmatpush1.bf16.msra.mxu0 0
        %4811 = vmatprep.mubr.bf16.mxu0 0
        %4812 = vmatmul.mubr.bf16.gmra.mrb[0].mxu0 %v4763
        %v4813 = vpop.f32.mrb[0].mxu0
        %v4814 = vadd.f32 0.0, %v4813
        %v4815 = vpop.f32.mrb[0].mxu0
        %v4816 = vpop.f32.mrb[0].mxu0
        %v4817 = vadd.f32 0.0, %v4816
        %v4818 = vpop.f32.mrb[0].mxu0
        %4819 = vmatprep.mubr.bf16.mxu0 0
        %4820 = vmatmul.mubr.bf16.gmra.mrb[0].mxu0 %v4764
        %v4821 = vpop.f32.mrb[0].mxu0
        %v4822 = vadd.f32 0.0, %v4821
        %v4823 = vpop.f32.mrb[0].mxu0
        %v4824 = vpop.f32.mrb[0].mxu0
        %v4825 = vadd.f32 0.0, %v4824
        %v4826 = vpop.f32.mrb[0].mxu0
        %4827 = vmatprep.mubr.bf16.mxu0 0
        %4828 = vmatmul.mubr.bf16.gmra.mrb[0].mxu0 %v4765
        %v4829 = vpop.f32.mrb[0].mxu0
        %v4830 = vadd.f32 0.0, %v4829
        %v4831 = vpop.f32.mrb[0].mxu0
        %v4832 = vpop.f32.mrb[0].mxu0
        %v4833 = vadd.f32 0.0, %v4832
        %v4834 = vpop.f32.mrb[0].mxu0
        %4835 = vmatprep.mubr.bf16.mxu0 0
        %4836 = vmatmul.mubr.bf16.gmra.mrb[0].mxu0 %v4766
        %v4837 = vpop.f32.mrb[0].mxu0
        %v4838 = vadd.f32 0.0, %v4837
        %v4839 = vpop.f32.mrb[0].mxu0
        %v4840 = vpop.f32.mrb[0].mxu0
        %v4841 = vadd.f32 0.0, %v4840
        %v4842 = vpop.f32.mrb[0].mxu0
        %4843 = vmatprep.mubr.bf16.mxu0 0
        %4844 = vmatmul.mubr.bf16.gmra.mrb[0].mxu0 %v4767
        %v4845 = vpop.f32.mrb[0].mxu0
        %v4846 = vadd.f32 0.0, %v4845
        %v4847 = vpop.f32.mrb[0].mxu0
        %v4848 = vpop.f32.mrb[0].mxu0
        %v4849 = vadd.f32 0.0, %v4848
        %v4850 = vpop.f32.mrb[0].mxu0
        %4851 = vmatprep.mubr.bf16.mxu0 0
        %4852 = vmatmul.mubr.bf16.gmra.mrb[0].mxu0 %v4768
        %v4853 = vpop.f32.mrb[0].mxu0
        %v4854 = vadd.f32 0.0, %v4853
        %v4855 = vpop.f32.mrb[0].mxu0
        %v4856 = vpop.f32.mrb[0].mxu0
        %v4857 = vadd.f32 0.0, %v4856
        %v4858 = vpop.f32.mrb[0].mxu0
        %4859 = vmatprep.mubr.bf16.mxu0 0
        %4860 = vmatmul.mubr.bf16.gmra.mrb[0].mxu0 %v4769
        %v4861 = vpop.f32.mrb[0].mxu0
        %v4862 = vadd.f32 0.0, %v4861
        %v4863 = vpop.f32.mrb[0].mxu0
        %v4864 = vpop.f32.mrb[0].mxu0
        %v4865 = vadd.f32 0.0, %v4864
        %v4866 = vpop.f32.mrb[0].mxu0
        %4867 = vmatprep.mubr.bf16.mxu0 0
        %4868 = vmatmul.mubr.bf16.gmra.mrb[0].mxu0 %v4770
        %v4869 = vpop.f32.mrb[0].mxu0
        %v4870 = vadd.f32 0.0, %v4869
        %v4871 = vpop.f32.mrb[0].mxu0
        %v4872 = vpop.f32.mrb[0].mxu0
        %v4873 = vadd.f32 0.0, %v4872
        %v4874 = vpop.f32.mrb[0].mxu0
        %4875 = vdwg.mxu0
        %v4876 = vmul.f32 %v4814, %v4747
        %v4877 = vmul.f32 %v4817, %v4748
        %v4878 = vmul.f32 %v4822, %v4749
        %v4879 = vmul.f32 %v4825, %v4750
        %v4880 = vmul.f32 %v4830, %v4751
        %v4881 = vmul.f32 %v4833, %v4752
        %v4882 = vmul.f32 %v4838, %v4753
        %v4883 = vmul.f32 %v4841, %v4754
        %v4884 = vmul.f32 %v4846, %v4755
        %v4885 = vmul.f32 %v4849, %v4756
        %v4886 = vmul.f32 %v4854, %v4757
        %v4887 = vmul.f32 %v4857, %v4758
        %v4888 = vmul.f32 %v4862, %v4759
        %v4889 = vmul.f32 %v4865, %v4760
        %v4890 = vmul.f32 %v4870, %v4761
        %v4891 = vmul.f32 %v4873, %v4762
        %4892 = vst.msk [vmem:[#allocation5 + $0x8] sm:$0xff] %vm2390, %v4876
        %4893 = vst.msk [vmem:[#allocation5 + $0x18] sm:$0xff] %vm2390, %v4877
        %4894 = vst.msk [vmem:[#allocation5 + $0x28] sm:$0xff] %vm2390, %v4878
        %4895 = vst.msk [vmem:[#allocation5 + $0x38] sm:$0xff] %vm2390, %v4879
        %4896 = vst.msk [vmem:[#allocation5 + $0x48] sm:$0xff] %vm2390, %v4880
        %4897 = vst.msk [vmem:[#allocation5 + $0x58] sm:$0xff] %vm2390, %v4881
        %4898 = vst.msk [vmem:[#allocation5 + $0x68] sm:$0xff] %vm2390, %v4882
        %4899 = vst.msk [vmem:[#allocation5 + $0x78] sm:$0xff] %vm2390, %v4883
        %4900 = vst.msk [vmem:[#allocation5 + $0x88] sm:$0xff] %vm2390, %v4884
        %4901 = vst.msk [vmem:[#allocation5 + $0x98] sm:$0xff] %vm2390, %v4885
        %4902 = vst.msk [vmem:[#allocation5 + $0xa8] sm:$0xff] %vm2390, %v4886
        %4903 = vst.msk [vmem:[#allocation5 + $0xb8] sm:$0xff] %vm2390, %v4887
        %4904 = vst.msk [vmem:[#allocation5 + $0xc8] sm:$0xff] %vm2390, %v4888
        %4905 = vst.msk [vmem:[#allocation5 + $0xd8] sm:$0xff] %vm2390, %v4889
        %4906 = vst.msk [vmem:[#allocation5 + $0xe8] sm:$0xff] %vm2390, %v4890
        %4907 = vst.msk [vmem:[#allocation5 + $0xf8] sm:$0xff] %vm2390, %v4891
        %v4908 = vld [vmem:[#allocation3 + $0x8] sm:$0xff]
        %v4909 = vld [vmem:[#allocation3 + $0x38] sm:$0xff]
        %v4910 = vld [vmem:[#allocation3 + $0x68] sm:$0xff]
        %v4911 = vld [vmem:[#allocation3 + $0x98] sm:$0xff]
        %v4912 = vld [vmem:[#allocation3 + $0xc8] sm:$0xff]
        %v4913 = vld [vmem:[#allocation3 + $0xf8] sm:$0xff]
        %v4914 = vld [vmem:[#allocation3 + $0x128] sm:$0xff]
        %v4915 = vld [vmem:[#allocation3 + $0x158] sm:$0xff]
        %v4916 = vld [vmem:[#allocation3 + $0x188] sm:$0xff]
        %v4917 = vld [vmem:[#allocation3 + $0x1b8] sm:$0xff]
        %v4918 = vld [vmem:[#allocation3 + $0x1e8] sm:$0xff]
        %v4919 = vld [vmem:[#allocation3 + $0x218] sm:$0xff]
        %v4920 = vld [vmem:[#allocation3 + $0x248] sm:$0xff]
        %v4921 = vld [vmem:[#allocation3 + $0x278] sm:$0xff]
        %v4922 = vld [vmem:[#allocation3 + $0x2a8] sm:$0xff]
        %v4923 = vld [vmem:[#allocation3 + $0x2d8] sm:$0xff]
        %v4924 = vld [vmem:[#allocation4 + $0xa0] sm:$0xff]
        %v4925 = vld [vmem:[#allocation4 + $0xa8] sm:$0xff]
        %v4926 = vld [vmem:[#allocation4 + $0xb0] sm:$0xff]
        %v4927 = vld [vmem:[#allocation4 + $0xb8] sm:$0xff]
        %v4928 = vld [vmem:[#allocation3 + $0x28] sm:$0xff]
        %v4929 = vld [vmem:[#allocation3 + $0x58] sm:$0xff]
        %v4930 = vld [vmem:[#allocation3 + $0x88] sm:$0xff]
        %v4931 = vld [vmem:[#allocation3 + $0xb8] sm:$0xff]
        %v4932 = vld [vmem:[#allocation3 + $0xe8] sm:$0xff]
        %v4933 = vld [vmem:[#allocation3 + $0x118] sm:$0xff]
        %v4934 = vld [vmem:[#allocation3 + $0x148] sm:$0xff]
        %v4935 = vld [vmem:[#allocation3 + $0x178] sm:$0xff]
        %v4936 = vld [vmem:[#allocation3 + $0x1a8] sm:$0xff]
        %v4937 = vld [vmem:[#allocation3 + $0x1d8] sm:$0xff]
        %v4938 = vld [vmem:[#allocation3 + $0x208] sm:$0xff]
        %v4939 = vld [vmem:[#allocation3 + $0x238] sm:$0xff]
        %v4940 = vld [vmem:[#allocation3 + $0x268] sm:$0xff]
        %v4941 = vld [vmem:[#allocation3 + $0x298] sm:$0xff]
        %v4942 = vld [vmem:[#allocation3 + $0x2c8] sm:$0xff]
        %v4943 = vld [vmem:[#allocation3 + $0x2f8] sm:$0xff]
        %v4944 = vpack.c.bf16 %v4909, %v4908
        %v4945 = vpack.c.bf16 %v4911, %v4910
        %v4946 = vpack.c.bf16 %v4913, %v4912
        %v4947 = vpack.c.bf16 %v4915, %v4914
        %v4948 = vpack.c.bf16 %v4917, %v4916
        %v4949 = vpack.c.bf16 %v4919, %v4918
        %v4950 = vpack.c.bf16 %v4921, %v4920
        %v4951 = vpack.c.bf16 %v4923, %v4922
        %v4952 = vpack.c.bf16 %v4925, %v4924
        %v4953 = vpack.c.bf16 %v4927, %v4926
        %4962 = vrot.lane.b32.xlu0 %v4944, 96
        %v4963 = vpop.permute.xlu0 %4962
        %4964 = vrot.lane.b32.xlu0 %v4945, 96
        %v4965 = vpop.permute.xlu0 %4964
        %4966 = vrot.lane.b32.xlu0 %v4946, 96
        %v4967 = vpop.permute.xlu0 %4966
        %4968 = vrot.lane.b32.xlu0 %v4947, 96
        %v4969 = vpop.permute.xlu0 %4968
        %4970 = vrot.lane.b32.xlu0 %v4948, 96
        %v4971 = vpop.permute.xlu0 %4970
        %4972 = vrot.lane.b32.xlu0 %v4949, 96
        %v4973 = vpop.permute.xlu0 %4972
        %4974 = vrot.lane.b32.xlu0 %v4950, 96
        %v4975 = vpop.permute.xlu0 %4974
        %4976 = vrot.lane.b32.xlu0 %v4951, 96
        %v4977 = vpop.permute.xlu0 %4976
        %v4979 = vsel %vm2390, %v4963, 0
        %v4982 = vsel %vm2390, %v4965, 0
        %v4985 = vsel %vm2390, %v4967, 0
        %v4988 = vsel %vm2390, %v4969, 0
        %v4991 = vsel %vm2390, %v4971, 0
        %v4994 = vsel %vm2390, %v4973, 0
        %v4997 = vsel %vm2390, %v4975, 0
        %v5000 = vsel %vm2390, %v4977, 0
        %5002 = vmatprep.subr.bf16.mxu0 0
        %5003 = vmatpush1.bf16.msra.mxu0 %v4952
        %5004 = vmatprep.subr.bf16.mxu0 0
        %5005 = vmatpush1.bf16.msra.mxu0 %v4953
        %5006 = vmatprep.subr.bf16.mxu0 0
        %5007 = vmatpush1.bf16.msra.mxu0 0
        %5008 = vmatprep.subr.bf16.mxu0 0
        %5009 = vmatpush1.bf16.msra.mxu0 0
        %5010 = vmatprep.subr.bf16.mxu0 0
        %5011 = vmatpush1.bf16.msra.mxu0 0
        %5012 = vmatprep.subr.bf16.mxu0 0
        %5013 = vmatpush1.bf16.msra.mxu0 0
        %5014 = vmatprep.subr.bf16.mxu0 0
        %5015 = vmatpush1.bf16.msra.mxu0 0
        %5016 = vmatprep.subr.bf16.mxu0 0
        %5017 = vmatpush1.bf16.msra.mxu0 0
        %5018 = vmatprep.subr.bf16.mxu0 0
        %5019 = vmatpush1.bf16.msra.mxu0 0
        %5020 = vmatprep.subr.bf16.mxu0 0
        %5021 = vmatpush1.bf16.msra.mxu0 0
        %5022 = vmatprep.subr.bf16.mxu0 0
        %5023 = vmatpush1.bf16.msra.mxu0 0
        %5024 = vmatprep.subr.bf16.mxu0 0
        %5025 = vmatpush1.bf16.msra.mxu0 0
        %5026 = vmatprep.subr.bf16.mxu0 0
        %5027 = vmatpush1.bf16.msra.mxu0 0
        %5028 = vmatprep.subr.bf16.mxu0 0
        %5029 = vmatpush1.bf16.msra.mxu0 0
        %5030 = vmatprep.subr.bf16.mxu0 0
        %5031 = vmatpush1.bf16.msra.mxu0 0
        %5032 = vmatprep.subr.bf16.mxu0 0
        %5033 = vmatpush1.bf16.msra.mxu0 0
        %5034 = vmatprep.mubr.bf16.mxu0 0
        %5035 = vmatmul.mubr.bf16.gmra.mrb[0].mxu0 %v4979
        %v5036 = vpop.f32.mrb[0].mxu0
        %v5037 = vadd.f32 %v910, %v5036
        %v5038 = vpop.f32.mrb[0].mxu0
        %v5039 = vpop.f32.mrb[0].mxu0
        %v5040 = vadd.f32 %v911, %v5039
        %v5041 = vpop.f32.mrb[0].mxu0
        %5042 = vmatprep.mubr.bf16.mxu0 0
        %5043 = vmatmul.mubr.bf16.gmra.mrb[0].mxu0 %v4982
        %v5044 = vpop.f32.mrb[0].mxu0
        %v5045 = vadd.f32 %v912, %v5044
        %v5046 = vpop.f32.mrb[0].mxu0
        %v5047 = vpop.f32.mrb[0].mxu0
        %v5048 = vadd.f32 %v913, %v5047
        %v5049 = vpop.f32.mrb[0].mxu0
        %5050 = vmatprep.mubr.bf16.mxu0 0
        %5051 = vmatmul.mubr.bf16.gmra.mrb[0].mxu0 %v4985
        %v5052 = vpop.f32.mrb[0].mxu0
        %v5053 = vadd.f32 %v914, %v5052
        %v5054 = vpop.f32.mrb[0].mxu0
        %v5055 = vpop.f32.mrb[0].mxu0
        %v5056 = vadd.f32 %v915, %v5055
        %v5057 = vpop.f32.mrb[0].mxu0
        %5058 = vmatprep.mubr.bf16.mxu0 0
        %5059 = vmatmul.mubr.bf16.gmra.mrb[0].mxu0 %v4988
        %v5060 = vpop.f32.mrb[0].mxu0
        %v5061 = vadd.f32 %v916, %v5060
        %v5062 = vpop.f32.mrb[0].mxu0
        %v5063 = vpop.f32.mrb[0].mxu0
        %v5064 = vadd.f32 %v917, %v5063
        %v5065 = vpop.f32.mrb[0].mxu0
        %5066 = vmatprep.mubr.bf16.mxu0 0
        %5067 = vmatmul.mubr.bf16.gmra.mrb[0].mxu0 %v4991
        %v5068 = vpop.f32.mrb[0].mxu0
        %v5069 = vadd.f32 %v918, %v5068
        %v5070 = vpop.f32.mrb[0].mxu0
        %v5071 = vpop.f32.mrb[0].mxu0
        %v5072 = vadd.f32 %v919, %v5071
        %v5073 = vpop.f32.mrb[0].mxu0
        %5074 = vmatprep.mubr.bf16.mxu0 0
        %5075 = vmatmul.mubr.bf16.gmra.mrb[0].mxu0 %v4994
        %v5076 = vpop.f32.mrb[0].mxu0
        %v5077 = vadd.f32 %v920, %v5076
        %v5078 = vpop.f32.mrb[0].mxu0
        %v5079 = vpop.f32.mrb[0].mxu0
        %v5080 = vadd.f32 %v921, %v5079
        %v5081 = vpop.f32.mrb[0].mxu0
        %5082 = vmatprep.mubr.bf16.mxu0 0
        %5083 = vmatmul.mubr.bf16.gmra.mrb[0].mxu0 %v4997
        %v5084 = vpop.f32.mrb[0].mxu0
        %v5085 = vadd.f32 %v922, %v5084
        %v5086 = vpop.f32.mrb[0].mxu0
        %v5087 = vpop.f32.mrb[0].mxu0
        %v5088 = vadd.f32 %v923, %v5087
        %v5089 = vpop.f32.mrb[0].mxu0
        %5090 = vmatprep.mubr.bf16.mxu0 0
        %5091 = vmatmul.mubr.bf16.gmra.mrb[0].mxu0 %v5000
        %v5092 = vpop.f32.mrb[0].mxu0
        %v5093 = vadd.f32 %v924, %v5092
        %v5094 = vpop.f32.mrb[0].mxu0
        %v5095 = vpop.f32.mrb[0].mxu0
        %v5096 = vadd.f32 %v925, %v5095
        %v5097 = vpop.f32.mrb[0].mxu0
        %5098 = vdwg.mxu0
        %5099 = vmax.xlane.f32.xlu0 %v5037
        %v5100 = vpop.xlane.xlu0 %5099
        %5101 = vmax.xlane.f32.xlu0 %v5040
        %v5102 = vpop.xlane.xlu0 %5101
        %5103 = vmax.xlane.f32.xlu0 %v5045
        %v5104 = vpop.xlane.xlu0 %5103
        %5105 = vmax.xlane.f32.xlu0 %v5048
        %v5106 = vpop.xlane.xlu0 %5105
        %5107 = vmax.xlane.f32.xlu0 %v5053
        %v5108 = vpop.xlane.xlu0 %5107
        %5109 = vmax.xlane.f32.xlu0 %v5056
        %v5110 = vpop.xlane.xlu0 %5109
        %5111 = vmax.xlane.f32.xlu0 %v5061
        %v5112 = vpop.xlane.xlu0 %5111
        %5113 = vmax.xlane.f32.xlu0 %v5064
        %v5114 = vpop.xlane.xlu0 %5113
        %5115 = vmax.xlane.f32.xlu0 %v5069
        %v5116 = vpop.xlane.xlu0 %5115
        %5117 = vmax.xlane.f32.xlu0 %v5072
        %v5118 = vpop.xlane.xlu0 %5117
        %5119 = vmax.xlane.f32.xlu0 %v5077
        %v5120 = vpop.xlane.xlu0 %5119
        %5121 = vmax.xlane.f32.xlu0 %v5080
        %v5122 = vpop.xlane.xlu0 %5121
        %5123 = vmax.xlane.f32.xlu0 %v5085
        %v5124 = vpop.xlane.xlu0 %5123
        %5125 = vmax.xlane.f32.xlu0 %v5088
        %v5126 = vpop.xlane.xlu0 %5125
        %5127 = vmax.xlane.f32.xlu0 %v5093
        %v5128 = vpop.xlane.xlu0 %5127
        %5129 = vmax.xlane.f32.xlu0 %v5096
        %v5130 = vpop.xlane.xlu0 %5129
        %v5131 = vsub.f32 %v5037, %v5100
        %v5132 = vsub.f32 %v5040, %v5102
        %v5133 = vsub.f32 %v5045, %v5104
        %v5134 = vsub.f32 %v5048, %v5106
        %v5135 = vsub.f32 %v5053, %v5108
        %v5136 = vsub.f32 %v5056, %v5110
        %v5137 = vsub.f32 %v5061, %v5112
        %v5138 = vsub.f32 %v5064, %v5114
        %v5139 = vsub.f32 %v5069, %v5116
        %v5140 = vsub.f32 %v5072, %v5118
        %v5141 = vsub.f32 %v5077, %v5120
        %v5142 = vsub.f32 %v5080, %v5122
        %v5143 = vsub.f32 %v5085, %v5124
        %v5144 = vsub.f32 %v5088, %v5126
        %v5145 = vsub.f32 %v5093, %v5128
        %v5146 = vsub.f32 %v5096, %v5130
        %v5147 = vmul.f32 %v5131, 1.442695
        %v5148 = vpow.pop %v5147
        %v5149 = vmul.f32 %v5132, 1.442695
        %v5150 = vpow.pop %v5149
        %v5151 = vmul.f32 %v5133, 1.442695
        %v5152 = vpow.pop %v5151
        %v5153 = vmul.f32 %v5134, 1.442695
        %v5154 = vpow.pop %v5153
        %v5155 = vmul.f32 %v5135, 1.442695
        %v5156 = vpow.pop %v5155
        %v5157 = vmul.f32 %v5136, 1.442695
        %v5158 = vpow.pop %v5157
        %v5159 = vmul.f32 %v5137, 1.442695
        %v5160 = vpow.pop %v5159
        %v5161 = vmul.f32 %v5138, 1.442695
        %v5162 = vpow.pop %v5161
        %v5163 = vmul.f32 %v5139, 1.442695
        %v5164 = vpow.pop %v5163
        %v5165 = vmul.f32 %v5140, 1.442695
        %v5166 = vpow.pop %v5165
        %v5167 = vmul.f32 %v5141, 1.442695
        %v5168 = vpow.pop %v5167
        %v5169 = vmul.f32 %v5142, 1.442695
        %v5170 = vpow.pop %v5169
        %v5171 = vmul.f32 %v5143, 1.442695
        %v5172 = vpow.pop %v5171
        %v5173 = vmul.f32 %v5144, 1.442695
        %v5174 = vpow.pop %v5173
        %v5175 = vmul.f32 %v5145, 1.442695
        %v5176 = vpow.pop %v5175
        %v5177 = vmul.f32 %v5146, 1.442695
        %v5178 = vpow.pop %v5177
        %5179 = vadd.xlane.f32.xlu0 %v5148
        %v5180 = vpop.xlane.xlu0 %5179
        %5181 = vadd.xlane.f32.xlu0 %v5150
        %v5182 = vpop.xlane.xlu0 %5181
        %5183 = vadd.xlane.f32.xlu0 %v5152
        %v5184 = vpop.xlane.xlu0 %5183
        %5185 = vadd.xlane.f32.xlu0 %v5154
        %v5186 = vpop.xlane.xlu0 %5185
        %5187 = vadd.xlane.f32.xlu0 %v5156
        %v5188 = vpop.xlane.xlu0 %5187
        %5189 = vadd.xlane.f32.xlu0 %v5158
        %v5190 = vpop.xlane.xlu0 %5189
        %5191 = vadd.xlane.f32.xlu0 %v5160
        %v5192 = vpop.xlane.xlu0 %5191
        %5193 = vadd.xlane.f32.xlu0 %v5162
        %v5194 = vpop.xlane.xlu0 %5193
        %5195 = vadd.xlane.f32.xlu0 %v5164
        %v5196 = vpop.xlane.xlu0 %5195
        %5197 = vadd.xlane.f32.xlu0 %v5166
        %v5198 = vpop.xlane.xlu0 %5197
        %5199 = vadd.xlane.f32.xlu0 %v5168
        %v5200 = vpop.xlane.xlu0 %5199
        %5201 = vadd.xlane.f32.xlu0 %v5170
        %v5202 = vpop.xlane.xlu0 %5201
        %5203 = vadd.xlane.f32.xlu0 %v5172
        %v5204 = vpop.xlane.xlu0 %5203
        %5205 = vadd.xlane.f32.xlu0 %v5174
        %v5206 = vpop.xlane.xlu0 %5205
        %5207 = vadd.xlane.f32.xlu0 %v5176
        %v5208 = vpop.xlane.xlu0 %5207
        %5209 = vadd.xlane.f32.xlu0 %v5178
        %v5210 = vpop.xlane.xlu0 %5209
        %v5211 = vrcp.pop %v5180
        %v5212 = vrcp.pop %v5182
        %v5213 = vrcp.pop %v5184
        %v5214 = vrcp.pop %v5186
        %v5215 = vrcp.pop %v5188
        %v5216 = vrcp.pop %v5190
        %v5217 = vrcp.pop %v5192
        %v5218 = vrcp.pop %v5194
        %v5219 = vrcp.pop %v5196
        %v5220 = vrcp.pop %v5198
        %v5221 = vrcp.pop %v5200
        %v5222 = vrcp.pop %v5202
        %v5223 = vrcp.pop %v5204
        %v5224 = vrcp.pop %v5206
        %v5225 = vrcp.pop %v5208
        %v5226 = vrcp.pop %v5210
        %v5227 = vpack.c.bf16 %v5150, %v5148
        %v5228 = vpack.c.bf16 %v5154, %v5152
        %v5229 = vpack.c.bf16 %v5158, %v5156
        %v5230 = vpack.c.bf16 %v5162, %v5160
        %v5231 = vpack.c.bf16 %v5166, %v5164
        %v5232 = vpack.c.bf16 %v5170, %v5168
        %v5233 = vpack.c.bf16 %v5174, %v5172
        %v5234 = vpack.c.bf16 %v5178, %v5176
        %v5235 = vpack.c.bf16 %v4929, %v4928
        %v5236 = vpack.c.bf16 %v4931, %v4930
        %v5237 = vpack.c.bf16 %v4933, %v4932
        %v5238 = vpack.c.bf16 %v4935, %v4934
        %v5239 = vpack.c.bf16 %v4937, %v4936
        %v5240 = vpack.c.bf16 %v4939, %v4938
        %v5241 = vpack.c.bf16 %v4941, %v4940
        %v5242 = vpack.c.bf16 %v4943, %v4942
        %5251 = vrot.lane.b32.xlu0 %v5235, 96
        %v5252 = vpop.permute.xlu0 %5251
        %5253 = vrot.lane.b32.xlu0 %v5236, 96
        %v5254 = vpop.permute.xlu0 %5253
        %5255 = vrot.lane.b32.xlu0 %v5237, 96
        %v5256 = vpop.permute.xlu0 %5255
        %5257 = vrot.lane.b32.xlu0 %v5238, 96
        %v5258 = vpop.permute.xlu0 %5257
        %5259 = vrot.lane.b32.xlu0 %v5239, 96
        %v5260 = vpop.permute.xlu0 %5259
        %5261 = vrot.lane.b32.xlu0 %v5240, 96
        %v5262 = vpop.permute.xlu0 %5261
        %5263 = vrot.lane.b32.xlu0 %v5241, 96
        %v5264 = vpop.permute.xlu0 %5263
        %5265 = vrot.lane.b32.xlu0 %v5242, 96
        %v5266 = vpop.permute.xlu0 %5265
        %5275 = vmatprep.subr.bf16.mxu0 0
        %5276 = vmatpush1.bf16.msra.mxu0 %v5252
        %5277 = vmatprep.subr.bf16.mxu0 0
        %5278 = vmatpush1.bf16.msra.mxu0 %v5254
        %5279 = vmatprep.subr.bf16.mxu0 0
        %5280 = vmatpush1.bf16.msra.mxu0 %v5256
        %5281 = vmatprep.subr.bf16.mxu0 0
        %5282 = vmatpush1.bf16.msra.mxu0 %v5258
        %5283 = vmatprep.subr.bf16.mxu0 0
        %5284 = vmatpush1.bf16.msra.mxu0 %v5260
        %5285 = vmatprep.subr.bf16.mxu0 0
        %5286 = vmatpush1.bf16.msra.mxu0 %v5262
        %5287 = vmatprep.subr.bf16.mxu0 0
        %5288 = vmatpush1.bf16.msra.mxu0 %v5264
        %5289 = vmatprep.subr.bf16.mxu0 0
        %5290 = vmatpush1.bf16.msra.mxu0 %v5266
        %5291 = vmatprep.subr.bf16.mxu0 0
        %5292 = vmatpush1.bf16.msra.mxu0 0
        %5293 = vmatprep.subr.bf16.mxu0 0
        %5294 = vmatpush1.bf16.msra.mxu0 0
        %5295 = vmatprep.subr.bf16.mxu0 0
        %5296 = vmatpush1.bf16.msra.mxu0 0
        %5297 = vmatprep.subr.bf16.mxu0 0
        %5298 = vmatpush1.bf16.msra.mxu0 0
        %5299 = vmatprep.subr.bf16.mxu0 0
        %5300 = vmatpush1.bf16.msra.mxu0 0
        %5301 = vmatprep.subr.bf16.mxu0 0
        %5302 = vmatpush1.bf16.msra.mxu0 0
        %5303 = vmatprep.subr.bf16.mxu0 0
        %5304 = vmatpush1.bf16.msra.mxu0 0
        %5305 = vmatprep.subr.bf16.mxu0 0
        %5306 = vmatpush1.bf16.msra.mxu0 0
        %5307 = vmatprep.mubr.bf16.mxu0 0
        %5308 = vmatmul.mubr.bf16.gmra.mrb[0].mxu0 %v5227
        %v5309 = vpop.f32.mrb[0].mxu0
        %v5310 = vadd.f32 0.0, %v5309
        %v5311 = vpop.f32.mrb[0].mxu0
        %v5312 = vpop.f32.mrb[0].mxu0
        %v5313 = vadd.f32 0.0, %v5312
        %v5314 = vpop.f32.mrb[0].mxu0
        %5315 = vmatprep.mubr.bf16.mxu0 0
        %5316 = vmatmul.mubr.bf16.gmra.mrb[0].mxu0 %v5228
        %v5317 = vpop.f32.mrb[0].mxu0
        %v5318 = vadd.f32 0.0, %v5317
        %v5319 = vpop.f32.mrb[0].mxu0
        %v5320 = vpop.f32.mrb[0].mxu0
        %v5321 = vadd.f32 0.0, %v5320
        %v5322 = vpop.f32.mrb[0].mxu0
        %5323 = vmatprep.mubr.bf16.mxu0 0
        %5324 = vmatmul.mubr.bf16.gmra.mrb[0].mxu0 %v5229
        %v5325 = vpop.f32.mrb[0].mxu0
        %v5326 = vadd.f32 0.0, %v5325
        %v5327 = vpop.f32.mrb[0].mxu0
        %v5328 = vpop.f32.mrb[0].mxu0
        %v5329 = vadd.f32 0.0, %v5328
        %v5330 = vpop.f32.mrb[0].mxu0
        %5331 = vmatprep.mubr.bf16.mxu0 0
        %5332 = vmatmul.mubr.bf16.gmra.mrb[0].mxu0 %v5230
        %v5333 = vpop.f32.mrb[0].mxu0
        %v5334 = vadd.f32 0.0, %v5333
        %v5335 = vpop.f32.mrb[0].mxu0
        %v5336 = vpop.f32.mrb[0].mxu0
        %v5337 = vadd.f32 0.0, %v5336
        %v5338 = vpop.f32.mrb[0].mxu0
        %5339 = vmatprep.mubr.bf16.mxu0 0
        %5340 = vmatmul.mubr.bf16.gmra.mrb[0].mxu0 %v5231
        %v5341 = vpop.f32.mrb[0].mxu0
        %v5342 = vadd.f32 0.0, %v5341
        %v5343 = vpop.f32.mrb[0].mxu0
        %v5344 = vpop.f32.mrb[0].mxu0
        %v5345 = vadd.f32 0.0, %v5344
        %v5346 = vpop.f32.mrb[0].mxu0
        %5347 = vmatprep.mubr.bf16.mxu0 0
        %5348 = vmatmul.mubr.bf16.gmra.mrb[0].mxu0 %v5232
        %v5349 = vpop.f32.mrb[0].mxu0
        %v5350 = vadd.f32 0.0, %v5349
        %v5351 = vpop.f32.mrb[0].mxu0
        %v5352 = vpop.f32.mrb[0].mxu0
        %v5353 = vadd.f32 0.0, %v5352
        %v5354 = vpop.f32.mrb[0].mxu0
        %5355 = vmatprep.mubr.bf16.mxu0 0
        %5356 = vmatmul.mubr.bf16.gmra.mrb[0].mxu0 %v5233
        %v5357 = vpop.f32.mrb[0].mxu0
        %v5358 = vadd.f32 0.0, %v5357
        %v5359 = vpop.f32.mrb[0].mxu0
        %v5360 = vpop.f32.mrb[0].mxu0
        %v5361 = vadd.f32 0.0, %v5360
        %v5362 = vpop.f32.mrb[0].mxu0
        %5363 = vmatprep.mubr.bf16.mxu0 0
        %5364 = vmatmul.mubr.bf16.gmra.mrb[0].mxu0 %v5234
        %v5365 = vpop.f32.mrb[0].mxu0
        %v5366 = vadd.f32 0.0, %v5365
        %v5367 = vpop.f32.mrb[0].mxu0
        %v5368 = vpop.f32.mrb[0].mxu0
        %v5369 = vadd.f32 0.0, %v5368
        %v5370 = vpop.f32.mrb[0].mxu0
        %5371 = vdwg.mxu0
        %v5372 = vmul.f32 %v5310, %v5211
        %v5373 = vmul.f32 %v5313, %v5212
        %v5374 = vmul.f32 %v5318, %v5213
        %v5375 = vmul.f32 %v5321, %v5214
        %v5376 = vmul.f32 %v5326, %v5215
        %v5377 = vmul.f32 %v5329, %v5216
        %v5378 = vmul.f32 %v5334, %v5217
        %v5379 = vmul.f32 %v5337, %v5218
        %v5380 = vmul.f32 %v5342, %v5219
        %v5381 = vmul.f32 %v5345, %v5220
        %v5382 = vmul.f32 %v5350, %v5221
        %v5383 = vmul.f32 %v5353, %v5222
        %v5384 = vmul.f32 %v5358, %v5223
        %v5385 = vmul.f32 %v5361, %v5224
        %v5386 = vmul.f32 %v5366, %v5225
        %v5387 = vmul.f32 %v5369, %v5226
        %5404 = vrot.lane.b32.xlu0 %v5372, 32
        %v5405 = vpop.permute.xlu0 %5404
        %5406 = vrot.lane.b32.xlu0 %v5373, 32
        %v5407 = vpop.permute.xlu0 %5406
        %5408 = vrot.lane.b32.xlu0 %v5374, 32
        %v5409 = vpop.permute.xlu0 %5408
        %5410 = vrot.lane.b32.xlu0 %v5375, 32
        %v5411 = vpop.permute.xlu0 %5410
        %5412 = vrot.lane.b32.xlu0 %v5376, 32
        %v5413 = vpop.permute.xlu0 %5412
        %5414 = vrot.lane.b32.xlu0 %v5377, 32
        %v5415 = vpop.permute.xlu0 %5414
        %5416 = vrot.lane.b32.xlu0 %v5378, 32
        %v5417 = vpop.permute.xlu0 %5416
        %5418 = vrot.lane.b32.xlu0 %v5379, 32
        %v5419 = vpop.permute.xlu0 %5418
        %5420 = vrot.lane.b32.xlu0 %v5380, 32
        %v5421 = vpop.permute.xlu0 %5420
        %5422 = vrot.lane.b32.xlu0 %v5381, 32
        %v5423 = vpop.permute.xlu0 %5422
        %5424 = vrot.lane.b32.xlu0 %v5382, 32
        %v5425 = vpop.permute.xlu0 %5424
        %5426 = vrot.lane.b32.xlu0 %v5383, 32
        %v5427 = vpop.permute.xlu0 %5426
        %5428 = vrot.lane.b32.xlu0 %v5384, 32
        %v5429 = vpop.permute.xlu0 %5428
        %5430 = vrot.lane.b32.xlu0 %v5385, 32
        %v5431 = vpop.permute.xlu0 %5430
        %5432 = vrot.lane.b32.xlu0 %v5386, 32
        %v5433 = vpop.permute.xlu0 %5432
        %5434 = vrot.lane.b32.xlu0 %v5387, 32
        %v5435 = vpop.permute.xlu0 %5434
        %5452 = vst.msk [vmem:[#allocation5 + $0x8] sm:$0xff] %vm3329, %v5405
        %5453 = vst.msk [vmem:[#allocation5 + $0x18] sm:$0xff] %vm3329, %v5407
        %5454 = vst.msk [vmem:[#allocation5 + $0x28] sm:$0xff] %vm3329, %v5409
        %5455 = vst.msk [vmem:[#allocation5 + $0x38] sm:$0xff] %vm3329, %v5411
        %5456 = vst.msk [vmem:[#allocation5 + $0x48] sm:$0xff] %vm3329, %v5413
        %5457 = vst.msk [vmem:[#allocation5 + $0x58] sm:$0xff] %vm3329, %v5415
        %5458 = vst.msk [vmem:[#allocation5 + $0x68] sm:$0xff] %vm3329, %v5417
        %5459 = vst.msk [vmem:[#allocation5 + $0x78] sm:$0xff] %vm3329, %v5419
        %5460 = vst.msk [vmem:[#allocation5 + $0x88] sm:$0xff] %vm3329, %v5421
        %5461 = vst.msk [vmem:[#allocation5 + $0x98] sm:$0xff] %vm3329, %v5423
        %5462 = vst.msk [vmem:[#allocation5 + $0xa8] sm:$0xff] %vm3329, %v5425
        %5463 = vst.msk [vmem:[#allocation5 + $0xb8] sm:$0xff] %vm3329, %v5427
        %5464 = vst.msk [vmem:[#allocation5 + $0xc8] sm:$0xff] %vm3329, %v5429
        %5465 = vst.msk [vmem:[#allocation5 + $0xd8] sm:$0xff] %vm3329, %v5431
        %5466 = vst.msk [vmem:[#allocation5 + $0xe8] sm:$0xff] %vm3329, %v5433
        %5467 = vst.msk [vmem:[#allocation5 + $0xf8] sm:$0xff] %vm3329, %v5435
        %v5468 = vld [vmem:[#allocation5] sm:$0xff]
        %v5469 = vld [vmem:[#allocation5 + $0x8] sm:$0xff]
        %v5470 = vld [vmem:[#allocation5 + $0x10] sm:$0xff]
        %v5471 = vld [vmem:[#allocation5 + $0x18] sm:$0xff]
        %v5472 = vld [vmem:[#allocation5 + $0x20] sm:$0xff]
        %v5473 = vld [vmem:[#allocation5 + $0x28] sm:$0xff]
        %v5474 = vld [vmem:[#allocation5 + $0x30] sm:$0xff]
        %v5475 = vld [vmem:[#allocation5 + $0x38] sm:$0xff]
        %v5476 = vld [vmem:[#allocation5 + $0x40] sm:$0xff]
        %v5477 = vld [vmem:[#allocation5 + $0x48] sm:$0xff]
        %v5478 = vld [vmem:[#allocation5 + $0x50] sm:$0xff]
        %v5479 = vld [vmem:[#allocation5 + $0x58] sm:$0xff]
        %v5480 = vld [vmem:[#allocation5 + $0x60] sm:$0xff]
        %v5481 = vld [vmem:[#allocation5 + $0x68] sm:$0xff]
        %v5482 = vld [vmem:[#allocation5 + $0x70] sm:$0xff]
        %v5483 = vld [vmem:[#allocation5 + $0x78] sm:$0xff]
        %v5484 = vld [vmem:[#allocation5 + $0x80] sm:$0xff]
        %v5485 = vld [vmem:[#allocation5 + $0x88] sm:$0xff]
        %v5486 = vld [vmem:[#allocation5 + $0x90] sm:$0xff]
        %v5487 = vld [vmem:[#allocation5 + $0x98] sm:$0xff]
        %v5488 = vld [vmem:[#allocation5 + $0xa0] sm:$0xff]
        %v5489 = vld [vmem:[#allocation5 + $0xa8] sm:$0xff]
        %v5490 = vld [vmem:[#allocation5 + $0xb0] sm:$0xff]
        %v5491 = vld [vmem:[#allocation5 + $0xb8] sm:$0xff]
        %v5492 = vld [vmem:[#allocation5 + $0xc0] sm:$0xff]
        %v5493 = vld [vmem:[#allocation5 + $0xc8] sm:$0xff]
        %v5494 = vld [vmem:[#allocation5 + $0xd0] sm:$0xff]
        %v5495 = vld [vmem:[#allocation5 + $0xd8] sm:$0xff]
        %v5496 = vld [vmem:[#allocation5 + $0xe0] sm:$0xff]
        %v5497 = vld [vmem:[#allocation5 + $0xe8] sm:$0xff]
        %v5498 = vld [vmem:[#allocation5 + $0xf0] sm:$0xff]
        %v5499 = vld [vmem:[#allocation5 + $0xf8] sm:$0xff]
        %v5500 = vpack.c.bf16 %v5470, %v5468
        %v5501 = vpack.c.bf16 %v5471, %v5469
        %v5502 = vpack.c.bf16 %v5474, %v5472
        %v5503 = vpack.c.bf16 %v5475, %v5473
        %v5504 = vpack.c.bf16 %v5478, %v5476
        %v5505 = vpack.c.bf16 %v5479, %v5477
        %v5506 = vpack.c.bf16 %v5482, %v5480
        %v5507 = vpack.c.bf16 %v5483, %v5481
        %v5508 = vpack.c.bf16 %v5486, %v5484
        %v5509 = vpack.c.bf16 %v5487, %v5485
        %v5510 = vpack.c.bf16 %v5490, %v5488
        %v5511 = vpack.c.bf16 %v5491, %v5489
        %v5512 = vpack.c.bf16 %v5494, %v5492
        %v5513 = vpack.c.bf16 %v5495, %v5493
        %v5514 = vpack.c.bf16 %v5498, %v5496
        %v5515 = vpack.c.bf16 %v5499, %v5497
        %v5516 = vld [vmem:[%s776] sm:$0xff]
        %v5517 = vld [vmem:[%s776 + $0x8] sm:$0xff]
        %v5518 = vld [vmem:[%s776 + $0x10] sm:$0xff]
        %v5519 = vld [vmem:[%s776 + $0x18] sm:$0xff]
        %v5520 = vld [vmem:[%s776 + $0x20] sm:$0xff]
        %v5521 = vld [vmem:[%s776 + $0x28] sm:$0xff]
        %v5522 = vld [vmem:[%s776 + $0x30] sm:$0xff]
        %v5523 = vld [vmem:[%s776 + $0x38] sm:$0xff]
        %v5524 = vld [vmem:[%s776 + $0x40] sm:$0xff]
        %v5525 = vld [vmem:[%s776 + $0x48] sm:$0xff]
        %v5526 = vld [vmem:[%s776 + $0x50] sm:$0xff]
        %v5527 = vld [vmem:[%s776 + $0x58] sm:$0xff]
        %v5528 = vld [vmem:[%s776 + $0x60] sm:$0xff]
        %v5529 = vld [vmem:[%s776 + $0x68] sm:$0xff]
        %v5530 = vld [vmem:[%s776 + $0x70] sm:$0xff]
        %v5531 = vld [vmem:[%s776 + $0x78] sm:$0xff]
        %v5532 = vld [vmem:[%s776 + $0x80] sm:$0xff]
        %v5533 = vld [vmem:[%s776 + $0x88] sm:$0xff]
        %v5534 = vld [vmem:[%s776 + $0x90] sm:$0xff]
        %v5535 = vld [vmem:[%s776 + $0x98] sm:$0xff]
        %v5536 = vld [vmem:[%s776 + $0xa0] sm:$0xff]
        %v5537 = vld [vmem:[%s776 + $0xa8] sm:$0xff]
        %v5538 = vld [vmem:[%s776 + $0xb0] sm:$0xff]
        %v5539 = vld [vmem:[%s776 + $0xb8] sm:$0xff]
        %v5540 = vld [vmem:[%s780] sm:$0x3]
        %v5542 = vlaneseq
        %v5543 = vshrl.u32 %v5542, 7
        %v5544 = vsub.s32 0, %v5543
        %v5545 = vrot.slane %v5540, %v5544
        %v5546 = vlaneseq
        %v5547 = vshrl.u32 %v5546, 7
        %v5548 = vsub.s32 1, %v5547
        %v5549 = vrot.slane %v5540, %v5548
        %v5576 = vunpack.c.l.b16 %v5516
        %v5577 = vunpack.c.h.b16 %v5516
        %v5578 = vunpack.c.l.b16 %v5517
        %v5579 = vunpack.c.h.b16 %v5517
        %v5580 = vunpack.c.l.b16 %v5518
        %v5581 = vunpack.c.h.b16 %v5518
        %v5582 = vunpack.c.l.b16 %v5519
        %v5583 = vunpack.c.h.b16 %v5519
        %v5584 = vunpack.c.l.b16 %v5520
        %v5585 = vunpack.c.h.b16 %v5520
        %v5586 = vunpack.c.l.b16 %v5521
        %v5587 = vunpack.c.h.b16 %v5521
        %v5588 = vunpack.c.l.b16 %v5522
        %v5589 = vunpack.c.h.b16 %v5522
        %v5590 = vunpack.c.l.b16 %v5523
        %v5591 = vunpack.c.h.b16 %v5523
        %v5592 = vunpack.c.l.b16 %v5524
        %v5593 = vunpack.c.h.b16 %v5524
        %v5594 = vunpack.c.l.b16 %v5525
        %v5595 = vunpack.c.h.b16 %v5525
        %v5596 = vunpack.c.l.b16 %v5526
        %v5597 = vunpack.c.h.b16 %v5526
        %v5598 = vunpack.c.l.b16 %v5527
        %v5599 = vunpack.c.h.b16 %v5527
        %v5600 = vunpack.c.l.b16 %v5528
        %v5601 = vunpack.c.h.b16 %v5528
        %v5602 = vunpack.c.l.b16 %v5529
        %v5603 = vunpack.c.h.b16 %v5529
        %v5604 = vunpack.c.l.b16 %v5530
        %v5605 = vunpack.c.h.b16 %v5530
        %v5606 = vunpack.c.l.b16 %v5531
        %v5607 = vunpack.c.h.b16 %v5531
        %v5608 = vunpack.c.l.b16 %v5532
        %v5609 = vunpack.c.h.b16 %v5532
        %v5610 = vunpack.c.l.b16 %v5533
        %v5611 = vunpack.c.h.b16 %v5533
        %v5612 = vunpack.c.l.b16 %v5534
        %v5613 = vunpack.c.h.b16 %v5534
        %v5614 = vunpack.c.l.b16 %v5535
        %v5615 = vunpack.c.h.b16 %v5535
        %v5616 = vunpack.c.l.b16 %v5536
        %v5617 = vunpack.c.h.b16 %v5536
        %v5618 = vunpack.c.l.b16 %v5537
        %v5619 = vunpack.c.h.b16 %v5537
        %v5620 = vunpack.c.l.b16 %v5538
        %v5621 = vunpack.c.h.b16 %v5538
        %v5622 = vunpack.c.l.b16 %v5539
        %v5623 = vunpack.c.h.b16 %v5539
        %v5624 = vpack.c.b16 %v5578, %v5576
        %v5625 = vpack.c.b16 %v5579, %v5577
        %v5626 = vpack.c.b16 %v5582, %v5580
        %v5627 = vpack.c.b16 %v5583, %v5581
        %v5628 = vpack.c.b16 %v5586, %v5584
        %v5629 = vpack.c.b16 %v5587, %v5585
        %v5630 = vpack.c.b16 %v5590, %v5588
        %v5631 = vpack.c.b16 %v5591, %v5589
        %v5632 = vpack.c.b16 %v5594, %v5592
        %v5633 = vpack.c.b16 %v5595, %v5593
        %v5634 = vpack.c.b16 %v5598, %v5596
        %v5635 = vpack.c.b16 %v5599, %v5597
        %v5636 = vpack.c.b16 %v5602, %v5600
        %v5637 = vpack.c.b16 %v5603, %v5601
        %v5638 = vpack.c.b16 %v5606, %v5604
        %v5639 = vpack.c.b16 %v5607, %v5605
        %v5640 = vpack.c.b16 %v5610, %v5608
        %v5641 = vpack.c.b16 %v5611, %v5609
        %v5642 = vpack.c.b16 %v5614, %v5612
        %v5643 = vpack.c.b16 %v5615, %v5613
        %v5644 = vpack.c.b16 %v5618, %v5616
        %v5645 = vpack.c.b16 %v5619, %v5617
        %v5646 = vpack.c.b16 %v5622, %v5620
        %v5647 = vpack.c.b16 %v5623, %v5621
        %vm5672 = vcmask 523264
        %v5674 = vsel %vm5672, %v5501, 0
        %v5677 = vsel %vm5672, %v5503, 0
        %v5680 = vsel %vm5672, %v5505, 0
        %v5683 = vsel %vm5672, %v5507, 0
        %v5686 = vsel %vm5672, %v5509, 0
        %v5689 = vsel %vm5672, %v5511, 0
        %v5692 = vsel %vm5672, %v5513, 0
        %v5695 = vsel %vm5672, %v5515, 0
        %5697 = vmatprep.subr.bf16.mxu0 %v5625
        %5698 = vmatpush1.bf16.msra.mxu0 %v5624
        %5699 = vmatprep.subr.bf16.mxu0 %v5627
        %5700 = vmatpush1.bf16.msra.mxu0 %v5626
        %5701 = vmatprep.subr.bf16.mxu0 %v5629
        %5702 = vmatpush1.bf16.msra.mxu0 %v5628
        %5703 = vmatprep.subr.bf16.mxu0 %v5631
        %5704 = vmatpush1.bf16.msra.mxu0 %v5630
        %5705 = vmatprep.subr.bf16.mxu0 %v5633
        %5706 = vmatpush1.bf16.msra.mxu0 %v5632
        %5707 = vmatprep.subr.bf16.mxu0 %v5635
        %5708 = vmatpush1.bf16.msra.mxu0 %v5634
        %5709 = vmatprep.subr.bf16.mxu0 %v5637
        %5710 = vmatpush1.bf16.msra.mxu0 %v5636
        %5711 = vmatprep.subr.bf16.mxu0 %v5639
        %5712 = vmatpush1.bf16.msra.mxu0 %v5638
        %5713 = vmatprep.subr.bf16.mxu0 %v5641
        %5714 = vmatpush1.bf16.msra.mxu0 %v5640
        %5715 = vmatprep.subr.bf16.mxu0 %v5643
        %5716 = vmatpush1.bf16.msra.mxu0 %v5642
        %5717 = vmatprep.subr.bf16.mxu0 %v5645
        %5718 = vmatpush1.bf16.msra.mxu0 %v5644
        %5719 = vmatprep.subr.bf16.mxu0 %v5647
        %5720 = vmatpush1.bf16.msra.mxu0 %v5646
        %5721 = vmatprep.subr.bf16.mxu0 0
        %5722 = vmatpush1.bf16.msra.mxu0 0
        %5723 = vmatprep.subr.bf16.mxu0 0
        %5724 = vmatpush1.bf16.msra.mxu0 0
        %5725 = vmatprep.subr.bf16.mxu0 0
        %5726 = vmatpush1.bf16.msra.mxu0 0
        %5727 = vmatprep.subr.bf16.mxu0 0
        %5728 = vmatpush1.bf16.msra.mxu0 0
        %5729 = vmatprep.mubr.bf16.mxu0 %v5674
        %5730 = vmatmul.mubr.bf16.gmra.mrb[0].mxu0 %v5500
        %v5731 = vpop.f32.mrb[0].mxu0
        %v5732 = vadd.f32 %v5545, %v5731
        %v5733 = vpop.f32.mrb[0].mxu0
        %v5734 = vadd.f32 %v5549, %v5733
        %v5735 = vpop.f32.mrb[0].mxu0
        %v5736 = vadd.f32 %v5545, %v5735
        %v5737 = vpop.f32.mrb[0].mxu0
        %v5738 = vadd.f32 %v5549, %v5737
        %5739 = vmatprep.mubr.bf16.mxu0 %v5677
        %5740 = vmatmul.mubr.bf16.gmra.mrb[0].mxu0 %v5502
        %v5741 = vpop.f32.mrb[0].mxu0
        %v5742 = vadd.f32 %v5545, %v5741
        %v5743 = vpop.f32.mrb[0].mxu0
        %v5744 = vadd.f32 %v5549, %v5743
        %v5745 = vpop.f32.mrb[0].mxu0
        %v5746 = vadd.f32 %v5545, %v5745
        %v5747 = vpop.f32.mrb[0].mxu0
        %v5748 = vadd.f32 %v5549, %v5747
        %5749 = vmatprep.mubr.bf16.mxu0 %v5680
        %5750 = vmatmul.mubr.bf16.gmra.mrb[0].mxu0 %v5504
        %v5751 = vpop.f32.mrb[0].mxu0
        %v5752 = vadd.f32 %v5545, %v5751
        %v5753 = vpop.f32.mrb[0].mxu0
        %v5754 = vadd.f32 %v5549, %v5753
        %v5755 = vpop.f32.mrb[0].mxu0
        %v5756 = vadd.f32 %v5545, %v5755
        %v5757 = vpop.f32.mrb[0].mxu0
        %v5758 = vadd.f32 %v5549, %v5757
        %5759 = vmatprep.mubr.bf16.mxu0 %v5683
        %5760 = vmatmul.mubr.bf16.gmra.mrb[0].mxu0 %v5506
        %v5761 = vpop.f32.mrb[0].mxu0
        %v5762 = vadd.f32 %v5545, %v5761
        %v5763 = vpop.f32.mrb[0].mxu0
        %v5764 = vadd.f32 %v5549, %v5763
        %v5765 = vpop.f32.mrb[0].mxu0
        %v5766 = vadd.f32 %v5545, %v5765
        %v5767 = vpop.f32.mrb[0].mxu0
        %v5768 = vadd.f32 %v5549, %v5767
        %5769 = vmatprep.mubr.bf16.mxu0 %v5686
        %5770 = vmatmul.mubr.bf16.gmra.mrb[0].mxu0 %v5508
        %v5771 = vpop.f32.mrb[0].mxu0
        %v5772 = vadd.f32 %v5545, %v5771
        %v5773 = vpop.f32.mrb[0].mxu0
        %v5774 = vadd.f32 %v5549, %v5773
        %v5775 = vpop.f32.mrb[0].mxu0
        %v5776 = vadd.f32 %v5545, %v5775
        %v5777 = vpop.f32.mrb[0].mxu0
        %v5778 = vadd.f32 %v5549, %v5777
        %5779 = vmatprep.mubr.bf16.mxu0 %v5689
        %5780 = vmatmul.mubr.bf16.gmra.mrb[0].mxu0 %v5510
        %v5781 = vpop.f32.mrb[0].mxu0
        %v5782 = vadd.f32 %v5545, %v5781
        %v5783 = vpop.f32.mrb[0].mxu0
        %v5784 = vadd.f32 %v5549, %v5783
        %v5785 = vpop.f32.mrb[0].mxu0
        %v5786 = vadd.f32 %v5545, %v5785
        %v5787 = vpop.f32.mrb[0].mxu0
        %v5788 = vadd.f32 %v5549, %v5787
        %5789 = vmatprep.mubr.bf16.mxu0 %v5692
        %5790 = vmatmul.mubr.bf16.gmra.mrb[0].mxu0 %v5512
        %v5791 = vpop.f32.mrb[0].mxu0
        %v5792 = vadd.f32 %v5545, %v5791
        %v5793 = vpop.f32.mrb[0].mxu0
        %v5794 = vadd.f32 %v5549, %v5793
        %v5795 = vpop.f32.mrb[0].mxu0
        %v5796 = vadd.f32 %v5545, %v5795
        %v5797 = vpop.f32.mrb[0].mxu0
        %v5798 = vadd.f32 %v5549, %v5797
        %5799 = vmatprep.mubr.bf16.mxu0 %v5695
        %5800 = vmatmul.mubr.bf16.gmra.mrb[0].mxu0 %v5514
        %v5801 = vpop.f32.mrb[0].mxu0
        %v5802 = vadd.f32 %v5545, %v5801
        %v5803 = vpop.f32.mrb[0].mxu0
        %v5804 = vadd.f32 %v5549, %v5803
        %v5805 = vpop.f32.mrb[0].mxu0
        %v5806 = vadd.f32 %v5545, %v5805
        %v5807 = vpop.f32.mrb[0].mxu0
        %v5808 = vadd.f32 %v5549, %v5807
        %5809 = vdwg.mxu0
        %v5810 = vadd.f32 %v878, %v5732
        %v5811 = vadd.f32 %v879, %v5734
        %v5812 = vadd.f32 %v880, %v5736
        %v5813 = vadd.f32 %v881, %v5738
        %v5814 = vadd.f32 %v882, %v5742
        %v5815 = vadd.f32 %v883, %v5744
        %v5816 = vadd.f32 %v884, %v5746
        %v5817 = vadd.f32 %v885, %v5748
        %v5818 = vadd.f32 %v886, %v5752
        %v5819 = vadd.f32 %v887, %v5754
        %v5820 = vadd.f32 %v888, %v5756
        %v5821 = vadd.f32 %v889, %v5758
        %v5822 = vadd.f32 %v890, %v5762
        %v5823 = vadd.f32 %v891, %v5764
        %v5824 = vadd.f32 %v892, %v5766
        %v5825 = vadd.f32 %v893, %v5768
        %v5826 = vadd.f32 %v894, %v5772
        %v5827 = vadd.f32 %v895, %v5774
        %v5828 = vadd.f32 %v896, %v5776
        %v5829 = vadd.f32 %v897, %v5778
        %v5830 = vadd.f32 %v898, %v5782
        %v5831 = vadd.f32 %v899, %v5784
        %v5832 = vadd.f32 %v900, %v5786
        %v5833 = vadd.f32 %v901, %v5788
        %v5834 = vadd.f32 %v902, %v5792
        %v5835 = vadd.f32 %v903, %v5794
        %v5836 = vadd.f32 %v904, %v5796
        %v5837 = vadd.f32 %v905, %v5798
        %v5838 = vadd.f32 %v906, %v5802
        %v5839 = vadd.f32 %v907, %v5804
        %v5840 = vadd.f32 %v908, %v5806
        %v5841 = vadd.f32 %v909, %v5808
        %v5842 = vld [vmem:[%s784] sm:$0x3]
        %v5843 = vld [vmem:[%s788] sm:$0x3]
        %v5844 = vsel %vm928, %v5811, 0.0
        %v5845 = vadd.f32 %v5810, %v5844
        %5846 = vadd.xlane.f32.xlu0 %v5845
        %v5847 = vpop.xlane.xlu0 %5846
        %v5848 = vsel %vm928, %v5813, 0.0
        %v5849 = vadd.f32 %v5812, %v5848
        %5850 = vadd.xlane.f32.xlu0 %v5849
        %v5851 = vpop.xlane.xlu0 %5850
        %v5852 = vsel %vm928, %v5815, 0.0
        %v5853 = vadd.f32 %v5814, %v5852
        %5854 = vadd.xlane.f32.xlu0 %v5853
        %v5855 = vpop.xlane.xlu0 %5854
        %v5856 = vsel %vm928, %v5817, 0.0
        %v5857 = vadd.f32 %v5816, %v5856
        %5858 = vadd.xlane.f32.xlu0 %v5857
        %v5859 = vpop.xlane.xlu0 %5858
        %v5860 = vsel %vm928, %v5819, 0.0
        %v5861 = vadd.f32 %v5818, %v5860
        %5862 = vadd.xlane.f32.xlu0 %v5861
        %v5863 = vpop.xlane.xlu0 %5862
        %v5864 = vsel %vm928, %v5821, 0.0
        %v5865 = vadd.f32 %v5820, %v5864
        %5866 = vadd.xlane.f32.xlu0 %v5865
        %v5867 = vpop.xlane.xlu0 %5866
        %v5868 = vsel %vm928, %v5823, 0.0
        %v5869 = vadd.f32 %v5822, %v5868
        %5870 = vadd.xlane.f32.xlu0 %v5869
        %v5871 = vpop.xlane.xlu0 %5870
        %v5872 = vsel %vm928, %v5825, 0.0
        %v5873 = vadd.f32 %v5824, %v5872
        %5874 = vadd.xlane.f32.xlu0 %v5873
        %v5875 = vpop.xlane.xlu0 %5874
        %v5876 = vsel %vm928, %v5827, 0.0
        %v5877 = vadd.f32 %v5826, %v5876
        %5878 = vadd.xlane.f32.xlu0 %v5877
        %v5879 = vpop.xlane.xlu0 %5878
        %v5880 = vsel %vm928, %v5829, 0.0
        %v5881 = vadd.f32 %v5828, %v5880
        %5882 = vadd.xlane.f32.xlu0 %v5881
        %v5883 = vpop.xlane.xlu0 %5882
        %v5884 = vsel %vm928, %v5831, 0.0
        %v5885 = vadd.f32 %v5830, %v5884
        %5886 = vadd.xlane.f32.xlu0 %v5885
        %v5887 = vpop.xlane.xlu0 %5886
        %v5888 = vsel %vm928, %v5833, 0.0
        %v5889 = vadd.f32 %v5832, %v5888
        %5890 = vadd.xlane.f32.xlu0 %v5889
        %v5891 = vpop.xlane.xlu0 %5890
        %v5892 = vsel %vm928, %v5835, 0.0
        %v5893 = vadd.f32 %v5834, %v5892
        %5894 = vadd.xlane.f32.xlu0 %v5893
        %v5895 = vpop.xlane.xlu0 %5894
        %v5896 = vsel %vm928, %v5837, 0.0
        %v5897 = vadd.f32 %v5836, %v5896
        %5898 = vadd.xlane.f32.xlu0 %v5897
        %v5899 = vpop.xlane.xlu0 %5898
        %v5900 = vsel %vm928, %v5839, 0.0
        %v5901 = vadd.f32 %v5838, %v5900
        %5902 = vadd.xlane.f32.xlu0 %v5901
        %v5903 = vpop.xlane.xlu0 %5902
        %v5904 = vsel %vm928, %v5841, 0.0
        %v5905 = vadd.f32 %v5840, %v5904
        %5906 = vadd.xlane.f32.xlu0 %v5905
        %v5907 = vpop.xlane.xlu0 %5906
        %v5908 = vmul.f32 %v5847, %v993
        %v5909 = vmul.f32 %v5851, %v993
        %v5910 = vmul.f32 %v5855, %v993
        %v5911 = vmul.f32 %v5859, %v993
        %v5912 = vmul.f32 %v5863, %v993
        %v5913 = vmul.f32 %v5867, %v993
        %v5914 = vmul.f32 %v5871, %v993
        %v5915 = vmul.f32 %v5875, %v993
        %v5916 = vmul.f32 %v5879, %v993
        %v5917 = vmul.f32 %v5883, %v993
        %v5918 = vmul.f32 %v5887, %v993
        %v5919 = vmul.f32 %v5891, %v993
        %v5920 = vmul.f32 %v5895, %v993
        %v5921 = vmul.f32 %v5899, %v993
        %v5922 = vmul.f32 %v5903, %v993
        %v5923 = vmul.f32 %v5907, %v993
        %v5924 = vmul.f32 %v5810, %v5810
        %v5925 = vmul.f32 %v5811, %v5811
        %v5926 = vmul.f32 %v5812, %v5812
        %v5927 = vmul.f32 %v5813, %v5813
        %v5928 = vmul.f32 %v5814, %v5814
        %v5929 = vmul.f32 %v5815, %v5815
        %v5930 = vmul.f32 %v5816, %v5816
        %v5931 = vmul.f32 %v5817, %v5817
        %v5932 = vmul.f32 %v5818, %v5818
        %v5933 = vmul.f32 %v5819, %v5819
        %v5934 = vmul.f32 %v5820, %v5820
        %v5935 = vmul.f32 %v5821, %v5821
        %v5936 = vmul.f32 %v5822, %v5822
        %v5937 = vmul.f32 %v5823, %v5823
        %v5938 = vmul.f32 %v5824, %v5824
        %v5939 = vmul.f32 %v5825, %v5825
        %v5940 = vmul.f32 %v5826, %v5826
        %v5941 = vmul.f32 %v5827, %v5827
        %v5942 = vmul.f32 %v5828, %v5828
        %v5943 = vmul.f32 %v5829, %v5829
        %v5944 = vmul.f32 %v5830, %v5830
        %v5945 = vmul.f32 %v5831, %v5831
        %v5946 = vmul.f32 %v5832, %v5832
        %v5947 = vmul.f32 %v5833, %v5833
        %v5948 = vmul.f32 %v5834, %v5834
        %v5949 = vmul.f32 %v5835, %v5835
        %v5950 = vmul.f32 %v5836, %v5836
        %v5951 = vmul.f32 %v5837, %v5837
        %v5952 = vmul.f32 %v5838, %v5838
        %v5953 = vmul.f32 %v5839, %v5839
        %v5954 = vmul.f32 %v5840, %v5840
        %v5955 = vmul.f32 %v5841, %v5841
        %v5956 = vsel %vm928, %v5925, 0.0
        %v5957 = vadd.f32 %v5924, %v5956
        %5958 = vadd.xlane.f32.xlu0 %v5957
        %v5959 = vpop.xlane.xlu0 %5958
        %v5960 = vsel %vm928, %v5927, 0.0
        %v5961 = vadd.f32 %v5926, %v5960
        %5962 = vadd.xlane.f32.xlu0 %v5961
        %v5963 = vpop.xlane.xlu0 %5962
        %v5964 = vsel %vm928, %v5929, 0.0
        %v5965 = vadd.f32 %v5928, %v5964
        %5966 = vadd.xlane.f32.xlu0 %v5965
        %v5967 = vpop.xlane.xlu0 %5966
        %v5968 = vsel %vm928, %v5931, 0.0
        %v5969 = vadd.f32 %v5930, %v5968
        %5970 = vadd.xlane.f32.xlu0 %v5969
        %v5971 = vpop.xlane.xlu0 %5970
        %v5972 = vsel %vm928, %v5933, 0.0
        %v5973 = vadd.f32 %v5932, %v5972
        %5974 = vadd.xlane.f32.xlu0 %v5973
        %v5975 = vpop.xlane.xlu0 %5974
        %v5976 = vsel %vm928, %v5935, 0.0
        %v5977 = vadd.f32 %v5934, %v5976
        %5978 = vadd.xlane.f32.xlu0 %v5977
        %v5979 = vpop.xlane.xlu0 %5978
        %v5980 = vsel %vm928, %v5937, 0.0
        %v5981 = vadd.f32 %v5936, %v5980
        %5982 = vadd.xlane.f32.xlu0 %v5981
        %v5983 = vpop.xlane.xlu0 %5982
        %v5984 = vsel %vm928, %v5939, 0.0
        %v5985 = vadd.f32 %v5938, %v5984
        %5986 = vadd.xlane.f32.xlu0 %v5985
        %v5987 = vpop.xlane.xlu0 %5986
        %v5988 = vsel %vm928, %v5941, 0.0
        %v5989 = vadd.f32 %v5940, %v5988
        %5990 = vadd.xlane.f32.xlu0 %v5989
        %v5991 = vpop.xlane.xlu0 %5990
        %v5992 = vsel %vm928, %v5943, 0.0
        %v5993 = vadd.f32 %v5942, %v5992
        %5994 = vadd.xlane.f32.xlu0 %v5993
        %v5995 = vpop.xlane.xlu0 %5994
        %v5996 = vsel %vm928, %v5945, 0.0
        %v5997 = vadd.f32 %v5944, %v5996
        %5998 = vadd.xlane.f32.xlu0 %v5997
        %v5999 = vpop.xlane.xlu0 %5998
        %v6000 = vsel %vm928, %v5947, 0.0
        %v6001 = vadd.f32 %v5946, %v6000
        %6002 = vadd.xlane.f32.xlu0 %v6001
        %v6003 = vpop.xlane.xlu0 %6002
        %v6004 = vsel %vm928, %v5949, 0.0
        %v6005 = vadd.f32 %v5948, %v6004
        %6006 = vadd.xlane.f32.xlu0 %v6005
        %v6007 = vpop.xlane.xlu0 %6006
        %v6008 = vsel %vm928, %v5951, 0.0
        %v6009 = vadd.f32 %v5950, %v6008
        %6010 = vadd.xlane.f32.xlu0 %v6009
        %v6011 = vpop.xlane.xlu0 %6010
        %v6012 = vsel %vm928, %v5953, 0.0
        %v6013 = vadd.f32 %v5952, %v6012
        %6014 = vadd.xlane.f32.xlu0 %v6013
        %v6015 = vpop.xlane.xlu0 %6014
        %v6016 = vsel %vm928, %v5955, 0.0
        %v6017 = vadd.f32 %v5954, %v6016
        %6018 = vadd.xlane.f32.xlu0 %v6017
        %v6019 = vpop.xlane.xlu0 %6018
        %v6020 = vmul.f32 %v5959, %v993
        %v6021 = vmul.f32 %v5963, %v993
        %v6022 = vmul.f32 %v5967, %v993
        %v6023 = vmul.f32 %v5971, %v993
        %v6024 = vmul.f32 %v5975, %v993
        %v6025 = vmul.f32 %v5979, %v993
        %v6026 = vmul.f32 %v5983, %v993
        %v6027 = vmul.f32 %v5987, %v993
        %v6028 = vmul.f32 %v5991, %v993
        %v6029 = vmul.f32 %v5995, %v993
        %v6030 = vmul.f32 %v5999, %v993
        %v6031 = vmul.f32 %v6003, %v993
        %v6032 = vmul.f32 %v6007, %v993
        %v6033 = vmul.f32 %v6011, %v993
        %v6034 = vmul.f32 %v6015, %v993
        %v6035 = vmul.f32 %v6019, %v993
        %v6036 = vmul.f32 %v5908, %v5908
        %v6037 = vmul.f32 %v5909, %v5909
        %v6038 = vmul.f32 %v5910, %v5910
        %v6039 = vmul.f32 %v5911, %v5911
        %v6040 = vmul.f32 %v5912, %v5912
        %v6041 = vmul.f32 %v5913, %v5913
        %v6042 = vmul.f32 %v5914, %v5914
        %v6043 = vmul.f32 %v5915, %v5915
        %v6044 = vmul.f32 %v5916, %v5916
        %v6045 = vmul.f32 %v5917, %v5917
        %v6046 = vmul.f32 %v5918, %v5918
        %v6047 = vmul.f32 %v5919, %v5919
        %v6048 = vmul.f32 %v5920, %v5920
        %v6049 = vmul.f32 %v5921, %v5921
        %v6050 = vmul.f32 %v5922, %v5922
        %v6051 = vmul.f32 %v5923, %v5923
        %v6052 = vsub.f32 %v6020, %v6036
        %v6053 = vsub.f32 %v6021, %v6037
        %v6054 = vsub.f32 %v6022, %v6038
        %v6055 = vsub.f32 %v6023, %v6039
        %v6056 = vsub.f32 %v6024, %v6040
        %v6057 = vsub.f32 %v6025, %v6041
        %v6058 = vsub.f32 %v6026, %v6042
        %v6059 = vsub.f32 %v6027, %v6043
        %v6060 = vsub.f32 %v6028, %v6044
        %v6061 = vsub.f32 %v6029, %v6045
        %v6062 = vsub.f32 %v6030, %v6046
        %v6063 = vsub.f32 %v6031, %v6047
        %v6064 = vsub.f32 %v6032, %v6048
        %v6065 = vsub.f32 %v6033, %v6049
        %v6066 = vsub.f32 %v6034, %v6050
        %v6067 = vsub.f32 %v6035, %v6051
        %v6068 = vsub.f32 %v5810, %v5908
        %v6069 = vsub.f32 %v5811, %v5908
        %v6070 = vsub.f32 %v5812, %v5909
        %v6071 = vsub.f32 %v5813, %v5909
        %v6072 = vsub.f32 %v5814, %v5910
        %v6073 = vsub.f32 %v5815, %v5910
        %v6074 = vsub.f32 %v5816, %v5911
        %v6075 = vsub.f32 %v5817, %v5911
        %v6076 = vsub.f32 %v5818, %v5912
        %v6077 = vsub.f32 %v5819, %v5912
        %v6078 = vsub.f32 %v5820, %v5913
        %v6079 = vsub.f32 %v5821, %v5913
        %v6080 = vsub.f32 %v5822, %v5914
        %v6081 = vsub.f32 %v5823, %v5914
        %v6082 = vsub.f32 %v5824, %v5915
        %v6083 = vsub.f32 %v5825, %v5915
        %v6084 = vsub.f32 %v5826, %v5916
        %v6085 = vsub.f32 %v5827, %v5916
        %v6086 = vsub.f32 %v5828, %v5917
        %v6087 = vsub.f32 %v5829, %v5917
        %v6088 = vsub.f32 %v5830, %v5918
        %v6089 = vsub.f32 %v5831, %v5918
        %v6090 = vsub.f32 %v5832, %v5919
        %v6091 = vsub.f32 %v5833, %v5919
        %v6092 = vsub.f32 %v5834, %v5920
        %v6093 = vsub.f32 %v5835, %v5920
        %v6094 = vsub.f32 %v5836, %v5921
        %v6095 = vsub.f32 %v5837, %v5921
        %v6096 = vsub.f32 %v5838, %v5922
        %v6097 = vsub.f32 %v5839, %v5922
        %v6098 = vsub.f32 %v5840, %v5923
        %v6099 = vsub.f32 %v5841, %v5923
        %v6100 = vadd.f32 %v6052, 1e-05
        %v6101 = vadd.f32 %v6053, 1e-05
        %v6102 = vadd.f32 %v6054, 1e-05
        %v6103 = vadd.f32 %v6055, 1e-05
        %v6104 = vadd.f32 %v6056, 1e-05
        %v6105 = vadd.f32 %v6057, 1e-05
        %v6106 = vadd.f32 %v6058, 1e-05
        %v6107 = vadd.f32 %v6059, 1e-05
        %v6108 = vadd.f32 %v6060, 1e-05
        %v6109 = vadd.f32 %v6061, 1e-05
        %v6110 = vadd.f32 %v6062, 1e-05
        %v6111 = vadd.f32 %v6063, 1e-05
        %v6112 = vadd.f32 %v6064, 1e-05
        %v6113 = vadd.f32 %v6065, 1e-05
        %v6114 = vadd.f32 %v6066, 1e-05
        %v6115 = vadd.f32 %v6067, 1e-05
        %v6116 = vrsqrt.pop %v6100
        %v6117 = vrsqrt.pop %v6101
        %v6118 = vrsqrt.pop %v6102
        %v6119 = vrsqrt.pop %v6103
        %v6120 = vrsqrt.pop %v6104
        %v6121 = vrsqrt.pop %v6105
        %v6122 = vrsqrt.pop %v6106
        %v6123 = vrsqrt.pop %v6107
        %v6124 = vrsqrt.pop %v6108
        %v6125 = vrsqrt.pop %v6109
        %v6126 = vrsqrt.pop %v6110
        %v6127 = vrsqrt.pop %v6111
        %v6128 = vrsqrt.pop %v6112
        %v6129 = vrsqrt.pop %v6113
        %v6130 = vrsqrt.pop %v6114
        %v6131 = vrsqrt.pop %v6115
        %v6132 = vmul.f32 %v6068, %v6116
        %v6133 = vmul.f32 %v6069, %v6116
        %v6134 = vmul.f32 %v6070, %v6117
        %v6135 = vmul.f32 %v6071, %v6117
        %v6136 = vmul.f32 %v6072, %v6118
        %v6137 = vmul.f32 %v6073, %v6118
        %v6138 = vmul.f32 %v6074, %v6119
        %v6139 = vmul.f32 %v6075, %v6119
        %v6140 = vmul.f32 %v6076, %v6120
        %v6141 = vmul.f32 %v6077, %v6120
        %v6142 = vmul.f32 %v6078, %v6121
        %v6143 = vmul.f32 %v6079, %v6121
        %v6144 = vmul.f32 %v6080, %v6122
        %v6145 = vmul.f32 %v6081, %v6122
        %v6146 = vmul.f32 %v6082, %v6123
        %v6147 = vmul.f32 %v6083, %v6123
        %v6148 = vmul.f32 %v6084, %v6124
        %v6149 = vmul.f32 %v6085, %v6124
        %v6150 = vmul.f32 %v6086, %v6125
        %v6151 = vmul.f32 %v6087, %v6125
        %v6152 = vmul.f32 %v6088, %v6126
        %v6153 = vmul.f32 %v6089, %v6126
        %v6154 = vmul.f32 %v6090, %v6127
        %v6155 = vmul.f32 %v6091, %v6127
        %v6156 = vmul.f32 %v6092, %v6128
        %v6157 = vmul.f32 %v6093, %v6128
        %v6158 = vmul.f32 %v6094, %v6129
        %v6159 = vmul.f32 %v6095, %v6129
        %v6160 = vmul.f32 %v6096, %v6130
        %v6161 = vmul.f32 %v6097, %v6130
        %v6162 = vmul.f32 %v6098, %v6131
        %v6163 = vmul.f32 %v6099, %v6131
        %v6165 = vlaneseq
        %v6166 = vshrl.u32 %v6165, 7
        %v6167 = vsub.s32 0, %v6166
        %v6168 = vrot.slane %v5842, %v6167
        %v6169 = vlaneseq
        %v6170 = vshrl.u32 %v6169, 7
        %v6171 = vsub.s32 1, %v6170
        %v6172 = vrot.slane %v5842, %v6171
        %v6175 = vmul.f32 %v6132, %v6168
        %v6176 = vmul.f32 %v6133, %v6172
        %v6177 = vmul.f32 %v6134, %v6168
        %v6178 = vmul.f32 %v6135, %v6172
        %v6179 = vmul.f32 %v6136, %v6168
        %v6180 = vmul.f32 %v6137, %v6172
        %v6181 = vmul.f32 %v6138, %v6168
        %v6182 = vmul.f32 %v6139, %v6172
        %v6183 = vmul.f32 %v6140, %v6168
        %v6184 = vmul.f32 %v6141, %v6172
        %v6185 = vmul.f32 %v6142, %v6168
        %v6186 = vmul.f32 %v6143, %v6172
        %v6187 = vmul.f32 %v6144, %v6168
        %v6188 = vmul.f32 %v6145, %v6172
        %v6189 = vmul.f32 %v6146, %v6168
        %v6190 = vmul.f32 %v6147, %v6172
        %v6191 = vmul.f32 %v6148, %v6168
        %v6192 = vmul.f32 %v6149, %v6172
        %v6193 = vmul.f32 %v6150, %v6168
        %v6194 = vmul.f32 %v6151, %v6172
        %v6195 = vmul.f32 %v6152, %v6168
        %v6196 = vmul.f32 %v6153, %v6172
        %v6197 = vmul.f32 %v6154, %v6168
        %v6198 = vmul.f32 %v6155, %v6172
        %v6199 = vmul.f32 %v6156, %v6168
        %v6200 = vmul.f32 %v6157, %v6172
        %v6201 = vmul.f32 %v6158, %v6168
        %v6202 = vmul.f32 %v6159, %v6172
        %v6203 = vmul.f32 %v6160, %v6168
        %v6204 = vmul.f32 %v6161, %v6172
        %v6205 = vmul.f32 %v6162, %v6168
        %v6206 = vmul.f32 %v6163, %v6172
        %v6208 = vlaneseq
        %v6209 = vshrl.u32 %v6208, 7
        %v6210 = vsub.s32 0, %v6209
        %v6211 = vrot.slane %v5843, %v6210
        %v6212 = vlaneseq
        %v6213 = vshrl.u32 %v6212, 7
        %v6214 = vsub.s32 1, %v6213
        %v6215 = vrot.slane %v5843, %v6214
        %v6218 = vadd.f32 %v6175, %v6211
        %v6219 = vadd.f32 %v6176, %v6215
        %v6220 = vadd.f32 %v6177, %v6211
        %v6221 = vadd.f32 %v6178, %v6215
        %v6222 = vadd.f32 %v6179, %v6211
        %v6223 = vadd.f32 %v6180, %v6215
        %v6224 = vadd.f32 %v6181, %v6211
        %v6225 = vadd.f32 %v6182, %v6215
        %v6226 = vadd.f32 %v6183, %v6211
        %v6227 = vadd.f32 %v6184, %v6215
        %v6228 = vadd.f32 %v6185, %v6211
        %v6229 = vadd.f32 %v6186, %v6215
        %v6230 = vadd.f32 %v6187, %v6211
        %v6231 = vadd.f32 %v6188, %v6215
        %v6232 = vadd.f32 %v6189, %v6211
        %v6233 = vadd.f32 %v6190, %v6215
        %v6234 = vadd.f32 %v6191, %v6211
        %v6235 = vadd.f32 %v6192, %v6215
        %v6236 = vadd.f32 %v6193, %v6211
        %v6237 = vadd.f32 %v6194, %v6215
        %v6238 = vadd.f32 %v6195, %v6211
        %v6239 = vadd.f32 %v6196, %v6215
        %v6240 = vadd.f32 %v6197, %v6211
        %v6241 = vadd.f32 %v6198, %v6215
        %v6242 = vadd.f32 %v6199, %v6211
        %v6243 = vadd.f32 %v6200, %v6215
        %v6244 = vadd.f32 %v6201, %v6211
        %v6245 = vadd.f32 %v6202, %v6215
        %v6246 = vadd.f32 %v6203, %v6211
        %v6247 = vadd.f32 %v6204, %v6215
        %v6248 = vadd.f32 %v6205, %v6211
        %v6249 = vadd.f32 %v6206, %v6215
        %v6250 = vpack.c.bf16 %v6220, %v6218
        %v6251 = vpack.c.bf16 %v6221, %v6219
        %v6252 = vpack.c.bf16 %v6224, %v6222
        %v6253 = vpack.c.bf16 %v6225, %v6223
        %v6254 = vpack.c.bf16 %v6228, %v6226
        %v6255 = vpack.c.bf16 %v6229, %v6227
        %v6256 = vpack.c.bf16 %v6232, %v6230
        %v6257 = vpack.c.bf16 %v6233, %v6231
        %v6258 = vpack.c.bf16 %v6236, %v6234
        %v6259 = vpack.c.bf16 %v6237, %v6235
        %v6260 = vpack.c.bf16 %v6240, %v6238
        %v6261 = vpack.c.bf16 %v6241, %v6239
        %v6262 = vpack.c.bf16 %v6244, %v6242
        %v6263 = vpack.c.bf16 %v6245, %v6243
        %v6264 = vpack.c.bf16 %v6248, %v6246
        %v6265 = vpack.c.bf16 %v6249, %v6247
        %v6266 = vld [vmem:[%s793] sm:$0xff]
        %v6267 = vld [vmem:[%s793 + $0x8] sm:$0xff]
        %v6268 = vld [vmem:[%s793 + $0x10] sm:$0xf]
        %v6269 = vld [vmem:[%s793 + $0x14] sm:$0xff]
        %v6270 = vld [vmem:[%s793 + $0x1c] sm:$0xff]
        %v6271 = vld [vmem:[%s793 + $0x24] sm:$0xf]
        %v6272 = vld [vmem:[%s793 + $0x28] sm:$0xff]
        %v6273 = vld [vmem:[%s793 + $0x30] sm:$0xff]
        %v6274 = vld [vmem:[%s793 + $0x38] sm:$0xf]
        %v6275 = vld [vmem:[%s793 + $0x3c] sm:$0xff]
        %v6276 = vld [vmem:[%s793 + $0x44] sm:$0xff]
        %v6277 = vld [vmem:[%s793 + $0x4c] sm:$0xf]
        %v6278 = vld [vmem:[%s793 + $0x50] sm:$0xff]
        %v6279 = vld [vmem:[%s793 + $0x58] sm:$0xff]
        %v6280 = vld [vmem:[%s793 + $0x60] sm:$0xf]
        %v6281 = vld [vmem:[%s793 + $0x64] sm:$0xff]
        %v6282 = vld [vmem:[%s793 + $0x6c] sm:$0xff]
        %v6283 = vld [vmem:[%s793 + $0x74] sm:$0xf]
        %v6284 = vld [vmem:[%s793 + $0x78] sm:$0xff]
        %v6285 = vld [vmem:[%s793 + $0x80] sm:$0xff]
        %v6286 = vld [vmem:[%s793 + $0x88] sm:$0xf]
        %v6287 = vld [vmem:[%s793 + $0x8c] sm:$0xff]
        %v6288 = vld [vmem:[%s793 + $0x94] sm:$0xff]
        %v6289 = vld [vmem:[%s793 + $0x9c] sm:$0xf]
        %v6290 = vld [vmem:[%s793 + $0xa0] sm:$0xff]
        %v6291 = vld [vmem:[%s793 + $0xa8] sm:$0xff]
        %v6292 = vld [vmem:[%s793 + $0xb0] sm:$0xf]
        %v6293 = vld [vmem:[%s793 + $0xb4] sm:$0xff]
        %v6294 = vld [vmem:[%s793 + $0xbc] sm:$0xff]
        %v6295 = vld [vmem:[%s793 + $0xc4] sm:$0xf]
        %v6296 = vld [vmem:[%s793 + $0xc8] sm:$0xff]
        %v6297 = vld [vmem:[%s793 + $0xd0] sm:$0xff]
        %v6298 = vld [vmem:[%s793 + $0xd8] sm:$0xf]
        %v6299 = vld [vmem:[%s793 + $0xdc] sm:$0xff]
        %v6300 = vld [vmem:[%s793 + $0xe4] sm:$0xff]
        %v6301 = vld [vmem:[%s793 + $0xec] sm:$0xf]
        %v6302 = vld [vmem:[%s793 + $0xf0] sm:$0xff]
        %v6303 = vld [vmem:[%s793 + $0xf8] sm:$0xff]
        %v6304 = vld [vmem:[%s793 + $0x100] sm:$0xf]
        %v6305 = vld [vmem:[%s793 + $0x104] sm:$0xff]
        %v6306 = vld [vmem:[%s793 + $0x10c] sm:$0xff]
        %v6307 = vld [vmem:[%s793 + $0x114] sm:$0xf]
        %v6308 = vld [vmem:[%s793 + $0x118] sm:$0xff]
        %v6309 = vld [vmem:[%s793 + $0x120] sm:$0xff]
        %v6310 = vld [vmem:[%s793 + $0x128] sm:$0xf]
        %v6311 = vld [vmem:[%s793 + $0x12c] sm:$0xff]
        %v6312 = vld [vmem:[%s793 + $0x134] sm:$0xff]
        %v6313 = vld [vmem:[%s793 + $0x13c] sm:$0xf]
        %v6314 = vld [vmem:[%s793 + $0x140] sm:$0xff]
        %v6315 = vld [vmem:[%s793 + $0x148] sm:$0xff]
        %v6316 = vld [vmem:[%s793 + $0x150] sm:$0xf]
        %v6317 = vld [vmem:[%s793 + $0x154] sm:$0xff]
        %v6318 = vld [vmem:[%s793 + $0x15c] sm:$0xff]
        %v6319 = vld [vmem:[%s793 + $0x164] sm:$0xf]
        %v6320 = vld [vmem:[%s793 + $0x168] sm:$0xff]
        %v6321 = vld [vmem:[%s793 + $0x170] sm:$0xff]
        %v6322 = vld [vmem:[%s793 + $0x178] sm:$0xf]
        %v6323 = vld [vmem:[%s793 + $0x17c] sm:$0x33]
        %v6324 = vld [vmem:[%s793 + $0x184] sm:$0x33]
        %v6325 = vld [vmem:[%s793 + $0x18c] sm:$0x3]
        %v6326 = vld [vmem:[%s797] sm:$0x1f]
        %v6328 = vlaneseq
        %v6329 = vshrl.u32 %v6328, 7
        %v6330 = vsub.s32 0, %v6329
        %v6331 = vrot.slane %v6326, %v6330
        %v6332 = vlaneseq
        %v6333 = vshrl.u32 %v6332, 7
        %v6334 = vsub.s32 1, %v6333
        %v6335 = vrot.slane %v6326, %v6334
        %v6336 = vlaneseq
        %v6337 = vshrl.u32 %v6336, 7
        %v6338 = vsub.s32 2, %v6337
        %v6339 = vrot.slane %v6326, %v6338
        %v6340 = vlaneseq
        %v6341 = vshrl.u32 %v6340, 7
        %v6342 = vsub.s32 3, %v6341
        %v6343 = vrot.slane %v6326, %v6342
        %v6344 = vlaneseq
        %v6345 = vshrl.u32 %v6344, 7
        %v6346 = vsub.s32 4, %v6345
        %v6347 = vrot.slane %v6326, %v6346
        %v6413 = vunpack.c.l.b16 %v6266
        %v6414 = vunpack.c.h.b16 %v6266
        %v6415 = vunpack.c.l.b16 %v6267
        %v6416 = vunpack.c.h.b16 %v6267
        %v6417 = vunpack.c.l.b16 %v6268
        %v6418 = vunpack.c.l.b16 %v6269
        %v6419 = vunpack.c.h.b16 %v6269
        %v6420 = vunpack.c.l.b16 %v6270
        %v6421 = vunpack.c.h.b16 %v6270
        %v6422 = vunpack.c.l.b16 %v6271
        %v6423 = vunpack.c.l.b16 %v6272
        %v6424 = vunpack.c.h.b16 %v6272
        %v6425 = vunpack.c.l.b16 %v6273
        %v6426 = vunpack.c.h.b16 %v6273
        %v6427 = vunpack.c.l.b16 %v6274
        %v6428 = vunpack.c.l.b16 %v6275
        %v6429 = vunpack.c.h.b16 %v6275
        %v6430 = vunpack.c.l.b16 %v6276
        %v6431 = vunpack.c.h.b16 %v6276
        %v6432 = vunpack.c.l.b16 %v6277
        %v6433 = vunpack.c.l.b16 %v6278
        %v6434 = vunpack.c.h.b16 %v6278
        %v6435 = vunpack.c.l.b16 %v6279
        %v6436 = vunpack.c.h.b16 %v6279
        %v6437 = vunpack.c.l.b16 %v6280
        %v6438 = vunpack.c.l.b16 %v6281
        %v6439 = vunpack.c.h.b16 %v6281
        %v6440 = vunpack.c.l.b16 %v6282
        %v6441 = vunpack.c.h.b16 %v6282
        %v6442 = vunpack.c.l.b16 %v6283
        %v6443 = vunpack.c.l.b16 %v6284
        %v6444 = vunpack.c.h.b16 %v6284
        %v6445 = vunpack.c.l.b16 %v6285
        %v6446 = vunpack.c.h.b16 %v6285
        %v6447 = vunpack.c.l.b16 %v6286
        %v6448 = vunpack.c.l.b16 %v6287
        %v6449 = vunpack.c.h.b16 %v6287
        %v6450 = vunpack.c.l.b16 %v6288
        %v6451 = vunpack.c.h.b16 %v6288
        %v6452 = vunpack.c.l.b16 %v6289
        %v6453 = vunpack.c.l.b16 %v6290
        %v6454 = vunpack.c.h.b16 %v6290
        %v6455 = vunpack.c.l.b16 %v6291
        %v6456 = vunpack.c.h.b16 %v6291
        %v6457 = vunpack.c.l.b16 %v6292
        %v6458 = vunpack.c.l.b16 %v6293
        %v6459 = vunpack.c.h.b16 %v6293
        %v6460 = vunpack.c.l.b16 %v6294
        %v6461 = vunpack.c.h.b16 %v6294
        %v6462 = vunpack.c.l.b16 %v6295
        %v6463 = vunpack.c.l.b16 %v6296
        %v6464 = vunpack.c.h.b16 %v6296
        %v6465 = vunpack.c.l.b16 %v6297
        %v6466 = vunpack.c.h.b16 %v6297
        %v6467 = vunpack.c.l.b16 %v6298
        %v6468 = vunpack.c.l.b16 %v6299
        %v6469 = vunpack.c.h.b16 %v6299
        %v6470 = vunpack.c.l.b16 %v6300
        %v6471 = vunpack.c.h.b16 %v6300
        %v6472 = vunpack.c.l.b16 %v6301
        %v6473 = vunpack.c.l.b16 %v6302
        %v6474 = vunpack.c.h.b16 %v6302
        %v6475 = vunpack.c.l.b16 %v6303
        %v6476 = vunpack.c.h.b16 %v6303
        %v6477 = vunpack.c.l.b16 %v6304
        %v6478 = vunpack.c.l.b16 %v6305
        %v6479 = vunpack.c.h.b16 %v6305
        %v6480 = vunpack.c.l.b16 %v6306
        %v6481 = vunpack.c.h.b16 %v6306
        %v6482 = vunpack.c.l.b16 %v6307
        %v6483 = vunpack.c.l.b16 %v6308
        %v6484 = vunpack.c.h.b16 %v6308
        %v6485 = vunpack.c.l.b16 %v6309
        %v6486 = vunpack.c.h.b16 %v6309
        %v6487 = vunpack.c.l.b16 %v6310
        %v6488 = vunpack.c.l.b16 %v6311
        %v6489 = vunpack.c.h.b16 %v6311
        %v6490 = vunpack.c.l.b16 %v6312
        %v6491 = vunpack.c.h.b16 %v6312
        %v6492 = vunpack.c.l.b16 %v6313
        %v6493 = vunpack.c.l.b16 %v6314
        %v6494 = vunpack.c.h.b16 %v6314
        %v6495 = vunpack.c.l.b16 %v6315
        %v6496 = vunpack.c.h.b16 %v6315
        %v6497 = vunpack.c.l.b16 %v6316
        %v6498 = vunpack.c.l.b16 %v6317
        %v6499 = vunpack.c.h.b16 %v6317
        %v6500 = vunpack.c.l.b16 %v6318
        %v6501 = vunpack.c.h.b16 %v6318
        %v6502 = vunpack.c.l.b16 %v6319
        %v6503 = vunpack.c.l.b16 %v6320
        %v6504 = vunpack.c.h.b16 %v6320
        %v6505 = vunpack.c.l.b16 %v6321
        %v6506 = vunpack.c.h.b16 %v6321
        %v6507 = vunpack.c.l.b16 %v6322
        %v6508 = vunpack.c.l.b16 %v6323
        %v6509 = vunpack.c.h.b16 %v6323
        %v6510 = vunpack.c.l.b16 %v6324
        %v6511 = vunpack.c.h.b16 %v6324
        %v6512 = vunpack.c.l.b16 %v6325
        %v6513 = vpack.c.b16 %v6418, %v6413
        %v6514 = vpack.c.b16 %v6419, %v6414
        %v6515 = vpack.c.b16 %v6420, %v6415
        %v6516 = vpack.c.b16 %v6421, %v6416
        %v6517 = vpack.c.b16 %v6422, %v6417
        %v6518 = vpack.c.b16 %v6428, %v6423
        %v6519 = vpack.c.b16 %v6429, %v6424
        %v6520 = vpack.c.b16 %v6430, %v6425
        %v6521 = vpack.c.b16 %v6431, %v6426
        %v6522 = vpack.c.b16 %v6432, %v6427
        %v6523 = vpack.c.b16 %v6438, %v6433
        %v6524 = vpack.c.b16 %v6439, %v6434
        %v6525 = vpack.c.b16 %v6440, %v6435
        %v6526 = vpack.c.b16 %v6441, %v6436
        %v6527 = vpack.c.b16 %v6442, %v6437
        %v6528 = vpack.c.b16 %v6448, %v6443
        %v6529 = vpack.c.b16 %v6449, %v6444
        %v6530 = vpack.c.b16 %v6450, %v6445
        %v6531 = vpack.c.b16 %v6451, %v6446
        %v6532 = vpack.c.b16 %v6452, %v6447
        %v6533 = vpack.c.b16 %v6458, %v6453
        %v6534 = vpack.c.b16 %v6459, %v6454
        %v6535 = vpack.c.b16 %v6460, %v6455
        %v6536 = vpack.c.b16 %v6461, %v6456
        %v6537 = vpack.c.b16 %v6462, %v6457
        %v6538 = vpack.c.b16 %v6468, %v6463
        %v6539 = vpack.c.b16 %v6469, %v6464
        %v6540 = vpack.c.b16 %v6470, %v6465
        %v6541 = vpack.c.b16 %v6471, %v6466
        %v6542 = vpack.c.b16 %v6472, %v6467
        %v6543 = vpack.c.b16 %v6478, %v6473
        %v6544 = vpack.c.b16 %v6479, %v6474
        %v6545 = vpack.c.b16 %v6480, %v6475
        %v6546 = vpack.c.b16 %v6481, %v6476
        %v6547 = vpack.c.b16 %v6482, %v6477
        %v6548 = vpack.c.b16 %v6488, %v6483
        %v6549 = vpack.c.b16 %v6489, %v6484
        %v6550 = vpack.c.b16 %v6490, %v6485
        %v6551 = vpack.c.b16 %v6491, %v6486
        %v6552 = vpack.c.b16 %v6492, %v6487
        %v6553 = vpack.c.b16 %v6498, %v6493
        %v6554 = vpack.c.b16 %v6499, %v6494
        %v6555 = vpack.c.b16 %v6500, %v6495
        %v6556 = vpack.c.b16 %v6501, %v6496
        %v6557 = vpack.c.b16 %v6502, %v6497
        %v6558 = vpack.c.b16 %v6508, %v6503
        %v6559 = vpack.c.b16 %v6509, %v6504
        %v6560 = vpack.c.b16 %v6510, %v6505
        %v6561 = vpack.c.b16 %v6511, %v6506
        %v6562 = vpack.c.b16 %v6512, %v6507
        %v6609 = vsel %vm928, %v6251, 0
        %v6612 = vsel %vm928, %v6253, 0
        %v6615 = vsel %vm928, %v6255, 0
        %v6618 = vsel %vm928, %v6257, 0
        %v6621 = vsel %vm928, %v6259, 0
        %v6624 = vsel %vm928, %v6261, 0
        %v6627 = vsel %vm928, %v6263, 0
        %v6630 = vsel %vm928, %v6265, 0
        %v6633 = vsel %vm1762, %v6558, 0
        %v6636 = vsel %vm1762, %v6559, 0
        %v6639 = vsel %vm1762, %v6560, 0
        %v6642 = vsel %vm1762, %v6561, 0
        %v6645 = vsel %vm1762, %v6562, 0
        %6647 = vmatprep.subr.bf16.mxu0 %v6514
        %6648 = vmatpush1.bf16.msra.mxu0 %v6513
        %6649 = vmatprep.subr.bf16.mxu0 %v6519
        %6650 = vmatpush1.bf16.msra.mxu0 %v6518
        %6651 = vmatprep.subr.bf16.mxu0 %v6524
        %6652 = vmatpush1.bf16.msra.mxu0 %v6523
        %6653 = vmatprep.subr.bf16.mxu0 %v6529
        %6654 = vmatpush1.bf16.msra.mxu0 %v6528
        %6655 = vmatprep.subr.bf16.mxu0 %v6534
        %6656 = vmatpush1.bf16.msra.mxu0 %v6533
        %6657 = vmatprep.subr.bf16.mxu0 %v6539
        %6658 = vmatpush1.bf16.msra.mxu0 %v6538
        %6659 = vmatprep.subr.bf16.mxu0 %v6544
        %6660 = vmatpush1.bf16.msra.mxu0 %v6543
        %6661 = vmatprep.subr.bf16.mxu0 %v6549
        %6662 = vmatpush1.bf16.msra.mxu0 %v6548
        %6663 = vmatprep.subr.bf16.mxu0 %v6554
        %6664 = vmatpush1.bf16.msra.mxu0 %v6553
        %6665 = vmatprep.subr.bf16.mxu0 %v6636
        %6666 = vmatpush1.bf16.msra.mxu0 %v6633
        %6667 = vmatprep.subr.bf16.mxu0 0
        %6668 = vmatpush1.bf16.msra.mxu0 0
        %6669 = vmatprep.subr.bf16.mxu0 0
        %6670 = vmatpush1.bf16.msra.mxu0 0
        %6671 = vmatprep.subr.bf16.mxu0 0
        %6672 = vmatpush1.bf16.msra.mxu0 0
        %6673 = vmatprep.subr.bf16.mxu0 0
        %6674 = vmatpush1.bf16.msra.mxu0 0
        %6675 = vmatprep.subr.bf16.mxu0 0
        %6676 = vmatpush1.bf16.msra.mxu0 0
        %6677 = vmatprep.subr.bf16.mxu0 0
        %6678 = vmatpush1.bf16.msra.mxu0 0
        %6679 = vmatprep.mubr.bf16.mxu0 %v6609
        %6680 = vmatmul.mubr.bf16.gmra.mrb[0].mxu0 %v6250
        %v6681 = vpop.f32.mrb[0].mxu0
        %v6682 = vadd.f32 %v6331, %v6681
        %v6683 = vpop.f32.mrb[0].mxu0
        %v6684 = vadd.f32 %v6335, %v6683
        %v6685 = vpop.f32.mrb[0].mxu0
        %v6686 = vadd.f32 %v6331, %v6685
        %v6687 = vpop.f32.mrb[0].mxu0
        %v6688 = vadd.f32 %v6335, %v6687
        %6689 = vmatprep.mubr.bf16.mxu0 %v6612
        %6690 = vmatmul.mubr.bf16.gmra.mrb[0].mxu0 %v6252
        %v6691 = vpop.f32.mrb[0].mxu0
        %v6692 = vadd.f32 %v6331, %v6691
        %v6693 = vpop.f32.mrb[0].mxu0
        %v6694 = vadd.f32 %v6335, %v6693
        %v6695 = vpop.f32.mrb[0].mxu0
        %v6696 = vadd.f32 %v6331, %v6695
        %v6697 = vpop.f32.mrb[0].mxu0
        %v6698 = vadd.f32 %v6335, %v6697
        %6699 = vmatprep.mubr.bf16.mxu0 %v6615
        %6700 = vmatmul.mubr.bf16.gmra.mrb[0].mxu0 %v6254
        %v6701 = vpop.f32.mrb[0].mxu0
        %v6702 = vadd.f32 %v6331, %v6701
        %v6703 = vpop.f32.mrb[0].mxu0
        %v6704 = vadd.f32 %v6335, %v6703
        %v6705 = vpop.f32.mrb[0].mxu0
        %v6706 = vadd.f32 %v6331, %v6705
        %v6707 = vpop.f32.mrb[0].mxu0
        %v6708 = vadd.f32 %v6335, %v6707
        %6709 = vmatprep.mubr.bf16.mxu0 %v6618
        %6710 = vmatmul.mubr.bf16.gmra.mrb[0].mxu0 %v6256
        %v6711 = vpop.f32.mrb[0].mxu0
        %v6712 = vadd.f32 %v6331, %v6711
        %v6713 = vpop.f32.mrb[0].mxu0
        %v6714 = vadd.f32 %v6335, %v6713
        %v6715 = vpop.f32.mrb[0].mxu0
        %v6716 = vadd.f32 %v6331, %v6715
        %v6717 = vpop.f32.mrb[0].mxu0
        %v6718 = vadd.f32 %v6335, %v6717
        %6719 = vmatprep.mubr.bf16.mxu0 %v6621
        %6720 = vmatmul.mubr.bf16.gmra.mrb[0].mxu0 %v6258
        %v6721 = vpop.f32.mrb[0].mxu0
        %v6722 = vadd.f32 %v6331, %v6721
        %v6723 = vpop.f32.mrb[0].mxu0
        %v6724 = vadd.f32 %v6335, %v6723
        %v6725 = vpop.f32.mrb[0].mxu0
        %v6726 = vadd.f32 %v6331, %v6725
        %v6727 = vpop.f32.mrb[0].mxu0
        %v6728 = vadd.f32 %v6335, %v6727
        %6729 = vmatprep.mubr.bf16.mxu0 %v6624
        %6730 = vmatmul.mubr.bf16.gmra.mrb[0].mxu0 %v6260
        %v6731 = vpop.f32.mrb[0].mxu0
        %v6732 = vadd.f32 %v6331, %v6731
        %v6733 = vpop.f32.mrb[0].mxu0
        %v6734 = vadd.f32 %v6335, %v6733
        %v6735 = vpop.f32.mrb[0].mxu0
        %v6736 = vadd.f32 %v6331, %v6735
        %v6737 = vpop.f32.mrb[0].mxu0
        %v6738 = vadd.f32 %v6335, %v6737
        %6739 = vmatprep.mubr.bf16.mxu0 %v6627
        %6740 = vmatmul.mubr.bf16.gmra.mrb[0].mxu0 %v6262
        %v6741 = vpop.f32.mrb[0].mxu0
        %v6742 = vadd.f32 %v6331, %v6741
        %v6743 = vpop.f32.mrb[0].mxu0
        %v6744 = vadd.f32 %v6335, %v6743
        %v6745 = vpop.f32.mrb[0].mxu0
        %v6746 = vadd.f32 %v6331, %v6745
        %v6747 = vpop.f32.mrb[0].mxu0
        %v6748 = vadd.f32 %v6335, %v6747
        %6749 = vmatprep.mubr.bf16.mxu0 %v6630
        %6750 = vmatmul.mubr.bf16.gmra.mrb[0].mxu0 %v6264
        %v6751 = vpop.f32.mrb[0].mxu0
        %v6752 = vadd.f32 %v6331, %v6751
        %v6753 = vpop.f32.mrb[0].mxu0
        %v6754 = vadd.f32 %v6335, %v6753
        %v6755 = vpop.f32.mrb[0].mxu0
        %v6756 = vadd.f32 %v6331, %v6755
        %v6757 = vpop.f32.mrb[0].mxu0
        %v6758 = vadd.f32 %v6335, %v6757
        %6759 = vdwg.mxu0
        %6760 = vmatprep.subr.bf16.mxu0 %v6516
        %6761 = vmatpush1.bf16.msra.mxu0 %v6515
        %6762 = vmatprep.subr.bf16.mxu0 %v6521
        %6763 = vmatpush1.bf16.msra.mxu0 %v6520
        %6764 = vmatprep.subr.bf16.mxu0 %v6526
        %6765 = vmatpush1.bf16.msra.mxu0 %v6525
        %6766 = vmatprep.subr.bf16.mxu0 %v6531
        %6767 = vmatpush1.bf16.msra.mxu0 %v6530
        %6768 = vmatprep.subr.bf16.mxu0 %v6536
        %6769 = vmatpush1.bf16.msra.mxu0 %v6535
        %6770 = vmatprep.subr.bf16.mxu0 %v6541
        %6771 = vmatpush1.bf16.msra.mxu0 %v6540
        %6772 = vmatprep.subr.bf16.mxu0 %v6546
        %6773 = vmatpush1.bf16.msra.mxu0 %v6545
        %6774 = vmatprep.subr.bf16.mxu0 %v6551
        %6775 = vmatpush1.bf16.msra.mxu0 %v6550
        %6776 = vmatprep.subr.bf16.mxu0 %v6556
        %6777 = vmatpush1.bf16.msra.mxu0 %v6555
        %6778 = vmatprep.subr.bf16.mxu0 %v6642
        %6779 = vmatpush1.bf16.msra.mxu0 %v6639
        %6780 = vmatprep.subr.bf16.mxu0 0
        %6781 = vmatpush1.bf16.msra.mxu0 0
        %6782 = vmatprep.subr.bf16.mxu0 0
        %6783 = vmatpush1.bf16.msra.mxu0 0
        %6784 = vmatprep.subr.bf16.mxu0 0
        %6785 = vmatpush1.bf16.msra.mxu0 0
        %6786 = vmatprep.subr.bf16.mxu0 0
        %6787 = vmatpush1.bf16.msra.mxu0 0
        %6788 = vmatprep.subr.bf16.mxu0 0
        %6789 = vmatpush1.bf16.msra.mxu0 0
        %6790 = vmatprep.subr.bf16.mxu0 0
        %6791 = vmatpush1.bf16.msra.mxu0 0
        %6792 = vmatprep.mubr.bf16.mxu0 %v6609
        %6793 = vmatmul.mubr.bf16.gmra.mrb[0].mxu0 %v6250
        %v6794 = vpop.f32.mrb[0].mxu0
        %v6795 = vadd.f32 %v6339, %v6794
        %v6796 = vpop.f32.mrb[0].mxu0
        %v6797 = vadd.f32 %v6343, %v6796
        %v6798 = vpop.f32.mrb[0].mxu0
        %v6799 = vadd.f32 %v6339, %v6798
        %v6800 = vpop.f32.mrb[0].mxu0
        %v6801 = vadd.f32 %v6343, %v6800
        %6802 = vmatprep.mubr.bf16.mxu0 %v6612
        %6803 = vmatmul.mubr.bf16.gmra.mrb[0].mxu0 %v6252
        %v6804 = vpop.f32.mrb[0].mxu0
        %v6805 = vadd.f32 %v6339, %v6804
        %v6806 = vpop.f32.mrb[0].mxu0
        %v6807 = vadd.f32 %v6343, %v6806
        %v6808 = vpop.f32.mrb[0].mxu0
        %v6809 = vadd.f32 %v6339, %v6808
        %v6810 = vpop.f32.mrb[0].mxu0
        %v6811 = vadd.f32 %v6343, %v6810
        %6812 = vmatprep.mubr.bf16.mxu0 %v6615
        %6813 = vmatmul.mubr.bf16.gmra.mrb[0].mxu0 %v6254
        %v6814 = vpop.f32.mrb[0].mxu0
        %v6815 = vadd.f32 %v6339, %v6814
        %v6816 = vpop.f32.mrb[0].mxu0
        %v6817 = vadd.f32 %v6343, %v6816
        %v6818 = vpop.f32.mrb[0].mxu0
        %v6819 = vadd.f32 %v6339, %v6818
        %v6820 = vpop.f32.mrb[0].mxu0
        %v6821 = vadd.f32 %v6343, %v6820
        %6822 = vmatprep.mubr.bf16.mxu0 %v6618
        %6823 = vmatmul.mubr.bf16.gmra.mrb[0].mxu0 %v6256
        %v6824 = vpop.f32.mrb[0].mxu0
        %v6825 = vadd.f32 %v6339, %v6824
        %v6826 = vpop.f32.mrb[0].mxu0
        %v6827 = vadd.f32 %v6343, %v6826
        %v6828 = vpop.f32.mrb[0].mxu0
        %v6829 = vadd.f32 %v6339, %v6828
        %v6830 = vpop.f32.mrb[0].mxu0
        %v6831 = vadd.f32 %v6343, %v6830
        %6832 = vmatprep.mubr.bf16.mxu0 %v6621
        %6833 = vmatmul.mubr.bf16.gmra.mrb[0].mxu0 %v6258
        %v6834 = vpop.f32.mrb[0].mxu0
        %v6835 = vadd.f32 %v6339, %v6834
        %v6836 = vpop.f32.mrb[0].mxu0
        %v6837 = vadd.f32 %v6343, %v6836
        %v6838 = vpop.f32.mrb[0].mxu0
        %v6839 = vadd.f32 %v6339, %v6838
        %v6840 = vpop.f32.mrb[0].mxu0
        %v6841 = vadd.f32 %v6343, %v6840
        %6842 = vmatprep.mubr.bf16.mxu0 %v6624
        %6843 = vmatmul.mubr.bf16.gmra.mrb[0].mxu0 %v6260
        %v6844 = vpop.f32.mrb[0].mxu0
        %v6845 = vadd.f32 %v6339, %v6844
        %v6846 = vpop.f32.mrb[0].mxu0
        %v6847 = vadd.f32 %v6343, %v6846
        %v6848 = vpop.f32.mrb[0].mxu0
        %v6849 = vadd.f32 %v6339, %v6848
        %v6850 = vpop.f32.mrb[0].mxu0
        %v6851 = vadd.f32 %v6343, %v6850
        %6852 = vmatprep.mubr.bf16.mxu0 %v6627
        %6853 = vmatmul.mubr.bf16.gmra.mrb[0].mxu0 %v6262
        %v6854 = vpop.f32.mrb[0].mxu0
        %v6855 = vadd.f32 %v6339, %v6854
        %v6856 = vpop.f32.mrb[0].mxu0
        %v6857 = vadd.f32 %v6343, %v6856
        %v6858 = vpop.f32.mrb[0].mxu0
        %v6859 = vadd.f32 %v6339, %v6858
        %v6860 = vpop.f32.mrb[0].mxu0
        %v6861 = vadd.f32 %v6343, %v6860
        %6862 = vmatprep.mubr.bf16.mxu0 %v6630
        %6863 = vmatmul.mubr.bf16.gmra.mrb[0].mxu0 %v6264
        %v6864 = vpop.f32.mrb[0].mxu0
        %v6865 = vadd.f32 %v6339, %v6864
        %v6866 = vpop.f32.mrb[0].mxu0
        %v6867 = vadd.f32 %v6343, %v6866
        %v6868 = vpop.f32.mrb[0].mxu0
        %v6869 = vadd.f32 %v6339, %v6868
        %v6870 = vpop.f32.mrb[0].mxu0
        %v6871 = vadd.f32 %v6343, %v6870
        %6872 = vdwg.mxu0
        %6873 = vmatprep.subr.bf16.mxu0 0
        %6874 = vmatpush1.bf16.msra.mxu0 %v6517
        %6875 = vmatprep.subr.bf16.mxu0 0
        %6876 = vmatpush1.bf16.msra.mxu0 %v6522
        %6877 = vmatprep.subr.bf16.mxu0 0
        %6878 = vmatpush1.bf16.msra.mxu0 %v6527
        %6879 = vmatprep.subr.bf16.mxu0 0
        %6880 = vmatpush1.bf16.msra.mxu0 %v6532
        %6881 = vmatprep.subr.bf16.mxu0 0
        %6882 = vmatpush1.bf16.msra.mxu0 %v6537
        %6883 = vmatprep.subr.bf16.mxu0 0
        %6884 = vmatpush1.bf16.msra.mxu0 %v6542
        %6885 = vmatprep.subr.bf16.mxu0 0
        %6886 = vmatpush1.bf16.msra.mxu0 %v6547
        %6887 = vmatprep.subr.bf16.mxu0 0
        %6888 = vmatpush1.bf16.msra.mxu0 %v6552
        %6889 = vmatprep.subr.bf16.mxu0 0
        %6890 = vmatpush1.bf16.msra.mxu0 %v6557
        %6891 = vmatprep.subr.bf16.mxu0 0
        %6892 = vmatpush1.bf16.msra.mxu0 %v6645
        %6893 = vmatprep.subr.bf16.mxu0 0
        %6894 = vmatpush1.bf16.msra.mxu0 0
        %6895 = vmatprep.subr.bf16.mxu0 0
        %6896 = vmatpush1.bf16.msra.mxu0 0
        %6897 = vmatprep.subr.bf16.mxu0 0
        %6898 = vmatpush1.bf16.msra.mxu0 0
        %6899 = vmatprep.subr.bf16.mxu0 0
        %6900 = vmatpush1.bf16.msra.mxu0 0
        %6901 = vmatprep.subr.bf16.mxu0 0
        %6902 = vmatpush1.bf16.msra.mxu0 0
        %6903 = vmatprep.subr.bf16.mxu0 0
        %6904 = vmatpush1.bf16.msra.mxu0 0
        %6905 = vmatprep.mubr.bf16.mxu0 %v6609
        %6906 = vmatmul.mubr.bf16.gmra.mrb[0].mxu0 %v6250
        %v6907 = vpop.f32.mrb[0].mxu0
        %v6908 = vadd.f32 %v6347, %v6907
        %v6909 = vpop.f32.mrb[0].mxu0
        %v6910 = vpop.f32.mrb[0].mxu0
        %v6911 = vadd.f32 %v6347, %v6910
        %v6912 = vpop.f32.mrb[0].mxu0
        %6913 = vmatprep.mubr.bf16.mxu0 %v6612
        %6914 = vmatmul.mubr.bf16.gmra.mrb[0].mxu0 %v6252
        %v6915 = vpop.f32.mrb[0].mxu0
        %v6916 = vadd.f32 %v6347, %v6915
        %v6917 = vpop.f32.mrb[0].mxu0
        %v6918 = vpop.f32.mrb[0].mxu0
        %v6919 = vadd.f32 %v6347, %v6918
        %v6920 = vpop.f32.mrb[0].mxu0
        %6921 = vmatprep.mubr.bf16.mxu0 %v6615
        %6922 = vmatmul.mubr.bf16.gmra.mrb[0].mxu0 %v6254
        %v6923 = vpop.f32.mrb[0].mxu0
        %v6924 = vadd.f32 %v6347, %v6923
        %v6925 = vpop.f32.mrb[0].mxu0
        %v6926 = vpop.f32.mrb[0].mxu0
        %v6927 = vadd.f32 %v6347, %v6926
        %v6928 = vpop.f32.mrb[0].mxu0
        %6929 = vmatprep.mubr.bf16.mxu0 %v6618
        %6930 = vmatmul.mubr.bf16.gmra.mrb[0].mxu0 %v6256
        %v6931 = vpop.f32.mrb[0].mxu0
        %v6932 = vadd.f32 %v6347, %v6931
        %v6933 = vpop.f32.mrb[0].mxu0
        %v6934 = vpop.f32.mrb[0].mxu0
        %v6935 = vadd.f32 %v6347, %v6934
        %v6936 = vpop.f32.mrb[0].mxu0
        %6937 = vmatprep.mubr.bf16.mxu0 %v6621
        %6938 = vmatmul.mubr.bf16.gmra.mrb[0].mxu0 %v6258
        %v6939 = vpop.f32.mrb[0].mxu0
        %v6940 = vadd.f32 %v6347, %v6939
        %v6941 = vpop.f32.mrb[0].mxu0
        %v6942 = vpop.f32.mrb[0].mxu0
        %v6943 = vadd.f32 %v6347, %v6942
        %v6944 = vpop.f32.mrb[0].mxu0
        %6945 = vmatprep.mubr.bf16.mxu0 %v6624
        %6946 = vmatmul.mubr.bf16.gmra.mrb[0].mxu0 %v6260
        %v6947 = vpop.f32.mrb[0].mxu0
        %v6948 = vadd.f32 %v6347, %v6947
        %v6949 = vpop.f32.mrb[0].mxu0
        %v6950 = vpop.f32.mrb[0].mxu0
        %v6951 = vadd.f32 %v6347, %v6950
        %v6952 = vpop.f32.mrb[0].mxu0
        %6953 = vmatprep.mubr.bf16.mxu0 %v6627
        %6954 = vmatmul.mubr.bf16.gmra.mrb[0].mxu0 %v6262
        %v6955 = vpop.f32.mrb[0].mxu0
        %v6956 = vadd.f32 %v6347, %v6955
        %v6957 = vpop.f32.mrb[0].mxu0
        %v6958 = vpop.f32.mrb[0].mxu0
        %v6959 = vadd.f32 %v6347, %v6958
        %v6960 = vpop.f32.mrb[0].mxu0
        %6961 = vmatprep.mubr.bf16.mxu0 %v6630
        %6962 = vmatmul.mubr.bf16.gmra.mrb[0].mxu0 %v6264
        %v6963 = vpop.f32.mrb[0].mxu0
        %v6964 = vadd.f32 %v6347, %v6963
        %v6965 = vpop.f32.mrb[0].mxu0
        %v6966 = vpop.f32.mrb[0].mxu0
        %v6967 = vadd.f32 %v6347, %v6966
        %v6968 = vpop.f32.mrb[0].mxu0
        %6969 = vdwg.mxu0
        %v6970 = vmax.f32 %v6682, 0.0
        %v6971 = vmax.f32 %v6684, 0.0
        %v6972 = vmax.f32 %v6795, 0.0
        %v6973 = vmax.f32 %v6797, 0.0
        %v6974 = vmax.f32 %v6908, 0.0
        %v6975 = vmax.f32 %v6686, 0.0
        %v6976 = vmax.f32 %v6688, 0.0
        %v6977 = vmax.f32 %v6799, 0.0
        %v6978 = vmax.f32 %v6801, 0.0
        %v6979 = vmax.f32 %v6911, 0.0
        %v6980 = vmax.f32 %v6692, 0.0
        %v6981 = vmax.f32 %v6694, 0.0
        %v6982 = vmax.f32 %v6805, 0.0
        %v6983 = vmax.f32 %v6807, 0.0
        %v6984 = vmax.f32 %v6916, 0.0
        %v6985 = vmax.f32 %v6696, 0.0
        %v6986 = vmax.f32 %v6698, 0.0
        %v6987 = vmax.f32 %v6809, 0.0
        %v6988 = vmax.f32 %v6811, 0.0
        %v6989 = vmax.f32 %v6919, 0.0
        %v6990 = vmax.f32 %v6702, 0.0
        %v6991 = vmax.f32 %v6704, 0.0
        %v6992 = vmax.f32 %v6815, 0.0
        %v6993 = vmax.f32 %v6817, 0.0
        %v6994 = vmax.f32 %v6924, 0.0
        %v6995 = vmax.f32 %v6706, 0.0
        %v6996 = vmax.f32 %v6708, 0.0
        %v6997 = vmax.f32 %v6819, 0.0
        %v6998 = vmax.f32 %v6821, 0.0
        %v6999 = vmax.f32 %v6927, 0.0
        %v7000 = vmax.f32 %v6712, 0.0
        %v7001 = vmax.f32 %v6714, 0.0
        %v7002 = vmax.f32 %v6825, 0.0
        %v7003 = vmax.f32 %v6827, 0.0
        %v7004 = vmax.f32 %v6932, 0.0
        %v7005 = vmax.f32 %v6716, 0.0
        %v7006 = vmax.f32 %v6718, 0.0
        %v7007 = vmax.f32 %v6829, 0.0
        %v7008 = vmax.f32 %v6831, 0.0
        %v7009 = vmax.f32 %v6935, 0.0
        %v7010 = vmax.f32 %v6722, 0.0
        %v7011 = vmax.f32 %v6724, 0.0
        %v7012 = vmax.f32 %v6835, 0.0
        %v7013 = vmax.f32 %v6837, 0.0
        %v7014 = vmax.f32 %v6940, 0.0
        %v7015 = vmax.f32 %v6726, 0.0
        %v7016 = vmax.f32 %v6728, 0.0
        %v7017 = vmax.f32 %v6839, 0.0
        %v7018 = vmax.f32 %v6841, 0.0
        %v7019 = vmax.f32 %v6943, 0.0
        %v7020 = vmax.f32 %v6732, 0.0
        %v7021 = vmax.f32 %v6734, 0.0
        %v7022 = vmax.f32 %v6845, 0.0
        %v7023 = vmax.f32 %v6847, 0.0
        %v7024 = vmax.f32 %v6948, 0.0
        %v7025 = vmax.f32 %v6736, 0.0
        %v7026 = vmax.f32 %v6738, 0.0
        %v7027 = vmax.f32 %v6849, 0.0
        %v7028 = vmax.f32 %v6851, 0.0
        %v7029 = vmax.f32 %v6951, 0.0
        %v7030 = vmax.f32 %v6742, 0.0
        %v7031 = vmax.f32 %v6744, 0.0
        %v7032 = vmax.f32 %v6855, 0.0
        %v7033 = vmax.f32 %v6857, 0.0
        %v7034 = vmax.f32 %v6956, 0.0
        %v7035 = vmax.f32 %v6746, 0.0
        %v7036 = vmax.f32 %v6748, 0.0
        %v7037 = vmax.f32 %v6859, 0.0
        %v7038 = vmax.f32 %v6861, 0.0
        %v7039 = vmax.f32 %v6959, 0.0
        %v7040 = vmax.f32 %v6752, 0.0
        %v7041 = vmax.f32 %v6754, 0.0
        %v7042 = vmax.f32 %v6865, 0.0
        %v7043 = vmax.f32 %v6867, 0.0
        %v7044 = vmax.f32 %v6964, 0.0
        %v7045 = vmax.f32 %v6756, 0.0
        %v7046 = vmax.f32 %v6758, 0.0
        %v7047 = vmax.f32 %v6869, 0.0
        %v7048 = vmax.f32 %v6871, 0.0
        %v7049 = vmax.f32 %v6967, 0.0
        %v7050 = vpack.c.bf16 %v6975, %v6970
        %v7051 = vpack.c.bf16 %v6976, %v6971
        %v7052 = vpack.c.bf16 %v6977, %v6972
        %v7053 = vpack.c.bf16 %v6978, %v6973
        %v7054 = vpack.c.bf16 %v6979, %v6974
        %v7055 = vpack.c.bf16 %v6985, %v6980
        %v7056 = vpack.c.bf16 %v6986, %v6981
        %v7057 = vpack.c.bf16 %v6987, %v6982
        %v7058 = vpack.c.bf16 %v6988, %v6983
        %v7059 = vpack.c.bf16 %v6989, %v6984
        %v7060 = vpack.c.bf16 %v6995, %v6990
        %v7061 = vpack.c.bf16 %v6996, %v6991
        %v7062 = vpack.c.bf16 %v6997, %v6992
        %v7063 = vpack.c.bf16 %v6998, %v6993
        %v7064 = vpack.c.bf16 %v6999, %v6994
        %v7065 = vpack.c.bf16 %v7005, %v7000
        %v7066 = vpack.c.bf16 %v7006, %v7001
        %v7067 = vpack.c.bf16 %v7007, %v7002
        %v7068 = vpack.c.bf16 %v7008, %v7003
        %v7069 = vpack.c.bf16 %v7009, %v7004
        %v7070 = vpack.c.bf16 %v7015, %v7010
        %v7071 = vpack.c.bf16 %v7016, %v7011
        %v7072 = vpack.c.bf16 %v7017, %v7012
        %v7073 = vpack.c.bf16 %v7018, %v7013
        %v7074 = vpack.c.bf16 %v7019, %v7014
        %v7075 = vpack.c.bf16 %v7025, %v7020
        %v7076 = vpack.c.bf16 %v7026, %v7021
        %v7077 = vpack.c.bf16 %v7027, %v7022
        %v7078 = vpack.c.bf16 %v7028, %v7023
        %v7079 = vpack.c.bf16 %v7029, %v7024
        %v7080 = vpack.c.bf16 %v7035, %v7030
        %v7081 = vpack.c.bf16 %v7036, %v7031
        %v7082 = vpack.c.bf16 %v7037, %v7032
        %v7083 = vpack.c.bf16 %v7038, %v7033
        %v7084 = vpack.c.bf16 %v7039, %v7034
        %v7085 = vpack.c.bf16 %v7045, %v7040
        %v7086 = vpack.c.bf16 %v7046, %v7041
        %v7087 = vpack.c.bf16 %v7047, %v7042
        %v7088 = vpack.c.bf16 %v7048, %v7043
        %v7089 = vpack.c.bf16 %v7049, %v7044
        %v7090 = vld [vmem:[%s802] sm:$0xff]
        %v7091 = vld [vmem:[%s802 + $0x8] sm:$0xff]
        %v7092 = vld [vmem:[%s802 + $0x10] sm:$0xff]
        %v7093 = vld [vmem:[%s802 + $0x18] sm:$0xff]
        %v7094 = vld [vmem:[%s802 + $0x20] sm:$0xff]
        %v7095 = vld [vmem:[%s802 + $0x28] sm:$0xff]
        %v7096 = vld [vmem:[%s802 + $0x30] sm:$0xff]
        %v7097 = vld [vmem:[%s802 + $0x38] sm:$0xff]
        %v7098 = vld [vmem:[%s802 + $0x40] sm:$0xff]
        %v7099 = vld [vmem:[%s802 + $0x48] sm:$0xff]
        %v7100 = vld [vmem:[%s802 + $0x50] sm:$0xff]
        %v7101 = vld [vmem:[%s802 + $0x58] sm:$0xff]
        %v7102 = vld [vmem:[%s802 + $0x60] sm:$0xff]
        %v7103 = vld [vmem:[%s802 + $0x68] sm:$0xff]
        %v7104 = vld [vmem:[%s802 + $0x70] sm:$0xff]
        %v7105 = vld [vmem:[%s802 + $0x78] sm:$0xff]
        %v7106 = vld [vmem:[%s802 + $0x80] sm:$0xff]
        %v7107 = vld [vmem:[%s802 + $0x88] sm:$0xff]
        %v7108 = vld [vmem:[%s802 + $0x90] sm:$0xff]
        %v7109 = vld [vmem:[%s802 + $0x98] sm:$0xff]
        %v7110 = vld [vmem:[%s802 + $0xa0] sm:$0xff]
        %v7111 = vld [vmem:[%s802 + $0xa8] sm:$0xff]
        %v7112 = vld [vmem:[%s802 + $0xb0] sm:$0xff]
        %v7113 = vld [vmem:[%s802 + $0xb8] sm:$0xff]
        %v7114 = vld [vmem:[%s802 + $0xc0] sm:$0xff]
        %v7115 = vld [vmem:[%s802 + $0xc8] sm:$0xff]
        %v7116 = vld [vmem:[%s802 + $0xd0] sm:$0xff]
        %v7117 = vld [vmem:[%s802 + $0xd8] sm:$0xff]
        %v7118 = vld [vmem:[%s802 + $0xe0] sm:$0xff]
        %v7119 = vld [vmem:[%s802 + $0xe8] sm:$0xff]
        %v7120 = vld [vmem:[%s802 + $0xf0] sm:$0xff]
        %v7121 = vld [vmem:[%s802 + $0xf8] sm:$0xff]
        %v7122 = vld [vmem:[%s802 + $0x100] sm:$0xff]
        %v7123 = vld [vmem:[%s802 + $0x108] sm:$0xff]
        %v7124 = vld [vmem:[%s802 + $0x110] sm:$0xff]
        %v7125 = vld [vmem:[%s802 + $0x118] sm:$0xff]
        %v7126 = vld [vmem:[%s802 + $0x120] sm:$0xff]
        %v7127 = vld [vmem:[%s802 + $0x128] sm:$0xff]
        %v7128 = vld [vmem:[%s802 + $0x130] sm:$0xff]
        %v7129 = vld [vmem:[%s802 + $0x138] sm:$0xff]
        %v7130 = vld [vmem:[%s802 + $0x140] sm:$0xff]
        %v7131 = vld [vmem:[%s802 + $0x148] sm:$0xff]
        %v7132 = vld [vmem:[%s802 + $0x150] sm:$0xff]
        %v7133 = vld [vmem:[%s802 + $0x158] sm:$0xff]
        %v7134 = vld [vmem:[%s802 + $0x160] sm:$0xff]
        %v7135 = vld [vmem:[%s802 + $0x168] sm:$0xff]
        %v7136 = vld [vmem:[%s802 + $0x170] sm:$0xff]
        %v7137 = vld [vmem:[%s802 + $0x178] sm:$0xff]
        %v7138 = vld [vmem:[%s802 + $0x180] sm:$0xff]
        %v7139 = vld [vmem:[%s802 + $0x188] sm:$0xff]
        %v7140 = vld [vmem:[%s802 + $0x190] sm:$0xff]
        %v7141 = vld [vmem:[%s802 + $0x198] sm:$0xff]
        %v7142 = vld [vmem:[%s802 + $0x1a0] sm:$0xff]
        %v7143 = vld [vmem:[%s802 + $0x1a8] sm:$0xff]
        %v7144 = vld [vmem:[%s802 + $0x1b0] sm:$0xff]
        %v7145 = vld [vmem:[%s802 + $0x1b8] sm:$0xff]
        %v7146 = vld [vmem:[%s802 + $0x1c0] sm:$0xff]
        %v7147 = vld [vmem:[%s802 + $0x1c8] sm:$0xff]
        %v7148 = vld [vmem:[%s802 + $0x1d0] sm:$0xff]
        %v7149 = vld [vmem:[%s802 + $0x1d8] sm:$0xff]
        %v7150 = vld [vmem:[%s802 + $0x1e0] sm:$0xff]
        %v7151 = vld [vmem:[%s802 + $0x1e8] sm:$0xff]
        %v7152 = vld [vmem:[%s802 + $0x1f0] sm:$0xff]
        %v7153 = vld [vmem:[%s802 + $0x1f8] sm:$0xff]
        %v7154 = vld [vmem:[%s802 + $0x200] sm:$0xff]
        %v7155 = vld [vmem:[%s802 + $0x208] sm:$0xff]
        %v7156 = vld [vmem:[%s802 + $0x210] sm:$0xff]
        %v7157 = vld [vmem:[%s802 + $0x218] sm:$0xff]
        %v7158 = vld [vmem:[%s802 + $0x220] sm:$0xff]
        %v7159 = vld [vmem:[%s802 + $0x228] sm:$0xff]
        %v7160 = vld [vmem:[%s802 + $0x230] sm:$0xff]
        %v7161 = vld [vmem:[%s802 + $0x238] sm:$0xff]
        %v7162 = vld [vmem:[%s802 + $0x240] sm:$0xff]
        %v7163 = vld [vmem:[%s802 + $0x248] sm:$0xff]
        %v7164 = vld [vmem:[%s802 + $0x250] sm:$0xff]
        %v7165 = vld [vmem:[%s802 + $0x258] sm:$0xff]
        %v7166 = vld [vmem:[%s802 + $0x260] sm:$0xff]
        %v7167 = vld [vmem:[%s802 + $0x268] sm:$0xff]
        %v7168 = vld [vmem:[%s806] sm:$0x3]
        %v7170 = vlaneseq
        %v7171 = vshrl.u32 %v7170, 7
        %v7172 = vsub.s32 0, %v7171
        %v7173 = vrot.slane %v7168, %v7172
        %v7174 = vlaneseq
        %v7175 = vshrl.u32 %v7174, 7
        %v7176 = vsub.s32 1, %v7175
        %v7177 = vrot.slane %v7168, %v7176
        %v7258 = vunpack.c.l.b16 %v7090
        %v7259 = vunpack.c.h.b16 %v7090
        %v7260 = vunpack.c.l.b16 %v7091
        %v7261 = vunpack.c.h.b16 %v7091
        %v7262 = vunpack.c.l.b16 %v7092
        %v7263 = vunpack.c.h.b16 %v7092
        %v7264 = vunpack.c.l.b16 %v7093
        %v7265 = vunpack.c.h.b16 %v7093
        %v7266 = vunpack.c.l.b16 %v7094
        %v7267 = vunpack.c.h.b16 %v7094
        %v7268 = vunpack.c.l.b16 %v7095
        %v7269 = vunpack.c.h.b16 %v7095
        %v7270 = vunpack.c.l.b16 %v7096
        %v7271 = vunpack.c.h.b16 %v7096
        %v7272 = vunpack.c.l.b16 %v7097
        %v7273 = vunpack.c.h.b16 %v7097
        %v7274 = vunpack.c.l.b16 %v7098
        %v7275 = vunpack.c.h.b16 %v7098
        %v7276 = vunpack.c.l.b16 %v7099
        %v7277 = vunpack.c.h.b16 %v7099
        %v7278 = vunpack.c.l.b16 %v7100
        %v7279 = vunpack.c.h.b16 %v7100
        %v7280 = vunpack.c.l.b16 %v7101
        %v7281 = vunpack.c.h.b16 %v7101
        %v7282 = vunpack.c.l.b16 %v7102
        %v7283 = vunpack.c.h.b16 %v7102
        %v7284 = vunpack.c.l.b16 %v7103
        %v7285 = vunpack.c.h.b16 %v7103
        %v7286 = vunpack.c.l.b16 %v7104
        %v7287 = vunpack.c.h.b16 %v7104
        %v7288 = vunpack.c.l.b16 %v7105
        %v7289 = vunpack.c.h.b16 %v7105
        %v7290 = vunpack.c.l.b16 %v7106
        %v7291 = vunpack.c.h.b16 %v7106
        %v7292 = vunpack.c.l.b16 %v7107
        %v7293 = vunpack.c.h.b16 %v7107
        %v7294 = vunpack.c.l.b16 %v7108
        %v7295 = vunpack.c.h.b16 %v7108
        %v7296 = vunpack.c.l.b16 %v7109
        %v7297 = vunpack.c.h.b16 %v7109
        %v7298 = vunpack.c.l.b16 %v7110
        %v7299 = vunpack.c.h.b16 %v7110
        %v7300 = vunpack.c.l.b16 %v7111
        %v7301 = vunpack.c.h.b16 %v7111
        %v7302 = vunpack.c.l.b16 %v7112
        %v7303 = vunpack.c.h.b16 %v7112
        %v7304 = vunpack.c.l.b16 %v7113
        %v7305 = vunpack.c.h.b16 %v7113
        %v7306 = vunpack.c.l.b16 %v7114
        %v7307 = vunpack.c.h.b16 %v7114
        %v7308 = vunpack.c.l.b16 %v7115
        %v7309 = vunpack.c.h.b16 %v7115
        %v7310 = vunpack.c.l.b16 %v7116
        %v7311 = vunpack.c.h.b16 %v7116
        %v7312 = vunpack.c.l.b16 %v7117
        %v7313 = vunpack.c.h.b16 %v7117
        %v7314 = vunpack.c.l.b16 %v7118
        %v7315 = vunpack.c.h.b16 %v7118
        %v7316 = vunpack.c.l.b16 %v7119
        %v7317 = vunpack.c.h.b16 %v7119
        %v7318 = vunpack.c.l.b16 %v7120
        %v7319 = vunpack.c.h.b16 %v7120
        %v7320 = vunpack.c.l.b16 %v7121
        %v7321 = vunpack.c.h.b16 %v7121
        %v7322 = vunpack.c.l.b16 %v7122
        %v7323 = vunpack.c.h.b16 %v7122
        %v7324 = vunpack.c.l.b16 %v7123
        %v7325 = vunpack.c.h.b16 %v7123
        %v7326 = vunpack.c.l.b16 %v7124
        %v7327 = vunpack.c.h.b16 %v7124
        %v7328 = vunpack.c.l.b16 %v7125
        %v7329 = vunpack.c.h.b16 %v7125
        %v7330 = vunpack.c.l.b16 %v7126
        %v7331 = vunpack.c.h.b16 %v7126
        %v7332 = vunpack.c.l.b16 %v7127
        %v7333 = vunpack.c.h.b16 %v7127
        %v7334 = vunpack.c.l.b16 %v7128
        %v7335 = vunpack.c.h.b16 %v7128
        %v7336 = vunpack.c.l.b16 %v7129
        %v7337 = vunpack.c.h.b16 %v7129
        %v7338 = vunpack.c.l.b16 %v7130
        %v7339 = vunpack.c.h.b16 %v7130
        %v7340 = vunpack.c.l.b16 %v7131
        %v7341 = vunpack.c.h.b16 %v7131
        %v7342 = vunpack.c.l.b16 %v7132
        %v7343 = vunpack.c.h.b16 %v7132
        %v7344 = vunpack.c.l.b16 %v7133
        %v7345 = vunpack.c.h.b16 %v7133
        %v7346 = vunpack.c.l.b16 %v7134
        %v7347 = vunpack.c.h.b16 %v7134
        %v7348 = vunpack.c.l.b16 %v7135
        %v7349 = vunpack.c.h.b16 %v7135
        %v7350 = vunpack.c.l.b16 %v7136
        %v7351 = vunpack.c.h.b16 %v7136
        %v7352 = vunpack.c.l.b16 %v7137
        %v7353 = vunpack.c.h.b16 %v7137
        %v7354 = vunpack.c.l.b16 %v7138
        %v7355 = vunpack.c.h.b16 %v7138
        %v7356 = vunpack.c.l.b16 %v7139
        %v7357 = vunpack.c.h.b16 %v7139
        %v7358 = vunpack.c.l.b16 %v7140
        %v7359 = vunpack.c.h.b16 %v7140
        %v7360 = vunpack.c.l.b16 %v7141
        %v7361 = vunpack.c.h.b16 %v7141
        %v7362 = vunpack.c.l.b16 %v7142
        %v7363 = vunpack.c.h.b16 %v7142
        %v7364 = vunpack.c.l.b16 %v7143
        %v7365 = vunpack.c.h.b16 %v7143
        %v7366 = vunpack.c.l.b16 %v7144
        %v7367 = vunpack.c.h.b16 %v7144
        %v7368 = vunpack.c.l.b16 %v7145
        %v7369 = vunpack.c.h.b16 %v7145
        %v7370 = vunpack.c.l.b16 %v7146
        %v7371 = vunpack.c.h.b16 %v7146
        %v7372 = vunpack.c.l.b16 %v7147
        %v7373 = vunpack.c.h.b16 %v7147
        %v7374 = vunpack.c.l.b16 %v7148
        %v7375 = vunpack.c.h.b16 %v7148
        %v7376 = vunpack.c.l.b16 %v7149
        %v7377 = vunpack.c.h.b16 %v7149
        %v7378 = vunpack.c.l.b16 %v7150
        %v7379 = vunpack.c.h.b16 %v7150
        %v7380 = vunpack.c.l.b16 %v7151
        %v7381 = vunpack.c.h.b16 %v7151
        %v7382 = vunpack.c.l.b16 %v7152
        %v7383 = vunpack.c.h.b16 %v7152
        %v7384 = vunpack.c.l.b16 %v7153
        %v7385 = vunpack.c.h.b16 %v7153
        %v7386 = vunpack.c.l.b16 %v7154
        %v7387 = vunpack.c.h.b16 %v7154
        %v7388 = vunpack.c.l.b16 %v7155
        %v7389 = vunpack.c.h.b16 %v7155
        %v7390 = vunpack.c.l.b16 %v7156
        %v7391 = vunpack.c.h.b16 %v7156
        %v7392 = vunpack.c.l.b16 %v7157
        %v7393 = vunpack.c.h.b16 %v7157
        %v7394 = vunpack.c.l.b16 %v7158
        %v7395 = vunpack.c.h.b16 %v7158
        %v7396 = vunpack.c.l.b16 %v7159
        %v7397 = vunpack.c.h.b16 %v7159
        %v7398 = vunpack.c.l.b16 %v7160
        %v7399 = vunpack.c.h.b16 %v7160
        %v7400 = vunpack.c.l.b16 %v7161
        %v7401 = vunpack.c.h.b16 %v7161
        %v7402 = vunpack.c.l.b16 %v7162
        %v7403 = vunpack.c.h.b16 %v7162
        %v7404 = vunpack.c.l.b16 %v7163
        %v7405 = vunpack.c.h.b16 %v7163
        %v7406 = vunpack.c.l.b16 %v7164
        %v7407 = vunpack.c.h.b16 %v7164
        %v7408 = vunpack.c.l.b16 %v7165
        %v7409 = vunpack.c.h.b16 %v7165
        %v7410 = vunpack.c.l.b16 %v7166
        %v7411 = vunpack.c.h.b16 %v7166
        %v7412 = vunpack.c.l.b16 %v7167
        %v7413 = vunpack.c.h.b16 %v7167
        %v7414 = vpack.c.b16 %v7260, %v7258
        %v7415 = vpack.c.b16 %v7261, %v7259
        %v7416 = vpack.c.b16 %v7264, %v7262
        %v7417 = vpack.c.b16 %v7265, %v7263
        %v7418 = vpack.c.b16 %v7268, %v7266
        %v7419 = vpack.c.b16 %v7269, %v7267
        %v7420 = vpack.c.b16 %v7272, %v7270
        %v7421 = vpack.c.b16 %v7273, %v7271
        %v7422 = vpack.c.b16 %v7276, %v7274
        %v7423 = vpack.c.b16 %v7277, %v7275
        %v7424 = vpack.c.b16 %v7280, %v7278
        %v7425 = vpack.c.b16 %v7281, %v7279
        %v7426 = vpack.c.b16 %v7284, %v7282
        %v7427 = vpack.c.b16 %v7285, %v7283
        %v7428 = vpack.c.b16 %v7288, %v7286
        %v7429 = vpack.c.b16 %v7289, %v7287
        %v7430 = vpack.c.b16 %v7292, %v7290
        %v7431 = vpack.c.b16 %v7293, %v7291
        %v7432 = vpack.c.b16 %v7296, %v7294
        %v7433 = vpack.c.b16 %v7297, %v7295
        %v7434 = vpack.c.b16 %v7300, %v7298
        %v7435 = vpack.c.b16 %v7301, %v7299
        %v7436 = vpack.c.b16 %v7304, %v7302
        %v7437 = vpack.c.b16 %v7305, %v7303
        %v7438 = vpack.c.b16 %v7308, %v7306
        %v7439 = vpack.c.b16 %v7309, %v7307
        %v7440 = vpack.c.b16 %v7312, %v7310
        %v7441 = vpack.c.b16 %v7313, %v7311
        %v7442 = vpack.c.b16 %v7316, %v7314
        %v7443 = vpack.c.b16 %v7317, %v7315
        %v7444 = vpack.c.b16 %v7320, %v7318
        %v7445 = vpack.c.b16 %v7321, %v7319
        %v7446 = vpack.c.b16 %v7324, %v7322
        %v7447 = vpack.c.b16 %v7325, %v7323
        %v7448 = vpack.c.b16 %v7328, %v7326
        %v7449 = vpack.c.b16 %v7329, %v7327
        %v7450 = vpack.c.b16 %v7332, %v7330
        %v7451 = vpack.c.b16 %v7333, %v7331
        %v7452 = vpack.c.b16 %v7336, %v7334
        %v7453 = vpack.c.b16 %v7337, %v7335
        %v7454 = vpack.c.b16 %v7340, %v7338
        %v7455 = vpack.c.b16 %v7341, %v7339
        %v7456 = vpack.c.b16 %v7344, %v7342
        %v7457 = vpack.c.b16 %v7345, %v7343
        %v7458 = vpack.c.b16 %v7348, %v7346
        %v7459 = vpack.c.b16 %v7349, %v7347
        %v7460 = vpack.c.b16 %v7352, %v7350
        %v7461 = vpack.c.b16 %v7353, %v7351
        %v7462 = vpack.c.b16 %v7356, %v7354
        %v7463 = vpack.c.b16 %v7357, %v7355
        %v7464 = vpack.c.b16 %v7360, %v7358
        %v7465 = vpack.c.b16 %v7361, %v7359
        %v7466 = vpack.c.b16 %v7364, %v7362
        %v7467 = vpack.c.b16 %v7365, %v7363
        %v7468 = vpack.c.b16 %v7368, %v7366
        %v7469 = vpack.c.b16 %v7369, %v7367
        %v7470 = vpack.c.b16 %v7372, %v7370
        %v7471 = vpack.c.b16 %v7373, %v7371
        %v7472 = vpack.c.b16 %v7376, %v7374
        %v7473 = vpack.c.b16 %v7377, %v7375
        %v7474 = vpack.c.b16 %v7380, %v7378
        %v7475 = vpack.c.b16 %v7381, %v7379
        %v7476 = vpack.c.b16 %v7384, %v7382
        %v7477 = vpack.c.b16 %v7385, %v7383
        %v7478 = vpack.c.b16 %v7388, %v7386
        %v7479 = vpack.c.b16 %v7389, %v7387
        %v7480 = vpack.c.b16 %v7392, %v7390
        %v7481 = vpack.c.b16 %v7393, %v7391
        %v7482 = vpack.c.b16 %v7396, %v7394
        %v7483 = vpack.c.b16 %v7397, %v7395
        %v7484 = vpack.c.b16 %v7400, %v7398
        %v7485 = vpack.c.b16 %v7401, %v7399
        %v7486 = vpack.c.b16 %v7404, %v7402
        %v7487 = vpack.c.b16 %v7405, %v7403
        %v7488 = vpack.c.b16 %v7408, %v7406
        %v7489 = vpack.c.b16 %v7409, %v7407
        %v7490 = vpack.c.b16 %v7412, %v7410
        %v7491 = vpack.c.b16 %v7413, %v7411
        %vm7570 = vcmask 916480
        %v7572 = vsel %vm7570, %v7054, 0
        %v7575 = vsel %vm7570, %v7059, 0
        %v7578 = vsel %vm7570, %v7064, 0
        %v7581 = vsel %vm7570, %v7069, 0
        %v7584 = vsel %vm7570, %v7074, 0
        %v7587 = vsel %vm7570, %v7079, 0
        %v7590 = vsel %vm7570, %v7084, 0
        %v7593 = vsel %vm7570, %v7089, 0
        %7595 = vmatprep.subr.bf16.mxu0 %v7415
        %7596 = vmatpush1.bf16.msra.mxu0 %v7414
        %7597 = vmatprep.subr.bf16.mxu0 %v7417
        %7598 = vmatpush1.bf16.msra.mxu0 %v7416
        %7599 = vmatprep.subr.bf16.mxu0 %v7419
        %7600 = vmatpush1.bf16.msra.mxu0 %v7418
        %7601 = vmatprep.subr.bf16.mxu0 %v7421
        %7602 = vmatpush1.bf16.msra.mxu0 %v7420
        %7603 = vmatprep.subr.bf16.mxu0 %v7423
        %7604 = vmatpush1.bf16.msra.mxu0 %v7422
        %7605 = vmatprep.subr.bf16.mxu0 %v7425
        %7606 = vmatpush1.bf16.msra.mxu0 %v7424
        %7607 = vmatprep.subr.bf16.mxu0 %v7427
        %7608 = vmatpush1.bf16.msra.mxu0 %v7426
        %7609 = vmatprep.subr.bf16.mxu0 %v7429
        %7610 = vmatpush1.bf16.msra.mxu0 %v7428
        %7611 = vmatprep.subr.bf16.mxu0 %v7431
        %7612 = vmatpush1.bf16.msra.mxu0 %v7430
        %7613 = vmatprep.subr.bf16.mxu0 %v7433
        %7614 = vmatpush1.bf16.msra.mxu0 %v7432
        %7615 = vmatprep.subr.bf16.mxu0 %v7435
        %7616 = vmatpush1.bf16.msra.mxu0 %v7434
        %7617 = vmatprep.subr.bf16.mxu0 %v7437
        %7618 = vmatpush1.bf16.msra.mxu0 %v7436
        %7619 = vmatprep.subr.bf16.mxu0 %v7439
        %7620 = vmatpush1.bf16.msra.mxu0 %v7438
        %7621 = vmatprep.subr.bf16.mxu0 %v7441
        %7622 = vmatpush1.bf16.msra.mxu0 %v7440
        %7623 = vmatprep.subr.bf16.mxu0 %v7443
        %7624 = vmatpush1.bf16.msra.mxu0 %v7442
        %7625 = vmatprep.subr.bf16.mxu0 %v7445
        %7626 = vmatpush1.bf16.msra.mxu0 %v7444
        %7627 = vmatprep.mubr.bf16.mxu0 %v7051
        %7628 = vmatmul.mubr.bf16.gmra.mrb[0].mxu0 %v7050
        %v7629 = vpop.f32.mrb[0].mxu0
        %v7630 = vadd.f32 %v7173, %v7629
        %v7631 = vpop.f32.mrb[0].mxu0
        %v7632 = vadd.f32 %v7177, %v7631
        %v7633 = vpop.f32.mrb[0].mxu0
        %v7634 = vadd.f32 %v7173, %v7633
        %v7635 = vpop.f32.mrb[0].mxu0
        %v7636 = vadd.f32 %v7177, %v7635
        %7637 = vmatprep.mubr.bf16.mxu0 %v7056
        %7638 = vmatmul.mubr.bf16.gmra.mrb[0].mxu0 %v7055
        %v7639 = vpop.f32.mrb[0].mxu0
        %v7640 = vadd.f32 %v7173, %v7639
        %v7641 = vpop.f32.mrb[0].mxu0
        %v7642 = vadd.f32 %v7177, %v7641
        %v7643 = vpop.f32.mrb[0].mxu0
        %v7644 = vadd.f32 %v7173, %v7643
        %v7645 = vpop.f32.mrb[0].mxu0
        %v7646 = vadd.f32 %v7177, %v7645
        %7647 = vmatprep.mubr.bf16.mxu0 %v7061
        %7648 = vmatmul.mubr.bf16.gmra.mrb[0].mxu0 %v7060
        %v7649 = vpop.f32.mrb[0].mxu0
        %v7650 = vadd.f32 %v7173, %v7649
        %v7651 = vpop.f32.mrb[0].mxu0
        %v7652 = vadd.f32 %v7177, %v7651
        %v7653 = vpop.f32.mrb[0].mxu0
        %v7654 = vadd.f32 %v7173, %v7653
        %v7655 = vpop.f32.mrb[0].mxu0
        %v7656 = vadd.f32 %v7177, %v7655
        %7657 = vmatprep.mubr.bf16.mxu0 %v7066
        %7658 = vmatmul.mubr.bf16.gmra.mrb[0].mxu0 %v7065
        %v7659 = vpop.f32.mrb[0].mxu0
        %v7660 = vadd.f32 %v7173, %v7659
        %v7661 = vpop.f32.mrb[0].mxu0
        %v7662 = vadd.f32 %v7177, %v7661
        %v7663 = vpop.f32.mrb[0].mxu0
        %v7664 = vadd.f32 %v7173, %v7663
        %v7665 = vpop.f32.mrb[0].mxu0
        %v7666 = vadd.f32 %v7177, %v7665
        %7667 = vmatprep.mubr.bf16.mxu0 %v7071
        %7668 = vmatmul.mubr.bf16.gmra.mrb[0].mxu0 %v7070
        %v7669 = vpop.f32.mrb[0].mxu0
        %v7670 = vadd.f32 %v7173, %v7669
        %v7671 = vpop.f32.mrb[0].mxu0
        %v7672 = vadd.f32 %v7177, %v7671
        %v7673 = vpop.f32.mrb[0].mxu0
        %v7674 = vadd.f32 %v7173, %v7673
        %v7675 = vpop.f32.mrb[0].mxu0
        %v7676 = vadd.f32 %v7177, %v7675
        %7677 = vmatprep.mubr.bf16.mxu0 %v7076
        %7678 = vmatmul.mubr.bf16.gmra.mrb[0].mxu0 %v7075
        %v7679 = vpop.f32.mrb[0].mxu0
        %v7680 = vadd.f32 %v7173, %v7679
        %v7681 = vpop.f32.mrb[0].mxu0
        %v7682 = vadd.f32 %v7177, %v7681
        %v7683 = vpop.f32.mrb[0].mxu0
        %v7684 = vadd.f32 %v7173, %v7683
        %v7685 = vpop.f32.mrb[0].mxu0
        %v7686 = vadd.f32 %v7177, %v7685
        %7687 = vmatprep.mubr.bf16.mxu0 %v7081
        %7688 = vmatmul.mubr.bf16.gmra.mrb[0].mxu0 %v7080
        %v7689 = vpop.f32.mrb[0].mxu0
        %v7690 = vadd.f32 %v7173, %v7689
        %v7691 = vpop.f32.mrb[0].mxu0
        %v7692 = vadd.f32 %v7177, %v7691
        %v7693 = vpop.f32.mrb[0].mxu0
        %v7694 = vadd.f32 %v7173, %v7693
        %v7695 = vpop.f32.mrb[0].mxu0
        %v7696 = vadd.f32 %v7177, %v7695
        %7697 = vmatprep.mubr.bf16.mxu0 %v7086
        %7698 = vmatmul.mubr.bf16.gmra.mrb[0].mxu0 %v7085
        %v7699 = vpop.f32.mrb[0].mxu0
        %v7700 = vadd.f32 %v7173, %v7699
        %v7701 = vpop.f32.mrb[0].mxu0
        %v7702 = vadd.f32 %v7177, %v7701
        %v7703 = vpop.f32.mrb[0].mxu0
        %v7704 = vadd.f32 %v7173, %v7703
        %v7705 = vpop.f32.mrb[0].mxu0
        %v7706 = vadd.f32 %v7177, %v7705
        %7707 = vdwg.mxu0
        %7708 = vmatprep.subr.bf16.mxu0 %v7447
        %7709 = vmatpush1.bf16.msra.mxu0 %v7446
        %7710 = vmatprep.subr.bf16.mxu0 %v7449
        %7711 = vmatpush1.bf16.msra.mxu0 %v7448
        %7712 = vmatprep.subr.bf16.mxu0 %v7451
        %7713 = vmatpush1.bf16.msra.mxu0 %v7450
        %7714 = vmatprep.subr.bf16.mxu0 %v7453
        %7715 = vmatpush1.bf16.msra.mxu0 %v7452
        %7716 = vmatprep.subr.bf16.mxu0 %v7455
        %7717 = vmatpush1.bf16.msra.mxu0 %v7454
        %7718 = vmatprep.subr.bf16.mxu0 %v7457
        %7719 = vmatpush1.bf16.msra.mxu0 %v7456
        %7720 = vmatprep.subr.bf16.mxu0 %v7459
        %7721 = vmatpush1.bf16.msra.mxu0 %v7458
        %7722 = vmatprep.subr.bf16.mxu0 %v7461
        %7723 = vmatpush1.bf16.msra.mxu0 %v7460
        %7724 = vmatprep.subr.bf16.mxu0 %v7463
        %7725 = vmatpush1.bf16.msra.mxu0 %v7462
        %7726 = vmatprep.subr.bf16.mxu0 %v7465
        %7727 = vmatpush1.bf16.msra.mxu0 %v7464
        %7728 = vmatprep.subr.bf16.mxu0 %v7467
        %7729 = vmatpush1.bf16.msra.mxu0 %v7466
        %7730 = vmatprep.subr.bf16.mxu0 %v7469
        %7731 = vmatpush1.bf16.msra.mxu0 %v7468
        %7732 = vmatprep.subr.bf16.mxu0 %v7471
        %7733 = vmatpush1.bf16.msra.mxu0 %v7470
        %7734 = vmatprep.subr.bf16.mxu0 %v7473
        %7735 = vmatpush1.bf16.msra.mxu0 %v7472
        %7736 = vmatprep.subr.bf16.mxu0 %v7475
        %7737 = vmatpush1.bf16.msra.mxu0 %v7474
        %7738 = vmatprep.subr.bf16.mxu0 %v7477
        %7739 = vmatpush1.bf16.msra.mxu0 %v7476
        %7740 = vmatprep.mubr.bf16.mxu0 %v7053
        %7741 = vmatmul.mubr.bf16.gmra.mrb[0].mxu0 %v7052
        %v7742 = vpop.f32.mrb[0].mxu0
        %v7743 = vadd.f32 %v7630, %v7742
        %v7744 = vpop.f32.mrb[0].mxu0
        %v7745 = vadd.f32 %v7632, %v7744
        %v7746 = vpop.f32.mrb[0].mxu0
        %v7747 = vadd.f32 %v7634, %v7746
        %v7748 = vpop.f32.mrb[0].mxu0
        %v7749 = vadd.f32 %v7636, %v7748
        %7750 = vmatprep.mubr.bf16.mxu0 %v7058
        %7751 = vmatmul.mubr.bf16.gmra.mrb[0].mxu0 %v7057
        %v7752 = vpop.f32.mrb[0].mxu0
        %v7753 = vadd.f32 %v7640, %v7752
        %v7754 = vpop.f32.mrb[0].mxu0
        %v7755 = vadd.f32 %v7642, %v7754
        %v7756 = vpop.f32.mrb[0].mxu0
        %v7757 = vadd.f32 %v7644, %v7756
        %v7758 = vpop.f32.mrb[0].mxu0
        %v7759 = vadd.f32 %v7646, %v7758
        %7760 = vmatprep.mubr.bf16.mxu0 %v7063
        %7761 = vmatmul.mubr.bf16.gmra.mrb[0].mxu0 %v7062
        %v7762 = vpop.f32.mrb[0].mxu0
        %v7763 = vadd.f32 %v7650, %v7762
        %v7764 = vpop.f32.mrb[0].mxu0
        %v7765 = vadd.f32 %v7652, %v7764
        %v7766 = vpop.f32.mrb[0].mxu0
        %v7767 = vadd.f32 %v7654, %v7766
        %v7768 = vpop.f32.mrb[0].mxu0
        %v7769 = vadd.f32 %v7656, %v7768
        %7770 = vmatprep.mubr.bf16.mxu0 %v7068
        %7771 = vmatmul.mubr.bf16.gmra.mrb[0].mxu0 %v7067
        %v7772 = vpop.f32.mrb[0].mxu0
        %v7773 = vadd.f32 %v7660, %v7772
        %v7774 = vpop.f32.mrb[0].mxu0
        %v7775 = vadd.f32 %v7662, %v7774
        %v7776 = vpop.f32.mrb[0].mxu0
        %v7777 = vadd.f32 %v7664, %v7776
        %v7778 = vpop.f32.mrb[0].mxu0
        %v7779 = vadd.f32 %v7666, %v7778
        %7780 = vmatprep.mubr.bf16.mxu0 %v7073
        %7781 = vmatmul.mubr.bf16.gmra.mrb[0].mxu0 %v7072
        %v7782 = vpop.f32.mrb[0].mxu0
        %v7783 = vadd.f32 %v7670, %v7782
        %v7784 = vpop.f32.mrb[0].mxu0
        %v7785 = vadd.f32 %v7672, %v7784
        %v7786 = vpop.f32.mrb[0].mxu0
        %v7787 = vadd.f32 %v7674, %v7786
        %v7788 = vpop.f32.mrb[0].mxu0
        %v7789 = vadd.f32 %v7676, %v7788
        %7790 = vmatprep.mubr.bf16.mxu0 %v7078
        %7791 = vmatmul.mubr.bf16.gmra.mrb[0].mxu0 %v7077
        %v7792 = vpop.f32.mrb[0].mxu0
        %v7793 = vadd.f32 %v7680, %v7792
        %v7794 = vpop.f32.mrb[0].mxu0
        %v7795 = vadd.f32 %v7682, %v7794
        %v7796 = vpop.f32.mrb[0].mxu0
        %v7797 = vadd.f32 %v7684, %v7796
        %v7798 = vpop.f32.mrb[0].mxu0
        %v7799 = vadd.f32 %v7686, %v7798
        %7800 = vmatprep.mubr.bf16.mxu0 %v7083
        %7801 = vmatmul.mubr.bf16.gmra.mrb[0].mxu0 %v7082
        %v7802 = vpop.f32.mrb[0].mxu0
        %v7803 = vadd.f32 %v7690, %v7802
        %v7804 = vpop.f32.mrb[0].mxu0
        %v7805 = vadd.f32 %v7692, %v7804
        %v7806 = vpop.f32.mrb[0].mxu0
        %v7807 = vadd.f32 %v7694, %v7806
        %v7808 = vpop.f32.mrb[0].mxu0
        %v7809 = vadd.f32 %v7696, %v7808
        %7810 = vmatprep.mubr.bf16.mxu0 %v7088
        %7811 = vmatmul.mubr.bf16.gmra.mrb[0].mxu0 %v7087
        %v7812 = vpop.f32.mrb[0].mxu0
        %v7813 = vadd.f32 %v7700, %v7812
        %v7814 = vpop.f32.mrb[0].mxu0
        %v7815 = vadd.f32 %v7702, %v7814
        %v7816 = vpop.f32.mrb[0].mxu0
        %v7817 = vadd.f32 %v7704, %v7816
        %v7818 = vpop.f32.mrb[0].mxu0
        %v7819 = vadd.f32 %v7706, %v7818
        %7820 = vdwg.mxu0
        %7821 = vmatprep.subr.bf16.mxu0 %v7479
        %7822 = vmatpush1.bf16.msra.mxu0 %v7478
        %7823 = vmatprep.subr.bf16.mxu0 %v7481
        %7824 = vmatpush1.bf16.msra.mxu0 %v7480
        %7825 = vmatprep.subr.bf16.mxu0 %v7483
        %7826 = vmatpush1.bf16.msra.mxu0 %v7482
        %7827 = vmatprep.subr.bf16.mxu0 %v7485
        %7828 = vmatpush1.bf16.msra.mxu0 %v7484
        %7829 = vmatprep.subr.bf16.mxu0 %v7487
        %7830 = vmatpush1.bf16.msra.mxu0 %v7486
        %7831 = vmatprep.subr.bf16.mxu0 %v7489
        %7832 = vmatpush1.bf16.msra.mxu0 %v7488
        %7833 = vmatprep.subr.bf16.mxu0 %v7491
        %7834 = vmatpush1.bf16.msra.mxu0 %v7490
        %7835 = vmatprep.subr.bf16.mxu0 0
        %7836 = vmatpush1.bf16.msra.mxu0 0
        %7837 = vmatprep.subr.bf16.mxu0 0
        %7838 = vmatpush1.bf16.msra.mxu0 0
        %7839 = vmatprep.subr.bf16.mxu0 0
        %7840 = vmatpush1.bf16.msra.mxu0 0
        %7841 = vmatprep.subr.bf16.mxu0 0
        %7842 = vmatpush1.bf16.msra.mxu0 0
        %7843 = vmatprep.subr.bf16.mxu0 0
        %7844 = vmatpush1.bf16.msra.mxu0 0
        %7845 = vmatprep.subr.bf16.mxu0 0
        %7846 = vmatpush1.bf16.msra.mxu0 0
        %7847 = vmatprep.subr.bf16.mxu0 0
        %7848 = vmatpush1.bf16.msra.mxu0 0
        %7849 = vmatprep.subr.bf16.mxu0 0
        %7850 = vmatpush1.bf16.msra.mxu0 0
        %7851 = vmatprep.subr.bf16.mxu0 0
        %7852 = vmatpush1.bf16.msra.mxu0 0
        %7853 = vmatprep.mubr.bf16.mxu0 0
        %7854 = vmatmul.mubr.bf16.gmra.mrb[0].mxu0 %v7572
        %v7855 = vpop.f32.mrb[0].mxu0
        %v7856 = vadd.f32 %v7743, %v7855
        %v7857 = vpop.f32.mrb[0].mxu0
        %v7858 = vadd.f32 %v7745, %v7857
        %v7859 = vpop.f32.mrb[0].mxu0
        %v7860 = vadd.f32 %v7747, %v7859
        %v7861 = vpop.f32.mrb[0].mxu0
        %v7862 = vadd.f32 %v7749, %v7861
        %7863 = vmatprep.mubr.bf16.mxu0 0
        %7864 = vmatmul.mubr.bf16.gmra.mrb[0].mxu0 %v7575
        %v7865 = vpop.f32.mrb[0].mxu0
        %v7866 = vadd.f32 %v7753, %v7865
        %v7867 = vpop.f32.mrb[0].mxu0
        %v7868 = vadd.f32 %v7755, %v7867
        %v7869 = vpop.f32.mrb[0].mxu0
        %v7870 = vadd.f32 %v7757, %v7869
        %v7871 = vpop.f32.mrb[0].mxu0
        %v7872 = vadd.f32 %v7759, %v7871
        %7873 = vmatprep.mubr.bf16.mxu0 0
        %7874 = vmatmul.mubr.bf16.gmra.mrb[0].mxu0 %v7578
        %v7875 = vpop.f32.mrb[0].mxu0
        %v7876 = vadd.f32 %v7763, %v7875
        %v7877 = vpop.f32.mrb[0].mxu0
        %v7878 = vadd.f32 %v7765, %v7877
        %v7879 = vpop.f32.mrb[0].mxu0
        %v7880 = vadd.f32 %v7767, %v7879
        %v7881 = vpop.f32.mrb[0].mxu0
        %v7882 = vadd.f32 %v7769, %v7881
        %7883 = vmatprep.mubr.bf16.mxu0 0
        %7884 = vmatmul.mubr.bf16.gmra.mrb[0].mxu0 %v7581
        %v7885 = vpop.f32.mrb[0].mxu0
        %v7886 = vadd.f32 %v7773, %v7885
        %v7887 = vpop.f32.mrb[0].mxu0
        %v7888 = vadd.f32 %v7775, %v7887
        %v7889 = vpop.f32.mrb[0].mxu0
        %v7890 = vadd.f32 %v7777, %v7889
        %v7891 = vpop.f32.mrb[0].mxu0
        %v7892 = vadd.f32 %v7779, %v7891
        %7893 = vmatprep.mubr.bf16.mxu0 0
        %7894 = vmatmul.mubr.bf16.gmra.mrb[0].mxu0 %v7584
        %v7895 = vpop.f32.mrb[0].mxu0
        %v7896 = vadd.f32 %v7783, %v7895
        %v7897 = vpop.f32.mrb[0].mxu0
        %v7898 = vadd.f32 %v7785, %v7897
        %v7899 = vpop.f32.mrb[0].mxu0
        %v7900 = vadd.f32 %v7787, %v7899
        %v7901 = vpop.f32.mrb[0].mxu0
        %v7902 = vadd.f32 %v7789, %v7901
        %7903 = vmatprep.mubr.bf16.mxu0 0
        %7904 = vmatmul.mubr.bf16.gmra.mrb[0].mxu0 %v7587
        %v7905 = vpop.f32.mrb[0].mxu0
        %v7906 = vadd.f32 %v7793, %v7905
        %v7907 = vpop.f32.mrb[0].mxu0
        %v7908 = vadd.f32 %v7795, %v7907
        %v7909 = vpop.f32.mrb[0].mxu0
        %v7910 = vadd.f32 %v7797, %v7909
        %v7911 = vpop.f32.mrb[0].mxu0
        %v7912 = vadd.f32 %v7799, %v7911
        %7913 = vmatprep.mubr.bf16.mxu0 0
        %7914 = vmatmul.mubr.bf16.gmra.mrb[0].mxu0 %v7590
        %v7915 = vpop.f32.mrb[0].mxu0
        %v7916 = vadd.f32 %v7803, %v7915
        %v7917 = vpop.f32.mrb[0].mxu0
        %v7918 = vadd.f32 %v7805, %v7917
        %v7919 = vpop.f32.mrb[0].mxu0
        %v7920 = vadd.f32 %v7807, %v7919
        %v7921 = vpop.f32.mrb[0].mxu0
        %v7922 = vadd.f32 %v7809, %v7921
        %7923 = vmatprep.mubr.bf16.mxu0 0
        %7924 = vmatmul.mubr.bf16.gmra.mrb[0].mxu0 %v7593
        %v7925 = vpop.f32.mrb[0].mxu0
        %v7926 = vadd.f32 %v7813, %v7925
        %v7927 = vpop.f32.mrb[0].mxu0
        %v7928 = vadd.f32 %v7815, %v7927
        %v7929 = vpop.f32.mrb[0].mxu0
        %v7930 = vadd.f32 %v7817, %v7929
        %v7931 = vpop.f32.mrb[0].mxu0
        %v7932 = vadd.f32 %v7819, %v7931
        %7933 = vdwg.mxu0
        %v7934 = vadd.f32 %v5810, %v7856
        %v7935 = vadd.f32 %v5811, %v7858
        %v7936 = vadd.f32 %v5812, %v7860
        %v7937 = vadd.f32 %v5813, %v7862
        %v7938 = vadd.f32 %v5814, %v7866
        %v7939 = vadd.f32 %v5815, %v7868
        %v7940 = vadd.f32 %v5816, %v7870
        %v7941 = vadd.f32 %v5817, %v7872
        %v7942 = vadd.f32 %v5818, %v7876
        %v7943 = vadd.f32 %v5819, %v7878
        %v7944 = vadd.f32 %v5820, %v7880
        %v7945 = vadd.f32 %v5821, %v7882
        %v7946 = vadd.f32 %v5822, %v7886
        %v7947 = vadd.f32 %v5823, %v7888
        %v7948 = vadd.f32 %v5824, %v7890
        %v7949 = vadd.f32 %v5825, %v7892
        %v7950 = vadd.f32 %v5826, %v7896
        %v7951 = vadd.f32 %v5827, %v7898
        %v7952 = vadd.f32 %v5828, %v7900
        %v7953 = vadd.f32 %v5829, %v7902
        %v7954 = vadd.f32 %v5830, %v7906
        %v7955 = vadd.f32 %v5831, %v7908
        %v7956 = vadd.f32 %v5832, %v7910
        %v7957 = vadd.f32 %v5833, %v7912
        %v7958 = vadd.f32 %v5834, %v7916
        %v7959 = vadd.f32 %v5835, %v7918
        %v7960 = vadd.f32 %v5836, %v7920
        %v7961 = vadd.f32 %v5837, %v7922
        %v7962 = vadd.f32 %v5838, %v7926
        %v7963 = vadd.f32 %v5839, %v7928
        %v7964 = vadd.f32 %v5840, %v7930
        %v7965 = vadd.f32 %v5841, %v7932
        %7966 = vst [vmem:[#allocation2] sm:$0xff] %v7934
        %7967 = vst.msk [vmem:[#allocation2 + $0x8] sm:$0xff] %vm928, %v7935
        %7968 = vst [vmem:[#allocation2 + $0x10] sm:$0xff] %v7936
        %7969 = vst.msk [vmem:[#allocation2 + $0x18] sm:$0xff] %vm928, %v7937
        %7970 = vst [vmem:[#allocation2 + $0x20] sm:$0xff] %v7938
        %7971 = vst.msk [vmem:[#allocation2 + $0x28] sm:$0xff] %vm928, %v7939
        %7972 = vst [vmem:[#allocation2 + $0x30] sm:$0xff] %v7940
        %7973 = vst.msk [vmem:[#allocation2 + $0x38] sm:$0xff] %vm928, %v7941
        %7974 = vst [vmem:[#allocation2 + $0x40] sm:$0xff] %v7942
        %7975 = vst.msk [vmem:[#allocation2 + $0x48] sm:$0xff] %vm928, %v7943
        %7976 = vst [vmem:[#allocation2 + $0x50] sm:$0xff] %v7944
        %7977 = vst.msk [vmem:[#allocation2 + $0x58] sm:$0xff] %vm928, %v7945
        %7978 = vst [vmem:[#allocation2 + $0x60] sm:$0xff] %v7946
        %7979 = vst.msk [vmem:[#allocation2 + $0x68] sm:$0xff] %vm928, %v7947
        %7980 = vst [vmem:[#allocation2 + $0x70] sm:$0xff] %v7948
        %7981 = vst.msk [vmem:[#allocation2 + $0x78] sm:$0xff] %vm928, %v7949
        %7982 = vst [vmem:[#allocation2 + $0x80] sm:$0xff] %v7950
        %7983 = vst.msk [vmem:[#allocation2 + $0x88] sm:$0xff] %vm928, %v7951
        %7984 = vst [vmem:[#allocation2 + $0x90] sm:$0xff] %v7952
        %7985 = vst.msk [vmem:[#allocation2 + $0x98] sm:$0xff] %vm928, %v7953
        %7986 = vst [vmem:[#allocation2 + $0xa0] sm:$0xff] %v7954
        %7987 = vst.msk [vmem:[#allocation2 + $0xa8] sm:$0xff] %vm928, %v7955
        %7988 = vst [vmem:[#allocation2 + $0xb0] sm:$0xff] %v7956
        %7989 = vst.msk [vmem:[#allocation2 + $0xb8] sm:$0xff] %vm928, %v7957
        %7990 = vst [vmem:[#allocation2 + $0xc0] sm:$0xff] %v7958
        %7991 = vst.msk [vmem:[#allocation2 + $0xc8] sm:$0xff] %vm928, %v7959
        %7992 = vst [vmem:[#allocation2 + $0xd0] sm:$0xff] %v7960
        %7993 = vst.msk [vmem:[#allocation2 + $0xd8] sm:$0xff] %vm928, %v7961
        %7994 = vst [vmem:[#allocation2 + $0xe0] sm:$0xff] %v7962
        %7995 = vst.msk [vmem:[#allocation2 + $0xe8] sm:$0xff] %vm928, %v7963
        %7996 = vst [vmem:[#allocation2 + $0xf0] sm:$0xff] %v7964
        %7997 = vst.msk [vmem:[#allocation2 + $0xf8] sm:$0xff] %vm928, %v7965
        %p7998 = scmp.eq.s32.totalorder %s37, 5
        // Predicated region
        $region97: #{tpu_custom_call.1} parent=91 // pred_check
          %p7999 = pneg %p7998
        $region98: #{tpu_custom_call.1} parent=91 // pred_check_branch
          %8001 = sbr.rel (%p7999) target = $region100
        $region99: #{tpu_custom_call.1} parent=91 // pred_region
          %v8002 = vld [vmem:[%s14] sm:$0x3]
          %v8003 = vld [vmem:[%s15] sm:$0x3]
          %v8004 = vsel %vm928, %v7935, 0.0
          %v8005 = vadd.f32 %v7934, %v8004
          %8006 = vadd.xlane.f32.xlu0 %v8005
          %v8007 = vpop.xlane.xlu0 %8006
          %v8008 = vsel %vm928, %v7937, 0.0
          %v8009 = vadd.f32 %v7936, %v8008
          %8010 = vadd.xlane.f32.xlu0 %v8009
          %v8011 = vpop.xlane.xlu0 %8010
          %v8012 = vsel %vm928, %v7939, 0.0
          %v8013 = vadd.f32 %v7938, %v8012
          %8014 = vadd.xlane.f32.xlu0 %v8013
          %v8015 = vpop.xlane.xlu0 %8014
          %v8016 = vsel %vm928, %v7941, 0.0
          %v8017 = vadd.f32 %v7940, %v8016
          %8018 = vadd.xlane.f32.xlu0 %v8017
          %v8019 = vpop.xlane.xlu0 %8018
          %v8020 = vsel %vm928, %v7943, 0.0
          %v8021 = vadd.f32 %v7942, %v8020
          %8022 = vadd.xlane.f32.xlu0 %v8021
          %v8023 = vpop.xlane.xlu0 %8022
          %v8024 = vsel %vm928, %v7945, 0.0
          %v8025 = vadd.f32 %v7944, %v8024
          %8026 = vadd.xlane.f32.xlu0 %v8025
          %v8027 = vpop.xlane.xlu0 %8026
          %v8028 = vsel %vm928, %v7947, 0.0
          %v8029 = vadd.f32 %v7946, %v8028
          %8030 = vadd.xlane.f32.xlu0 %v8029
          %v8031 = vpop.xlane.xlu0 %8030
          %v8032 = vsel %vm928, %v7949, 0.0
          %v8033 = vadd.f32 %v7948, %v8032
          %8034 = vadd.xlane.f32.xlu0 %v8033
          %v8035 = vpop.xlane.xlu0 %8034
          %v8036 = vsel %vm928, %v7951, 0.0
          %v8037 = vadd.f32 %v7950, %v8036
          %8038 = vadd.xlane.f32.xlu0 %v8037
          %v8039 = vpop.xlane.xlu0 %8038
          %v8040 = vsel %vm928, %v7953, 0.0
          %v8041 = vadd.f32 %v7952, %v8040
          %8042 = vadd.xlane.f32.xlu0 %v8041
          %v8043 = vpop.xlane.xlu0 %8042
          %v8044 = vsel %vm928, %v7955, 0.0
          %v8045 = vadd.f32 %v7954, %v8044
          %8046 = vadd.xlane.f32.xlu0 %v8045
          %v8047 = vpop.xlane.xlu0 %8046
          %v8048 = vsel %vm928, %v7957, 0.0
          %v8049 = vadd.f32 %v7956, %v8048
          %8050 = vadd.xlane.f32.xlu0 %v8049
          %v8051 = vpop.xlane.xlu0 %8050
          %v8052 = vsel %vm928, %v7959, 0.0
          %v8053 = vadd.f32 %v7958, %v8052
          %8054 = vadd.xlane.f32.xlu0 %v8053
          %v8055 = vpop.xlane.xlu0 %8054
          %v8056 = vsel %vm928, %v7961, 0.0
          %v8057 = vadd.f32 %v7960, %v8056
          %8058 = vadd.xlane.f32.xlu0 %v8057
          %v8059 = vpop.xlane.xlu0 %8058
          %v8060 = vsel %vm928, %v7963, 0.0
          %v8061 = vadd.f32 %v7962, %v8060
          %8062 = vadd.xlane.f32.xlu0 %v8061
          %v8063 = vpop.xlane.xlu0 %8062
          %v8064 = vsel %vm928, %v7965, 0.0
          %v8065 = vadd.f32 %v7964, %v8064
          %8066 = vadd.xlane.f32.xlu0 %v8065
          %v8067 = vpop.xlane.xlu0 %8066
          %v8068 = vmul.f32 %v8007, %v993
          %v8069 = vmul.f32 %v8011, %v993
          %v8070 = vmul.f32 %v8015, %v993
          %v8071 = vmul.f32 %v8019, %v993
          %v8072 = vmul.f32 %v8023, %v993
          %v8073 = vmul.f32 %v8027, %v993
          %v8074 = vmul.f32 %v8031, %v993
          %v8075 = vmul.f32 %v8035, %v993
          %v8076 = vmul.f32 %v8039, %v993
          %v8077 = vmul.f32 %v8043, %v993
          %v8078 = vmul.f32 %v8047, %v993
          %v8079 = vmul.f32 %v8051, %v993
          %v8080 = vmul.f32 %v8055, %v993
          %v8081 = vmul.f32 %v8059, %v993
          %v8082 = vmul.f32 %v8063, %v993
          %v8083 = vmul.f32 %v8067, %v993
          %v8084 = vmul.f32 %v7934, %v7934
          %v8085 = vmul.f32 %v7935, %v7935
          %v8086 = vmul.f32 %v7936, %v7936
          %v8087 = vmul.f32 %v7937, %v7937
          %v8088 = vmul.f32 %v7938, %v7938
          %v8089 = vmul.f32 %v7939, %v7939
          %v8090 = vmul.f32 %v7940, %v7940
          %v8091 = vmul.f32 %v7941, %v7941
          %v8092 = vmul.f32 %v7942, %v7942
          %v8093 = vmul.f32 %v7943, %v7943
          %v8094 = vmul.f32 %v7944, %v7944
          %v8095 = vmul.f32 %v7945, %v7945
          %v8096 = vmul.f32 %v7946, %v7946
          %v8097 = vmul.f32 %v7947, %v7947
          %v8098 = vmul.f32 %v7948, %v7948
          %v8099 = vmul.f32 %v7949, %v7949
          %v8100 = vmul.f32 %v7950, %v7950
          %v8101 = vmul.f32 %v7951, %v7951
          %v8102 = vmul.f32 %v7952, %v7952
          %v8103 = vmul.f32 %v7953, %v7953
          %v8104 = vmul.f32 %v7954, %v7954
          %v8105 = vmul.f32 %v7955, %v7955
          %v8106 = vmul.f32 %v7956, %v7956
          %v8107 = vmul.f32 %v7957, %v7957
          %v8108 = vmul.f32 %v7958, %v7958
          %v8109 = vmul.f32 %v7959, %v7959
          %v8110 = vmul.f32 %v7960, %v7960
          %v8111 = vmul.f32 %v7961, %v7961
          %v8112 = vmul.f32 %v7962, %v7962
          %v8113 = vmul.f32 %v7963, %v7963
          %v8114 = vmul.f32 %v7964, %v7964
          %v8115 = vmul.f32 %v7965, %v7965
          %v8116 = vsel %vm928, %v8085, 0.0
          %v8117 = vadd.f32 %v8084, %v8116
          %8118 = vadd.xlane.f32.xlu0 %v8117
          %v8119 = vpop.xlane.xlu0 %8118
          %v8120 = vsel %vm928, %v8087, 0.0
          %v8121 = vadd.f32 %v8086, %v8120
          %8122 = vadd.xlane.f32.xlu0 %v8121
          %v8123 = vpop.xlane.xlu0 %8122
          %v8124 = vsel %vm928, %v8089, 0.0
          %v8125 = vadd.f32 %v8088, %v8124
          %8126 = vadd.xlane.f32.xlu0 %v8125
          %v8127 = vpop.xlane.xlu0 %8126
          %v8128 = vsel %vm928, %v8091, 0.0
          %v8129 = vadd.f32 %v8090, %v8128
          %8130 = vadd.xlane.f32.xlu0 %v8129
          %v8131 = vpop.xlane.xlu0 %8130
          %v8132 = vsel %vm928, %v8093, 0.0
          %v8133 = vadd.f32 %v8092, %v8132
          %8134 = vadd.xlane.f32.xlu0 %v8133
          %v8135 = vpop.xlane.xlu0 %8134
          %v8136 = vsel %vm928, %v8095, 0.0
          %v8137 = vadd.f32 %v8094, %v8136
          %8138 = vadd.xlane.f32.xlu0 %v8137
          %v8139 = vpop.xlane.xlu0 %8138
          %v8140 = vsel %vm928, %v8097, 0.0
          %v8141 = vadd.f32 %v8096, %v8140
          %8142 = vadd.xlane.f32.xlu0 %v8141
          %v8143 = vpop.xlane.xlu0 %8142
          %v8144 = vsel %vm928, %v8099, 0.0
          %v8145 = vadd.f32 %v8098, %v8144
          %8146 = vadd.xlane.f32.xlu0 %v8145
          %v8147 = vpop.xlane.xlu0 %8146
          %v8148 = vsel %vm928, %v8101, 0.0
          %v8149 = vadd.f32 %v8100, %v8148
          %8150 = vadd.xlane.f32.xlu0 %v8149
          %v8151 = vpop.xlane.xlu0 %8150
          %v8152 = vsel %vm928, %v8103, 0.0
          %v8153 = vadd.f32 %v8102, %v8152
          %8154 = vadd.xlane.f32.xlu0 %v8153
          %v8155 = vpop.xlane.xlu0 %8154
          %v8156 = vsel %vm928, %v8105, 0.0
          %v8157 = vadd.f32 %v8104, %v8156
          %8158 = vadd.xlane.f32.xlu0 %v8157
          %v8159 = vpop.xlane.xlu0 %8158
          %v8160 = vsel %vm928, %v8107, 0.0
          %v8161 = vadd.f32 %v8106, %v8160
          %8162 = vadd.xlane.f32.xlu0 %v8161
          %v8163 = vpop.xlane.xlu0 %8162
          %v8164 = vsel %vm928, %v8109, 0.0
          %v8165 = vadd.f32 %v8108, %v8164
          %8166 = vadd.xlane.f32.xlu0 %v8165
          %v8167 = vpop.xlane.xlu0 %8166
          %v8168 = vsel %vm928, %v8111, 0.0
          %v8169 = vadd.f32 %v8110, %v8168
          %8170 = vadd.xlane.f32.xlu0 %v8169
          %v8171 = vpop.xlane.xlu0 %8170
          %v8172 = vsel %vm928, %v8113, 0.0
          %v8173 = vadd.f32 %v8112, %v8172
          %8174 = vadd.xlane.f32.xlu0 %v8173
          %v8175 = vpop.xlane.xlu0 %8174
          %v8176 = vsel %vm928, %v8115, 0.0
          %v8177 = vadd.f32 %v8114, %v8176
          %8178 = vadd.xlane.f32.xlu0 %v8177
          %v8179 = vpop.xlane.xlu0 %8178
          %v8180 = vmul.f32 %v8119, %v993
          %v8181 = vmul.f32 %v8123, %v993
          %v8182 = vmul.f32 %v8127, %v993
          %v8183 = vmul.f32 %v8131, %v993
          %v8184 = vmul.f32 %v8135, %v993
          %v8185 = vmul.f32 %v8139, %v993
          %v8186 = vmul.f32 %v8143, %v993
          %v8187 = vmul.f32 %v8147, %v993
          %v8188 = vmul.f32 %v8151, %v993
          %v8189 = vmul.f32 %v8155, %v993
          %v8190 = vmul.f32 %v8159, %v993
          %v8191 = vmul.f32 %v8163, %v993
          %v8192 = vmul.f32 %v8167, %v993
          %v8193 = vmul.f32 %v8171, %v993
          %v8194 = vmul.f32 %v8175, %v993
          %v8195 = vmul.f32 %v8179, %v993
          %v8196 = vmul.f32 %v8068, %v8068
          %v8197 = vmul.f32 %v8069, %v8069
          %v8198 = vmul.f32 %v8070, %v8070
          %v8199 = vmul.f32 %v8071, %v8071
          %v8200 = vmul.f32 %v8072, %v8072
          %v8201 = vmul.f32 %v8073, %v8073
          %v8202 = vmul.f32 %v8074, %v8074
          %v8203 = vmul.f32 %v8075, %v8075
          %v8204 = vmul.f32 %v8076, %v8076
          %v8205 = vmul.f32 %v8077, %v8077
          %v8206 = vmul.f32 %v8078, %v8078
          %v8207 = vmul.f32 %v8079, %v8079
          %v8208 = vmul.f32 %v8080, %v8080
          %v8209 = vmul.f32 %v8081, %v8081
          %v8210 = vmul.f32 %v8082, %v8082
          %v8211 = vmul.f32 %v8083, %v8083
          %v8212 = vsub.f32 %v8180, %v8196
          %v8213 = vsub.f32 %v8181, %v8197
          %v8214 = vsub.f32 %v8182, %v8198
          %v8215 = vsub.f32 %v8183, %v8199
          %v8216 = vsub.f32 %v8184, %v8200
          %v8217 = vsub.f32 %v8185, %v8201
          %v8218 = vsub.f32 %v8186, %v8202
          %v8219 = vsub.f32 %v8187, %v8203
          %v8220 = vsub.f32 %v8188, %v8204
          %v8221 = vsub.f32 %v8189, %v8205
          %v8222 = vsub.f32 %v8190, %v8206
          %v8223 = vsub.f32 %v8191, %v8207
          %v8224 = vsub.f32 %v8192, %v8208
          %v8225 = vsub.f32 %v8193, %v8209
          %v8226 = vsub.f32 %v8194, %v8210
          %v8227 = vsub.f32 %v8195, %v8211
          %v8228 = vsub.f32 %v7934, %v8068
          %v8229 = vsub.f32 %v7935, %v8068
          %v8230 = vsub.f32 %v7936, %v8069
          %v8231 = vsub.f32 %v7937, %v8069
          %v8232 = vsub.f32 %v7938, %v8070
          %v8233 = vsub.f32 %v7939, %v8070
          %v8234 = vsub.f32 %v7940, %v8071
          %v8235 = vsub.f32 %v7941, %v8071
          %v8236 = vsub.f32 %v7942, %v8072
          %v8237 = vsub.f32 %v7943, %v8072
          %v8238 = vsub.f32 %v7944, %v8073
          %v8239 = vsub.f32 %v7945, %v8073
          %v8240 = vsub.f32 %v7946, %v8074
          %v8241 = vsub.f32 %v7947, %v8074
          %v8242 = vsub.f32 %v7948, %v8075
          %v8243 = vsub.f32 %v7949, %v8075
          %v8244 = vsub.f32 %v7950, %v8076
          %v8245 = vsub.f32 %v7951, %v8076
          %v8246 = vsub.f32 %v7952, %v8077
          %v8247 = vsub.f32 %v7953, %v8077
          %v8248 = vsub.f32 %v7954, %v8078
          %v8249 = vsub.f32 %v7955, %v8078
          %v8250 = vsub.f32 %v7956, %v8079
          %v8251 = vsub.f32 %v7957, %v8079
          %v8252 = vsub.f32 %v7958, %v8080
          %v8253 = vsub.f32 %v7959, %v8080
          %v8254 = vsub.f32 %v7960, %v8081
          %v8255 = vsub.f32 %v7961, %v8081
          %v8256 = vsub.f32 %v7962, %v8082
          %v8257 = vsub.f32 %v7963, %v8082
          %v8258 = vsub.f32 %v7964, %v8083
          %v8259 = vsub.f32 %v7965, %v8083
          %v8260 = vadd.f32 %v8212, 1e-05
          %v8261 = vadd.f32 %v8213, 1e-05
          %v8262 = vadd.f32 %v8214, 1e-05
          %v8263 = vadd.f32 %v8215, 1e-05
          %v8264 = vadd.f32 %v8216, 1e-05
          %v8265 = vadd.f32 %v8217, 1e-05
          %v8266 = vadd.f32 %v8218, 1e-05
          %v8267 = vadd.f32 %v8219, 1e-05
          %v8268 = vadd.f32 %v8220, 1e-05
          %v8269 = vadd.f32 %v8221, 1e-05
          %v8270 = vadd.f32 %v8222, 1e-05
          %v8271 = vadd.f32 %v8223, 1e-05
          %v8272 = vadd.f32 %v8224, 1e-05
          %v8273 = vadd.f32 %v8225, 1e-05
          %v8274 = vadd.f32 %v8226, 1e-05
          %v8275 = vadd.f32 %v8227, 1e-05
          %v8276 = vrsqrt.pop %v8260
          %v8277 = vrsqrt.pop %v8261
          %v8278 = vrsqrt.pop %v8262
          %v8279 = vrsqrt.pop %v8263
          %v8280 = vrsqrt.pop %v8264
          %v8281 = vrsqrt.pop %v8265
          %v8282 = vrsqrt.pop %v8266
          %v8283 = vrsqrt.pop %v8267
          %v8284 = vrsqrt.pop %v8268
          %v8285 = vrsqrt.pop %v8269
          %v8286 = vrsqrt.pop %v8270
          %v8287 = vrsqrt.pop %v8271
          %v8288 = vrsqrt.pop %v8272
          %v8289 = vrsqrt.pop %v8273
          %v8290 = vrsqrt.pop %v8274
          %v8291 = vrsqrt.pop %v8275
          %v8292 = vmul.f32 %v8228, %v8276
          %v8293 = vmul.f32 %v8229, %v8276
          %v8294 = vmul.f32 %v8230, %v8277
          %v8295 = vmul.f32 %v8231, %v8277
          %v8296 = vmul.f32 %v8232, %v8278
          %v8297 = vmul.f32 %v8233, %v8278
          %v8298 = vmul.f32 %v8234, %v8279
          %v8299 = vmul.f32 %v8235, %v8279
          %v8300 = vmul.f32 %v8236, %v8280
          %v8301 = vmul.f32 %v8237, %v8280
          %v8302 = vmul.f32 %v8238, %v8281
          %v8303 = vmul.f32 %v8239, %v8281
          %v8304 = vmul.f32 %v8240, %v8282
          %v8305 = vmul.f32 %v8241, %v8282
          %v8306 = vmul.f32 %v8242, %v8283
          %v8307 = vmul.f32 %v8243, %v8283
          %v8308 = vmul.f32 %v8244, %v8284
          %v8309 = vmul.f32 %v8245, %v8284
          %v8310 = vmul.f32 %v8246, %v8285
          %v8311 = vmul.f32 %v8247, %v8285
          %v8312 = vmul.f32 %v8248, %v8286
          %v8313 = vmul.f32 %v8249, %v8286
          %v8314 = vmul.f32 %v8250, %v8287
          %v8315 = vmul.f32 %v8251, %v8287
          %v8316 = vmul.f32 %v8252, %v8288
          %v8317 = vmul.f32 %v8253, %v8288
          %v8318 = vmul.f32 %v8254, %v8289
          %v8319 = vmul.f32 %v8255, %v8289
          %v8320 = vmul.f32 %v8256, %v8290
          %v8321 = vmul.f32 %v8257, %v8290
          %v8322 = vmul.f32 %v8258, %v8291
          %v8323 = vmul.f32 %v8259, %v8291
          %v8325 = vlaneseq
          %v8326 = vshrl.u32 %v8325, 7
          %v8327 = vsub.s32 0, %v8326
          %v8328 = vrot.slane %v8002, %v8327
          %v8329 = vlaneseq
          %v8330 = vshrl.u32 %v8329, 7
          %v8331 = vsub.s32 1, %v8330
          %v8332 = vrot.slane %v8002, %v8331
          %v8335 = vmul.f32 %v8292, %v8328
          %v8336 = vmul.f32 %v8293, %v8332
          %v8337 = vmul.f32 %v8294, %v8328
          %v8338 = vmul.f32 %v8295, %v8332
          %v8339 = vmul.f32 %v8296, %v8328
          %v8340 = vmul.f32 %v8297, %v8332
          %v8341 = vmul.f32 %v8298, %v8328
          %v8342 = vmul.f32 %v8299, %v8332
          %v8343 = vmul.f32 %v8300, %v8328
          %v8344 = vmul.f32 %v8301, %v8332
          %v8345 = vmul.f32 %v8302, %v8328
          %v8346 = vmul.f32 %v8303, %v8332
          %v8347 = vmul.f32 %v8304, %v8328
          %v8348 = vmul.f32 %v8305, %v8332
          %v8349 = vmul.f32 %v8306, %v8328
          %v8350 = vmul.f32 %v8307, %v8332
          %v8351 = vmul.f32 %v8308, %v8328
          %v8352 = vmul.f32 %v8309, %v8332
          %v8353 = vmul.f32 %v8310, %v8328
          %v8354 = vmul.f32 %v8311, %v8332
          %v8355 = vmul.f32 %v8312, %v8328
          %v8356 = vmul.f32 %v8313, %v8332
          %v8357 = vmul.f32 %v8314, %v8328
          %v8358 = vmul.f32 %v8315, %v8332
          %v8359 = vmul.f32 %v8316, %v8328
          %v8360 = vmul.f32 %v8317, %v8332
          %v8361 = vmul.f32 %v8318, %v8328
          %v8362 = vmul.f32 %v8319, %v8332
          %v8363 = vmul.f32 %v8320, %v8328
          %v8364 = vmul.f32 %v8321, %v8332
          %v8365 = vmul.f32 %v8322, %v8328
          %v8366 = vmul.f32 %v8323, %v8332
          %v8368 = vlaneseq
          %v8369 = vshrl.u32 %v8368, 7
          %v8370 = vsub.s32 0, %v8369
          %v8371 = vrot.slane %v8003, %v8370
          %v8372 = vlaneseq
          %v8373 = vshrl.u32 %v8372, 7
          %v8374 = vsub.s32 1, %v8373
          %v8375 = vrot.slane %v8003, %v8374
          %v8378 = vadd.f32 %v8335, %v8371
          %v8379 = vadd.f32 %v8336, %v8375
          %v8380 = vadd.f32 %v8337, %v8371
          %v8381 = vadd.f32 %v8338, %v8375
          %v8382 = vadd.f32 %v8339, %v8371
          %v8383 = vadd.f32 %v8340, %v8375
          %v8384 = vadd.f32 %v8341, %v8371
          %v8385 = vadd.f32 %v8342, %v8375
          %v8386 = vadd.f32 %v8343, %v8371
          %v8387 = vadd.f32 %v8344, %v8375
          %v8388 = vadd.f32 %v8345, %v8371
          %v8389 = vadd.f32 %v8346, %v8375
          %v8390 = vadd.f32 %v8347, %v8371
          %v8391 = vadd.f32 %v8348, %v8375
          %v8392 = vadd.f32 %v8349, %v8371
          %v8393 = vadd.f32 %v8350, %v8375
          %v8394 = vadd.f32 %v8351, %v8371
          %v8395 = vadd.f32 %v8352, %v8375
          %v8396 = vadd.f32 %v8353, %v8371
          %v8397 = vadd.f32 %v8354, %v8375
          %v8398 = vadd.f32 %v8355, %v8371
          %v8399 = vadd.f32 %v8356, %v8375
          %v8400 = vadd.f32 %v8357, %v8371
          %v8401 = vadd.f32 %v8358, %v8375
          %v8402 = vadd.f32 %v8359, %v8371
          %v8403 = vadd.f32 %v8360, %v8375
          %v8404 = vadd.f32 %v8361, %v8371
          %v8405 = vadd.f32 %v8362, %v8375
          %v8406 = vadd.f32 %v8363, %v8371
          %v8407 = vadd.f32 %v8364, %v8375
          %v8408 = vadd.f32 %v8365, %v8371
          %v8409 = vadd.f32 %v8366, %v8375
          %v8410 = vpack.c.bf16 %v8380, %v8378
          %v8411 = vpack.c.bf16 %v8381, %v8379
          %v8412 = vpack.c.bf16 %v8384, %v8382
          %v8413 = vpack.c.bf16 %v8385, %v8383
          %v8414 = vpack.c.bf16 %v8388, %v8386
          %v8415 = vpack.c.bf16 %v8389, %v8387
          %v8416 = vpack.c.bf16 %v8392, %v8390
          %v8417 = vpack.c.bf16 %v8393, %v8391
          %v8418 = vpack.c.bf16 %v8396, %v8394
          %v8419 = vpack.c.bf16 %v8397, %v8395
          %v8420 = vpack.c.bf16 %v8400, %v8398
          %v8421 = vpack.c.bf16 %v8401, %v8399
          %v8422 = vpack.c.bf16 %v8404, %v8402
          %v8423 = vpack.c.bf16 %v8405, %v8403
          %v8424 = vpack.c.bf16 %v8408, %v8406
          %v8425 = vpack.c.bf16 %v8409, %v8407
          %v8426 = vld [vmem:[%s16] sm:$0xf]
          %v8427 = vld [vmem:[%s16 + $0x4] sm:$0xf]
          %v8428 = vld [vmem:[%s16 + $0x8] sm:$0xf]
          %v8429 = vld [vmem:[%s16 + $0xc] sm:$0xf]
          %v8430 = vld [vmem:[%s16 + $0x10] sm:$0xf]
          %v8431 = vld [vmem:[%s16 + $0x14] sm:$0xf]
          %v8432 = vld [vmem:[%s16 + $0x18] sm:$0xf]
          %v8433 = vld [vmem:[%s16 + $0x1c] sm:$0xf]
          %v8434 = vld [vmem:[%s16 + $0x20] sm:$0xf]
          %v8435 = vld [vmem:[%s16 + $0x24] sm:$0xf]
          %v8436 = vld [vmem:[%s16 + $0x28] sm:$0xf]
          %v8437 = vld [vmem:[%s16 + $0x2c] sm:$0xf]
          %v8438 = vld [vmem:[%s16 + $0x30] sm:$0xf]
          %v8439 = vld [vmem:[%s16 + $0x34] sm:$0xf]
          %v8440 = vld [vmem:[%s16 + $0x38] sm:$0xf]
          %v8441 = vld [vmem:[%s16 + $0x3c] sm:$0xf]
          %v8442 = vld [vmem:[%s16 + $0x40] sm:$0xf]
          %v8443 = vld [vmem:[%s16 + $0x44] sm:$0xf]
          %v8444 = vld [vmem:[%s16 + $0x48] sm:$0xf]
          %v8445 = vld [vmem:[%s16 + $0x4c] sm:$0x3]
          %v8446 = vld [vmem:[%s17] sm:$0x1]
          %v8448 = vlaneseq
          %v8449 = vshrl.u32 %v8448, 7
          %v8450 = vsub.s32 0, %v8449
          %v8451 = vrot.slane %v8446, %v8450
          %v8473 = vunpack.c.l.b16 %v8426
          %v8474 = vunpack.c.l.b16 %v8427
          %v8475 = vunpack.c.l.b16 %v8428
          %v8476 = vunpack.c.l.b16 %v8429
          %v8477 = vunpack.c.l.b16 %v8430
          %v8478 = vunpack.c.l.b16 %v8431
          %v8479 = vunpack.c.l.b16 %v8432
          %v8480 = vunpack.c.l.b16 %v8433
          %v8481 = vunpack.c.l.b16 %v8434
          %v8482 = vunpack.c.l.b16 %v8435
          %v8483 = vunpack.c.l.b16 %v8436
          %v8484 = vunpack.c.l.b16 %v8437
          %v8485 = vunpack.c.l.b16 %v8438
          %v8486 = vunpack.c.l.b16 %v8439
          %v8487 = vunpack.c.l.b16 %v8440
          %v8488 = vunpack.c.l.b16 %v8441
          %v8489 = vunpack.c.l.b16 %v8442
          %v8490 = vunpack.c.l.b16 %v8443
          %v8491 = vunpack.c.l.b16 %v8444
          %v8492 = vunpack.c.l.b16 %v8445
          %v8493 = vpack.c.b16 %v8474, %v8473
          %v8494 = vpack.c.b16 %v8476, %v8475
          %v8495 = vpack.c.b16 %v8478, %v8477
          %v8496 = vpack.c.b16 %v8480, %v8479
          %v8497 = vpack.c.b16 %v8482, %v8481
          %v8498 = vpack.c.b16 %v8484, %v8483
          %v8499 = vpack.c.b16 %v8486, %v8485
          %v8500 = vpack.c.b16 %v8488, %v8487
          %v8501 = vpack.c.b16 %v8490, %v8489
          %v8502 = vpack.c.b16 %v8492, %v8491
          %v8513 = vsel %vm928, %v8411, 0
          %v8516 = vsel %vm928, %v8413, 0
          %v8519 = vsel %vm928, %v8415, 0
          %v8522 = vsel %vm928, %v8417, 0
          %v8525 = vsel %vm928, %v8419, 0
          %v8528 = vsel %vm928, %v8421, 0
          %v8531 = vsel %vm928, %v8423, 0
          %v8534 = vsel %vm928, %v8425, 0
          %v8537 = vsel %vm1762, %v8502, 0
          %8539 = vmatprep.subr.bf16.mxu0 0
          %8540 = vmatpush1.bf16.msra.mxu0 %v8493
          %8541 = vmatprep.subr.bf16.mxu0 0
          %8542 = vmatpush1.bf16.msra.mxu0 %v8494
          %8543 = vmatprep.subr.bf16.mxu0 0
          %8544 = vmatpush1.bf16.msra.mxu0 %v8495
          %8545 = vmatprep.subr.bf16.mxu0 0
          %8546 = vmatpush1.bf16.msra.mxu0 %v8496
          %8547 = vmatprep.subr.bf16.mxu0 0
          %8548 = vmatpush1.bf16.msra.mxu0 %v8497
          %8549 = vmatprep.subr.bf16.mxu0 0
          %8550 = vmatpush1.bf16.msra.mxu0 %v8498
          %8551 = vmatprep.subr.bf16.mxu0 0
          %8552 = vmatpush1.bf16.msra.mxu0 %v8499
          %8553 = vmatprep.subr.bf16.mxu0 0
          %8554 = vmatpush1.bf16.msra.mxu0 %v8500
          %8555 = vmatprep.subr.bf16.mxu0 0
          %8556 = vmatpush1.bf16.msra.mxu0 %v8501
          %8557 = vmatprep.subr.bf16.mxu0 0
          %8558 = vmatpush1.bf16.msra.mxu0 %v8537
          %8559 = vmatprep.subr.bf16.mxu0 0
          %8560 = vmatpush1.bf16.msra.mxu0 0
          %8561 = vmatprep.subr.bf16.mxu0 0
          %8562 = vmatpush1.bf16.msra.mxu0 0
          %8563 = vmatprep.subr.bf16.mxu0 0
          %8564 = vmatpush1.bf16.msra.mxu0 0
          %8565 = vmatprep.subr.bf16.mxu0 0
          %8566 = vmatpush1.bf16.msra.mxu0 0
          %8567 = vmatprep.subr.bf16.mxu0 0
          %8568 = vmatpush1.bf16.msra.mxu0 0
          %8569 = vmatprep.subr.bf16.mxu0 0
          %8570 = vmatpush1.bf16.msra.mxu0 0
          %8571 = vmatprep.mubr.bf16.mxu0 %v8513
          %8572 = vmatmul.mubr.bf16.gmra.mrb[0].mxu0 %v8410
          %v8573 = vpop.f32.mrb[0].mxu0
          %v8574 = vadd.f32 %v8451, %v8573
          %v8575 = vpop.f32.mrb[0].mxu0
          %v8576 = vpop.f32.mrb[0].mxu0
          %v8577 = vadd.f32 %v8451, %v8576
          %v8578 = vpop.f32.mrb[0].mxu0
          %8579 = vmatprep.mubr.bf16.mxu0 %v8516
          %8580 = vmatmul.mubr.bf16.gmra.mrb[0].mxu0 %v8412
          %v8581 = vpop.f32.mrb[0].mxu0
          %v8582 = vadd.f32 %v8451, %v8581
          %v8583 = vpop.f32.mrb[0].mxu0
          %v8584 = vpop.f32.mrb[0].mxu0
          %v8585 = vadd.f32 %v8451, %v8584
          %v8586 = vpop.f32.mrb[0].mxu0
          %8587 = vmatprep.mubr.bf16.mxu0 %v8519
          %8588 = vmatmul.mubr.bf16.gmra.mrb[0].mxu0 %v8414
          %v8589 = vpop.f32.mrb[0].mxu0
          %v8590 = vadd.f32 %v8451, %v8589
          %v8591 = vpop.f32.mrb[0].mxu0
          %v8592 = vpop.f32.mrb[0].mxu0
          %v8593 = vadd.f32 %v8451, %v8592
          %v8594 = vpop.f32.mrb[0].mxu0
          %8595 = vmatprep.mubr.bf16.mxu0 %v8522
          %8596 = vmatmul.mubr.bf16.gmra.mrb[0].mxu0 %v8416
          %v8597 = vpop.f32.mrb[0].mxu0
          %v8598 = vadd.f32 %v8451, %v8597
          %v8599 = vpop.f32.mrb[0].mxu0
          %v8600 = vpop.f32.mrb[0].mxu0
          %v8601 = vadd.f32 %v8451, %v8600
          %v8602 = vpop.f32.mrb[0].mxu0
          %8603 = vmatprep.mubr.bf16.mxu0 %v8525
          %8604 = vmatmul.mubr.bf16.gmra.mrb[0].mxu0 %v8418
          %v8605 = vpop.f32.mrb[0].mxu0
          %v8606 = vadd.f32 %v8451, %v8605
          %v8607 = vpop.f32.mrb[0].mxu0
          %v8608 = vpop.f32.mrb[0].mxu0
          %v8609 = vadd.f32 %v8451, %v8608
          %v8610 = vpop.f32.mrb[0].mxu0
          %8611 = vmatprep.mubr.bf16.mxu0 %v8528
          %8612 = vmatmul.mubr.bf16.gmra.mrb[0].mxu0 %v8420
          %v8613 = vpop.f32.mrb[0].mxu0
          %v8614 = vadd.f32 %v8451, %v8613
          %v8615 = vpop.f32.mrb[0].mxu0
          %v8616 = vpop.f32.mrb[0].mxu0
          %v8617 = vadd.f32 %v8451, %v8616
          %v8618 = vpop.f32.mrb[0].mxu0
          %8619 = vmatprep.mubr.bf16.mxu0 %v8531
          %8620 = vmatmul.mubr.bf16.gmra.mrb[0].mxu0 %v8422
          %v8621 = vpop.f32.mrb[0].mxu0
          %v8622 = vadd.f32 %v8451, %v8621
          %v8623 = vpop.f32.mrb[0].mxu0
          %v8624 = vpop.f32.mrb[0].mxu0
          %v8625 = vadd.f32 %v8451, %v8624
          %v8626 = vpop.f32.mrb[0].mxu0
          %8627 = vmatprep.mubr.bf16.mxu0 %v8534
          %8628 = vmatmul.mubr.bf16.gmra.mrb[0].mxu0 %v8424
          %v8629 = vpop.f32.mrb[0].mxu0
          %v8630 = vadd.f32 %v8451, %v8629
          %v8631 = vpop.f32.mrb[0].mxu0
          %v8632 = vpop.f32.mrb[0].mxu0
          %v8633 = vadd.f32 %v8451, %v8632
          %v8634 = vpop.f32.mrb[0].mxu0
          %8635 = vdwg.mxu0
          %8636 = vst [vmem:[%s747] sm:$0xff] %v8574
          %8637 = vst [vmem:[%s747 + $0x8] sm:$0xff] %v8577
          %8638 = vst [vmem:[%s747 + $0x10] sm:$0xff] %v8582
          %8639 = vst [vmem:[%s747 + $0x18] sm:$0xff] %v8585
          %8640 = vst [vmem:[%s747 + $0x20] sm:$0xff] %v8590
          %8641 = vst [vmem:[%s747 + $0x28] sm:$0xff] %v8593
          %8642 = vst [vmem:[%s747 + $0x30] sm:$0xff] %v8598
          %8643 = vst [vmem:[%s747 + $0x38] sm:$0xff] %v8601
          %8644 = vst [vmem:[%s747 + $0x40] sm:$0xff] %v8606
          %8645 = vst [vmem:[%s747 + $0x48] sm:$0xff] %v8609
          %8646 = vst [vmem:[%s747 + $0x50] sm:$0xff] %v8614
          %8647 = vst [vmem:[%s747 + $0x58] sm:$0xff] %v8617
          %8648 = vst [vmem:[%s747 + $0x60] sm:$0xff] %v8622
          %8649 = vst [vmem:[%s747 + $0x68] sm:$0xff] %v8625
          %8650 = vst [vmem:[%s747 + $0x70] sm:$0xff] %v8630
          %8651 = vst [vmem:[%s747 + $0x78] sm:$0xff] %v8633
        $region100: #{tpu_custom_call.1} parent=91 // pred_fallthru
          _
        %s8652 = sand.u32 %s495, 1
        %s8653 = scalar_lea.sflag [#allocation7], %s8652
        %s8654 = sand.u32 %s495, 1
        %s8655 = smul.addr %s8654, 128
        %s8656 = scalar_lea.vmem [#allocation6], %s8655
        // Predicated region
        $region101: #{tpu_custom_call.1} parent=91 // pred_check
          %p8657 = pneg %p505
        $region102: #{tpu_custom_call.1} parent=91 // pred_check_branch
          %8659 = sbr.rel (%p8657) target = $region104
        $region103: #{tpu_custom_call.1} parent=91 // pred_region
          %s8660 = smul.u32 16, %s36
          %s8662 = ssub.s32 2048, 2048
          %8663 = vsyncadd %s8653, %s8662
          %s8664 = smul.addr %s8660, 128
          %s8665 = scalar_lea.hbm %s18, %s8664
          %s8666 = sshll.u32 %s8656, 4
          %s8667 = int_to_ptr.vmem [resolvable:$true] %s8666
          %8672 = dma.vmem_to_hbm [thread:$0]  %s8667, 2048, %s8665, %s8653, 128, 128, 8
        $region104: #{tpu_custom_call.1} parent=91 // pred_fallthru
          _
      $region92: #{tpu_custom_call.1} parent=5 // pred_fallthru
        _
      %p8673 = scmp.le.s32.totalorder 2, %s27
      // Predicated region
      $region105: #{tpu_custom_call.1} parent=5 // pred_check
        %p8674 = pneg %p8673
      $region106: #{tpu_custom_call.1} parent=5 // pred_check_branch
        %8676 = sbr.rel (%p8674) target = $region108
      $region107: #{tpu_custom_call.1} parent=5 // pred_region
        %s8677 = ssub.s32 %s27, 2
        // Predicated region
        $region109: #{tpu_custom_call.1} parent=107 // pred_check
          %p8678 = pneg %p511
        $region110: #{tpu_custom_call.1} parent=107 // pred_check_branch
          %8680 = sbr.rel (%p8678) target = $region112
        $region111: #{tpu_custom_call.1} parent=107 // pred_region
          %s8681 = sand.u32 %s496, 1
          %s8682 = scalar_lea.sflag [#allocation7], %s8681
          %s8683 = sand.u32 %s496, 1
          %s8684 = smul.addr %s8683, 128
          %s8685 = scalar_lea.vmem [#allocation6], %s8684
          %8686 = dma.done %s8682, 2048
        $region112: #{tpu_custom_call.1} parent=107 // pred_fallthru
          _
      $region108: #{tpu_custom_call.1} parent=5 // pred_fallthru
        _
    $region6: #{tpu_custom_call.1} parent=1 // loop_footer
      %s31 = sadd.s32 1, %s27
    $region7: #{tpu_custom_call.1} parent=1 // loop_footer_branch
      %26 = sbr.rel target = $region3
    $region8: #{tpu_custom_call.1} parent=1 // loop_exit
      _
    %8687 = vsyncpa [#allocation7], 1
    %s8688 = scalar_lea.sflag [#allocation7], 1
    %8689 = vsyncpa %s8688, 1

</llo_original>
